<compile_context>
chip_gen: v7x
topology: tpu7x:2x2x1
jax: 0.10.0
libtpu: 0.0.40
codegen_flags: <defaults>
</compile_context>

<pallas_src>
import functools

import jax
import jax.numpy as jnp
from jax.experimental import pallas as pl
from jax.experimental.pallas import tpu as pltpu


# ------------------------------ fused kernel ------------------------------- #
def _espcn_kernel(x_ref, w1_ref, b1_ref, w2_ref, b2_ref, w3_ref, b3_ref,
                  o_ref,
                  xp_s, a1p_s, a2p_s, p1_s, p2_s, p3_s):
    """Fused ESPCN forward for one batch element.

    x_ref : (1, H, W, Cin) f32
    wN_ref: (KN*KN*CinN, CoutN) bf16   (im2col matmul form)
    bN_ref: (1, CoutN) f32
    o_ref : (1, H*W, Cout3) f32        (tanh already applied; pixel-shuffle
                                        is a permutation done in the wrapper)
    *_s   : VMEM scratch (padded activations + im2col patch buffers)
    """
    _, H, W, _ = x_ref.shape
    n1 = w1_ref.shape[1]
    n2 = w2_ref.shape[1]

    def conv(interior, pad_s, patch_s, w_ref, b_ref, K):
        # 'same' KxK conv as one deep-K MXU matmul (bf16 in, f32 accumulate).
        Ci = interior.shape[-1]
        p = K // 2
        # in-kernel zero padding (VMEM scratch, no HBM traffic)
        pad_s[...] = jnp.zeros_like(pad_s)
        pad_s[p:p + H, p:p + W, :] = interior
        # im2col: copy the KxK shifted taps into the patch buffer
        for kh in range(K):
            for kw in range(K):
                t = kh * K + kw
                patch_s[:, :, t * Ci:(t + 1) * Ci] = \
                    pad_s[kh:kh + H, kw:kw + W, :]
        patches = patch_s[...].reshape(H * W, K * K * Ci).astype(jnp.bfloat16)
        y = jnp.dot(patches, w_ref[...],
                    preferred_element_type=jnp.float32)      # (H*W, Cout) f32
        return y + b_ref[...]                                # bias broadcast

    x = x_ref[0]                                             # (H, W, Cin) f32
    a1 = jnp.tanh(conv(x, xp_s, p1_s, w1_ref, b1_ref, 5))                # layer1
    a2 = jnp.tanh(conv(a1.reshape(H, W, n1), a1p_s, p2_s, w2_ref, b2_ref, 3))  # layer2
    y3 = jnp.tanh(conv(a2.reshape(H, W, n2), a2p_s, p3_s, w3_ref, b3_ref, 3))  # upsample conv + act3 (fused)
    o_ref[0] = y3


def _espcn_pallas(x_nhwc, kparams):
    """Run the fused kernel. x_nhwc: (N, H, W, Cin) f32 -> (N, H*W, Cout3) f32."""
    w1, b1, w2, b2, w3, b3 = kparams
    N, H, W, cin = x_nhwc.shape
    n1, n2, c3 = w1.shape[1], w2.shape[1], w3.shape[1]
    K1, K2, K3 = 5, 3, 3

    grid_spec = pltpu.PrefetchScalarGridSpec(
        num_scalar_prefetch=0,
        grid=(N,),
        in_specs=[
            pl.BlockSpec((1, H, W, cin), lambda n: (n, 0, 0, 0)),
            pl.BlockSpec((K1 * K1 * cin, n1), lambda n: (0, 0)),
            pl.BlockSpec((1, n1), lambda n: (0, 0)),
            pl.BlockSpec((K2 * K2 * n1, n2), lambda n: (0, 0)),
            pl.BlockSpec((1, n2), lambda n: (0, 0)),
            pl.BlockSpec((K3 * K3 * n2, c3), lambda n: (0, 0)),
            pl.BlockSpec((1, c3), lambda n: (0, 0)),
        ],
        out_specs=pl.BlockSpec((1, H * W, c3), lambda n: (n, 0, 0)),
        scratch_shapes=[
            # zero-padded activations ('same' padding done in VMEM)
            pltpu.VMEM((H + K1 - 1, W + K1 - 1, cin), jnp.float32),
            pltpu.VMEM((H + K2 - 1, W + K2 - 1, n1), jnp.float32),
            pltpu.VMEM((H + K3 - 1, W + K3 - 1, n2), jnp.float32),
            # im2col patch buffers (deep-K matmul LHS)
            pltpu.VMEM((H, W, K1 * K1 * cin), jnp.float32),
            pltpu.VMEM((H, W, K2 * K2 * n1), jnp.float32),
            pltpu.VMEM((H, W, K3 * K3 * n2), jnp.float32),
        ],
    )
    return pl.pallas_call(
        _espcn_kernel,
        out_shape=jax.ShapeDtypeStruct((N, H * W, c3), jnp.float32),
        grid_spec=grid_spec,
        compiler_params=pltpu.CompilerParams(
            dimension_semantics=("parallel",)),
    )(x_nhwc, w1, b1, w2, b2, w3, b3)


# ------------------------------ params & glue ------------------------------ #
def init_conv_params(key, kh, kw, cin, cout):
    """PyTorch-Conv2d-style uniform(-1/sqrt(fan_in), 1/sqrt(fan_in)) init.
    Weights stored as (KH, KW, Cin, Cout) (HWIO)."""
    w_key, b_key = jax.random.split(key)
    fan_in = cin * kh * kw
    bound = 1.0 / (fan_in ** 0.5)
    w = jax.random.uniform(w_key, (kh, kw, cin, cout), jnp.float32,
                           minval=-bound, maxval=bound)
    b = jax.random.uniform(b_key, (cout,), jnp.float32,
                           minval=-bound, maxval=bound)
    return w, b


def make_espcn_params(key, in_channels, out_channels, upscale, n1=64, n2=32):
    k1, k2, k3 = jax.random.split(key, 3)
    w1, b1 = init_conv_params(k1, 5, 5, in_channels, n1)
    w2, b2 = init_conv_params(k2, 3, 3, n1, n2)
    w3, b3 = init_conv_params(k3, 3, 3, n2, out_channels * upscale * upscale)
    return (w1, b1, w2, b2, w3, b3)


def prepare_kernel_params(params):
    """Convert (KH,KW,Cin,Cout) f32 conv params to the kernel's matmul form
    (done once, outside the hot path): bf16 (KH*KW*Cin, Cout) weights and
    f32 (1, Cout) biases."""
    out = []
    for w, b in zip(params[0::2], params[1::2]):
        kh, kw, cin, cout = w.shape
        out.append(w.reshape(kh * kw * cin, cout).astype(jnp.bfloat16))
        out.append(b.reshape(1, cout).astype(jnp.float32))
    return tuple(out)


@functools.partial(jax.jit, static_argnames=("out_channels", "upscale"))
def espcn_forward(x_nchw, kparams, *, out_channels, upscale):
    """Forward pass matching the PyTorch ESPCN (act='tanh', pixelshuffle).
    Input/output are NCHW like PyTorch."""
    N, _, H, W = x_nchw.shape
    x = jnp.transpose(x_nchw, (0, 2, 3, 1))          # NCHW -> NHWC (channels in lanes)
    y = _espcn_pallas(x, kparams)                    # (N, H*W, C*r*r), tanh fused
    r = upscale
    y = y.reshape(N, H, W, out_channels, r, r)       # n, h, w, c, i, j
    y = jnp.transpose(y, (0, 3, 1, 4, 2, 5))         # n, c, h, i, w, j
    return y.reshape(N, out_channels, H * r, W * r)  # PixelShuffle, NCHW out


def espcn_reference(x_nchw, params, out_channels, upscale):
    """Pure-JAX f32 reference (XLA convs) for validation."""
    w1, b1, w2, b2, w3, b3 = params
    x = jnp.transpose(x_nchw, (0, 2, 3, 1))

    def conv(a, w, b):
        y = jax.lax.conv_general_dilated(
            a, w, window_strides=(1, 1), padding="SAME",
            dimension_numbers=("NHWC", "HWIO", "NHWC"))
        return y + b

    a = jnp.tanh(conv(x, w1, b1))
    a = jnp.tanh(conv(a, w2, b2))
    a = jnp.tanh(conv(a, w3, b3))
    N, H, W, _ = a.shape
    r = upscale
    a = a.reshape(N, H, W, out_channels, r, r)
    a = jnp.transpose(a, (0, 3, 1, 4, 2, 5))
    return a.reshape(N, out_channels, H * r, W * r)


# --------------------------------- main ------------------------------------ #
if __name__ == "__main__":
    in_channels, out_channels, upscale = 3, 3, 2
    N, H, W = 2, 16, 16

    key = jax.random.PRNGKey(0)
    x_key, p_key = jax.random.split(key)
    x = jax.random.normal(x_key, (N, in_channels, H, W), jnp.float32)

    params = make_espcn_params(p_key, in_channels, out_channels, upscale)
    kparams = prepare_kernel_params(params)

    out = espcn_forward(x, kparams, out_channels=out_channels, upscale=upscale)
    out = jax.block_until_ready(out)

    expected_shape = (N, out_channels, H * upscale, W * upscale)
    assert out.shape == expected_shape, (out.shape, expected_shape)
    assert bool(jnp.all(jnp.isfinite(out)))

    # Validate against the pure-JAX f32 reference (bf16 MXU inputs -> tolerance).
    ref = espcn_reference(x, params, out_channels, upscale)
    max_err = float(jnp.max(jnp.abs(out - ref)))
    assert max_err < 5e-2, f"max abs error vs reference: {max_err}"

    print("KERNEL_OK")
</pallas_src>

<mosaic_0001>
module attributes {stable_mosaic.version = 11 : i64} {
  func.func @_espcn_kernel(%arg0: i32, %arg1: memref<1x16x16x3xf32, #tpu.memory_space<vmem>>, %arg2: memref<75x64xbf16, #tpu.memory_space<vmem>>, %arg3: memref<1x64xf32, #tpu.memory_space<vmem>>, %arg4: memref<576x32xbf16, #tpu.memory_space<vmem>>, %arg5: memref<1x32xf32, #tpu.memory_space<vmem>>, %arg6: memref<288x12xbf16, #tpu.memory_space<vmem>>, %arg7: memref<1x12xf32, #tpu.memory_space<vmem>>, %arg8: memref<1x256x12xf32, #tpu.memory_space<vmem>>, %arg9: memref<20x20x3xf32, #tpu.memory_space<vmem>>, %arg10: memref<18x18x64xf32, #tpu.memory_space<vmem>>, %arg11: memref<18x18x32xf32, #tpu.memory_space<vmem>>, %arg12: memref<16x16x75xf32, #tpu.memory_space<vmem>>, %arg13: memref<16x16x576xf32, #tpu.memory_space<vmem>>, %arg14: memref<16x16x288xf32, #tpu.memory_space<vmem>>) attributes {dimension_semantics = [#tpu.dimension_semantics<parallel>], iteration_bounds = array<i64: 2>, scalar_prefetch = 0 : i64, scratch_operands = 6 : i64, tpu.core_type = #tpu.core_type<tc>, window_params = [{transform_indices = @transform_0, window_bounds = array<i64: 1, 16, 16, 3>}, {pipeline_mode = #tpu.pipeline_mode<synchronous>, transform_indices = @transform_1, window_bounds = array<i64: 75, 64>}, {pipeline_mode = #tpu.pipeline_mode<synchronous>, transform_indices = @transform_2, window_bounds = array<i64: 1, 64>}, {pipeline_mode = #tpu.pipeline_mode<synchronous>, transform_indices = @transform_3, window_bounds = array<i64: 576, 32>}, {pipeline_mode = #tpu.pipeline_mode<synchronous>, transform_indices = @transform_4, window_bounds = array<i64: 1, 32>}, {pipeline_mode = #tpu.pipeline_mode<synchronous>, transform_indices = @transform_5, window_bounds = array<i64: 288, 12>}, {pipeline_mode = #tpu.pipeline_mode<synchronous>, transform_indices = @transform_6, window_bounds = array<i64: 1, 12>}, {transform_indices = @transform_7, window_bounds = array<i64: 1, 256, 12>}]} {
    %c0 = arith.constant 0 : index
    %c0_0 = arith.constant 0 : index
    %c0_1 = arith.constant 0 : index
    %c0_2 = arith.constant 0 : index
    %0 = vector.load %arg1[%c0, %c0_0, %c0_1, %c0_2] : memref<1x16x16x3xf32, #tpu.memory_space<vmem>>, vector<1x16x16x3xf32>
    %1 = vector.shape_cast %0 : vector<1x16x16x3xf32> to vector<16x16x3xf32>
    %cst = arith.constant 0.000000e+00 : f32
    %2 = vector.broadcast %cst : f32 to vector<20x20x3xf32>
    %c0_3 = arith.constant 0 : index
    %c0_4 = arith.constant 0 : index
    %c0_5 = arith.constant 0 : index
    %3 = vector.load %arg9[%c0_3, %c0_4, %c0_5] : memref<20x20x3xf32, #tpu.memory_space<vmem>>, vector<20x20x3xf32>
    tpu.vector_store %arg9[%c0_3, %c0_4, %c0_5], %2 {strides = array<i32>} : memref<20x20x3xf32, #tpu.memory_space<vmem>>, vector<20x20x3xf32>,
    %c2 = arith.constant 2 : index
    %c2_6 = arith.constant 2 : index
    %c0_7 = arith.constant 0 : index
    %4 = vector.load %arg9[%c2, %c2_6, %c0_7] : memref<20x20x3xf32, #tpu.memory_space<vmem>>, vector<16x16x3xf32>
    tpu.vector_store %arg9[%c2, %c2_6, %c0_7], %1 {strides = array<i32>} : memref<20x20x3xf32, #tpu.memory_space<vmem>>, vector<16x16x3xf32>,
    %c0_8 = arith.constant 0 : index
    %c0_9 = arith.constant 0 : index
    %c0_10 = arith.constant 0 : index
    %5 = vector.load %arg9[%c0_8, %c0_9, %c0_10] : memref<20x20x3xf32, #tpu.memory_space<vmem>>, vector<16x16x3xf32>
    %c0_11 = arith.constant 0 : index
    %c0_12 = arith.constant 0 : index
    %c0_13 = arith.constant 0 : index
    %6 = vector.load %arg12[%c0_11, %c0_12, %c0_13] : memref<16x16x75xf32, #tpu.memory_space<vmem>>, vector<16x16x3xf32>
    tpu.vector_store %arg12[%c0_11, %c0_12, %c0_13], %5 {strides = array<i32>} : memref<16x16x75xf32, #tpu.memory_space<vmem>>, vector<16x16x3xf32>,
    %c0_14 = arith.constant 0 : index
    %c1 = arith.constant 1 : index
    %c0_15 = arith.constant 0 : index
    %7 = vector.load %arg9[%c0_14, %c1, %c0_15] : memref<20x20x3xf32, #tpu.memory_space<vmem>>, vector<16x16x3xf32>
    %c0_16 = arith.constant 0 : index
    %c0_17 = arith.constant 0 : index
    %c3 = arith.constant 3 : index
    %8 = vector.load %arg12[%c0_16, %c0_17, %c3] : memref<16x16x75xf32, #tpu.memory_space<vmem>>, vector<16x16x3xf32>
    tpu.vector_store %arg12[%c0_16, %c0_17, %c3], %7 {strides = array<i32>} : memref<16x16x75xf32, #tpu.memory_space<vmem>>, vector<16x16x3xf32>,
    %c0_18 = arith.constant 0 : index
    %c2_19 = arith.constant 2 : index
    %c0_20 = arith.constant 0 : index
    %9 = vector.load %arg9[%c0_18, %c2_19, %c0_20] : memref<20x20x3xf32, #tpu.memory_space<vmem>>, vector<16x16x3xf32>
    %c0_21 = arith.constant 0 : index
    %c0_22 = arith.constant 0 : index
    %c6 = arith.constant 6 : index
    %10 = vector.load %arg12[%c0_21, %c0_22, %c6] : memref<16x16x75xf32, #tpu.memory_space<vmem>>, vector<16x16x3xf32>
    tpu.vector_store %arg12[%c0_21, %c0_22, %c6], %9 {strides = array<i32>} : memref<16x16x75xf32, #tpu.memory_space<vmem>>, vector<16x16x3xf32>,
    %c0_23 = arith.constant 0 : index
    %c3_24 = arith.constant 3 : index
    %c0_25 = arith.constant 0 : index
    %11 = vector.load %arg9[%c0_23, %c3_24, %c0_25] : memref<20x20x3xf32, #tpu.memory_space<vmem>>, vector<16x16x3xf32>
    %c0_26 = arith.constant 0 : index
    %c0_27 = arith.constant 0 : index
    %c9 = arith.constant 9 : index
    %12 = vector.load %arg12[%c0_26, %c0_27, %c9] : memref<16x16x75xf32, #tpu.memory_space<vmem>>, vector<16x16x3xf32>
    tpu.vector_store %arg12[%c0_26, %c0_27, %c9], %11 {strides = array<i32>} : memref<16x16x75xf32, #tpu.memory_space<vmem>>, vector<16x16x3xf32>,
    %c0_28 = arith.constant 0 : index
    %c4 = arith.constant 4 : index
    %c0_29 = arith.constant 0 : index
    %13 = vector.load %arg9[%c0_28, %c4, %c0_29] : memref<20x20x3xf32, #tpu.memory_space<vmem>>, vector<16x16x3xf32>
    %c0_30 = arith.constant 0 : index
    %c0_31 = arith.constant 0 : index
    %c12 = arith.constant 12 : index
    %14 = vector.load %arg12[%c0_30, %c0_31, %c12] : memref<16x16x75xf32, #tpu.memory_space<vmem>>, vector<16x16x3xf32>
    tpu.vector_store %arg12[%c0_30, %c0_31, %c12], %13 {strides = array<i32>} : memref<16x16x75xf32, #tpu.memory_space<vmem>>, vector<16x16x3xf32>,
    %c1_32 = arith.constant 1 : index
    %c0_33 = arith.constant 0 : index
    %c0_34 = arith.constant 0 : index
    %15 = vector.load %arg9[%c1_32, %c0_33, %c0_34] : memref<20x20x3xf32, #tpu.memory_space<vmem>>, vector<16x16x3xf32>
    %c0_35 = arith.constant 0 : index
    %c0_36 = arith.constant 0 : index
    %c15 = arith.constant 15 : index
    %16 = vector.load %arg12[%c0_35, %c0_36, %c15] : memref<16x16x75xf32, #tpu.memory_space<vmem>>, vector<16x16x3xf32>
    tpu.vector_store %arg12[%c0_35, %c0_36, %c15], %15 {strides = array<i32>} : memref<16x16x75xf32, #tpu.memory_space<vmem>>, vector<16x16x3xf32>,
    %c1_37 = arith.constant 1 : index
    %c1_38 = arith.constant 1 : index
    %c0_39 = arith.constant 0 : index
    %17 = vector.load %arg9[%c1_37, %c1_38, %c0_39] : memref<20x20x3xf32, #tpu.memory_space<vmem>>, vector<16x16x3xf32>
    %c0_40 = arith.constant 0 : index
    %c0_41 = arith.constant 0 : index
    %c18 = arith.constant 18 : index
    %18 = vector.load %arg12[%c0_40, %c0_41, %c18] : memref<16x16x75xf32, #tpu.memory_space<vmem>>, vector<16x16x3xf32>
    tpu.vector_store %arg12[%c0_40, %c0_41, %c18], %17 {strides = array<i32>} : memref<16x16x75xf32, #tpu.memory_space<vmem>>, vector<16x16x3xf32>,
    %c1_42 = arith.constant 1 : index
    %c2_43 = arith.constant 2 : index
    %c0_44 = arith.constant 0 : index
    %19 = vector.load %arg9[%c1_42, %c2_43, %c0_44] : memref<20x20x3xf32, #tpu.memory_space<vmem>>, vector<16x16x3xf32>
    %c0_45 = arith.constant 0 : index
    %c0_46 = arith.constant 0 : index
    %c21 = arith.constant 21 : index
    %20 = vector.load %arg12[%c0_45, %c0_46, %c21] : memref<16x16x75xf32, #tpu.memory_space<vmem>>, vector<16x16x3xf32>
    tpu.vector_store %arg12[%c0_45, %c0_46, %c21], %19 {strides = array<i32>} : memref<16x16x75xf32, #tpu.memory_space<vmem>>, vector<16x16x3xf32>,
    %c1_47 = arith.constant 1 : index
    %c3_48 = arith.constant 3 : index
    %c0_49 = arith.constant 0 : index
    %21 = vector.load %arg9[%c1_47, %c3_48, %c0_49] : memref<20x20x3xf32, #tpu.memory_space<vmem>>, vector<16x16x3xf32>
    %c0_50 = arith.constant 0 : index
    %c0_51 = arith.constant 0 : index
    %c24 = arith.constant 24 : index
    %22 = vector.load %arg12[%c0_50, %c0_51, %c24] : memref<16x16x75xf32, #tpu.memory_space<vmem>>, vector<16x16x3xf32>
    tpu.vector_store %arg12[%c0_50, %c0_51, %c24], %21 {strides = array<i32>} : memref<16x16x75xf32, #tpu.memory_space<vmem>>, vector<16x16x3xf32>,
    %c1_52 = arith.constant 1 : index
    %c4_53 = arith.constant 4 : index
    %c0_54 = arith.constant 0 : index
    %23 = vector.load %arg9[%c1_52, %c4_53, %c0_54] : memref<20x20x3xf32, #tpu.memory_space<vmem>>, vector<16x16x3xf32>
    %c0_55 = arith.constant 0 : index
    %c0_56 = arith.constant 0 : index
    %c27 = arith.constant 27 : index
    %24 = vector.load %arg12[%c0_55, %c0_56, %c27] : memref<16x16x75xf32, #tpu.memory_space<vmem>>, vector<16x16x3xf32>
    tpu.vector_store %arg12[%c0_55, %c0_56, %c27], %23 {strides = array<i32>} : memref<16x16x75xf32, #tpu.memory_space<vmem>>, vector<16x16x3xf32>,
    %c2_57 = arith.constant 2 : index
    %c0_58 = arith.constant 0 : index
    %c0_59 = arith.constant 0 : index
    %25 = vector.load %arg9[%c2_57, %c0_58, %c0_59] : memref<20x20x3xf32, #tpu.memory_space<vmem>>, vector<16x16x3xf32>
    %c0_60 = arith.constant 0 : index
    %c0_61 = arith.constant 0 : index
    %c30 = arith.constant 30 : index
    %26 = vector.load %arg12[%c0_60, %c0_61, %c30] : memref<16x16x75xf32, #tpu.memory_space<vmem>>, vector<16x16x3xf32>
    tpu.vector_store %arg12[%c0_60, %c0_61, %c30], %25 {strides = array<i32>} : memref<16x16x75xf32, #tpu.memory_space<vmem>>, vector<16x16x3xf32>,
    %c2_62 = arith.constant 2 : index
    %c1_63 = arith.constant 1 : index
    %c0_64 = arith.constant 0 : index
    %27 = vector.load %arg9[%c2_62, %c1_63, %c0_64] : memref<20x20x3xf32, #tpu.memory_space<vmem>>, vector<16x16x3xf32>
    %c0_65 = arith.constant 0 : index
    %c0_66 = arith.constant 0 : index
    %c33 = arith.constant 33 : index
    %28 = vector.load %arg12[%c0_65, %c0_66, %c33] : memref<16x16x75xf32, #tpu.memory_space<vmem>>, vector<16x16x3xf32>
    tpu.vector_store %arg12[%c0_65, %c0_66, %c33], %27 {strides = array<i32>} : memref<16x16x75xf32, #tpu.memory_space<vmem>>, vector<16x16x3xf32>,
    %c2_67 = arith.constant 2 : index
    %c2_68 = arith.constant 2 : index
    %c0_69 = arith.constant 0 : index
    %29 = vector.load %arg9[%c2_67, %c2_68, %c0_69] : memref<20x20x3xf32, #tpu.memory_space<vmem>>, vector<16x16x3xf32>
    %c0_70 = arith.constant 0 : index
    %c0_71 = arith.constant 0 : index
    %c36 = arith.constant 36 : index
    %30 = vector.load %arg12[%c0_70, %c0_71, %c36] : memref<16x16x75xf32, #tpu.memory_space<vmem>>, vector<16x16x3xf32>
    tpu.vector_store %arg12[%c0_70, %c0_71, %c36], %29 {strides = array<i32>} : memref<16x16x75xf32, #tpu.memory_space<vmem>>, vector<16x16x3xf32>,
    %c2_72 = arith.constant 2 : index
    %c3_73 = arith.constant 3 : index
    %c0_74 = arith.constant 0 : index
    %31 = vector.load %arg9[%c2_72, %c3_73, %c0_74] : memref<20x20x3xf32, #tpu.memory_space<vmem>>, vector<16x16x3xf32>
    %c0_75 = arith.constant 0 : index
    %c0_76 = arith.constant 0 : index
    %c39 = arith.constant 39 : index
    %32 = vector.load %arg12[%c0_75, %c0_76, %c39] : memref<16x16x75xf32, #tpu.memory_space<vmem>>, vector<16x16x3xf32>
    tpu.vector_store %arg12[%c0_75, %c0_76, %c39], %31 {strides = array<i32>} : memref<16x16x75xf32, #tpu.memory_space<vmem>>, vector<16x16x3xf32>,
    %c2_77 = arith.constant 2 : index
    %c4_78 = arith.constant 4 : index
    %c0_79 = arith.constant 0 : index
    %33 = vector.load %arg9[%c2_77, %c4_78, %c0_79] : memref<20x20x3xf32, #tpu.memory_space<vmem>>, vector<16x16x3xf32>
    %c0_80 = arith.constant 0 : index
    %c0_81 = arith.constant 0 : index
    %c42 = arith.constant 42 : index
    %34 = vector.load %arg12[%c0_80, %c0_81, %c42] : memref<16x16x75xf32, #tpu.memory_space<vmem>>, vector<16x16x3xf32>
    tpu.vector_store %arg12[%c0_80, %c0_81, %c42], %33 {strides = array<i32>} : memref<16x16x75xf32, #tpu.memory_space<vmem>>, vector<16x16x3xf32>,
    %c3_82 = arith.constant 3 : index
    %c0_83 = arith.constant 0 : index
    %c0_84 = arith.constant 0 : index
    %35 = vector.load %arg9[%c3_82, %c0_83, %c0_84] : memref<20x20x3xf32, #tpu.memory_space<vmem>>, vector<16x16x3xf32>
    %c0_85 = arith.constant 0 : index
    %c0_86 = arith.constant 0 : index
    %c45 = arith.constant 45 : index
    %36 = vector.load %arg12[%c0_85, %c0_86, %c45] : memref<16x16x75xf32, #tpu.memory_space<vmem>>, vector<16x16x3xf32>
    tpu.vector_store %arg12[%c0_85, %c0_86, %c45], %35 {strides = array<i32>} : memref<16x16x75xf32, #tpu.memory_space<vmem>>, vector<16x16x3xf32>,
    %c3_87 = arith.constant 3 : index
    %c1_88 = arith.constant 1 : index
    %c0_89 = arith.constant 0 : index
    %37 = vector.load %arg9[%c3_87, %c1_88, %c0_89] : memref<20x20x3xf32, #tpu.memory_space<vmem>>, vector<16x16x3xf32>
    %c0_90 = arith.constant 0 : index
    %c0_91 = arith.constant 0 : index
    %c48 = arith.constant 48 : index
    %38 = vector.load %arg12[%c0_90, %c0_91, %c48] : memref<16x16x75xf32, #tpu.memory_space<vmem>>, vector<16x16x3xf32>
    tpu.vector_store %arg12[%c0_90, %c0_91, %c48], %37 {strides = array<i32>} : memref<16x16x75xf32, #tpu.memory_space<vmem>>, vector<16x16x3xf32>,
    %c3_92 = arith.constant 3 : index
    %c2_93 = arith.constant 2 : index
    %c0_94 = arith.constant 0 : index
    %39 = vector.load %arg9[%c3_92, %c2_93, %c0_94] : memref<20x20x3xf32, #tpu.memory_space<vmem>>, vector<16x16x3xf32>
    %c0_95 = arith.constant 0 : index
    %c0_96 = arith.constant 0 : index
    %c51 = arith.constant 51 : index
    %40 = vector.load %arg12[%c0_95, %c0_96, %c51] : memref<16x16x75xf32, #tpu.memory_space<vmem>>, vector<16x16x3xf32>
    tpu.vector_store %arg12[%c0_95, %c0_96, %c51], %39 {strides = array<i32>} : memref<16x16x75xf32, #tpu.memory_space<vmem>>, vector<16x16x3xf32>,
    %c3_97 = arith.constant 3 : index
    %c3_98 = arith.constant 3 : index
    %c0_99 = arith.constant 0 : index
    %41 = vector.load %arg9[%c3_97, %c3_98, %c0_99] : memref<20x20x3xf32, #tpu.memory_space<vmem>>, vector<16x16x3xf32>
    %c0_100 = arith.constant 0 : index
    %c0_101 = arith.constant 0 : index
    %c54 = arith.constant 54 : index
    %42 = vector.load %arg12[%c0_100, %c0_101, %c54] : memref<16x16x75xf32, #tpu.memory_space<vmem>>, vector<16x16x3xf32>
    tpu.vector_store %arg12[%c0_100, %c0_101, %c54], %41 {strides = array<i32>} : memref<16x16x75xf32, #tpu.memory_space<vmem>>, vector<16x16x3xf32>,
    %c3_102 = arith.constant 3 : index
    %c4_103 = arith.constant 4 : index
    %c0_104 = arith.constant 0 : index
    %43 = vector.load %arg9[%c3_102, %c4_103, %c0_104] : memref<20x20x3xf32, #tpu.memory_space<vmem>>, vector<16x16x3xf32>
    %c0_105 = arith.constant 0 : index
    %c0_106 = arith.constant 0 : index
    %c57 = arith.constant 57 : index
    %44 = vector.load %arg12[%c0_105, %c0_106, %c57] : memref<16x16x75xf32, #tpu.memory_space<vmem>>, vector<16x16x3xf32>
    tpu.vector_store %arg12[%c0_105, %c0_106, %c57], %43 {strides = array<i32>} : memref<16x16x75xf32, #tpu.memory_space<vmem>>, vector<16x16x3xf32>,
    %c4_107 = arith.constant 4 : index
    %c0_108 = arith.constant 0 : index
    %c0_109 = arith.constant 0 : index
    %45 = vector.load %arg9[%c4_107, %c0_108, %c0_109] : memref<20x20x3xf32, #tpu.memory_space<vmem>>, vector<16x16x3xf32>
    %c0_110 = arith.constant 0 : index
    %c0_111 = arith.constant 0 : index
    %c60 = arith.constant 60 : index
    %46 = vector.load %arg12[%c0_110, %c0_111, %c60] : memref<16x16x75xf32, #tpu.memory_space<vmem>>, vector<16x16x3xf32>
    tpu.vector_store %arg12[%c0_110, %c0_111, %c60], %45 {strides = array<i32>} : memref<16x16x75xf32, #tpu.memory_space<vmem>>, vector<16x16x3xf32>,
    %c4_112 = arith.constant 4 : index
    %c1_113 = arith.constant 1 : index
    %c0_114 = arith.constant 0 : index
    %47 = vector.load %arg9[%c4_112, %c1_113, %c0_114] : memref<20x20x3xf32, #tpu.memory_space<vmem>>, vector<16x16x3xf32>
    %c0_115 = arith.constant 0 : index
    %c0_116 = arith.constant 0 : index
    %c63 = arith.constant 63 : index
    %48 = vector.load %arg12[%c0_115, %c0_116, %c63] : memref<16x16x75xf32, #tpu.memory_space<vmem>>, vector<16x16x3xf32>
    tpu.vector_store %arg12[%c0_115, %c0_116, %c63], %47 {strides = array<i32>} : memref<16x16x75xf32, #tpu.memory_space<vmem>>, vector<16x16x3xf32>,
    %c4_117 = arith.constant 4 : index
    %c2_118 = arith.constant 2 : index
    %c0_119 = arith.constant 0 : index
    %49 = vector.load %arg9[%c4_117, %c2_118, %c0_119] : memref<20x20x3xf32, #tpu.memory_space<vmem>>, vector<16x16x3xf32>
    %c0_120 = arith.constant 0 : index
    %c0_121 = arith.constant 0 : index
    %c66 = arith.constant 66 : index
    %50 = vector.load %arg12[%c0_120, %c0_121, %c66] : memref<16x16x75xf32, #tpu.memory_space<vmem>>, vector<16x16x3xf32>
    tpu.vector_store %arg12[%c0_120, %c0_121, %c66], %49 {strides = array<i32>} : memref<16x16x75xf32, #tpu.memory_space<vmem>>, vector<16x16x3xf32>,
    %c4_122 = arith.constant 4 : index
    %c3_123 = arith.constant 3 : index
    %c0_124 = arith.constant 0 : index
    %51 = vector.load %arg9[%c4_122, %c3_123, %c0_124] : memref<20x20x3xf32, #tpu.memory_space<vmem>>, vector<16x16x3xf32>
    %c0_125 = arith.constant 0 : index
    %c0_126 = arith.constant 0 : index
    %c69 = arith.constant 69 : index
    %52 = vector.load %arg12[%c0_125, %c0_126, %c69] : memref<16x16x75xf32, #tpu.memory_space<vmem>>, vector<16x16x3xf32>
    tpu.vector_store %arg12[%c0_125, %c0_126, %c69], %51 {strides = array<i32>} : memref<16x16x75xf32, #tpu.memory_space<vmem>>, vector<16x16x3xf32>,
    %c4_127 = arith.constant 4 : index
    %c4_128 = arith.constant 4 : index
    %c0_129 = arith.constant 0 : index
    %53 = vector.load %arg9[%c4_127, %c4_128, %c0_129] : memref<20x20x3xf32, #tpu.memory_space<vmem>>, vector<16x16x3xf32>
    %c0_130 = arith.constant 0 : index
    %c0_131 = arith.constant 0 : index
    %c72 = arith.constant 72 : index
    %54 = vector.load %arg12[%c0_130, %c0_131, %c72] : memref<16x16x75xf32, #tpu.memory_space<vmem>>, vector<16x16x3xf32>
    tpu.vector_store %arg12[%c0_130, %c0_131, %c72], %53 {strides = array<i32>} : memref<16x16x75xf32, #tpu.memory_space<vmem>>, vector<16x16x3xf32>,
    %c0_132 = arith.constant 0 : index
    %c0_133 = arith.constant 0 : index
    %c0_134 = arith.constant 0 : index
    %55 = vector.load %arg12[%c0_132, %c0_133, %c0_134] : memref<16x16x75xf32, #tpu.memory_space<vmem>>, vector<16x16x75xf32>
    %56 = vector.shape_cast %55 : vector<16x16x75xf32> to vector<256x75xf32>
    %57 = arith.truncf %56 : vector<256x75xf32> to vector<256x75xbf16>
    %c0_135 = arith.constant 0 : index
    %c0_136 = arith.constant 0 : index
    %58 = vector.load %arg2[%c0_135, %c0_136] : memref<75x64xbf16, #tpu.memory_space<vmem>>, vector<75x64xbf16>
    %cst_137 = arith.constant dense<0.000000e+00> : vector<256x64xf32>
    %59 = tpu.matmul %57, %58, %cst_137 {dimension_numbers = #tpu.dot_dimension_numbers<[1], [0], [0], [1], [0, 0, 1, 1], [], []>} : vector<256x75xbf16>, vector<75x64xbf16>, vector<256x64xf32> -> vector<256x64xf32>
    %c0_138 = arith.constant 0 : index
    %c0_139 = arith.constant 0 : index
    %60 = vector.load %arg3[%c0_138, %c0_139] : memref<1x64xf32, #tpu.memory_space<vmem>>, vector<1x64xf32>
    %61 = vector.broadcast %60 : vector<1x64xf32> to vector<256x64xf32>
    %62 = arith.addf %59, %61 : vector<256x64xf32>
    %63 = math.tanh %62 : vector<256x64xf32>
    %64 = vector.shape_cast %63 : vector<256x64xf32> to vector<16x16x64xf32>
    %cst_140 = arith.constant 0.000000e+00 : f32
    %65 = vector.broadcast %cst_140 : f32 to vector<18x18x64xf32>
    %c0_141 = arith.constant 0 : index
    %c0_142 = arith.constant 0 : index
    %c0_143 = arith.constant 0 : index
    %66 = vector.load %arg10[%c0_141, %c0_142, %c0_143] : memref<18x18x64xf32, #tpu.memory_space<vmem>>, vector<18x18x64xf32>
    tpu.vector_store %arg10[%c0_141, %c0_142, %c0_143], %65 {strides = array<i32>} : memref<18x18x64xf32, #tpu.memory_space<vmem>>, vector<18x18x64xf32>,
    %c1_144 = arith.constant 1 : index
    %c1_145 = arith.constant 1 : index
    %c0_146 = arith.constant 0 : index
    %67 = vector.load %arg10[%c1_144, %c1_145, %c0_146] : memref<18x18x64xf32, #tpu.memory_space<vmem>>, vector<16x16x64xf32>
    tpu.vector_store %arg10[%c1_144, %c1_145, %c0_146], %64 {strides = array<i32>} : memref<18x18x64xf32, #tpu.memory_space<vmem>>, vector<16x16x64xf32>,
    %c0_147 = arith.constant 0 : index
    %c0_148 = arith.constant 0 : index
    %c0_149 = arith.constant 0 : index
    %68 = vector.load %arg10[%c0_147, %c0_148, %c0_149] : memref<18x18x64xf32, #tpu.memory_space<vmem>>, vector<16x16x64xf32>
    %c0_150 = arith.constant 0 : index
    %c0_151 = arith.constant 0 : index
    %c0_152 = arith.constant 0 : index
    %69 = vector.load %arg13[%c0_150, %c0_151, %c0_152] : memref<16x16x576xf32, #tpu.memory_space<vmem>>, vector<16x16x64xf32>
    tpu.vector_store %arg13[%c0_150, %c0_151, %c0_152], %68 {strides = array<i32>} : memref<16x16x576xf32, #tpu.memory_space<vmem>>, vector<16x16x64xf32>,
    %c0_153 = arith.constant 0 : index
    %c1_154 = arith.constant 1 : index
    %c0_155 = arith.constant 0 : index
    %70 = vector.load %arg10[%c0_153, %c1_154, %c0_155] : memref<18x18x64xf32, #tpu.memory_space<vmem>>, vector<16x16x64xf32>
    %c0_156 = arith.constant 0 : index
    %c0_157 = arith.constant 0 : index
    %c64 = arith.constant 64 : index
    %71 = vector.load %arg13[%c0_156, %c0_157, %c64] : memref<16x16x576xf32, #tpu.memory_space<vmem>>, vector<16x16x64xf32>
    tpu.vector_store %arg13[%c0_156, %c0_157, %c64], %70 {strides = array<i32>} : memref<16x16x576xf32, #tpu.memory_space<vmem>>, vector<16x16x64xf32>,
    %c0_158 = arith.constant 0 : index
    %c2_159 = arith.constant 2 : index
    %c0_160 = arith.constant 0 : index
    %72 = vector.load %arg10[%c0_158, %c2_159, %c0_160] : memref<18x18x64xf32, #tpu.memory_space<vmem>>, vector<16x16x64xf32>
    %c0_161 = arith.constant 0 : index
    %c0_162 = arith.constant 0 : index
    %c128 = arith.constant 128 : index
    %73 = vector.load %arg13[%c0_161, %c0_162, %c128] : memref<16x16x576xf32, #tpu.memory_space<vmem>>, vector<16x16x64xf32>
    tpu.vector_store %arg13[%c0_161, %c0_162, %c128], %72 {strides = array<i32>} : memref<16x16x576xf32, #tpu.memory_space<vmem>>, vector<16x16x64xf32>,
    %c1_163 = arith.constant 1 : index
    %c0_164 = arith.constant 0 : index
    %c0_165 = arith.constant 0 : index
    %74 = vector.load %arg10[%c1_163, %c0_164, %c0_165] : memref<18x18x64xf32, #tpu.memory_space<vmem>>, vector<16x16x64xf32>
    %c0_166 = arith.constant 0 : index
    %c0_167 = arith.constant 0 : index
    %c192 = arith.constant 192 : index
    %75 = vector.load %arg13[%c0_166, %c0_167, %c192] : memref<16x16x576xf32, #tpu.memory_space<vmem>>, vector<16x16x64xf32>
    tpu.vector_store %arg13[%c0_166, %c0_167, %c192], %74 {strides = array<i32>} : memref<16x16x576xf32, #tpu.memory_space<vmem>>, vector<16x16x64xf32>,
    %c1_168 = arith.constant 1 : index
    %c1_169 = arith.constant 1 : index
    %c0_170 = arith.constant 0 : index
    %76 = vector.load %arg10[%c1_168, %c1_169, %c0_170] : memref<18x18x64xf32, #tpu.memory_space<vmem>>, vector<16x16x64xf32>
    %c0_171 = arith.constant 0 : index
    %c0_172 = arith.constant 0 : index
    %c256 = arith.constant 256 : index
    %77 = vector.load %arg13[%c0_171, %c0_172, %c256] : memref<16x16x576xf32, #tpu.memory_space<vmem>>, vector<16x16x64xf32>
    tpu.vector_store %arg13[%c0_171, %c0_172, %c256], %76 {strides = array<i32>} : memref<16x16x576xf32, #tpu.memory_space<vmem>>, vector<16x16x64xf32>,
    %c1_173 = arith.constant 1 : index
    %c2_174 = arith.constant 2 : index
    %c0_175 = arith.constant 0 : index
    %78 = vector.load %arg10[%c1_173, %c2_174, %c0_175] : memref<18x18x64xf32, #tpu.memory_space<vmem>>, vector<16x16x64xf32>
    %c0_176 = arith.constant 0 : index
    %c0_177 = arith.constant 0 : index
    %c320 = arith.constant 320 : index
    %79 = vector.load %arg13[%c0_176, %c0_177, %c320] : memref<16x16x576xf32, #tpu.memory_space<vmem>>, vector<16x16x64xf32>
    tpu.vector_store %arg13[%c0_176, %c0_177, %c320], %78 {strides = array<i32>} : memref<16x16x576xf32, #tpu.memory_space<vmem>>, vector<16x16x64xf32>,
    %c2_178 = arith.constant 2 : index
    %c0_179 = arith.constant 0 : index
    %c0_180 = arith.constant 0 : index
    %80 = vector.load %arg10[%c2_178, %c0_179, %c0_180] : memref<18x18x64xf32, #tpu.memory_space<vmem>>, vector<16x16x64xf32>
    %c0_181 = arith.constant 0 : index
    %c0_182 = arith.constant 0 : index
    %c384 = arith.constant 384 : index
    %81 = vector.load %arg13[%c0_181, %c0_182, %c384] : memref<16x16x576xf32, #tpu.memory_space<vmem>>, vector<16x16x64xf32>
    tpu.vector_store %arg13[%c0_181, %c0_182, %c384], %80 {strides = array<i32>} : memref<16x16x576xf32, #tpu.memory_space<vmem>>, vector<16x16x64xf32>,
    %c2_183 = arith.constant 2 : index
    %c1_184 = arith.constant 1 : index
    %c0_185 = arith.constant 0 : index
    %82 = vector.load %arg10[%c2_183, %c1_184, %c0_185] : memref<18x18x64xf32, #tpu.memory_space<vmem>>, vector<16x16x64xf32>
    %c0_186 = arith.constant 0 : index
    %c0_187 = arith.constant 0 : index
    %c448 = arith.constant 448 : index
    %83 = vector.load %arg13[%c0_186, %c0_187, %c448] : memref<16x16x576xf32, #tpu.memory_space<vmem>>, vector<16x16x64xf32>
    tpu.vector_store %arg13[%c0_186, %c0_187, %c448], %82 {strides = array<i32>} : memref<16x16x576xf32, #tpu.memory_space<vmem>>, vector<16x16x64xf32>,
    %c2_188 = arith.constant 2 : index
    %c2_189 = arith.constant 2 : index
    %c0_190 = arith.constant 0 : index
    %84 = vector.load %arg10[%c2_188, %c2_189, %c0_190] : memref<18x18x64xf32, #tpu.memory_space<vmem>>, vector<16x16x64xf32>
    %c0_191 = arith.constant 0 : index
    %c0_192 = arith.constant 0 : index
    %c512 = arith.constant 512 : index
    %85 = vector.load %arg13[%c0_191, %c0_192, %c512] : memref<16x16x576xf32, #tpu.memory_space<vmem>>, vector<16x16x64xf32>
    tpu.vector_store %arg13[%c0_191, %c0_192, %c512], %84 {strides = array<i32>} : memref<16x16x576xf32, #tpu.memory_space<vmem>>, vector<16x16x64xf32>,
    %c0_193 = arith.constant 0 : index
    %c0_194 = arith.constant 0 : index
    %c0_195 = arith.constant 0 : index
    %86 = vector.load %arg13[%c0_193, %c0_194, %c0_195] : memref<16x16x576xf32, #tpu.memory_space<vmem>>, vector<16x16x576xf32>
    %87 = vector.shape_cast %86 : vector<16x16x576xf32> to vector<256x576xf32>
    %88 = arith.truncf %87 : vector<256x576xf32> to vector<256x576xbf16>
    %c0_196 = arith.constant 0 : index
    %c0_197 = arith.constant 0 : index
    %89 = vector.load %arg4[%c0_196, %c0_197] : memref<576x32xbf16, #tpu.memory_space<vmem>>, vector<576x32xbf16>
    %cst_198 = arith.constant dense<0.000000e+00> : vector<256x32xf32>
    %90 = tpu.matmul %88, %89, %cst_198 {dimension_numbers = #tpu.dot_dimension_numbers<[1], [0], [0], [1], [0, 0, 1, 1], [], []>} : vector<256x576xbf16>, vector<576x32xbf16>, vector<256x32xf32> -> vector<256x32xf32>
    %c0_199 = arith.constant 0 : index
    %c0_200 = arith.constant 0 : index
    %91 = vector.load %arg5[%c0_199, %c0_200] : memref<1x32xf32, #tpu.memory_space<vmem>>, vector<1x32xf32>
    %92 = vector.broadcast %91 : vector<1x32xf32> to vector<256x32xf32>
    %93 = arith.addf %90, %92 : vector<256x32xf32>
    %94 = math.tanh %93 : vector<256x32xf32>
    %95 = vector.shape_cast %94 : vector<256x32xf32> to vector<16x16x32xf32>
    %cst_201 = arith.constant 0.000000e+00 : f32
    %96 = vector.broadcast %cst_201 : f32 to vector<18x18x32xf32>
    %c0_202 = arith.constant 0 : index
    %c0_203 = arith.constant 0 : index
    %c0_204 = arith.constant 0 : index
    %97 = vector.load %arg11[%c0_202, %c0_203, %c0_204] : memref<18x18x32xf32, #tpu.memory_space<vmem>>, vector<18x18x32xf32>
    tpu.vector_store %arg11[%c0_202, %c0_203, %c0_204], %96 {strides = array<i32>} : memref<18x18x32xf32, #tpu.memory_space<vmem>>, vector<18x18x32xf32>,
    %c1_205 = arith.constant 1 : index
    %c1_206 = arith.constant 1 : index
    %c0_207 = arith.constant 0 : index
    %98 = vector.load %arg11[%c1_205, %c1_206, %c0_207] : memref<18x18x32xf32, #tpu.memory_space<vmem>>, vector<16x16x32xf32>
    tpu.vector_store %arg11[%c1_205, %c1_206, %c0_207], %95 {strides = array<i32>} : memref<18x18x32xf32, #tpu.memory_space<vmem>>, vector<16x16x32xf32>,
    %c0_208 = arith.constant 0 : index
    %c0_209 = arith.constant 0 : index
    %c0_210 = arith.constant 0 : index
    %99 = vector.load %arg11[%c0_208, %c0_209, %c0_210] : memref<18x18x32xf32, #tpu.memory_space<vmem>>, vector<16x16x32xf32>
    %c0_211 = arith.constant 0 : index
    %c0_212 = arith.constant 0 : index
    %c0_213 = arith.constant 0 : index
    %100 = vector.load %arg14[%c0_211, %c0_212, %c0_213] : memref<16x16x288xf32, #tpu.memory_space<vmem>>, vector<16x16x32xf32>
    tpu.vector_store %arg14[%c0_211, %c0_212, %c0_213], %99 {strides = array<i32>} : memref<16x16x288xf32, #tpu.memory_space<vmem>>, vector<16x16x32xf32>,
    %c0_214 = arith.constant 0 : index
    %c1_215 = arith.constant 1 : index
    %c0_216 = arith.constant 0 : index
    %101 = vector.load %arg11[%c0_214, %c1_215, %c0_216] : memref<18x18x32xf32, #tpu.memory_space<vmem>>, vector<16x16x32xf32>
    %c0_217 = arith.constant 0 : index
    %c0_218 = arith.constant 0 : index
    %c32 = arith.constant 32 : index
    %102 = vector.load %arg14[%c0_217, %c0_218, %c32] : memref<16x16x288xf32, #tpu.memory_space<vmem>>, vector<16x16x32xf32>
    tpu.vector_store %arg14[%c0_217, %c0_218, %c32], %101 {strides = array<i32>} : memref<16x16x288xf32, #tpu.memory_space<vmem>>, vector<16x16x32xf32>,
    %c0_219 = arith.constant 0 : index
    %c2_220 = arith.constant 2 : index
    %c0_221 = arith.constant 0 : index
    %103 = vector.load %arg11[%c0_219, %c2_220, %c0_221] : memref<18x18x32xf32, #tpu.memory_space<vmem>>, vector<16x16x32xf32>
    %c0_222 = arith.constant 0 : index
    %c0_223 = arith.constant 0 : index
    %c64_224 = arith.constant 64 : index
    %104 = vector.load %arg14[%c0_222, %c0_223, %c64_224] : memref<16x16x288xf32, #tpu.memory_space<vmem>>, vector<16x16x32xf32>
    tpu.vector_store %arg14[%c0_222, %c0_223, %c64_224], %103 {strides = array<i32>} : memref<16x16x288xf32, #tpu.memory_space<vmem>>, vector<16x16x32xf32>,
    %c1_225 = arith.constant 1 : index
    %c0_226 = arith.constant 0 : index
    %c0_227 = arith.constant 0 : index
    %105 = vector.load %arg11[%c1_225, %c0_226, %c0_227] : memref<18x18x32xf32, #tpu.memory_space<vmem>>, vector<16x16x32xf32>
    %c0_228 = arith.constant 0 : index
    %c0_229 = arith.constant 0 : index
    %c96 = arith.constant 96 : index
    %106 = vector.load %arg14[%c0_228, %c0_229, %c96] : memref<16x16x288xf32, #tpu.memory_space<vmem>>, vector<16x16x32xf32>
    tpu.vector_store %arg14[%c0_228, %c0_229, %c96], %105 {strides = array<i32>} : memref<16x16x288xf32, #tpu.memory_space<vmem>>, vector<16x16x32xf32>,
    %c1_230 = arith.constant 1 : index
    %c1_231 = arith.constant 1 : index
    %c0_232 = arith.constant 0 : index
    %107 = vector.load %arg11[%c1_230, %c1_231, %c0_232] : memref<18x18x32xf32, #tpu.memory_space<vmem>>, vector<16x16x32xf32>
    %c0_233 = arith.constant 0 : index
    %c0_234 = arith.constant 0 : index
    %c128_235 = arith.constant 128 : index
    %108 = vector.load %arg14[%c0_233, %c0_234, %c128_235] : memref<16x16x288xf32, #tpu.memory_space<vmem>>, vector<16x16x32xf32>
    tpu.vector_store %arg14[%c0_233, %c0_234, %c128_235], %107 {strides = array<i32>} : memref<16x16x288xf32, #tpu.memory_space<vmem>>, vector<16x16x32xf32>,
    %c1_236 = arith.constant 1 : index
    %c2_237 = arith.constant 2 : index
    %c0_238 = arith.constant 0 : index
    %109 = vector.load %arg11[%c1_236, %c2_237, %c0_238] : memref<18x18x32xf32, #tpu.memory_space<vmem>>, vector<16x16x32xf32>
    %c0_239 = arith.constant 0 : index
    %c0_240 = arith.constant 0 : index
    %c160 = arith.constant 160 : index
    %110 = vector.load %arg14[%c0_239, %c0_240, %c160] : memref<16x16x288xf32, #tpu.memory_space<vmem>>, vector<16x16x32xf32>
    tpu.vector_store %arg14[%c0_239, %c0_240, %c160], %109 {strides = array<i32>} : memref<16x16x288xf32, #tpu.memory_space<vmem>>, vector<16x16x32xf32>,
    %c2_241 = arith.constant 2 : index
    %c0_242 = arith.constant 0 : index
    %c0_243 = arith.constant 0 : index
    %111 = vector.load %arg11[%c2_241, %c0_242, %c0_243] : memref<18x18x32xf32, #tpu.memory_space<vmem>>, vector<16x16x32xf32>
    %c0_244 = arith.constant 0 : index
    %c0_245 = arith.constant 0 : index
    %c192_246 = arith.constant 192 : index
    %112 = vector.load %arg14[%c0_244, %c0_245, %c192_246] : memref<16x16x288xf32, #tpu.memory_space<vmem>>, vector<16x16x32xf32>
    tpu.vector_store %arg14[%c0_244, %c0_245, %c192_246], %111 {strides = array<i32>} : memref<16x16x288xf32, #tpu.memory_space<vmem>>, vector<16x16x32xf32>,
    %c2_247 = arith.constant 2 : index
    %c1_248 = arith.constant 1 : index
    %c0_249 = arith.constant 0 : index
    %113 = vector.load %arg11[%c2_247, %c1_248, %c0_249] : memref<18x18x32xf32, #tpu.memory_space<vmem>>, vector<16x16x32xf32>
    %c0_250 = arith.constant 0 : index
    %c0_251 = arith.constant 0 : index
    %c224 = arith.constant 224 : index
    %114 = vector.load %arg14[%c0_250, %c0_251, %c224] : memref<16x16x288xf32, #tpu.memory_space<vmem>>, vector<16x16x32xf32>
    tpu.vector_store %arg14[%c0_250, %c0_251, %c224], %113 {strides = array<i32>} : memref<16x16x288xf32, #tpu.memory_space<vmem>>, vector<16x16x32xf32>,
    %c2_252 = arith.constant 2 : index
    %c2_253 = arith.constant 2 : index
    %c0_254 = arith.constant 0 : index
    %115 = vector.load %arg11[%c2_252, %c2_253, %c0_254] : memref<18x18x32xf32, #tpu.memory_space<vmem>>, vector<16x16x32xf32>
    %c0_255 = arith.constant 0 : index
    %c0_256 = arith.constant 0 : index
    %c256_257 = arith.constant 256 : index
    %116 = vector.load %arg14[%c0_255, %c0_256, %c256_257] : memref<16x16x288xf32, #tpu.memory_space<vmem>>, vector<16x16x32xf32>
    tpu.vector_store %arg14[%c0_255, %c0_256, %c256_257], %115 {strides = array<i32>} : memref<16x16x288xf32, #tpu.memory_space<vmem>>, vector<16x16x32xf32>,
    %c0_258 = arith.constant 0 : index
    %c0_259 = arith.constant 0 : index
    %c0_260 = arith.constant 0 : index
    %117 = vector.load %arg14[%c0_258, %c0_259, %c0_260] : memref<16x16x288xf32, #tpu.memory_space<vmem>>, vector<16x16x288xf32>
    %118 = vector.shape_cast %117 : vector<16x16x288xf32> to vector<256x288xf32>
    %119 = arith.truncf %118 : vector<256x288xf32> to vector<256x288xbf16>
    %c0_261 = arith.constant 0 : index
    %c0_262 = arith.constant 0 : index
    %120 = vector.load %arg6[%c0_261, %c0_262] : memref<288x12xbf16, #tpu.memory_space<vmem>>, vector<288x12xbf16>
    %cst_263 = arith.constant dense<0.000000e+00> : vector<256x12xf32>
    %121 = tpu.matmul %119, %120, %cst_263 {dimension_numbers = #tpu.dot_dimension_numbers<[1], [0], [0], [1], [0, 0, 1, 1], [], []>} : vector<256x288xbf16>, vector<288x12xbf16>, vector<256x12xf32> -> vector<256x12xf32>
    %c0_264 = arith.constant 0 : index
    %c0_265 = arith.constant 0 : index
    %122 = vector.load %arg7[%c0_264, %c0_265] : memref<1x12xf32, #tpu.memory_space<vmem>>, vector<1x12xf32>
    %123 = vector.broadcast %122 : vector<1x12xf32> to vector<256x12xf32>
    %124 = arith.addf %121, %123 : vector<256x12xf32>
    %125 = math.tanh %124 : vector<256x12xf32>
    %c0_266 = arith.constant 0 : index
    %c0_267 = arith.constant 0 : index
    %c0_268 = arith.constant 0 : index
    %126 = vector.load %arg8[%c0_266, %c0_267, %c0_268] : memref<1x256x12xf32, #tpu.memory_space<vmem>>, vector<1x256x12xf32>
    %127 = vector.shape_cast %126 : vector<1x256x12xf32> to vector<256x12xf32>
    %128 = vector.shape_cast %125 : vector<256x12xf32> to vector<1x256x12xf32>
    tpu.vector_store %arg8[%c0_266, %c0_267, %c0_268], %128 {strides = array<i32>} : memref<1x256x12xf32, #tpu.memory_space<vmem>>, vector<1x256x12xf32>,
    return
  }
  func.func @transform_0(%arg0: i32) -> (i32, i32, i32, i32) {
    %c0_i32 = arith.constant 0 : i32
    %c0_i32_0 = arith.constant 0 : i32
    %c0_i32_1 = arith.constant 0 : i32
    %c0_i32_2 = arith.constant 0 : i32
    return %arg0, %c0_i32, %c0_i32_0, %c0_i32_1 : i32, i32, i32, i32
  }
  func.func @transform_1(%arg0: i32) -> (i32, i32) {
    %c0_i32 = arith.constant 0 : i32
    %c0_i32_0 = arith.constant 0 : i32
    %c0_i32_1 = arith.constant 0 : i32
    return %c0_i32, %c0_i32_0 : i32, i32
  }
  func.func @transform_2(%arg0: i32) -> (i32, i32) {
    %c0_i32 = arith.constant 0 : i32
    %c0_i32_0 = arith.constant 0 : i32
    %c0_i32_1 = arith.constant 0 : i32
    return %c0_i32, %c0_i32_0 : i32, i32
  }
  func.func @transform_3(%arg0: i32) -> (i32, i32) {
    %c0_i32 = arith.constant 0 : i32
    %c0_i32_0 = arith.constant 0 : i32
    %c0_i32_1 = arith.constant 0 : i32
    return %c0_i32, %c0_i32_0 : i32, i32
  }
  func.func @transform_4(%arg0: i32) -> (i32, i32) {
    %c0_i32 = arith.constant 0 : i32
    %c0_i32_0 = arith.constant 0 : i32
    %c0_i32_1 = arith.constant 0 : i32
    return %c0_i32, %c0_i32_0 : i32, i32
  }
  func.func @transform_5(%arg0: i32) -> (i32, i32) {
    %c0_i32 = arith.constant 0 : i32
    %c0_i32_0 = arith.constant 0 : i32
    %c0_i32_1 = arith.constant 0 : i32
    return %c0_i32, %c0_i32_0 : i32, i32
  }
  func.func @transform_6(%arg0: i32) -> (i32, i32) {
    %c0_i32 = arith.constant 0 : i32
    %c0_i32_0 = arith.constant 0 : i32
    %c0_i32_1 = arith.constant 0 : i32
    return %c0_i32, %c0_i32_0 : i32, i32
  }
  func.func @transform_7(%arg0: i32) -> (i32, i32, i32) {
    %c0_i32 = arith.constant 0 : i32
    %c0_i32_0 = arith.constant 0 : i32
    %c0_i32_1 = arith.constant 0 : i32
    return %arg0, %c0_i32, %c0_i32_0 : i32, i32, i32
  }
}

</mosaic_0001>

<llo_original>
// kernel: espcn_forward.1
$region0: #{espcn_forward.1}
  #allocation0 [shape = 'u32[]', space=smem, size = 0x4, offset = 0x4, fixed_abs, tag = 'smem constant byte address 0x4 - core index']
  #allocation1 [shape = 'u32[144,128]{1,0:T(1,128)}', space=vmem, size = 0x12000, scoped, tag = 'internal scratch']
  #allocation2 [shape = 'f32[20,20,3]{2,1,0:T(8,128)}', space=vmem, size = 0x3c000, scoped, tag = 'scratch operand']
  #allocation3 [shape = 'f32[18,18,64]{2,1,0:T(8,128)}', space=vmem, size = 0x36000, scoped, tag = 'scratch operand']
  #allocation4 [shape = 'f32[18,18,32]{2,1,0:T(8,128)}', space=vmem, size = 0x36000, scoped, tag = 'scratch operand']
  #allocation5 [shape = 'f32[16,16,75]{2,1,0:T(8,128)}', space=vmem, size = 0x20000, scoped, tag = 'scratch operand']
  #allocation6 [shape = 'f32[16,16,576]{2,1,0:T(8,128)}', space=vmem, size = 0xa0000, scoped, tag = 'scratch operand']
  #allocation7 [shape = 'f32[16,16,288]{2,1,0:T(8,128)}', space=vmem, size = 0x60000, scoped, tag = 'scratch operand']
  %s0 = inlined_call_operand.vmem [shape: f32[2,16,16,3], index: 0, kind: input, shape index: {}]
  %s1 = inlined_call_operand.vmem [shape: bf16[75,64], index: 1, kind: input, shape index: {}]
  %s2 = inlined_call_operand.hbm [shape: f32[1,64], index: 2, kind: input, shape index: {}]
  %s3 = inlined_call_operand.vmem [shape: bf16[576,32], index: 3, kind: input, shape index: {}]
  %s4 = inlined_call_operand.hbm [shape: f32[1,32], index: 4, kind: input, shape index: {}]
  %s5 = inlined_call_operand.vmem [shape: bf16[288,12], index: 5, kind: input, shape index: {}]
  %s6 = inlined_call_operand.hbm [shape: f32[1,12], index: 6, kind: input, shape index: {}]
  %s7 = inlined_call_operand.vmem [shape: f32[2,256,12], index: 7, kind: output, shape index: {}]
  %s8 = sld [smem:[#allocation0]]
  $region73: #{espcn_forward.1} parent=0
    _
  %s10 = ssub.s32 1, %s8
  %s11 = scalar_select 0, %s10, %s8
  $region1: #{espcn_forward.1} parent=0
    #allocation8 [shape = 'u8[512]{0}', space=vmem, size = 0x400, scoped, tag = 'input window, operand 2, single buffered']
    #allocation9 [shape = 's32[2]{0}', space=sflag, size = 0x8, scoped, tag = 'scoped memory for espcn_forward.1']
    #allocation10 [shape = 'u8[512]{0}', space=vmem, size = 0x400, scoped, tag = 'input window, operand 4, single buffered']
    #allocation11 [shape = 's32[1]{0}', space=sflag, size = 0x4, scoped, tag = 'scoped memory for espcn_forward.1']
    #allocation12 [shape = 'u8[512]{0}', space=vmem, size = 0x400, scoped, tag = 'input window, operand 6, single buffered']
    %12 = vsyncpa [#allocation9], 0
    %13 = vsyncpa [#allocation11], 0
    loop: start=0, step=1, limit=4
    $region2: #{espcn_forward.1} parent=1 // loop_pre_header
      _
    $region3: #{espcn_forward.1} parent=1 // loop_header
      %s15 = sphi 0, %s19
      %p16 = scmp.ge.s32.totalorder %s15, 4
      %s25 = sphi 0, %s27
      %s28 = sphi 0, %s25
      %s29 = sphi 0, %s28
      %s45 = sphi 0, %s29
      %s49 = sphi 0, %s49
      %s51 = sphi 0, %s49
      %s52 = sphi 0, %s51
      %s66 = sphi 0, %s52
      %s70 = sphi 0, %s70
      %s72 = sphi 0, %s70
      %s73 = sphi 0, %s72
      %s87 = sphi 0, %s73
      %s91 = sphi 0, %s91
      %s93 = sphi 0, %s91
      %s94 = sphi 0, %s93
      %s108 = sphi 0, %s94
      %s112 = sphi 0, %s112
      %s114 = sphi 0, %s112
      %s115 = sphi 0, %s114
      %s129 = sphi 0, %s115
      %s133 = sphi 0, %s133
      %s135 = sphi 0, %s133
      %s136 = sphi 0, %s135
      %s150 = sphi 0, %s136
      %s154 = sphi 0, %s154
      %s156 = sphi 0, %s154
      %s157 = sphi 0, %s156
      %s171 = sphi 0, %s157
      %s177 = sphi 0, %s179
      %s180 = sphi 0, %s177
      %s181 = sphi 0, %s180
      %s197 = sphi 0, %s181
    $region4: #{espcn_forward.1} parent=1 // loop_header_branch
      %18 = sbr.rel (%p16) target = $region8
    $region5: #{espcn_forward.1} parent=1 // loop_body
      %s20 = ssub.s32 %s15, 1
      %s21 = ssub.s32 %s15, 2
      %s22 = sadd.s32 %s15, 1
      %s23 = ssub.s32 %s15, %s22
      %p24 = scmp.eq.s32.totalorder %s23, 0
      %s26 = sadd.s32 %s25, 1
      %s27 = scalar_select %p24, %s25, %s26
      %p30 = pneg %p24
      %p31 = scmp.eq.s32.totalorder %s15, 1
      %p32 = por %p30, %p31
      %p33 = scmp.ne.s32.totalorder %s25, %s28
      %p34 = scmp.eq.s32.totalorder %s15, 0
      %p35 = por %p33, %p34
      %p36 = scmp.ne.s32.totalorder %s25, %s28
      %p37 = scmp.eq.s32.totalorder %s20, 1
      %p38 = por %p36, %p37
      %p39 = scmp.ne.s32.totalorder %s28, %s29
      %p40 = scmp.eq.s32.totalorder %s20, 0
      %p41 = por %p39, %p40
      %p42 = scmp.ne.s32.totalorder %s28, %s29
      %p43 = scmp.eq.s32.totalorder %s21, 1
      %p44 = por %p42, %p43
      %p46 = scmp.ne.s32.totalorder %s29, %s45
      %p47 = scmp.eq.s32.totalorder %s21, 0
      %p48 = por %p46, %p47
      %s50 = sadd.s32 %s49, 1
      %p53 = scmp.eq.s32.totalorder %s15, 1
      %p54 = scmp.ne.s32.totalorder %s49, %s51
      %p55 = scmp.eq.s32.totalorder %s15, 0
      %p56 = por %p54, %p55
      %p57 = scmp.ne.s32.totalorder %s49, %s51
      %p58 = scmp.eq.s32.totalorder %s20, 1
      %p59 = por %p57, %p58
      %p60 = scmp.ne.s32.totalorder %s51, %s52
      %p61 = scmp.eq.s32.totalorder %s20, 0
      %p62 = por %p60, %p61
      %p63 = scmp.ne.s32.totalorder %s51, %s52
      %p64 = scmp.eq.s32.totalorder %s21, 1
      %p65 = por %p63, %p64
      %p67 = scmp.ne.s32.totalorder %s52, %s66
      %p68 = scmp.eq.s32.totalorder %s21, 0
      %p69 = por %p67, %p68
      %s71 = sadd.s32 %s70, 1
      %p74 = scmp.eq.s32.totalorder %s15, 1
      %p75 = scmp.ne.s32.totalorder %s70, %s72
      %p76 = scmp.eq.s32.totalorder %s15, 0
      %p77 = por %p75, %p76
      %p78 = scmp.ne.s32.totalorder %s70, %s72
      %p79 = scmp.eq.s32.totalorder %s20, 1
      %p80 = por %p78, %p79
      %p81 = scmp.ne.s32.totalorder %s72, %s73
      %p82 = scmp.eq.s32.totalorder %s20, 0
      %p83 = por %p81, %p82
      %p84 = scmp.ne.s32.totalorder %s72, %s73
      %p85 = scmp.eq.s32.totalorder %s21, 1
      %p86 = por %p84, %p85
      %p88 = scmp.ne.s32.totalorder %s73, %s87
      %p89 = scmp.eq.s32.totalorder %s21, 0
      %p90 = por %p88, %p89
      %s92 = sadd.s32 %s91, 1
      %p95 = scmp.eq.s32.totalorder %s15, 1
      %p96 = scmp.ne.s32.totalorder %s91, %s93
      %p97 = scmp.eq.s32.totalorder %s15, 0
      %p98 = por %p96, %p97
      %p99 = scmp.ne.s32.totalorder %s91, %s93
      %p100 = scmp.eq.s32.totalorder %s20, 1
      %p101 = por %p99, %p100
      %p102 = scmp.ne.s32.totalorder %s93, %s94
      %p103 = scmp.eq.s32.totalorder %s20, 0
      %p104 = por %p102, %p103
      %p105 = scmp.ne.s32.totalorder %s93, %s94
      %p106 = scmp.eq.s32.totalorder %s21, 1
      %p107 = por %p105, %p106
      %p109 = scmp.ne.s32.totalorder %s94, %s108
      %p110 = scmp.eq.s32.totalorder %s21, 0
      %p111 = por %p109, %p110
      %s113 = sadd.s32 %s112, 1
      %p116 = scmp.eq.s32.totalorder %s15, 1
      %p117 = scmp.ne.s32.totalorder %s112, %s114
      %p118 = scmp.eq.s32.totalorder %s15, 0
      %p119 = por %p117, %p118
      %p120 = scmp.ne.s32.totalorder %s112, %s114
      %p121 = scmp.eq.s32.totalorder %s20, 1
      %p122 = por %p120, %p121
      %p123 = scmp.ne.s32.totalorder %s114, %s115
      %p124 = scmp.eq.s32.totalorder %s20, 0
      %p125 = por %p123, %p124
      %p126 = scmp.ne.s32.totalorder %s114, %s115
      %p127 = scmp.eq.s32.totalorder %s21, 1
      %p128 = por %p126, %p127
      %p130 = scmp.ne.s32.totalorder %s115, %s129
      %p131 = scmp.eq.s32.totalorder %s21, 0
      %p132 = por %p130, %p131
      %s134 = sadd.s32 %s133, 1
      %p137 = scmp.eq.s32.totalorder %s15, 1
      %p138 = scmp.ne.s32.totalorder %s133, %s135
      %p139 = scmp.eq.s32.totalorder %s15, 0
      %p140 = por %p138, %p139
      %p141 = scmp.ne.s32.totalorder %s133, %s135
      %p142 = scmp.eq.s32.totalorder %s20, 1
      %p143 = por %p141, %p142
      %p144 = scmp.ne.s32.totalorder %s135, %s136
      %p145 = scmp.eq.s32.totalorder %s20, 0
      %p146 = por %p144, %p145
      %p147 = scmp.ne.s32.totalorder %s135, %s136
      %p148 = scmp.eq.s32.totalorder %s21, 1
      %p149 = por %p147, %p148
      %p151 = scmp.ne.s32.totalorder %s136, %s150
      %p152 = scmp.eq.s32.totalorder %s21, 0
      %p153 = por %p151, %p152
      %s155 = sadd.s32 %s154, 1
      %p158 = scmp.eq.s32.totalorder %s15, 1
      %p159 = scmp.ne.s32.totalorder %s154, %s156
      %p160 = scmp.eq.s32.totalorder %s15, 0
      %p161 = por %p159, %p160
      %p162 = scmp.ne.s32.totalorder %s154, %s156
      %p163 = scmp.eq.s32.totalorder %s20, 1
      %p164 = por %p162, %p163
      %p165 = scmp.ne.s32.totalorder %s156, %s157
      %p166 = scmp.eq.s32.totalorder %s20, 0
      %p167 = por %p165, %p166
      %p168 = scmp.ne.s32.totalorder %s156, %s157
      %p169 = scmp.eq.s32.totalorder %s21, 1
      %p170 = por %p168, %p169
      %p172 = scmp.ne.s32.totalorder %s157, %s171
      %p173 = scmp.eq.s32.totalorder %s21, 0
      %p174 = por %p172, %p173
      %s175 = ssub.s32 %s15, %s22
      %p176 = scmp.eq.s32.totalorder %s175, 0
      %s178 = sadd.s32 %s177, 1
      %s179 = scalar_select %p176, %s177, %s178
      %p182 = pneg %p176
      %p183 = scmp.eq.s32.totalorder %s15, 1
      %p184 = por %p182, %p183
      %p185 = scmp.ne.s32.totalorder %s177, %s180
      %p186 = scmp.eq.s32.totalorder %s15, 0
      %p187 = por %p185, %p186
      %p188 = scmp.ne.s32.totalorder %s177, %s180
      %p189 = scmp.eq.s32.totalorder %s20, 1
      %p190 = por %p188, %p189
      %p191 = scmp.ne.s32.totalorder %s180, %s181
      %p192 = scmp.eq.s32.totalorder %s20, 0
      %p193 = por %p191, %p192
      %p194 = scmp.ne.s32.totalorder %s180, %s181
      %p195 = scmp.eq.s32.totalorder %s21, 1
      %p196 = por %p194, %p195
      %p198 = scmp.ne.s32.totalorder %s181, %s197
      %p199 = scmp.eq.s32.totalorder %s21, 0
      %p200 = por %p198, %p199
      %p201 = scmp.le.s32.totalorder 1, %s15
      %p202 = scmp.lt.s32.totalorder %s15, 3
      %p203 = pnand %p201, %p202
      %p204 = pneg %p203
      // Predicated region
      $region9: #{espcn_forward.1} parent=5 // pred_check
        _
      $region10: #{espcn_forward.1} parent=5 // pred_check_branch
        %206 = sbr.rel (%p203) target = $region12
      $region11: #{espcn_forward.1} parent=5 // pred_region
        %s207 = ssub.s32 %s15, 1
        // Predicated region
        $region13: #{espcn_forward.1} parent=11 // pred_check
          %p208 = pneg %p62
        $region14: #{espcn_forward.1} parent=11 // pred_check_branch
          %210 = sbr.rel (%p208) target = $region16
        $region15: #{espcn_forward.1} parent=11 // pred_region
          _
        $region16: #{espcn_forward.1} parent=11 // pred_fallthru
          _
        // Predicated region
        $region17: #{espcn_forward.1} parent=11 // pred_check
          %p211 = pneg %p83
        $region18: #{espcn_forward.1} parent=11 // pred_check_branch
          %213 = sbr.rel (%p211) target = $region20
        $region19: #{espcn_forward.1} parent=11 // pred_region
          %s215 = ssub.s32 16, 16
          %216 = vsyncadd [#allocation9], %s215
          %s218 = sshll.u32 [#allocation8], 4
          %s219 = int_to_ptr.vmem [resolvable:$true] %s218
          %221 = dma.hbm_to_vmem [thread:$0]  %s2, 16, %s219, [#allocation9]
        $region20: #{espcn_forward.1} parent=11 // pred_fallthru
          _
        // Predicated region
        $region21: #{espcn_forward.1} parent=11 // pred_check
          %p222 = pneg %p104
        $region22: #{espcn_forward.1} parent=11 // pred_check_branch
          %224 = sbr.rel (%p222) target = $region24
        $region23: #{espcn_forward.1} parent=11 // pred_region
          _
        $region24: #{espcn_forward.1} parent=11 // pred_fallthru
          _
        // Predicated region
        $region25: #{espcn_forward.1} parent=11 // pred_check
          %p225 = pneg %p125
        $region26: #{espcn_forward.1} parent=11 // pred_check_branch
          %227 = sbr.rel (%p225) target = $region28
        $region27: #{espcn_forward.1} parent=11 // pred_region
          %s229 = ssub.s32 16, 16
          %230 = vsyncadd [#allocation11], %s229
          %s232 = sshll.u32 [#allocation10], 4
          %s233 = int_to_ptr.vmem [resolvable:$true] %s232
          %235 = dma.hbm_to_vmem [thread:$0]  %s4, 16, %s233, [#allocation11]
        $region28: #{espcn_forward.1} parent=11 // pred_fallthru
          _
        // Predicated region
        $region29: #{espcn_forward.1} parent=11 // pred_check
          %p236 = pneg %p146
        $region30: #{espcn_forward.1} parent=11 // pred_check_branch
          %238 = sbr.rel (%p236) target = $region32
        $region31: #{espcn_forward.1} parent=11 // pred_region
          _
        $region32: #{espcn_forward.1} parent=11 // pred_fallthru
          _
        // Predicated region
        $region33: #{espcn_forward.1} parent=11 // pred_check
          %p239 = pneg %p167
        $region34: #{espcn_forward.1} parent=11 // pred_check_branch
          %241 = sbr.rel (%p239) target = $region36
        $region35: #{espcn_forward.1} parent=11 // pred_region
          %s243 = ssub.s32 16, 16
          %244 = vsyncadd [#allocation11], %s243
          %s246 = sshll.u32 [#allocation12], 4
          %s247 = int_to_ptr.vmem [resolvable:$true] %s246
          %249 = dma.hbm_to_vmem [thread:$0]  %s6, 16, %s247, [#allocation11]
        $region36: #{espcn_forward.1} parent=11 // pred_fallthru
          _
      $region12: #{espcn_forward.1} parent=5 // pred_fallthru
        _
      %p250 = scmp.lt.s32.totalorder %s15, 2
      // Predicated region
      $region37: #{espcn_forward.1} parent=5 // pred_check
        %p251 = pneg %p250
      $region38: #{espcn_forward.1} parent=5 // pred_check_branch
        %253 = sbr.rel (%p251) target = $region40
      $region39: #{espcn_forward.1} parent=5 // pred_region
        // Predicated region
        $region41: #{espcn_forward.1} parent=39 // pred_check
          %p254 = pneg %p35
        $region42: #{espcn_forward.1} parent=39 // pred_check_branch
          %256 = sbr.rel (%p254) target = $region44
        $region43: #{espcn_forward.1} parent=39 // pred_region
          %p257 = scmp.lt.s32.totalorder %s15, 1
          %s258 = scalar_select %p257, %s15, 1
          %s259 = smul.addr %s258, 32
          %s260 = smul.addr %s259, 8
          %s261 = scalar_lea.vmem %s0, %s260
        $region44: #{espcn_forward.1} parent=39 // pred_fallthru
          _
      $region40: #{espcn_forward.1} parent=5 // pred_fallthru
        _
      %p262 = scmp.le.s32.totalorder 1, %s15
      %p263 = scmp.lt.s32.totalorder %s15, 3
      %p264 = pnand %p262, %p263
      %p265 = pneg %p264
      // Predicated region
      $region45: #{espcn_forward.1} parent=5 // pred_check
        _
      $region46: #{espcn_forward.1} parent=5 // pred_check_branch
        %267 = sbr.rel (%p264) target = $region48
      $region47: #{espcn_forward.1} parent=5 // pred_region
        %s268 = ssub.s32 %s15, 1
        // Predicated region
        $region49: #{espcn_forward.1} parent=47 // pred_check
          %p269 = pneg %p83
        $region50: #{espcn_forward.1} parent=47 // pred_check_branch
          %271 = sbr.rel (%p269) target = $region52
        $region51: #{espcn_forward.1} parent=47 // pred_region
          %272 = dma.done [#allocation9], 16
        $region52: #{espcn_forward.1} parent=47 // pred_fallthru
          _
        // Predicated region
        $region53: #{espcn_forward.1} parent=47 // pred_check
          %p273 = pneg %p125
        $region54: #{espcn_forward.1} parent=47 // pred_check_branch
          %275 = sbr.rel (%p273) target = $region56
        $region55: #{espcn_forward.1} parent=47 // pred_region
          %276 = dma.done [#allocation11], 16
        $region56: #{espcn_forward.1} parent=47 // pred_fallthru
          _
        // Predicated region
        $region57: #{espcn_forward.1} parent=47 // pred_check
          %p277 = pneg %p167
        $region58: #{espcn_forward.1} parent=47 // pred_check_branch
          %279 = sbr.rel (%p277) target = $region60
        $region59: #{espcn_forward.1} parent=47 // pred_region
          %280 = dma.done [#allocation11], 16
        $region60: #{espcn_forward.1} parent=47 // pred_fallthru
          _
        %p281 = scmp.lt.s32.totalorder %s20, 1
        %s282 = scalar_select %p281, %s20, 1
        %s283 = smul.addr %s282, 32
        %s284 = smul.addr %s283, 8
        %s285 = scalar_lea.vmem %s0, %s284
        %p286 = pneg %p41
        %p287 = pneg %p38
        %p288 = pneg %p62
        %p289 = pneg %p59
        %p290 = pneg %p83
        %p291 = pneg %p80
        %p292 = pneg %p104
        %p293 = pneg %p101
        %p294 = pneg %p125
        %p295 = pneg %p122
        %p296 = pneg %p146
        %p297 = pneg %p143
        %p298 = pneg %p167
        %p299 = pneg %p164
        %p300 = pneg %p193
        %p301 = pneg %p190
        %p302 = scmp.lt.s32.totalorder %s20, 1
        %s303 = scalar_select %p302, %s20, 1
        %s304 = smul.addr %s303, 32
        %s305 = smul.addr %s304, 8
        %s306 = scalar_lea.vmem %s7, %s305
        %p307 = scmp.lt.s32.totalorder %s20, 1
        %s308 = scalar_select %p307, %s20, 1
        %s309 = smul.addr %s308, 32
        %s310 = smul.addr %s309, 8
        %s311 = scalar_lea.vmem %s0, %s310
        %p312 = scmp.lt.s32.totalorder %s20, 1
        %s313 = scalar_select %p312, %s20, 1
        %s314 = smul.addr %s313, 32
        %s315 = smul.addr %s314, 8
        %s316 = scalar_lea.vmem %s7, %s315
        %v318 = vld [vmem:[%s311] sm:$0xff]
        %v319 = vld [vmem:[%s311 + $0x8] sm:$0xff]
        %v320 = vld [vmem:[%s311 + $0x10] sm:$0xff]
        %v321 = vld [vmem:[%s311 + $0x18] sm:$0xff]
        %v322 = vld [vmem:[%s311 + $0x20] sm:$0xff]
        %v323 = vld [vmem:[%s311 + $0x28] sm:$0xff]
        %v324 = vld [vmem:[%s311 + $0x30] sm:$0xff]
        %v325 = vld [vmem:[%s311 + $0x38] sm:$0xff]
        %v326 = vld [vmem:[%s311 + $0x40] sm:$0xff]
        %v327 = vld [vmem:[%s311 + $0x48] sm:$0xff]
        %v328 = vld [vmem:[%s311 + $0x50] sm:$0xff]
        %v329 = vld [vmem:[%s311 + $0x58] sm:$0xff]
        %v330 = vld [vmem:[%s311 + $0x60] sm:$0xff]
        %v331 = vld [vmem:[%s311 + $0x68] sm:$0xff]
        %v332 = vld [vmem:[%s311 + $0x70] sm:$0xff]
        %v333 = vld [vmem:[%s311 + $0x78] sm:$0xff]
        %v334 = vld [vmem:[%s311 + $0x80] sm:$0xff]
        %v335 = vld [vmem:[%s311 + $0x88] sm:$0xff]
        %v336 = vld [vmem:[%s311 + $0x90] sm:$0xff]
        %v337 = vld [vmem:[%s311 + $0x98] sm:$0xff]
        %v338 = vld [vmem:[%s311 + $0xa0] sm:$0xff]
        %v339 = vld [vmem:[%s311 + $0xa8] sm:$0xff]
        %v340 = vld [vmem:[%s311 + $0xb0] sm:$0xff]
        %v341 = vld [vmem:[%s311 + $0xb8] sm:$0xff]
        %v342 = vld [vmem:[%s311 + $0xc0] sm:$0xff]
        %v343 = vld [vmem:[%s311 + $0xc8] sm:$0xff]
        %v344 = vld [vmem:[%s311 + $0xd0] sm:$0xff]
        %v345 = vld [vmem:[%s311 + $0xd8] sm:$0xff]
        %v346 = vld [vmem:[%s311 + $0xe0] sm:$0xff]
        %v347 = vld [vmem:[%s311 + $0xe8] sm:$0xff]
        %v348 = vld [vmem:[%s311 + $0xf0] sm:$0xff]
        %v349 = vld [vmem:[%s311 + $0xf8] sm:$0xff]
        %vm350 = vcmask 23552
        %351 = vst.msk [vmem:[#allocation2] sm:$0xff] %vm350, 0.0
        %352 = vst.msk [vmem:[#allocation2 + $0x8] sm:$0xff] %vm350, 0.0
        %vm353 = vcmask 19456
        %354 = vst.msk [vmem:[#allocation2 + $0x10] sm:$0xf] %vm353, 0.0
        %355 = vst.msk [vmem:[#allocation2 + $0x18] sm:$0xff] %vm350, 0.0
        %356 = vst.msk [vmem:[#allocation2 + $0x20] sm:$0xff] %vm350, 0.0
        %357 = vst.msk [vmem:[#allocation2 + $0x28] sm:$0xf] %vm353, 0.0
        %358 = vst.msk [vmem:[#allocation2 + $0x30] sm:$0xff] %vm350, 0.0
        %359 = vst.msk [vmem:[#allocation2 + $0x38] sm:$0xff] %vm350, 0.0
        %360 = vst.msk [vmem:[#allocation2 + $0x40] sm:$0xf] %vm353, 0.0
        %361 = vst.msk [vmem:[#allocation2 + $0x48] sm:$0xff] %vm350, 0.0
        %362 = vst.msk [vmem:[#allocation2 + $0x50] sm:$0xff] %vm350, 0.0
        %363 = vst.msk [vmem:[#allocation2 + $0x58] sm:$0xf] %vm353, 0.0
        %364 = vst.msk [vmem:[#allocation2 + $0x60] sm:$0xff] %vm350, 0.0
        %365 = vst.msk [vmem:[#allocation2 + $0x68] sm:$0xff] %vm350, 0.0
        %366 = vst.msk [vmem:[#allocation2 + $0x70] sm:$0xf] %vm353, 0.0
        %367 = vst.msk [vmem:[#allocation2 + $0x78] sm:$0xff] %vm350, 0.0
        %368 = vst.msk [vmem:[#allocation2 + $0x80] sm:$0xff] %vm350, 0.0
        %369 = vst.msk [vmem:[#allocation2 + $0x88] sm:$0xf] %vm353, 0.0
        %370 = vst.msk [vmem:[#allocation2 + $0x90] sm:$0xff] %vm350, 0.0
        %371 = vst.msk [vmem:[#allocation2 + $0x98] sm:$0xff] %vm350, 0.0
        %372 = vst.msk [vmem:[#allocation2 + $0xa0] sm:$0xf] %vm353, 0.0
        %373 = vst.msk [vmem:[#allocation2 + $0xa8] sm:$0xff] %vm350, 0.0
        %374 = vst.msk [vmem:[#allocation2 + $0xb0] sm:$0xff] %vm350, 0.0
        %375 = vst.msk [vmem:[#allocation2 + $0xb8] sm:$0xf] %vm353, 0.0
        %376 = vst.msk [vmem:[#allocation2 + $0xc0] sm:$0xff] %vm350, 0.0
        %377 = vst.msk [vmem:[#allocation2 + $0xc8] sm:$0xff] %vm350, 0.0
        %378 = vst.msk [vmem:[#allocation2 + $0xd0] sm:$0xf] %vm353, 0.0
        %379 = vst.msk [vmem:[#allocation2 + $0xd8] sm:$0xff] %vm350, 0.0
        %380 = vst.msk [vmem:[#allocation2 + $0xe0] sm:$0xff] %vm350, 0.0
        %381 = vst.msk [vmem:[#allocation2 + $0xe8] sm:$0xf] %vm353, 0.0
        %382 = vst.msk [vmem:[#allocation2 + $0xf0] sm:$0xff] %vm350, 0.0
        %383 = vst.msk [vmem:[#allocation2 + $0xf8] sm:$0xff] %vm350, 0.0
        %384 = vst.msk [vmem:[#allocation2 + $0x100] sm:$0xf] %vm353, 0.0
        %385 = vst.msk [vmem:[#allocation2 + $0x108] sm:$0xff] %vm350, 0.0
        %386 = vst.msk [vmem:[#allocation2 + $0x110] sm:$0xff] %vm350, 0.0
        %387 = vst.msk [vmem:[#allocation2 + $0x118] sm:$0xf] %vm353, 0.0
        %388 = vst.msk [vmem:[#allocation2 + $0x120] sm:$0xff] %vm350, 0.0
        %389 = vst.msk [vmem:[#allocation2 + $0x128] sm:$0xff] %vm350, 0.0
        %390 = vst.msk [vmem:[#allocation2 + $0x130] sm:$0xf] %vm353, 0.0
        %391 = vst.msk [vmem:[#allocation2 + $0x138] sm:$0xff] %vm350, 0.0
        %392 = vst.msk [vmem:[#allocation2 + $0x140] sm:$0xff] %vm350, 0.0
        %393 = vst.msk [vmem:[#allocation2 + $0x148] sm:$0xf] %vm353, 0.0
        %394 = vst.msk [vmem:[#allocation2 + $0x150] sm:$0xff] %vm350, 0.0
        %395 = vst.msk [vmem:[#allocation2 + $0x158] sm:$0xff] %vm350, 0.0
        %396 = vst.msk [vmem:[#allocation2 + $0x160] sm:$0xf] %vm353, 0.0
        %397 = vst.msk [vmem:[#allocation2 + $0x168] sm:$0xff] %vm350, 0.0
        %398 = vst.msk [vmem:[#allocation2 + $0x170] sm:$0xff] %vm350, 0.0
        %399 = vst.msk [vmem:[#allocation2 + $0x178] sm:$0xf] %vm353, 0.0
        %400 = vst.msk [vmem:[#allocation2 + $0x180] sm:$0xff] %vm350, 0.0
        %401 = vst.msk [vmem:[#allocation2 + $0x188] sm:$0xff] %vm350, 0.0
        %402 = vst.msk [vmem:[#allocation2 + $0x190] sm:$0xf] %vm353, 0.0
        %403 = vst.msk [vmem:[#allocation2 + $0x198] sm:$0xff] %vm350, 0.0
        %404 = vst.msk [vmem:[#allocation2 + $0x1a0] sm:$0xff] %vm350, 0.0
        %405 = vst.msk [vmem:[#allocation2 + $0x1a8] sm:$0xf] %vm353, 0.0
        %406 = vst.msk [vmem:[#allocation2 + $0x1b0] sm:$0xff] %vm350, 0.0
        %407 = vst.msk [vmem:[#allocation2 + $0x1b8] sm:$0xff] %vm350, 0.0
        %408 = vst.msk [vmem:[#allocation2 + $0x1c0] sm:$0xf] %vm353, 0.0
        %409 = vst.msk [vmem:[#allocation2 + $0x1c8] sm:$0xff] %vm350, 0.0
        %410 = vst.msk [vmem:[#allocation2 + $0x1d0] sm:$0xff] %vm350, 0.0
        %411 = vst.msk [vmem:[#allocation2 + $0x1d8] sm:$0xf] %vm353, 0.0
        %s412 = scalar_lea.vmem [#allocation2], 48
        %413 = vst.msk [vmem:[%s412 + $0x2] sm:$0xff] %vm350, %v318
        %414 = vst.msk [vmem:[%s412 + $0xa] sm:$0xff] %vm350, %v319
        %415 = vst.msk [vmem:[%s412 + $0x1a] sm:$0xff] %vm350, %v320
        %416 = vst.msk [vmem:[%s412 + $0x22] sm:$0xff] %vm350, %v321
        %417 = vst.msk [vmem:[%s412 + $0x32] sm:$0xff] %vm350, %v322
        %418 = vst.msk [vmem:[%s412 + $0x3a] sm:$0xff] %vm350, %v323
        %419 = vst.msk [vmem:[%s412 + $0x4a] sm:$0xff] %vm350, %v324
        %420 = vst.msk [vmem:[%s412 + $0x52] sm:$0xff] %vm350, %v325
        %421 = vst.msk [vmem:[%s412 + $0x62] sm:$0xff] %vm350, %v326
        %422 = vst.msk [vmem:[%s412 + $0x6a] sm:$0xff] %vm350, %v327
        %423 = vst.msk [vmem:[%s412 + $0x7a] sm:$0xff] %vm350, %v328
        %424 = vst.msk [vmem:[%s412 + $0x82] sm:$0xff] %vm350, %v329
        %425 = vst.msk [vmem:[%s412 + $0x92] sm:$0xff] %vm350, %v330
        %426 = vst.msk [vmem:[%s412 + $0x9a] sm:$0xff] %vm350, %v331
        %427 = vst.msk [vmem:[%s412 + $0xaa] sm:$0xff] %vm350, %v332
        %428 = vst.msk [vmem:[%s412 + $0xb2] sm:$0xff] %vm350, %v333
        %429 = vst.msk [vmem:[%s412 + $0xc2] sm:$0xff] %vm350, %v334
        %430 = vst.msk [vmem:[%s412 + $0xca] sm:$0xff] %vm350, %v335
        %431 = vst.msk [vmem:[%s412 + $0xda] sm:$0xff] %vm350, %v336
        %432 = vst.msk [vmem:[%s412 + $0xe2] sm:$0xff] %vm350, %v337
        %433 = vst.msk [vmem:[%s412 + $0xf2] sm:$0xff] %vm350, %v338
        %434 = vst.msk [vmem:[%s412 + $0xfa] sm:$0xff] %vm350, %v339
        %435 = vst.msk [vmem:[%s412 + $0x10a] sm:$0xff] %vm350, %v340
        %436 = vst.msk [vmem:[%s412 + $0x112] sm:$0xff] %vm350, %v341
        %437 = vst.msk [vmem:[%s412 + $0x122] sm:$0xff] %vm350, %v342
        %438 = vst.msk [vmem:[%s412 + $0x12a] sm:$0xff] %vm350, %v343
        %439 = vst.msk [vmem:[%s412 + $0x13a] sm:$0xff] %vm350, %v344
        %440 = vst.msk [vmem:[%s412 + $0x142] sm:$0xff] %vm350, %v345
        %441 = vst.msk [vmem:[%s412 + $0x152] sm:$0xff] %vm350, %v346
        %442 = vst.msk [vmem:[%s412 + $0x15a] sm:$0xff] %vm350, %v347
        %443 = vst.msk [vmem:[%s412 + $0x16a] sm:$0xff] %vm350, %v348
        %444 = vst.msk [vmem:[%s412 + $0x172] sm:$0xff] %vm350, %v349
        %v445 = vld [vmem:[#allocation2] sm:$0xff]
        %v446 = vld [vmem:[#allocation2 + $0x8] sm:$0xff]
        %v447 = vld [vmem:[#allocation2 + $0x18] sm:$0xff]
        %v448 = vld [vmem:[#allocation2 + $0x20] sm:$0xff]
        %v449 = vld [vmem:[#allocation2 + $0x30] sm:$0xff]
        %v450 = vld [vmem:[#allocation2 + $0x38] sm:$0xff]
        %v451 = vld [vmem:[#allocation2 + $0x48] sm:$0xff]
        %v452 = vld [vmem:[#allocation2 + $0x50] sm:$0xff]
        %v453 = vld [vmem:[#allocation2 + $0x60] sm:$0xff]
        %v454 = vld [vmem:[#allocation2 + $0x68] sm:$0xff]
        %v455 = vld [vmem:[#allocation2 + $0x78] sm:$0xff]
        %v456 = vld [vmem:[#allocation2 + $0x80] sm:$0xff]
        %v457 = vld [vmem:[#allocation2 + $0x90] sm:$0xff]
        %v458 = vld [vmem:[#allocation2 + $0x98] sm:$0xff]
        %v459 = vld [vmem:[#allocation2 + $0xa8] sm:$0xff]
        %v460 = vld [vmem:[#allocation2 + $0xb0] sm:$0xff]
        %v461 = vld [vmem:[#allocation2 + $0xc0] sm:$0xff]
        %v462 = vld [vmem:[#allocation2 + $0xc8] sm:$0xff]
        %v463 = vld [vmem:[#allocation2 + $0xd8] sm:$0xff]
        %v464 = vld [vmem:[#allocation2 + $0xe0] sm:$0xff]
        %v465 = vld [vmem:[#allocation2 + $0xf0] sm:$0xff]
        %v466 = vld [vmem:[#allocation2 + $0xf8] sm:$0xff]
        %v467 = vld [vmem:[#allocation2 + $0x108] sm:$0xff]
        %v468 = vld [vmem:[#allocation2 + $0x110] sm:$0xff]
        %v469 = vld [vmem:[#allocation2 + $0x120] sm:$0xff]
        %v470 = vld [vmem:[#allocation2 + $0x128] sm:$0xff]
        %v471 = vld [vmem:[#allocation2 + $0x138] sm:$0xff]
        %v472 = vld [vmem:[#allocation2 + $0x140] sm:$0xff]
        %v473 = vld [vmem:[#allocation2 + $0x150] sm:$0xff]
        %v474 = vld [vmem:[#allocation2 + $0x158] sm:$0xff]
        %v475 = vld [vmem:[#allocation2 + $0x168] sm:$0xff]
        %v476 = vld [vmem:[#allocation2 + $0x170] sm:$0xff]
        %477 = vst.msk [vmem:[#allocation5] sm:$0xff] %vm350, %v445
        %478 = vst.msk [vmem:[#allocation5 + $0x8] sm:$0xff] %vm350, %v446
        %479 = vst.msk [vmem:[#allocation5 + $0x10] sm:$0xff] %vm350, %v447
        %480 = vst.msk [vmem:[#allocation5 + $0x18] sm:$0xff] %vm350, %v448
        %481 = vst.msk [vmem:[#allocation5 + $0x20] sm:$0xff] %vm350, %v449
        %482 = vst.msk [vmem:[#allocation5 + $0x28] sm:$0xff] %vm350, %v450
        %483 = vst.msk [vmem:[#allocation5 + $0x30] sm:$0xff] %vm350, %v451
        %484 = vst.msk [vmem:[#allocation5 + $0x38] sm:$0xff] %vm350, %v452
        %485 = vst.msk [vmem:[#allocation5 + $0x40] sm:$0xff] %vm350, %v453
        %486 = vst.msk [vmem:[#allocation5 + $0x48] sm:$0xff] %vm350, %v454
        %487 = vst.msk [vmem:[#allocation5 + $0x50] sm:$0xff] %vm350, %v455
        %488 = vst.msk [vmem:[#allocation5 + $0x58] sm:$0xff] %vm350, %v456
        %489 = vst.msk [vmem:[#allocation5 + $0x60] sm:$0xff] %vm350, %v457
        %490 = vst.msk [vmem:[#allocation5 + $0x68] sm:$0xff] %vm350, %v458
        %491 = vst.msk [vmem:[#allocation5 + $0x70] sm:$0xff] %vm350, %v459
        %492 = vst.msk [vmem:[#allocation5 + $0x78] sm:$0xff] %vm350, %v460
        %493 = vst.msk [vmem:[#allocation5 + $0x80] sm:$0xff] %vm350, %v461
        %494 = vst.msk [vmem:[#allocation5 + $0x88] sm:$0xff] %vm350, %v462
        %495 = vst.msk [vmem:[#allocation5 + $0x90] sm:$0xff] %vm350, %v463
        %496 = vst.msk [vmem:[#allocation5 + $0x98] sm:$0xff] %vm350, %v464
        %497 = vst.msk [vmem:[#allocation5 + $0xa0] sm:$0xff] %vm350, %v465
        %498 = vst.msk [vmem:[#allocation5 + $0xa8] sm:$0xff] %vm350, %v466
        %499 = vst.msk [vmem:[#allocation5 + $0xb0] sm:$0xff] %vm350, %v467
        %500 = vst.msk [vmem:[#allocation5 + $0xb8] sm:$0xff] %vm350, %v468
        %501 = vst.msk [vmem:[#allocation5 + $0xc0] sm:$0xff] %vm350, %v469
        %502 = vst.msk [vmem:[#allocation5 + $0xc8] sm:$0xff] %vm350, %v470
        %503 = vst.msk [vmem:[#allocation5 + $0xd0] sm:$0xff] %vm350, %v471
        %504 = vst.msk [vmem:[#allocation5 + $0xd8] sm:$0xff] %vm350, %v472
        %505 = vst.msk [vmem:[#allocation5 + $0xe0] sm:$0xff] %vm350, %v473
        %506 = vst.msk [vmem:[#allocation5 + $0xe8] sm:$0xff] %vm350, %v474
        %507 = vst.msk [vmem:[#allocation5 + $0xf0] sm:$0xff] %vm350, %v475
        %508 = vst.msk [vmem:[#allocation5 + $0xf8] sm:$0xff] %vm350, %v476
        %v509 = vld [vmem:[#allocation2 + $0x1] sm:$0xff]
        %v510 = vld [vmem:[#allocation2 + $0x9] sm:$0xff]
        %v511 = vld [vmem:[#allocation2 + $0x19] sm:$0xff]
        %v512 = vld [vmem:[#allocation2 + $0x21] sm:$0xff]
        %v513 = vld [vmem:[#allocation2 + $0x31] sm:$0xff]
        %v514 = vld [vmem:[#allocation2 + $0x39] sm:$0xff]
        %v515 = vld [vmem:[#allocation2 + $0x49] sm:$0xff]
        %v516 = vld [vmem:[#allocation2 + $0x51] sm:$0xff]
        %v517 = vld [vmem:[#allocation2 + $0x61] sm:$0xff]
        %v518 = vld [vmem:[#allocation2 + $0x69] sm:$0xff]
        %v519 = vld [vmem:[#allocation2 + $0x79] sm:$0xff]
        %v520 = vld [vmem:[#allocation2 + $0x81] sm:$0xff]
        %v521 = vld [vmem:[#allocation2 + $0x91] sm:$0xff]
        %v522 = vld [vmem:[#allocation2 + $0x99] sm:$0xff]
        %v523 = vld [vmem:[#allocation2 + $0xa9] sm:$0xff]
        %v524 = vld [vmem:[#allocation2 + $0xb1] sm:$0xff]
        %v525 = vld [vmem:[#allocation2 + $0xc1] sm:$0xff]
        %v526 = vld [vmem:[#allocation2 + $0xc9] sm:$0xff]
        %v527 = vld [vmem:[#allocation2 + $0xd9] sm:$0xff]
        %v528 = vld [vmem:[#allocation2 + $0xe1] sm:$0xff]
        %v529 = vld [vmem:[#allocation2 + $0xf1] sm:$0xff]
        %v530 = vld [vmem:[#allocation2 + $0xf9] sm:$0xff]
        %v531 = vld [vmem:[#allocation2 + $0x109] sm:$0xff]
        %v532 = vld [vmem:[#allocation2 + $0x111] sm:$0xff]
        %v533 = vld [vmem:[#allocation2 + $0x121] sm:$0xff]
        %v534 = vld [vmem:[#allocation2 + $0x129] sm:$0xff]
        %v535 = vld [vmem:[#allocation2 + $0x139] sm:$0xff]
        %v536 = vld [vmem:[#allocation2 + $0x141] sm:$0xff]
        %v537 = vld [vmem:[#allocation2 + $0x151] sm:$0xff]
        %v538 = vld [vmem:[#allocation2 + $0x159] sm:$0xff]
        %v539 = vld [vmem:[#allocation2 + $0x169] sm:$0xff]
        %v540 = vld [vmem:[#allocation2 + $0x171] sm:$0xff]
        %573 = vrot.lane.b32.xlu0 %v509, 3
        %v574 = vpop.permute.xlu0 %573
        %575 = vrot.lane.b32.xlu0 %v510, 3
        %v576 = vpop.permute.xlu0 %575
        %577 = vrot.lane.b32.xlu0 %v511, 3
        %v578 = vpop.permute.xlu0 %577
        %579 = vrot.lane.b32.xlu0 %v512, 3
        %v580 = vpop.permute.xlu0 %579
        %581 = vrot.lane.b32.xlu0 %v513, 3
        %v582 = vpop.permute.xlu0 %581
        %583 = vrot.lane.b32.xlu0 %v514, 3
        %v584 = vpop.permute.xlu0 %583
        %585 = vrot.lane.b32.xlu0 %v515, 3
        %v586 = vpop.permute.xlu0 %585
        %587 = vrot.lane.b32.xlu0 %v516, 3
        %v588 = vpop.permute.xlu0 %587
        %589 = vrot.lane.b32.xlu0 %v517, 3
        %v590 = vpop.permute.xlu0 %589
        %591 = vrot.lane.b32.xlu0 %v518, 3
        %v592 = vpop.permute.xlu0 %591
        %593 = vrot.lane.b32.xlu0 %v519, 3
        %v594 = vpop.permute.xlu0 %593
        %595 = vrot.lane.b32.xlu0 %v520, 3
        %v596 = vpop.permute.xlu0 %595
        %597 = vrot.lane.b32.xlu0 %v521, 3
        %v598 = vpop.permute.xlu0 %597
        %599 = vrot.lane.b32.xlu0 %v522, 3
        %v600 = vpop.permute.xlu0 %599
        %601 = vrot.lane.b32.xlu0 %v523, 3
        %v602 = vpop.permute.xlu0 %601
        %603 = vrot.lane.b32.xlu0 %v524, 3
        %v604 = vpop.permute.xlu0 %603
        %605 = vrot.lane.b32.xlu0 %v525, 3
        %v606 = vpop.permute.xlu0 %605
        %607 = vrot.lane.b32.xlu0 %v526, 3
        %v608 = vpop.permute.xlu0 %607
        %609 = vrot.lane.b32.xlu0 %v527, 3
        %v610 = vpop.permute.xlu0 %609
        %611 = vrot.lane.b32.xlu0 %v528, 3
        %v612 = vpop.permute.xlu0 %611
        %613 = vrot.lane.b32.xlu0 %v529, 3
        %v614 = vpop.permute.xlu0 %613
        %615 = vrot.lane.b32.xlu0 %v530, 3
        %v616 = vpop.permute.xlu0 %615
        %617 = vrot.lane.b32.xlu0 %v531, 3
        %v618 = vpop.permute.xlu0 %617
        %619 = vrot.lane.b32.xlu0 %v532, 3
        %v620 = vpop.permute.xlu0 %619
        %621 = vrot.lane.b32.xlu0 %v533, 3
        %v622 = vpop.permute.xlu0 %621
        %623 = vrot.lane.b32.xlu0 %v534, 3
        %v624 = vpop.permute.xlu0 %623
        %625 = vrot.lane.b32.xlu0 %v535, 3
        %v626 = vpop.permute.xlu0 %625
        %627 = vrot.lane.b32.xlu0 %v536, 3
        %v628 = vpop.permute.xlu0 %627
        %629 = vrot.lane.b32.xlu0 %v537, 3
        %v630 = vpop.permute.xlu0 %629
        %631 = vrot.lane.b32.xlu0 %v538, 3
        %v632 = vpop.permute.xlu0 %631
        %633 = vrot.lane.b32.xlu0 %v539, 3
        %v634 = vpop.permute.xlu0 %633
        %635 = vrot.lane.b32.xlu0 %v540, 3
        %v636 = vpop.permute.xlu0 %635
        %vm669 = vcmask 48152
        %670 = vst.msk [vmem:[#allocation5] sm:$0xff] %vm669, %v574
        %671 = vst.msk [vmem:[#allocation5 + $0x8] sm:$0xff] %vm669, %v576
        %672 = vst.msk [vmem:[#allocation5 + $0x10] sm:$0xff] %vm669, %v578
        %673 = vst.msk [vmem:[#allocation5 + $0x18] sm:$0xff] %vm669, %v580
        %674 = vst.msk [vmem:[#allocation5 + $0x20] sm:$0xff] %vm669, %v582
        %675 = vst.msk [vmem:[#allocation5 + $0x28] sm:$0xff] %vm669, %v584
        %676 = vst.msk [vmem:[#allocation5 + $0x30] sm:$0xff] %vm669, %v586
        %677 = vst.msk [vmem:[#allocation5 + $0x38] sm:$0xff] %vm669, %v588
        %678 = vst.msk [vmem:[#allocation5 + $0x40] sm:$0xff] %vm669, %v590
        %679 = vst.msk [vmem:[#allocation5 + $0x48] sm:$0xff] %vm669, %v592
        %680 = vst.msk [vmem:[#allocation5 + $0x50] sm:$0xff] %vm669, %v594
        %681 = vst.msk [vmem:[#allocation5 + $0x58] sm:$0xff] %vm669, %v596
        %682 = vst.msk [vmem:[#allocation5 + $0x60] sm:$0xff] %vm669, %v598
        %683 = vst.msk [vmem:[#allocation5 + $0x68] sm:$0xff] %vm669, %v600
        %684 = vst.msk [vmem:[#allocation5 + $0x70] sm:$0xff] %vm669, %v602
        %685 = vst.msk [vmem:[#allocation5 + $0x78] sm:$0xff] %vm669, %v604
        %686 = vst.msk [vmem:[#allocation5 + $0x80] sm:$0xff] %vm669, %v606
        %687 = vst.msk [vmem:[#allocation5 + $0x88] sm:$0xff] %vm669, %v608
        %688 = vst.msk [vmem:[#allocation5 + $0x90] sm:$0xff] %vm669, %v610
        %689 = vst.msk [vmem:[#allocation5 + $0x98] sm:$0xff] %vm669, %v612
        %690 = vst.msk [vmem:[#allocation5 + $0xa0] sm:$0xff] %vm669, %v614
        %691 = vst.msk [vmem:[#allocation5 + $0xa8] sm:$0xff] %vm669, %v616
        %692 = vst.msk [vmem:[#allocation5 + $0xb0] sm:$0xff] %vm669, %v618
        %693 = vst.msk [vmem:[#allocation5 + $0xb8] sm:$0xff] %vm669, %v620
        %694 = vst.msk [vmem:[#allocation5 + $0xc0] sm:$0xff] %vm669, %v622
        %695 = vst.msk [vmem:[#allocation5 + $0xc8] sm:$0xff] %vm669, %v624
        %696 = vst.msk [vmem:[#allocation5 + $0xd0] sm:$0xff] %vm669, %v626
        %697 = vst.msk [vmem:[#allocation5 + $0xd8] sm:$0xff] %vm669, %v628
        %698 = vst.msk [vmem:[#allocation5 + $0xe0] sm:$0xff] %vm669, %v630
        %699 = vst.msk [vmem:[#allocation5 + $0xe8] sm:$0xff] %vm669, %v632
        %700 = vst.msk [vmem:[#allocation5 + $0xf0] sm:$0xff] %vm669, %v634
        %701 = vst.msk [vmem:[#allocation5 + $0xf8] sm:$0xff] %vm669, %v636
        %v702 = vld [vmem:[#allocation2 + $0x2] sm:$0xff]
        %v703 = vld [vmem:[#allocation2 + $0xa] sm:$0xff]
        %v704 = vld [vmem:[#allocation2 + $0x1a] sm:$0xff]
        %v705 = vld [vmem:[#allocation2 + $0x22] sm:$0xff]
        %v706 = vld [vmem:[#allocation2 + $0x32] sm:$0xff]
        %v707 = vld [vmem:[#allocation2 + $0x3a] sm:$0xff]
        %v708 = vld [vmem:[#allocation2 + $0x4a] sm:$0xff]
        %v709 = vld [vmem:[#allocation2 + $0x52] sm:$0xff]
        %v710 = vld [vmem:[#allocation2 + $0x62] sm:$0xff]
        %v711 = vld [vmem:[#allocation2 + $0x6a] sm:$0xff]
        %v712 = vld [vmem:[#allocation2 + $0x7a] sm:$0xff]
        %v713 = vld [vmem:[#allocation2 + $0x82] sm:$0xff]
        %v714 = vld [vmem:[#allocation2 + $0x92] sm:$0xff]
        %v715 = vld [vmem:[#allocation2 + $0x9a] sm:$0xff]
        %v716 = vld [vmem:[#allocation2 + $0xaa] sm:$0xff]
        %v717 = vld [vmem:[#allocation2 + $0xb2] sm:$0xff]
        %v718 = vld [vmem:[#allocation2 + $0xc2] sm:$0xff]
        %v719 = vld [vmem:[#allocation2 + $0xca] sm:$0xff]
        %v720 = vld [vmem:[#allocation2 + $0xda] sm:$0xff]
        %v721 = vld [vmem:[#allocation2 + $0xe2] sm:$0xff]
        %v722 = vld [vmem:[#allocation2 + $0xf2] sm:$0xff]
        %v723 = vld [vmem:[#allocation2 + $0xfa] sm:$0xff]
        %v724 = vld [vmem:[#allocation2 + $0x10a] sm:$0xff]
        %v725 = vld [vmem:[#allocation2 + $0x112] sm:$0xff]
        %v726 = vld [vmem:[#allocation2 + $0x122] sm:$0xff]
        %v727 = vld [vmem:[#allocation2 + $0x12a] sm:$0xff]
        %v728 = vld [vmem:[#allocation2 + $0x13a] sm:$0xff]
        %v729 = vld [vmem:[#allocation2 + $0x142] sm:$0xff]
        %v730 = vld [vmem:[#allocation2 + $0x152] sm:$0xff]
        %v731 = vld [vmem:[#allocation2 + $0x15a] sm:$0xff]
        %v732 = vld [vmem:[#allocation2 + $0x16a] sm:$0xff]
        %v733 = vld [vmem:[#allocation2 + $0x172] sm:$0xff]
        %766 = vrot.lane.b32.xlu0 %v702, 6
        %v767 = vpop.permute.xlu0 %766
        %768 = vrot.lane.b32.xlu0 %v703, 6
        %v769 = vpop.permute.xlu0 %768
        %770 = vrot.lane.b32.xlu0 %v704, 6
        %v771 = vpop.permute.xlu0 %770
        %772 = vrot.lane.b32.xlu0 %v705, 6
        %v773 = vpop.permute.xlu0 %772
        %774 = vrot.lane.b32.xlu0 %v706, 6
        %v775 = vpop.permute.xlu0 %774
        %776 = vrot.lane.b32.xlu0 %v707, 6
        %v777 = vpop.permute.xlu0 %776
        %778 = vrot.lane.b32.xlu0 %v708, 6
        %v779 = vpop.permute.xlu0 %778
        %780 = vrot.lane.b32.xlu0 %v709, 6
        %v781 = vpop.permute.xlu0 %780
        %782 = vrot.lane.b32.xlu0 %v710, 6
        %v783 = vpop.permute.xlu0 %782
        %784 = vrot.lane.b32.xlu0 %v711, 6
        %v785 = vpop.permute.xlu0 %784
        %786 = vrot.lane.b32.xlu0 %v712, 6
        %v787 = vpop.permute.xlu0 %786
        %788 = vrot.lane.b32.xlu0 %v713, 6
        %v789 = vpop.permute.xlu0 %788
        %790 = vrot.lane.b32.xlu0 %v714, 6
        %v791 = vpop.permute.xlu0 %790
        %792 = vrot.lane.b32.xlu0 %v715, 6
        %v793 = vpop.permute.xlu0 %792
        %794 = vrot.lane.b32.xlu0 %v716, 6
        %v795 = vpop.permute.xlu0 %794
        %796 = vrot.lane.b32.xlu0 %v717, 6
        %v797 = vpop.permute.xlu0 %796
        %798 = vrot.lane.b32.xlu0 %v718, 6
        %v799 = vpop.permute.xlu0 %798
        %800 = vrot.lane.b32.xlu0 %v719, 6
        %v801 = vpop.permute.xlu0 %800
        %802 = vrot.lane.b32.xlu0 %v720, 6
        %v803 = vpop.permute.xlu0 %802
        %804 = vrot.lane.b32.xlu0 %v721, 6
        %v805 = vpop.permute.xlu0 %804
        %806 = vrot.lane.b32.xlu0 %v722, 6
        %v807 = vpop.permute.xlu0 %806
        %808 = vrot.lane.b32.xlu0 %v723, 6
        %v809 = vpop.permute.xlu0 %808
        %810 = vrot.lane.b32.xlu0 %v724, 6
        %v811 = vpop.permute.xlu0 %810
        %812 = vrot.lane.b32.xlu0 %v725, 6
        %v813 = vpop.permute.xlu0 %812
        %814 = vrot.lane.b32.xlu0 %v726, 6
        %v815 = vpop.permute.xlu0 %814
        %816 = vrot.lane.b32.xlu0 %v727, 6
        %v817 = vpop.permute.xlu0 %816
        %818 = vrot.lane.b32.xlu0 %v728, 6
        %v819 = vpop.permute.xlu0 %818
        %820 = vrot.lane.b32.xlu0 %v729, 6
        %v821 = vpop.permute.xlu0 %820
        %822 = vrot.lane.b32.xlu0 %v730, 6
        %v823 = vpop.permute.xlu0 %822
        %824 = vrot.lane.b32.xlu0 %v731, 6
        %v825 = vpop.permute.xlu0 %824
        %826 = vrot.lane.b32.xlu0 %v732, 6
        %v827 = vpop.permute.xlu0 %826
        %828 = vrot.lane.b32.xlu0 %v733, 6
        %v829 = vpop.permute.xlu0 %828
        %vm862 = vcmask 72752
        %863 = vst.msk [vmem:[#allocation5] sm:$0xff] %vm862, %v767
        %864 = vst.msk [vmem:[#allocation5 + $0x8] sm:$0xff] %vm862, %v769
        %865 = vst.msk [vmem:[#allocation5 + $0x10] sm:$0xff] %vm862, %v771
        %866 = vst.msk [vmem:[#allocation5 + $0x18] sm:$0xff] %vm862, %v773
        %867 = vst.msk [vmem:[#allocation5 + $0x20] sm:$0xff] %vm862, %v775
        %868 = vst.msk [vmem:[#allocation5 + $0x28] sm:$0xff] %vm862, %v777
        %869 = vst.msk [vmem:[#allocation5 + $0x30] sm:$0xff] %vm862, %v779
        %870 = vst.msk [vmem:[#allocation5 + $0x38] sm:$0xff] %vm862, %v781
        %871 = vst.msk [vmem:[#allocation5 + $0x40] sm:$0xff] %vm862, %v783
        %872 = vst.msk [vmem:[#allocation5 + $0x48] sm:$0xff] %vm862, %v785
        %873 = vst.msk [vmem:[#allocation5 + $0x50] sm:$0xff] %vm862, %v787
        %874 = vst.msk [vmem:[#allocation5 + $0x58] sm:$0xff] %vm862, %v789
        %875 = vst.msk [vmem:[#allocation5 + $0x60] sm:$0xff] %vm862, %v791
        %876 = vst.msk [vmem:[#allocation5 + $0x68] sm:$0xff] %vm862, %v793
        %877 = vst.msk [vmem:[#allocation5 + $0x70] sm:$0xff] %vm862, %v795
        %878 = vst.msk [vmem:[#allocation5 + $0x78] sm:$0xff] %vm862, %v797
        %879 = vst.msk [vmem:[#allocation5 + $0x80] sm:$0xff] %vm862, %v799
        %880 = vst.msk [vmem:[#allocation5 + $0x88] sm:$0xff] %vm862, %v801
        %881 = vst.msk [vmem:[#allocation5 + $0x90] sm:$0xff] %vm862, %v803
        %882 = vst.msk [vmem:[#allocation5 + $0x98] sm:$0xff] %vm862, %v805
        %883 = vst.msk [vmem:[#allocation5 + $0xa0] sm:$0xff] %vm862, %v807
        %884 = vst.msk [vmem:[#allocation5 + $0xa8] sm:$0xff] %vm862, %v809
        %885 = vst.msk [vmem:[#allocation5 + $0xb0] sm:$0xff] %vm862, %v811
        %886 = vst.msk [vmem:[#allocation5 + $0xb8] sm:$0xff] %vm862, %v813
        %887 = vst.msk [vmem:[#allocation5 + $0xc0] sm:$0xff] %vm862, %v815
        %888 = vst.msk [vmem:[#allocation5 + $0xc8] sm:$0xff] %vm862, %v817
        %889 = vst.msk [vmem:[#allocation5 + $0xd0] sm:$0xff] %vm862, %v819
        %890 = vst.msk [vmem:[#allocation5 + $0xd8] sm:$0xff] %vm862, %v821
        %891 = vst.msk [vmem:[#allocation5 + $0xe0] sm:$0xff] %vm862, %v823
        %892 = vst.msk [vmem:[#allocation5 + $0xe8] sm:$0xff] %vm862, %v825
        %893 = vst.msk [vmem:[#allocation5 + $0xf0] sm:$0xff] %vm862, %v827
        %894 = vst.msk [vmem:[#allocation5 + $0xf8] sm:$0xff] %vm862, %v829
        %v895 = vld [vmem:[#allocation2 + $0x3] sm:$0xff]
        %v896 = vld [vmem:[#allocation2 + $0xb] sm:$0xff]
        %v897 = vld [vmem:[#allocation2 + $0x1b] sm:$0xff]
        %v898 = vld [vmem:[#allocation2 + $0x23] sm:$0xff]
        %v899 = vld [vmem:[#allocation2 + $0x33] sm:$0xff]
        %v900 = vld [vmem:[#allocation2 + $0x3b] sm:$0xff]
        %v901 = vld [vmem:[#allocation2 + $0x4b] sm:$0xff]
        %v902 = vld [vmem:[#allocation2 + $0x53] sm:$0xff]
        %v903 = vld [vmem:[#allocation2 + $0x63] sm:$0xff]
        %v904 = vld [vmem:[#allocation2 + $0x6b] sm:$0xff]
        %v905 = vld [vmem:[#allocation2 + $0x7b] sm:$0xff]
        %v906 = vld [vmem:[#allocation2 + $0x83] sm:$0xff]
        %v907 = vld [vmem:[#allocation2 + $0x93] sm:$0xff]
        %v908 = vld [vmem:[#allocation2 + $0x9b] sm:$0xff]
        %v909 = vld [vmem:[#allocation2 + $0xab] sm:$0xff]
        %v910 = vld [vmem:[#allocation2 + $0xb3] sm:$0xff]
        %v911 = vld [vmem:[#allocation2 + $0xc3] sm:$0xff]
        %v912 = vld [vmem:[#allocation2 + $0xcb] sm:$0xff]
        %v913 = vld [vmem:[#allocation2 + $0xdb] sm:$0xff]
        %v914 = vld [vmem:[#allocation2 + $0xe3] sm:$0xff]
        %v915 = vld [vmem:[#allocation2 + $0xf3] sm:$0xff]
        %v916 = vld [vmem:[#allocation2 + $0xfb] sm:$0xff]
        %v917 = vld [vmem:[#allocation2 + $0x10b] sm:$0xff]
        %v918 = vld [vmem:[#allocation2 + $0x113] sm:$0xff]
        %v919 = vld [vmem:[#allocation2 + $0x123] sm:$0xff]
        %v920 = vld [vmem:[#allocation2 + $0x12b] sm:$0xff]
        %v921 = vld [vmem:[#allocation2 + $0x13b] sm:$0xff]
        %v922 = vld [vmem:[#allocation2 + $0x143] sm:$0xff]
        %v923 = vld [vmem:[#allocation2 + $0x153] sm:$0xff]
        %v924 = vld [vmem:[#allocation2 + $0x15b] sm:$0xff]
        %v925 = vld [vmem:[#allocation2 + $0x16b] sm:$0xff]
        %v926 = vld [vmem:[#allocation2 + $0x173] sm:$0xff]
        %959 = vrot.lane.b32.xlu0 %v895, 9
        %v960 = vpop.permute.xlu0 %959
        %961 = vrot.lane.b32.xlu0 %v896, 9
        %v962 = vpop.permute.xlu0 %961
        %963 = vrot.lane.b32.xlu0 %v897, 9
        %v964 = vpop.permute.xlu0 %963
        %965 = vrot.lane.b32.xlu0 %v898, 9
        %v966 = vpop.permute.xlu0 %965
        %967 = vrot.lane.b32.xlu0 %v899, 9
        %v968 = vpop.permute.xlu0 %967
        %969 = vrot.lane.b32.xlu0 %v900, 9
        %v970 = vpop.permute.xlu0 %969
        %971 = vrot.lane.b32.xlu0 %v901, 9
        %v972 = vpop.permute.xlu0 %971
        %973 = vrot.lane.b32.xlu0 %v902, 9
        %v974 = vpop.permute.xlu0 %973
        %975 = vrot.lane.b32.xlu0 %v903, 9
        %v976 = vpop.permute.xlu0 %975
        %977 = vrot.lane.b32.xlu0 %v904, 9
        %v978 = vpop.permute.xlu0 %977
        %979 = vrot.lane.b32.xlu0 %v905, 9
        %v980 = vpop.permute.xlu0 %979
        %981 = vrot.lane.b32.xlu0 %v906, 9
        %v982 = vpop.permute.xlu0 %981
        %983 = vrot.lane.b32.xlu0 %v907, 9
        %v984 = vpop.permute.xlu0 %983
        %985 = vrot.lane.b32.xlu0 %v908, 9
        %v986 = vpop.permute.xlu0 %985
        %987 = vrot.lane.b32.xlu0 %v909, 9
        %v988 = vpop.permute.xlu0 %987
        %989 = vrot.lane.b32.xlu0 %v910, 9
        %v990 = vpop.permute.xlu0 %989
        %991 = vrot.lane.b32.xlu0 %v911, 9
        %v992 = vpop.permute.xlu0 %991
        %993 = vrot.lane.b32.xlu0 %v912, 9
        %v994 = vpop.permute.xlu0 %993
        %995 = vrot.lane.b32.xlu0 %v913, 9
        %v996 = vpop.permute.xlu0 %995
        %997 = vrot.lane.b32.xlu0 %v914, 9
        %v998 = vpop.permute.xlu0 %997
        %999 = vrot.lane.b32.xlu0 %v915, 9
        %v1000 = vpop.permute.xlu0 %999
        %1001 = vrot.lane.b32.xlu0 %v916, 9
        %v1002 = vpop.permute.xlu0 %1001
        %1003 = vrot.lane.b32.xlu0 %v917, 9
        %v1004 = vpop.permute.xlu0 %1003
        %1005 = vrot.lane.b32.xlu0 %v918, 9
        %v1006 = vpop.permute.xlu0 %1005
        %1007 = vrot.lane.b32.xlu0 %v919, 9
        %v1008 = vpop.permute.xlu0 %1007
        %1009 = vrot.lane.b32.xlu0 %v920, 9
        %v1010 = vpop.permute.xlu0 %1009
        %1011 = vrot.lane.b32.xlu0 %v921, 9
        %v1012 = vpop.permute.xlu0 %1011
        %1013 = vrot.lane.b32.xlu0 %v922, 9
        %v1014 = vpop.permute.xlu0 %1013
        %1015 = vrot.lane.b32.xlu0 %v923, 9
        %v1016 = vpop.permute.xlu0 %1015
        %1017 = vrot.lane.b32.xlu0 %v924, 9
        %v1018 = vpop.permute.xlu0 %1017
        %1019 = vrot.lane.b32.xlu0 %v925, 9
        %v1020 = vpop.permute.xlu0 %1019
        %1021 = vrot.lane.b32.xlu0 %v926, 9
        %v1022 = vpop.permute.xlu0 %1021
        %vm1055 = vcmask 97352
        %1056 = vst.msk [vmem:[#allocation5] sm:$0xff] %vm1055, %v960
        %1057 = vst.msk [vmem:[#allocation5 + $0x8] sm:$0xff] %vm1055, %v962
        %1058 = vst.msk [vmem:[#allocation5 + $0x10] sm:$0xff] %vm1055, %v964
        %1059 = vst.msk [vmem:[#allocation5 + $0x18] sm:$0xff] %vm1055, %v966
        %1060 = vst.msk [vmem:[#allocation5 + $0x20] sm:$0xff] %vm1055, %v968
        %1061 = vst.msk [vmem:[#allocation5 + $0x28] sm:$0xff] %vm1055, %v970
        %1062 = vst.msk [vmem:[#allocation5 + $0x30] sm:$0xff] %vm1055, %v972
        %1063 = vst.msk [vmem:[#allocation5 + $0x38] sm:$0xff] %vm1055, %v974
        %1064 = vst.msk [vmem:[#allocation5 + $0x40] sm:$0xff] %vm1055, %v976
        %1065 = vst.msk [vmem:[#allocation5 + $0x48] sm:$0xff] %vm1055, %v978
        %1066 = vst.msk [vmem:[#allocation5 + $0x50] sm:$0xff] %vm1055, %v980
        %1067 = vst.msk [vmem:[#allocation5 + $0x58] sm:$0xff] %vm1055, %v982
        %1068 = vst.msk [vmem:[#allocation5 + $0x60] sm:$0xff] %vm1055, %v984
        %1069 = vst.msk [vmem:[#allocation5 + $0x68] sm:$0xff] %vm1055, %v986
        %1070 = vst.msk [vmem:[#allocation5 + $0x70] sm:$0xff] %vm1055, %v988
        %1071 = vst.msk [vmem:[#allocation5 + $0x78] sm:$0xff] %vm1055, %v990
        %1072 = vst.msk [vmem:[#allocation5 + $0x80] sm:$0xff] %vm1055, %v992
        %1073 = vst.msk [vmem:[#allocation5 + $0x88] sm:$0xff] %vm1055, %v994
        %1074 = vst.msk [vmem:[#allocation5 + $0x90] sm:$0xff] %vm1055, %v996
        %1075 = vst.msk [vmem:[#allocation5 + $0x98] sm:$0xff] %vm1055, %v998
        %1076 = vst.msk [vmem:[#allocation5 + $0xa0] sm:$0xff] %vm1055, %v1000
        %1077 = vst.msk [vmem:[#allocation5 + $0xa8] sm:$0xff] %vm1055, %v1002
        %1078 = vst.msk [vmem:[#allocation5 + $0xb0] sm:$0xff] %vm1055, %v1004
        %1079 = vst.msk [vmem:[#allocation5 + $0xb8] sm:$0xff] %vm1055, %v1006
        %1080 = vst.msk [vmem:[#allocation5 + $0xc0] sm:$0xff] %vm1055, %v1008
        %1081 = vst.msk [vmem:[#allocation5 + $0xc8] sm:$0xff] %vm1055, %v1010
        %1082 = vst.msk [vmem:[#allocation5 + $0xd0] sm:$0xff] %vm1055, %v1012
        %1083 = vst.msk [vmem:[#allocation5 + $0xd8] sm:$0xff] %vm1055, %v1014
        %1084 = vst.msk [vmem:[#allocation5 + $0xe0] sm:$0xff] %vm1055, %v1016
        %1085 = vst.msk [vmem:[#allocation5 + $0xe8] sm:$0xff] %vm1055, %v1018
        %1086 = vst.msk [vmem:[#allocation5 + $0xf0] sm:$0xff] %vm1055, %v1020
        %1087 = vst.msk [vmem:[#allocation5 + $0xf8] sm:$0xff] %vm1055, %v1022
        %v1088 = vld [vmem:[#allocation2 + $0x4] sm:$0xff]
        %v1089 = vld [vmem:[#allocation2 + $0xc] sm:$0xff]
        %v1090 = vld [vmem:[#allocation2 + $0x1c] sm:$0xff]
        %v1091 = vld [vmem:[#allocation2 + $0x24] sm:$0xff]
        %v1092 = vld [vmem:[#allocation2 + $0x34] sm:$0xff]
        %v1093 = vld [vmem:[#allocation2 + $0x3c] sm:$0xff]
        %v1094 = vld [vmem:[#allocation2 + $0x4c] sm:$0xff]
        %v1095 = vld [vmem:[#allocation2 + $0x54] sm:$0xff]
        %v1096 = vld [vmem:[#allocation2 + $0x64] sm:$0xff]
        %v1097 = vld [vmem:[#allocation2 + $0x6c] sm:$0xff]
        %v1098 = vld [vmem:[#allocation2 + $0x7c] sm:$0xff]
        %v1099 = vld [vmem:[#allocation2 + $0x84] sm:$0xff]
        %v1100 = vld [vmem:[#allocation2 + $0x94] sm:$0xff]
        %v1101 = vld [vmem:[#allocation2 + $0x9c] sm:$0xff]
        %v1102 = vld [vmem:[#allocation2 + $0xac] sm:$0xff]
        %v1103 = vld [vmem:[#allocation2 + $0xb4] sm:$0xff]
        %v1104 = vld [vmem:[#allocation2 + $0xc4] sm:$0xff]
        %v1105 = vld [vmem:[#allocation2 + $0xcc] sm:$0xff]
        %v1106 = vld [vmem:[#allocation2 + $0xdc] sm:$0xff]
        %v1107 = vld [vmem:[#allocation2 + $0xe4] sm:$0xff]
        %v1108 = vld [vmem:[#allocation2 + $0xf4] sm:$0xff]
        %v1109 = vld [vmem:[#allocation2 + $0xfc] sm:$0xff]
        %v1110 = vld [vmem:[#allocation2 + $0x10c] sm:$0xff]
        %v1111 = vld [vmem:[#allocation2 + $0x114] sm:$0xff]
        %v1112 = vld [vmem:[#allocation2 + $0x124] sm:$0xff]
        %v1113 = vld [vmem:[#allocation2 + $0x12c] sm:$0xff]
        %v1114 = vld [vmem:[#allocation2 + $0x13c] sm:$0xff]
        %v1115 = vld [vmem:[#allocation2 + $0x144] sm:$0xff]
        %v1116 = vld [vmem:[#allocation2 + $0x154] sm:$0xff]
        %v1117 = vld [vmem:[#allocation2 + $0x15c] sm:$0xff]
        %v1118 = vld [vmem:[#allocation2 + $0x16c] sm:$0xff]
        %v1119 = vld [vmem:[#allocation2 + $0x174] sm:$0xff]
        %1152 = vrot.lane.b32.xlu0 %v1088, 12
        %v1153 = vpop.permute.xlu0 %1152
        %1154 = vrot.lane.b32.xlu0 %v1089, 12
        %v1155 = vpop.permute.xlu0 %1154
        %1156 = vrot.lane.b32.xlu0 %v1090, 12
        %v1157 = vpop.permute.xlu0 %1156
        %1158 = vrot.lane.b32.xlu0 %v1091, 12
        %v1159 = vpop.permute.xlu0 %1158
        %1160 = vrot.lane.b32.xlu0 %v1092, 12
        %v1161 = vpop.permute.xlu0 %1160
        %1162 = vrot.lane.b32.xlu0 %v1093, 12
        %v1163 = vpop.permute.xlu0 %1162
        %1164 = vrot.lane.b32.xlu0 %v1094, 12
        %v1165 = vpop.permute.xlu0 %1164
        %1166 = vrot.lane.b32.xlu0 %v1095, 12
        %v1167 = vpop.permute.xlu0 %1166
        %1168 = vrot.lane.b32.xlu0 %v1096, 12
        %v1169 = vpop.permute.xlu0 %1168
        %1170 = vrot.lane.b32.xlu0 %v1097, 12
        %v1171 = vpop.permute.xlu0 %1170
        %1172 = vrot.lane.b32.xlu0 %v1098, 12
        %v1173 = vpop.permute.xlu0 %1172
        %1174 = vrot.lane.b32.xlu0 %v1099, 12
        %v1175 = vpop.permute.xlu0 %1174
        %1176 = vrot.lane.b32.xlu0 %v1100, 12
        %v1177 = vpop.permute.xlu0 %1176
        %1178 = vrot.lane.b32.xlu0 %v1101, 12
        %v1179 = vpop.permute.xlu0 %1178
        %1180 = vrot.lane.b32.xlu0 %v1102, 12
        %v1181 = vpop.permute.xlu0 %1180
        %1182 = vrot.lane.b32.xlu0 %v1103, 12
        %v1183 = vpop.permute.xlu0 %1182
        %1184 = vrot.lane.b32.xlu0 %v1104, 12
        %v1185 = vpop.permute.xlu0 %1184
        %1186 = vrot.lane.b32.xlu0 %v1105, 12
        %v1187 = vpop.permute.xlu0 %1186
        %1188 = vrot.lane.b32.xlu0 %v1106, 12
        %v1189 = vpop.permute.xlu0 %1188
        %1190 = vrot.lane.b32.xlu0 %v1107, 12
        %v1191 = vpop.permute.xlu0 %1190
        %1192 = vrot.lane.b32.xlu0 %v1108, 12
        %v1193 = vpop.permute.xlu0 %1192
        %1194 = vrot.lane.b32.xlu0 %v1109, 12
        %v1195 = vpop.permute.xlu0 %1194
        %1196 = vrot.lane.b32.xlu0 %v1110, 12
        %v1197 = vpop.permute.xlu0 %1196
        %1198 = vrot.lane.b32.xlu0 %v1111, 12
        %v1199 = vpop.permute.xlu0 %1198
        %1200 = vrot.lane.b32.xlu0 %v1112, 12
        %v1201 = vpop.permute.xlu0 %1200
        %1202 = vrot.lane.b32.xlu0 %v1113, 12
        %v1203 = vpop.permute.xlu0 %1202
        %1204 = vrot.lane.b32.xlu0 %v1114, 12
        %v1205 = vpop.permute.xlu0 %1204
        %1206 = vrot.lane.b32.xlu0 %v1115, 12
        %v1207 = vpop.permute.xlu0 %1206
        %1208 = vrot.lane.b32.xlu0 %v1116, 12
        %v1209 = vpop.permute.xlu0 %1208
        %1210 = vrot.lane.b32.xlu0 %v1117, 12
        %v1211 = vpop.permute.xlu0 %1210
        %1212 = vrot.lane.b32.xlu0 %v1118, 12
        %v1213 = vpop.permute.xlu0 %1212
        %1214 = vrot.lane.b32.xlu0 %v1119, 12
        %v1215 = vpop.permute.xlu0 %1214
        %vm1248 = vcmask 121952
        %1249 = vst.msk [vmem:[#allocation5] sm:$0xff] %vm1248, %v1153
        %1250 = vst.msk [vmem:[#allocation5 + $0x8] sm:$0xff] %vm1248, %v1155
        %1251 = vst.msk [vmem:[#allocation5 + $0x10] sm:$0xff] %vm1248, %v1157
        %1252 = vst.msk [vmem:[#allocation5 + $0x18] sm:$0xff] %vm1248, %v1159
        %1253 = vst.msk [vmem:[#allocation5 + $0x20] sm:$0xff] %vm1248, %v1161
        %1254 = vst.msk [vmem:[#allocation5 + $0x28] sm:$0xff] %vm1248, %v1163
        %1255 = vst.msk [vmem:[#allocation5 + $0x30] sm:$0xff] %vm1248, %v1165
        %1256 = vst.msk [vmem:[#allocation5 + $0x38] sm:$0xff] %vm1248, %v1167
        %1257 = vst.msk [vmem:[#allocation5 + $0x40] sm:$0xff] %vm1248, %v1169
        %1258 = vst.msk [vmem:[#allocation5 + $0x48] sm:$0xff] %vm1248, %v1171
        %1259 = vst.msk [vmem:[#allocation5 + $0x50] sm:$0xff] %vm1248, %v1173
        %1260 = vst.msk [vmem:[#allocation5 + $0x58] sm:$0xff] %vm1248, %v1175
        %1261 = vst.msk [vmem:[#allocation5 + $0x60] sm:$0xff] %vm1248, %v1177
        %1262 = vst.msk [vmem:[#allocation5 + $0x68] sm:$0xff] %vm1248, %v1179
        %1263 = vst.msk [vmem:[#allocation5 + $0x70] sm:$0xff] %vm1248, %v1181
        %1264 = vst.msk [vmem:[#allocation5 + $0x78] sm:$0xff] %vm1248, %v1183
        %1265 = vst.msk [vmem:[#allocation5 + $0x80] sm:$0xff] %vm1248, %v1185
        %1266 = vst.msk [vmem:[#allocation5 + $0x88] sm:$0xff] %vm1248, %v1187
        %1267 = vst.msk [vmem:[#allocation5 + $0x90] sm:$0xff] %vm1248, %v1189
        %1268 = vst.msk [vmem:[#allocation5 + $0x98] sm:$0xff] %vm1248, %v1191
        %1269 = vst.msk [vmem:[#allocation5 + $0xa0] sm:$0xff] %vm1248, %v1193
        %1270 = vst.msk [vmem:[#allocation5 + $0xa8] sm:$0xff] %vm1248, %v1195
        %1271 = vst.msk [vmem:[#allocation5 + $0xb0] sm:$0xff] %vm1248, %v1197
        %1272 = vst.msk [vmem:[#allocation5 + $0xb8] sm:$0xff] %vm1248, %v1199
        %1273 = vst.msk [vmem:[#allocation5 + $0xc0] sm:$0xff] %vm1248, %v1201
        %1274 = vst.msk [vmem:[#allocation5 + $0xc8] sm:$0xff] %vm1248, %v1203
        %1275 = vst.msk [vmem:[#allocation5 + $0xd0] sm:$0xff] %vm1248, %v1205
        %1276 = vst.msk [vmem:[#allocation5 + $0xd8] sm:$0xff] %vm1248, %v1207
        %1277 = vst.msk [vmem:[#allocation5 + $0xe0] sm:$0xff] %vm1248, %v1209
        %1278 = vst.msk [vmem:[#allocation5 + $0xe8] sm:$0xff] %vm1248, %v1211
        %1279 = vst.msk [vmem:[#allocation5 + $0xf0] sm:$0xff] %vm1248, %v1213
        %1280 = vst.msk [vmem:[#allocation5 + $0xf8] sm:$0xff] %vm1248, %v1215
        %s1281 = scalar_lea.vmem [#allocation2], 24
        %v1282 = vld [vmem:[%s1281] sm:$0xff]
        %v1283 = vld [vmem:[%s1281 + $0x8] sm:$0xff]
        %v1284 = vld [vmem:[%s1281 + $0x18] sm:$0xff]
        %v1285 = vld [vmem:[%s1281 + $0x20] sm:$0xff]
        %v1286 = vld [vmem:[%s1281 + $0x30] sm:$0xff]
        %v1287 = vld [vmem:[%s1281 + $0x38] sm:$0xff]
        %v1288 = vld [vmem:[%s1281 + $0x48] sm:$0xff]
        %v1289 = vld [vmem:[%s1281 + $0x50] sm:$0xff]
        %v1290 = vld [vmem:[%s1281 + $0x60] sm:$0xff]
        %v1291 = vld [vmem:[%s1281 + $0x68] sm:$0xff]
        %v1292 = vld [vmem:[%s1281 + $0x78] sm:$0xff]
        %v1293 = vld [vmem:[%s1281 + $0x80] sm:$0xff]
        %v1294 = vld [vmem:[%s1281 + $0x90] sm:$0xff]
        %v1295 = vld [vmem:[%s1281 + $0x98] sm:$0xff]
        %v1296 = vld [vmem:[%s1281 + $0xa8] sm:$0xff]
        %v1297 = vld [vmem:[%s1281 + $0xb0] sm:$0xff]
        %v1298 = vld [vmem:[%s1281 + $0xc0] sm:$0xff]
        %v1299 = vld [vmem:[%s1281 + $0xc8] sm:$0xff]
        %v1300 = vld [vmem:[%s1281 + $0xd8] sm:$0xff]
        %v1301 = vld [vmem:[%s1281 + $0xe0] sm:$0xff]
        %v1302 = vld [vmem:[%s1281 + $0xf0] sm:$0xff]
        %v1303 = vld [vmem:[%s1281 + $0xf8] sm:$0xff]
        %v1304 = vld [vmem:[%s1281 + $0x108] sm:$0xff]
        %v1305 = vld [vmem:[%s1281 + $0x110] sm:$0xff]
        %v1306 = vld [vmem:[%s1281 + $0x120] sm:$0xff]
        %v1307 = vld [vmem:[%s1281 + $0x128] sm:$0xff]
        %v1308 = vld [vmem:[%s1281 + $0x138] sm:$0xff]
        %v1309 = vld [vmem:[%s1281 + $0x140] sm:$0xff]
        %v1310 = vld [vmem:[%s1281 + $0x150] sm:$0xff]
        %v1311 = vld [vmem:[%s1281 + $0x158] sm:$0xff]
        %v1312 = vld [vmem:[%s1281 + $0x168] sm:$0xff]
        %v1313 = vld [vmem:[%s1281 + $0x170] sm:$0xff]
        %1346 = vrot.lane.b32.xlu0 %v1282, 15
        %v1347 = vpop.permute.xlu0 %1346
        %1348 = vrot.lane.b32.xlu0 %v1283, 15
        %v1349 = vpop.permute.xlu0 %1348
        %1350 = vrot.lane.b32.xlu0 %v1284, 15
        %v1351 = vpop.permute.xlu0 %1350
        %1352 = vrot.lane.b32.xlu0 %v1285, 15
        %v1353 = vpop.permute.xlu0 %1352
        %1354 = vrot.lane.b32.xlu0 %v1286, 15
        %v1355 = vpop.permute.xlu0 %1354
        %1356 = vrot.lane.b32.xlu0 %v1287, 15
        %v1357 = vpop.permute.xlu0 %1356
        %1358 = vrot.lane.b32.xlu0 %v1288, 15
        %v1359 = vpop.permute.xlu0 %1358
        %1360 = vrot.lane.b32.xlu0 %v1289, 15
        %v1361 = vpop.permute.xlu0 %1360
        %1362 = vrot.lane.b32.xlu0 %v1290, 15
        %v1363 = vpop.permute.xlu0 %1362
        %1364 = vrot.lane.b32.xlu0 %v1291, 15
        %v1365 = vpop.permute.xlu0 %1364
        %1366 = vrot.lane.b32.xlu0 %v1292, 15
        %v1367 = vpop.permute.xlu0 %1366
        %1368 = vrot.lane.b32.xlu0 %v1293, 15
        %v1369 = vpop.permute.xlu0 %1368
        %1370 = vrot.lane.b32.xlu0 %v1294, 15
        %v1371 = vpop.permute.xlu0 %1370
        %1372 = vrot.lane.b32.xlu0 %v1295, 15
        %v1373 = vpop.permute.xlu0 %1372
        %1374 = vrot.lane.b32.xlu0 %v1296, 15
        %v1375 = vpop.permute.xlu0 %1374
        %1376 = vrot.lane.b32.xlu0 %v1297, 15
        %v1377 = vpop.permute.xlu0 %1376
        %1378 = vrot.lane.b32.xlu0 %v1298, 15
        %v1379 = vpop.permute.xlu0 %1378
        %1380 = vrot.lane.b32.xlu0 %v1299, 15
        %v1381 = vpop.permute.xlu0 %1380
        %1382 = vrot.lane.b32.xlu0 %v1300, 15
        %v1383 = vpop.permute.xlu0 %1382
        %1384 = vrot.lane.b32.xlu0 %v1301, 15
        %v1385 = vpop.permute.xlu0 %1384
        %1386 = vrot.lane.b32.xlu0 %v1302, 15
        %v1387 = vpop.permute.xlu0 %1386
        %1388 = vrot.lane.b32.xlu0 %v1303, 15
        %v1389 = vpop.permute.xlu0 %1388
        %1390 = vrot.lane.b32.xlu0 %v1304, 15
        %v1391 = vpop.permute.xlu0 %1390
        %1392 = vrot.lane.b32.xlu0 %v1305, 15
        %v1393 = vpop.permute.xlu0 %1392
        %1394 = vrot.lane.b32.xlu0 %v1306, 15
        %v1395 = vpop.permute.xlu0 %1394
        %1396 = vrot.lane.b32.xlu0 %v1307, 15
        %v1397 = vpop.permute.xlu0 %1396
        %1398 = vrot.lane.b32.xlu0 %v1308, 15
        %v1399 = vpop.permute.xlu0 %1398
        %1400 = vrot.lane.b32.xlu0 %v1309, 15
        %v1401 = vpop.permute.xlu0 %1400
        %1402 = vrot.lane.b32.xlu0 %v1310, 15
        %v1403 = vpop.permute.xlu0 %1402
        %1404 = vrot.lane.b32.xlu0 %v1311, 15
        %v1405 = vpop.permute.xlu0 %1404
        %1406 = vrot.lane.b32.xlu0 %v1312, 15
        %v1407 = vpop.permute.xlu0 %1406
        %1408 = vrot.lane.b32.xlu0 %v1313, 15
        %v1409 = vpop.permute.xlu0 %1408
        %vm1442 = vcmask 146552
        %1443 = vst.msk [vmem:[#allocation5] sm:$0xff] %vm1442, %v1347
        %1444 = vst.msk [vmem:[#allocation5 + $0x8] sm:$0xff] %vm1442, %v1349
        %1445 = vst.msk [vmem:[#allocation5 + $0x10] sm:$0xff] %vm1442, %v1351
        %1446 = vst.msk [vmem:[#allocation5 + $0x18] sm:$0xff] %vm1442, %v1353
        %1447 = vst.msk [vmem:[#allocation5 + $0x20] sm:$0xff] %vm1442, %v1355
        %1448 = vst.msk [vmem:[#allocation5 + $0x28] sm:$0xff] %vm1442, %v1357
        %1449 = vst.msk [vmem:[#allocation5 + $0x30] sm:$0xff] %vm1442, %v1359
        %1450 = vst.msk [vmem:[#allocation5 + $0x38] sm:$0xff] %vm1442, %v1361
        %1451 = vst.msk [vmem:[#allocation5 + $0x40] sm:$0xff] %vm1442, %v1363
        %1452 = vst.msk [vmem:[#allocation5 + $0x48] sm:$0xff] %vm1442, %v1365
        %1453 = vst.msk [vmem:[#allocation5 + $0x50] sm:$0xff] %vm1442, %v1367
        %1454 = vst.msk [vmem:[#allocation5 + $0x58] sm:$0xff] %vm1442, %v1369
        %1455 = vst.msk [vmem:[#allocation5 + $0x60] sm:$0xff] %vm1442, %v1371
        %1456 = vst.msk [vmem:[#allocation5 + $0x68] sm:$0xff] %vm1442, %v1373
        %1457 = vst.msk [vmem:[#allocation5 + $0x70] sm:$0xff] %vm1442, %v1375
        %1458 = vst.msk [vmem:[#allocation5 + $0x78] sm:$0xff] %vm1442, %v1377
        %1459 = vst.msk [vmem:[#allocation5 + $0x80] sm:$0xff] %vm1442, %v1379
        %1460 = vst.msk [vmem:[#allocation5 + $0x88] sm:$0xff] %vm1442, %v1381
        %1461 = vst.msk [vmem:[#allocation5 + $0x90] sm:$0xff] %vm1442, %v1383
        %1462 = vst.msk [vmem:[#allocation5 + $0x98] sm:$0xff] %vm1442, %v1385
        %1463 = vst.msk [vmem:[#allocation5 + $0xa0] sm:$0xff] %vm1442, %v1387
        %1464 = vst.msk [vmem:[#allocation5 + $0xa8] sm:$0xff] %vm1442, %v1389
        %1465 = vst.msk [vmem:[#allocation5 + $0xb0] sm:$0xff] %vm1442, %v1391
        %1466 = vst.msk [vmem:[#allocation5 + $0xb8] sm:$0xff] %vm1442, %v1393
        %1467 = vst.msk [vmem:[#allocation5 + $0xc0] sm:$0xff] %vm1442, %v1395
        %1468 = vst.msk [vmem:[#allocation5 + $0xc8] sm:$0xff] %vm1442, %v1397
        %1469 = vst.msk [vmem:[#allocation5 + $0xd0] sm:$0xff] %vm1442, %v1399
        %1470 = vst.msk [vmem:[#allocation5 + $0xd8] sm:$0xff] %vm1442, %v1401
        %1471 = vst.msk [vmem:[#allocation5 + $0xe0] sm:$0xff] %vm1442, %v1403
        %1472 = vst.msk [vmem:[#allocation5 + $0xe8] sm:$0xff] %vm1442, %v1405
        %1473 = vst.msk [vmem:[#allocation5 + $0xf0] sm:$0xff] %vm1442, %v1407
        %1474 = vst.msk [vmem:[#allocation5 + $0xf8] sm:$0xff] %vm1442, %v1409
        %v1475 = vld [vmem:[%s1281 + $0x1] sm:$0xff]
        %v1476 = vld [vmem:[%s1281 + $0x9] sm:$0xff]
        %v1477 = vld [vmem:[%s1281 + $0x19] sm:$0xff]
        %v1478 = vld [vmem:[%s1281 + $0x21] sm:$0xff]
        %v1479 = vld [vmem:[%s1281 + $0x31] sm:$0xff]
        %v1480 = vld [vmem:[%s1281 + $0x39] sm:$0xff]
        %v1481 = vld [vmem:[%s1281 + $0x49] sm:$0xff]
        %v1482 = vld [vmem:[%s1281 + $0x51] sm:$0xff]
        %v1483 = vld [vmem:[%s1281 + $0x61] sm:$0xff]
        %v1484 = vld [vmem:[%s1281 + $0x69] sm:$0xff]
        %v1485 = vld [vmem:[%s1281 + $0x79] sm:$0xff]
        %v1486 = vld [vmem:[%s1281 + $0x81] sm:$0xff]
        %v1487 = vld [vmem:[%s1281 + $0x91] sm:$0xff]
        %v1488 = vld [vmem:[%s1281 + $0x99] sm:$0xff]
        %v1489 = vld [vmem:[%s1281 + $0xa9] sm:$0xff]
        %v1490 = vld [vmem:[%s1281 + $0xb1] sm:$0xff]
        %v1491 = vld [vmem:[%s1281 + $0xc1] sm:$0xff]
        %v1492 = vld [vmem:[%s1281 + $0xc9] sm:$0xff]
        %v1493 = vld [vmem:[%s1281 + $0xd9] sm:$0xff]
        %v1494 = vld [vmem:[%s1281 + $0xe1] sm:$0xff]
        %v1495 = vld [vmem:[%s1281 + $0xf1] sm:$0xff]
        %v1496 = vld [vmem:[%s1281 + $0xf9] sm:$0xff]
        %v1497 = vld [vmem:[%s1281 + $0x109] sm:$0xff]
        %v1498 = vld [vmem:[%s1281 + $0x111] sm:$0xff]
        %v1499 = vld [vmem:[%s1281 + $0x121] sm:$0xff]
        %v1500 = vld [vmem:[%s1281 + $0x129] sm:$0xff]
        %v1501 = vld [vmem:[%s1281 + $0x139] sm:$0xff]
        %v1502 = vld [vmem:[%s1281 + $0x141] sm:$0xff]
        %v1503 = vld [vmem:[%s1281 + $0x151] sm:$0xff]
        %v1504 = vld [vmem:[%s1281 + $0x159] sm:$0xff]
        %v1505 = vld [vmem:[%s1281 + $0x169] sm:$0xff]
        %v1506 = vld [vmem:[%s1281 + $0x171] sm:$0xff]
        %1539 = vrot.lane.b32.xlu0 %v1475, 18
        %v1540 = vpop.permute.xlu0 %1539
        %1541 = vrot.lane.b32.xlu0 %v1476, 18
        %v1542 = vpop.permute.xlu0 %1541
        %1543 = vrot.lane.b32.xlu0 %v1477, 18
        %v1544 = vpop.permute.xlu0 %1543
        %1545 = vrot.lane.b32.xlu0 %v1478, 18
        %v1546 = vpop.permute.xlu0 %1545
        %1547 = vrot.lane.b32.xlu0 %v1479, 18
        %v1548 = vpop.permute.xlu0 %1547
        %1549 = vrot.lane.b32.xlu0 %v1480, 18
        %v1550 = vpop.permute.xlu0 %1549
        %1551 = vrot.lane.b32.xlu0 %v1481, 18
        %v1552 = vpop.permute.xlu0 %1551
        %1553 = vrot.lane.b32.xlu0 %v1482, 18
        %v1554 = vpop.permute.xlu0 %1553
        %1555 = vrot.lane.b32.xlu0 %v1483, 18
        %v1556 = vpop.permute.xlu0 %1555
        %1557 = vrot.lane.b32.xlu0 %v1484, 18
        %v1558 = vpop.permute.xlu0 %1557
        %1559 = vrot.lane.b32.xlu0 %v1485, 18
        %v1560 = vpop.permute.xlu0 %1559
        %1561 = vrot.lane.b32.xlu0 %v1486, 18
        %v1562 = vpop.permute.xlu0 %1561
        %1563 = vrot.lane.b32.xlu0 %v1487, 18
        %v1564 = vpop.permute.xlu0 %1563
        %1565 = vrot.lane.b32.xlu0 %v1488, 18
        %v1566 = vpop.permute.xlu0 %1565
        %1567 = vrot.lane.b32.xlu0 %v1489, 18
        %v1568 = vpop.permute.xlu0 %1567
        %1569 = vrot.lane.b32.xlu0 %v1490, 18
        %v1570 = vpop.permute.xlu0 %1569
        %1571 = vrot.lane.b32.xlu0 %v1491, 18
        %v1572 = vpop.permute.xlu0 %1571
        %1573 = vrot.lane.b32.xlu0 %v1492, 18
        %v1574 = vpop.permute.xlu0 %1573
        %1575 = vrot.lane.b32.xlu0 %v1493, 18
        %v1576 = vpop.permute.xlu0 %1575
        %1577 = vrot.lane.b32.xlu0 %v1494, 18
        %v1578 = vpop.permute.xlu0 %1577
        %1579 = vrot.lane.b32.xlu0 %v1495, 18
        %v1580 = vpop.permute.xlu0 %1579
        %1581 = vrot.lane.b32.xlu0 %v1496, 18
        %v1582 = vpop.permute.xlu0 %1581
        %1583 = vrot.lane.b32.xlu0 %v1497, 18
        %v1584 = vpop.permute.xlu0 %1583
        %1585 = vrot.lane.b32.xlu0 %v1498, 18
        %v1586 = vpop.permute.xlu0 %1585
        %1587 = vrot.lane.b32.xlu0 %v1499, 18
        %v1588 = vpop.permute.xlu0 %1587
        %1589 = vrot.lane.b32.xlu0 %v1500, 18
        %v1590 = vpop.permute.xlu0 %1589
        %1591 = vrot.lane.b32.xlu0 %v1501, 18
        %v1592 = vpop.permute.xlu0 %1591
        %1593 = vrot.lane.b32.xlu0 %v1502, 18
        %v1594 = vpop.permute.xlu0 %1593
        %1595 = vrot.lane.b32.xlu0 %v1503, 18
        %v1596 = vpop.permute.xlu0 %1595
        %1597 = vrot.lane.b32.xlu0 %v1504, 18
        %v1598 = vpop.permute.xlu0 %1597
        %1599 = vrot.lane.b32.xlu0 %v1505, 18
        %v1600 = vpop.permute.xlu0 %1599
        %1601 = vrot.lane.b32.xlu0 %v1506, 18
        %v1602 = vpop.permute.xlu0 %1601
        %vm1635 = vcmask 171152
        %1636 = vst.msk [vmem:[#allocation5] sm:$0xff] %vm1635, %v1540
        %1637 = vst.msk [vmem:[#allocation5 + $0x8] sm:$0xff] %vm1635, %v1542
        %1638 = vst.msk [vmem:[#allocation5 + $0x10] sm:$0xff] %vm1635, %v1544
        %1639 = vst.msk [vmem:[#allocation5 + $0x18] sm:$0xff] %vm1635, %v1546
        %1640 = vst.msk [vmem:[#allocation5 + $0x20] sm:$0xff] %vm1635, %v1548
        %1641 = vst.msk [vmem:[#allocation5 + $0x28] sm:$0xff] %vm1635, %v1550
        %1642 = vst.msk [vmem:[#allocation5 + $0x30] sm:$0xff] %vm1635, %v1552
        %1643 = vst.msk [vmem:[#allocation5 + $0x38] sm:$0xff] %vm1635, %v1554
        %1644 = vst.msk [vmem:[#allocation5 + $0x40] sm:$0xff] %vm1635, %v1556
        %1645 = vst.msk [vmem:[#allocation5 + $0x48] sm:$0xff] %vm1635, %v1558
        %1646 = vst.msk [vmem:[#allocation5 + $0x50] sm:$0xff] %vm1635, %v1560
        %1647 = vst.msk [vmem:[#allocation5 + $0x58] sm:$0xff] %vm1635, %v1562
        %1648 = vst.msk [vmem:[#allocation5 + $0x60] sm:$0xff] %vm1635, %v1564
        %1649 = vst.msk [vmem:[#allocation5 + $0x68] sm:$0xff] %vm1635, %v1566
        %1650 = vst.msk [vmem:[#allocation5 + $0x70] sm:$0xff] %vm1635, %v1568
        %1651 = vst.msk [vmem:[#allocation5 + $0x78] sm:$0xff] %vm1635, %v1570
        %1652 = vst.msk [vmem:[#allocation5 + $0x80] sm:$0xff] %vm1635, %v1572
        %1653 = vst.msk [vmem:[#allocation5 + $0x88] sm:$0xff] %vm1635, %v1574
        %1654 = vst.msk [vmem:[#allocation5 + $0x90] sm:$0xff] %vm1635, %v1576
        %1655 = vst.msk [vmem:[#allocation5 + $0x98] sm:$0xff] %vm1635, %v1578
        %1656 = vst.msk [vmem:[#allocation5 + $0xa0] sm:$0xff] %vm1635, %v1580
        %1657 = vst.msk [vmem:[#allocation5 + $0xa8] sm:$0xff] %vm1635, %v1582
        %1658 = vst.msk [vmem:[#allocation5 + $0xb0] sm:$0xff] %vm1635, %v1584
        %1659 = vst.msk [vmem:[#allocation5 + $0xb8] sm:$0xff] %vm1635, %v1586
        %1660 = vst.msk [vmem:[#allocation5 + $0xc0] sm:$0xff] %vm1635, %v1588
        %1661 = vst.msk [vmem:[#allocation5 + $0xc8] sm:$0xff] %vm1635, %v1590
        %1662 = vst.msk [vmem:[#allocation5 + $0xd0] sm:$0xff] %vm1635, %v1592
        %1663 = vst.msk [vmem:[#allocation5 + $0xd8] sm:$0xff] %vm1635, %v1594
        %1664 = vst.msk [vmem:[#allocation5 + $0xe0] sm:$0xff] %vm1635, %v1596
        %1665 = vst.msk [vmem:[#allocation5 + $0xe8] sm:$0xff] %vm1635, %v1598
        %1666 = vst.msk [vmem:[#allocation5 + $0xf0] sm:$0xff] %vm1635, %v1600
        %1667 = vst.msk [vmem:[#allocation5 + $0xf8] sm:$0xff] %vm1635, %v1602
        %v1668 = vld [vmem:[%s1281 + $0x2] sm:$0xff]
        %v1669 = vld [vmem:[%s1281 + $0xa] sm:$0xff]
        %v1670 = vld [vmem:[%s1281 + $0x1a] sm:$0xff]
        %v1671 = vld [vmem:[%s1281 + $0x22] sm:$0xff]
        %v1672 = vld [vmem:[%s1281 + $0x32] sm:$0xff]
        %v1673 = vld [vmem:[%s1281 + $0x3a] sm:$0xff]
        %v1674 = vld [vmem:[%s1281 + $0x4a] sm:$0xff]
        %v1675 = vld [vmem:[%s1281 + $0x52] sm:$0xff]
        %v1676 = vld [vmem:[%s1281 + $0x62] sm:$0xff]
        %v1677 = vld [vmem:[%s1281 + $0x6a] sm:$0xff]
        %v1678 = vld [vmem:[%s1281 + $0x7a] sm:$0xff]
        %v1679 = vld [vmem:[%s1281 + $0x82] sm:$0xff]
        %v1680 = vld [vmem:[%s1281 + $0x92] sm:$0xff]
        %v1681 = vld [vmem:[%s1281 + $0x9a] sm:$0xff]
        %v1682 = vld [vmem:[%s1281 + $0xaa] sm:$0xff]
        %v1683 = vld [vmem:[%s1281 + $0xb2] sm:$0xff]
        %v1684 = vld [vmem:[%s1281 + $0xc2] sm:$0xff]
        %v1685 = vld [vmem:[%s1281 + $0xca] sm:$0xff]
        %v1686 = vld [vmem:[%s1281 + $0xda] sm:$0xff]
        %v1687 = vld [vmem:[%s1281 + $0xe2] sm:$0xff]
        %v1688 = vld [vmem:[%s1281 + $0xf2] sm:$0xff]
        %v1689 = vld [vmem:[%s1281 + $0xfa] sm:$0xff]
        %v1690 = vld [vmem:[%s1281 + $0x10a] sm:$0xff]
        %v1691 = vld [vmem:[%s1281 + $0x112] sm:$0xff]
        %v1692 = vld [vmem:[%s1281 + $0x122] sm:$0xff]
        %v1693 = vld [vmem:[%s1281 + $0x12a] sm:$0xff]
        %v1694 = vld [vmem:[%s1281 + $0x13a] sm:$0xff]
        %v1695 = vld [vmem:[%s1281 + $0x142] sm:$0xff]
        %v1696 = vld [vmem:[%s1281 + $0x152] sm:$0xff]
        %v1697 = vld [vmem:[%s1281 + $0x15a] sm:$0xff]
        %v1698 = vld [vmem:[%s1281 + $0x16a] sm:$0xff]
        %v1699 = vld [vmem:[%s1281 + $0x172] sm:$0xff]
        %1732 = vrot.lane.b32.xlu0 %v1668, 21
        %v1733 = vpop.permute.xlu0 %1732
        %1734 = vrot.lane.b32.xlu0 %v1669, 21
        %v1735 = vpop.permute.xlu0 %1734
        %1736 = vrot.lane.b32.xlu0 %v1670, 21
        %v1737 = vpop.permute.xlu0 %1736
        %1738 = vrot.lane.b32.xlu0 %v1671, 21
        %v1739 = vpop.permute.xlu0 %1738
        %1740 = vrot.lane.b32.xlu0 %v1672, 21
        %v1741 = vpop.permute.xlu0 %1740
        %1742 = vrot.lane.b32.xlu0 %v1673, 21
        %v1743 = vpop.permute.xlu0 %1742
        %1744 = vrot.lane.b32.xlu0 %v1674, 21
        %v1745 = vpop.permute.xlu0 %1744
        %1746 = vrot.lane.b32.xlu0 %v1675, 21
        %v1747 = vpop.permute.xlu0 %1746
        %1748 = vrot.lane.b32.xlu0 %v1676, 21
        %v1749 = vpop.permute.xlu0 %1748
        %1750 = vrot.lane.b32.xlu0 %v1677, 21
        %v1751 = vpop.permute.xlu0 %1750
        %1752 = vrot.lane.b32.xlu0 %v1678, 21
        %v1753 = vpop.permute.xlu0 %1752
        %1754 = vrot.lane.b32.xlu0 %v1679, 21
        %v1755 = vpop.permute.xlu0 %1754
        %1756 = vrot.lane.b32.xlu0 %v1680, 21
        %v1757 = vpop.permute.xlu0 %1756
        %1758 = vrot.lane.b32.xlu0 %v1681, 21
        %v1759 = vpop.permute.xlu0 %1758
        %1760 = vrot.lane.b32.xlu0 %v1682, 21
        %v1761 = vpop.permute.xlu0 %1760
        %1762 = vrot.lane.b32.xlu0 %v1683, 21
        %v1763 = vpop.permute.xlu0 %1762
        %1764 = vrot.lane.b32.xlu0 %v1684, 21
        %v1765 = vpop.permute.xlu0 %1764
        %1766 = vrot.lane.b32.xlu0 %v1685, 21
        %v1767 = vpop.permute.xlu0 %1766
        %1768 = vrot.lane.b32.xlu0 %v1686, 21
        %v1769 = vpop.permute.xlu0 %1768
        %1770 = vrot.lane.b32.xlu0 %v1687, 21
        %v1771 = vpop.permute.xlu0 %1770
        %1772 = vrot.lane.b32.xlu0 %v1688, 21
        %v1773 = vpop.permute.xlu0 %1772
        %1774 = vrot.lane.b32.xlu0 %v1689, 21
        %v1775 = vpop.permute.xlu0 %1774
        %1776 = vrot.lane.b32.xlu0 %v1690, 21
        %v1777 = vpop.permute.xlu0 %1776
        %1778 = vrot.lane.b32.xlu0 %v1691, 21
        %v1779 = vpop.permute.xlu0 %1778
        %1780 = vrot.lane.b32.xlu0 %v1692, 21
        %v1781 = vpop.permute.xlu0 %1780
        %1782 = vrot.lane.b32.xlu0 %v1693, 21
        %v1783 = vpop.permute.xlu0 %1782
        %1784 = vrot.lane.b32.xlu0 %v1694, 21
        %v1785 = vpop.permute.xlu0 %1784
        %1786 = vrot.lane.b32.xlu0 %v1695, 21
        %v1787 = vpop.permute.xlu0 %1786
        %1788 = vrot.lane.b32.xlu0 %v1696, 21
        %v1789 = vpop.permute.xlu0 %1788
        %1790 = vrot.lane.b32.xlu0 %v1697, 21
        %v1791 = vpop.permute.xlu0 %1790
        %1792 = vrot.lane.b32.xlu0 %v1698, 21
        %v1793 = vpop.permute.xlu0 %1792
        %1794 = vrot.lane.b32.xlu0 %v1699, 21
        %v1795 = vpop.permute.xlu0 %1794
        %vm1828 = vcmask 195752
        %1829 = vst.msk [vmem:[#allocation5] sm:$0xff] %vm1828, %v1733
        %1830 = vst.msk [vmem:[#allocation5 + $0x8] sm:$0xff] %vm1828, %v1735
        %1831 = vst.msk [vmem:[#allocation5 + $0x10] sm:$0xff] %vm1828, %v1737
        %1832 = vst.msk [vmem:[#allocation5 + $0x18] sm:$0xff] %vm1828, %v1739
        %1833 = vst.msk [vmem:[#allocation5 + $0x20] sm:$0xff] %vm1828, %v1741
        %1834 = vst.msk [vmem:[#allocation5 + $0x28] sm:$0xff] %vm1828, %v1743
        %1835 = vst.msk [vmem:[#allocation5 + $0x30] sm:$0xff] %vm1828, %v1745
        %1836 = vst.msk [vmem:[#allocation5 + $0x38] sm:$0xff] %vm1828, %v1747
        %1837 = vst.msk [vmem:[#allocation5 + $0x40] sm:$0xff] %vm1828, %v1749
        %1838 = vst.msk [vmem:[#allocation5 + $0x48] sm:$0xff] %vm1828, %v1751
        %1839 = vst.msk [vmem:[#allocation5 + $0x50] sm:$0xff] %vm1828, %v1753
        %1840 = vst.msk [vmem:[#allocation5 + $0x58] sm:$0xff] %vm1828, %v1755
        %1841 = vst.msk [vmem:[#allocation5 + $0x60] sm:$0xff] %vm1828, %v1757
        %1842 = vst.msk [vmem:[#allocation5 + $0x68] sm:$0xff] %vm1828, %v1759
        %1843 = vst.msk [vmem:[#allocation5 + $0x70] sm:$0xff] %vm1828, %v1761
        %1844 = vst.msk [vmem:[#allocation5 + $0x78] sm:$0xff] %vm1828, %v1763
        %1845 = vst.msk [vmem:[#allocation5 + $0x80] sm:$0xff] %vm1828, %v1765
        %1846 = vst.msk [vmem:[#allocation5 + $0x88] sm:$0xff] %vm1828, %v1767
        %1847 = vst.msk [vmem:[#allocation5 + $0x90] sm:$0xff] %vm1828, %v1769
        %1848 = vst.msk [vmem:[#allocation5 + $0x98] sm:$0xff] %vm1828, %v1771
        %1849 = vst.msk [vmem:[#allocation5 + $0xa0] sm:$0xff] %vm1828, %v1773
        %1850 = vst.msk [vmem:[#allocation5 + $0xa8] sm:$0xff] %vm1828, %v1775
        %1851 = vst.msk [vmem:[#allocation5 + $0xb0] sm:$0xff] %vm1828, %v1777
        %1852 = vst.msk [vmem:[#allocation5 + $0xb8] sm:$0xff] %vm1828, %v1779
        %1853 = vst.msk [vmem:[#allocation5 + $0xc0] sm:$0xff] %vm1828, %v1781
        %1854 = vst.msk [vmem:[#allocation5 + $0xc8] sm:$0xff] %vm1828, %v1783
        %1855 = vst.msk [vmem:[#allocation5 + $0xd0] sm:$0xff] %vm1828, %v1785
        %1856 = vst.msk [vmem:[#allocation5 + $0xd8] sm:$0xff] %vm1828, %v1787
        %1857 = vst.msk [vmem:[#allocation5 + $0xe0] sm:$0xff] %vm1828, %v1789
        %1858 = vst.msk [vmem:[#allocation5 + $0xe8] sm:$0xff] %vm1828, %v1791
        %1859 = vst.msk [vmem:[#allocation5 + $0xf0] sm:$0xff] %vm1828, %v1793
        %1860 = vst.msk [vmem:[#allocation5 + $0xf8] sm:$0xff] %vm1828, %v1795
        %v1861 = vld [vmem:[%s1281 + $0x3] sm:$0xff]
        %v1862 = vld [vmem:[%s1281 + $0xb] sm:$0xff]
        %v1863 = vld [vmem:[%s1281 + $0x1b] sm:$0xff]
        %v1864 = vld [vmem:[%s1281 + $0x23] sm:$0xff]
        %v1865 = vld [vmem:[%s1281 + $0x33] sm:$0xff]
        %v1866 = vld [vmem:[%s1281 + $0x3b] sm:$0xff]
        %v1867 = vld [vmem:[%s1281 + $0x4b] sm:$0xff]
        %v1868 = vld [vmem:[%s1281 + $0x53] sm:$0xff]
        %v1869 = vld [vmem:[%s1281 + $0x63] sm:$0xff]
        %v1870 = vld [vmem:[%s1281 + $0x6b] sm:$0xff]
        %v1871 = vld [vmem:[%s1281 + $0x7b] sm:$0xff]
        %v1872 = vld [vmem:[%s1281 + $0x83] sm:$0xff]
        %v1873 = vld [vmem:[%s1281 + $0x93] sm:$0xff]
        %v1874 = vld [vmem:[%s1281 + $0x9b] sm:$0xff]
        %v1875 = vld [vmem:[%s1281 + $0xab] sm:$0xff]
        %v1876 = vld [vmem:[%s1281 + $0xb3] sm:$0xff]
        %v1877 = vld [vmem:[%s1281 + $0xc3] sm:$0xff]
        %v1878 = vld [vmem:[%s1281 + $0xcb] sm:$0xff]
        %v1879 = vld [vmem:[%s1281 + $0xdb] sm:$0xff]
        %v1880 = vld [vmem:[%s1281 + $0xe3] sm:$0xff]
        %v1881 = vld [vmem:[%s1281 + $0xf3] sm:$0xff]
        %v1882 = vld [vmem:[%s1281 + $0xfb] sm:$0xff]
        %v1883 = vld [vmem:[%s1281 + $0x10b] sm:$0xff]
        %v1884 = vld [vmem:[%s1281 + $0x113] sm:$0xff]
        %v1885 = vld [vmem:[%s1281 + $0x123] sm:$0xff]
        %v1886 = vld [vmem:[%s1281 + $0x12b] sm:$0xff]
        %v1887 = vld [vmem:[%s1281 + $0x13b] sm:$0xff]
        %v1888 = vld [vmem:[%s1281 + $0x143] sm:$0xff]
        %v1889 = vld [vmem:[%s1281 + $0x153] sm:$0xff]
        %v1890 = vld [vmem:[%s1281 + $0x15b] sm:$0xff]
        %v1891 = vld [vmem:[%s1281 + $0x16b] sm:$0xff]
        %v1892 = vld [vmem:[%s1281 + $0x173] sm:$0xff]
        %1925 = vrot.lane.b32.xlu0 %v1861, 24
        %v1926 = vpop.permute.xlu0 %1925
        %1927 = vrot.lane.b32.xlu0 %v1862, 24
        %v1928 = vpop.permute.xlu0 %1927
        %1929 = vrot.lane.b32.xlu0 %v1863, 24
        %v1930 = vpop.permute.xlu0 %1929
        %1931 = vrot.lane.b32.xlu0 %v1864, 24
        %v1932 = vpop.permute.xlu0 %1931
        %1933 = vrot.lane.b32.xlu0 %v1865, 24
        %v1934 = vpop.permute.xlu0 %1933
        %1935 = vrot.lane.b32.xlu0 %v1866, 24
        %v1936 = vpop.permute.xlu0 %1935
        %1937 = vrot.lane.b32.xlu0 %v1867, 24
        %v1938 = vpop.permute.xlu0 %1937
        %1939 = vrot.lane.b32.xlu0 %v1868, 24
        %v1940 = vpop.permute.xlu0 %1939
        %1941 = vrot.lane.b32.xlu0 %v1869, 24
        %v1942 = vpop.permute.xlu0 %1941
        %1943 = vrot.lane.b32.xlu0 %v1870, 24
        %v1944 = vpop.permute.xlu0 %1943
        %1945 = vrot.lane.b32.xlu0 %v1871, 24
        %v1946 = vpop.permute.xlu0 %1945
        %1947 = vrot.lane.b32.xlu0 %v1872, 24
        %v1948 = vpop.permute.xlu0 %1947
        %1949 = vrot.lane.b32.xlu0 %v1873, 24
        %v1950 = vpop.permute.xlu0 %1949
        %1951 = vrot.lane.b32.xlu0 %v1874, 24
        %v1952 = vpop.permute.xlu0 %1951
        %1953 = vrot.lane.b32.xlu0 %v1875, 24
        %v1954 = vpop.permute.xlu0 %1953
        %1955 = vrot.lane.b32.xlu0 %v1876, 24
        %v1956 = vpop.permute.xlu0 %1955
        %1957 = vrot.lane.b32.xlu0 %v1877, 24
        %v1958 = vpop.permute.xlu0 %1957
        %1959 = vrot.lane.b32.xlu0 %v1878, 24
        %v1960 = vpop.permute.xlu0 %1959
        %1961 = vrot.lane.b32.xlu0 %v1879, 24
        %v1962 = vpop.permute.xlu0 %1961
        %1963 = vrot.lane.b32.xlu0 %v1880, 24
        %v1964 = vpop.permute.xlu0 %1963
        %1965 = vrot.lane.b32.xlu0 %v1881, 24
        %v1966 = vpop.permute.xlu0 %1965
        %1967 = vrot.lane.b32.xlu0 %v1882, 24
        %v1968 = vpop.permute.xlu0 %1967
        %1969 = vrot.lane.b32.xlu0 %v1883, 24
        %v1970 = vpop.permute.xlu0 %1969
        %1971 = vrot.lane.b32.xlu0 %v1884, 24
        %v1972 = vpop.permute.xlu0 %1971
        %1973 = vrot.lane.b32.xlu0 %v1885, 24
        %v1974 = vpop.permute.xlu0 %1973
        %1975 = vrot.lane.b32.xlu0 %v1886, 24
        %v1976 = vpop.permute.xlu0 %1975
        %1977 = vrot.lane.b32.xlu0 %v1887, 24
        %v1978 = vpop.permute.xlu0 %1977
        %1979 = vrot.lane.b32.xlu0 %v1888, 24
        %v1980 = vpop.permute.xlu0 %1979
        %1981 = vrot.lane.b32.xlu0 %v1889, 24
        %v1982 = vpop.permute.xlu0 %1981
        %1983 = vrot.lane.b32.xlu0 %v1890, 24
        %v1984 = vpop.permute.xlu0 %1983
        %1985 = vrot.lane.b32.xlu0 %v1891, 24
        %v1986 = vpop.permute.xlu0 %1985
        %1987 = vrot.lane.b32.xlu0 %v1892, 24
        %v1988 = vpop.permute.xlu0 %1987
        %vm2021 = vcmask 220352
        %2022 = vst.msk [vmem:[#allocation5] sm:$0xff] %vm2021, %v1926
        %2023 = vst.msk [vmem:[#allocation5 + $0x8] sm:$0xff] %vm2021, %v1928
        %2024 = vst.msk [vmem:[#allocation5 + $0x10] sm:$0xff] %vm2021, %v1930
        %2025 = vst.msk [vmem:[#allocation5 + $0x18] sm:$0xff] %vm2021, %v1932
        %2026 = vst.msk [vmem:[#allocation5 + $0x20] sm:$0xff] %vm2021, %v1934
        %2027 = vst.msk [vmem:[#allocation5 + $0x28] sm:$0xff] %vm2021, %v1936
        %2028 = vst.msk [vmem:[#allocation5 + $0x30] sm:$0xff] %vm2021, %v1938
        %2029 = vst.msk [vmem:[#allocation5 + $0x38] sm:$0xff] %vm2021, %v1940
        %2030 = vst.msk [vmem:[#allocation5 + $0x40] sm:$0xff] %vm2021, %v1942
        %2031 = vst.msk [vmem:[#allocation5 + $0x48] sm:$0xff] %vm2021, %v1944
        %2032 = vst.msk [vmem:[#allocation5 + $0x50] sm:$0xff] %vm2021, %v1946
        %2033 = vst.msk [vmem:[#allocation5 + $0x58] sm:$0xff] %vm2021, %v1948
        %2034 = vst.msk [vmem:[#allocation5 + $0x60] sm:$0xff] %vm2021, %v1950
        %2035 = vst.msk [vmem:[#allocation5 + $0x68] sm:$0xff] %vm2021, %v1952
        %2036 = vst.msk [vmem:[#allocation5 + $0x70] sm:$0xff] %vm2021, %v1954
        %2037 = vst.msk [vmem:[#allocation5 + $0x78] sm:$0xff] %vm2021, %v1956
        %2038 = vst.msk [vmem:[#allocation5 + $0x80] sm:$0xff] %vm2021, %v1958
        %2039 = vst.msk [vmem:[#allocation5 + $0x88] sm:$0xff] %vm2021, %v1960
        %2040 = vst.msk [vmem:[#allocation5 + $0x90] sm:$0xff] %vm2021, %v1962
        %2041 = vst.msk [vmem:[#allocation5 + $0x98] sm:$0xff] %vm2021, %v1964
        %2042 = vst.msk [vmem:[#allocation5 + $0xa0] sm:$0xff] %vm2021, %v1966
        %2043 = vst.msk [vmem:[#allocation5 + $0xa8] sm:$0xff] %vm2021, %v1968
        %2044 = vst.msk [vmem:[#allocation5 + $0xb0] sm:$0xff] %vm2021, %v1970
        %2045 = vst.msk [vmem:[#allocation5 + $0xb8] sm:$0xff] %vm2021, %v1972
        %2046 = vst.msk [vmem:[#allocation5 + $0xc0] sm:$0xff] %vm2021, %v1974
        %2047 = vst.msk [vmem:[#allocation5 + $0xc8] sm:$0xff] %vm2021, %v1976
        %2048 = vst.msk [vmem:[#allocation5 + $0xd0] sm:$0xff] %vm2021, %v1978
        %2049 = vst.msk [vmem:[#allocation5 + $0xd8] sm:$0xff] %vm2021, %v1980
        %2050 = vst.msk [vmem:[#allocation5 + $0xe0] sm:$0xff] %vm2021, %v1982
        %2051 = vst.msk [vmem:[#allocation5 + $0xe8] sm:$0xff] %vm2021, %v1984
        %2052 = vst.msk [vmem:[#allocation5 + $0xf0] sm:$0xff] %vm2021, %v1986
        %2053 = vst.msk [vmem:[#allocation5 + $0xf8] sm:$0xff] %vm2021, %v1988
        %v2054 = vld [vmem:[%s1281 + $0x4] sm:$0xff]
        %v2055 = vld [vmem:[%s1281 + $0xc] sm:$0xff]
        %v2056 = vld [vmem:[%s1281 + $0x1c] sm:$0xff]
        %v2057 = vld [vmem:[%s1281 + $0x24] sm:$0xff]
        %v2058 = vld [vmem:[%s1281 + $0x34] sm:$0xff]
        %v2059 = vld [vmem:[%s1281 + $0x3c] sm:$0xff]
        %v2060 = vld [vmem:[%s1281 + $0x4c] sm:$0xff]
        %v2061 = vld [vmem:[%s1281 + $0x54] sm:$0xff]
        %v2062 = vld [vmem:[%s1281 + $0x64] sm:$0xff]
        %v2063 = vld [vmem:[%s1281 + $0x6c] sm:$0xff]
        %v2064 = vld [vmem:[%s1281 + $0x7c] sm:$0xff]
        %v2065 = vld [vmem:[%s1281 + $0x84] sm:$0xff]
        %v2066 = vld [vmem:[%s1281 + $0x94] sm:$0xff]
        %v2067 = vld [vmem:[%s1281 + $0x9c] sm:$0xff]
        %v2068 = vld [vmem:[%s1281 + $0xac] sm:$0xff]
        %v2069 = vld [vmem:[%s1281 + $0xb4] sm:$0xff]
        %v2070 = vld [vmem:[%s1281 + $0xc4] sm:$0xff]
        %v2071 = vld [vmem:[%s1281 + $0xcc] sm:$0xff]
        %v2072 = vld [vmem:[%s1281 + $0xdc] sm:$0xff]
        %v2073 = vld [vmem:[%s1281 + $0xe4] sm:$0xff]
        %v2074 = vld [vmem:[%s1281 + $0xf4] sm:$0xff]
        %v2075 = vld [vmem:[%s1281 + $0xfc] sm:$0xff]
        %v2076 = vld [vmem:[%s1281 + $0x10c] sm:$0xff]
        %v2077 = vld [vmem:[%s1281 + $0x114] sm:$0xff]
        %v2078 = vld [vmem:[%s1281 + $0x124] sm:$0xff]
        %v2079 = vld [vmem:[%s1281 + $0x12c] sm:$0xff]
        %v2080 = vld [vmem:[%s1281 + $0x13c] sm:$0xff]
        %v2081 = vld [vmem:[%s1281 + $0x144] sm:$0xff]
        %v2082 = vld [vmem:[%s1281 + $0x154] sm:$0xff]
        %v2083 = vld [vmem:[%s1281 + $0x15c] sm:$0xff]
        %v2084 = vld [vmem:[%s1281 + $0x16c] sm:$0xff]
        %v2085 = vld [vmem:[%s1281 + $0x174] sm:$0xff]
        %2118 = vrot.lane.b32.xlu0 %v2054, 27
        %v2119 = vpop.permute.xlu0 %2118
        %2120 = vrot.lane.b32.xlu0 %v2055, 27
        %v2121 = vpop.permute.xlu0 %2120
        %2122 = vrot.lane.b32.xlu0 %v2056, 27
        %v2123 = vpop.permute.xlu0 %2122
        %2124 = vrot.lane.b32.xlu0 %v2057, 27
        %v2125 = vpop.permute.xlu0 %2124
        %2126 = vrot.lane.b32.xlu0 %v2058, 27
        %v2127 = vpop.permute.xlu0 %2126
        %2128 = vrot.lane.b32.xlu0 %v2059, 27
        %v2129 = vpop.permute.xlu0 %2128
        %2130 = vrot.lane.b32.xlu0 %v2060, 27
        %v2131 = vpop.permute.xlu0 %2130
        %2132 = vrot.lane.b32.xlu0 %v2061, 27
        %v2133 = vpop.permute.xlu0 %2132
        %2134 = vrot.lane.b32.xlu0 %v2062, 27
        %v2135 = vpop.permute.xlu0 %2134
        %2136 = vrot.lane.b32.xlu0 %v2063, 27
        %v2137 = vpop.permute.xlu0 %2136
        %2138 = vrot.lane.b32.xlu0 %v2064, 27
        %v2139 = vpop.permute.xlu0 %2138
        %2140 = vrot.lane.b32.xlu0 %v2065, 27
        %v2141 = vpop.permute.xlu0 %2140
        %2142 = vrot.lane.b32.xlu0 %v2066, 27
        %v2143 = vpop.permute.xlu0 %2142
        %2144 = vrot.lane.b32.xlu0 %v2067, 27
        %v2145 = vpop.permute.xlu0 %2144
        %2146 = vrot.lane.b32.xlu0 %v2068, 27
        %v2147 = vpop.permute.xlu0 %2146
        %2148 = vrot.lane.b32.xlu0 %v2069, 27
        %v2149 = vpop.permute.xlu0 %2148
        %2150 = vrot.lane.b32.xlu0 %v2070, 27
        %v2151 = vpop.permute.xlu0 %2150
        %2152 = vrot.lane.b32.xlu0 %v2071, 27
        %v2153 = vpop.permute.xlu0 %2152
        %2154 = vrot.lane.b32.xlu0 %v2072, 27
        %v2155 = vpop.permute.xlu0 %2154
        %2156 = vrot.lane.b32.xlu0 %v2073, 27
        %v2157 = vpop.permute.xlu0 %2156
        %2158 = vrot.lane.b32.xlu0 %v2074, 27
        %v2159 = vpop.permute.xlu0 %2158
        %2160 = vrot.lane.b32.xlu0 %v2075, 27
        %v2161 = vpop.permute.xlu0 %2160
        %2162 = vrot.lane.b32.xlu0 %v2076, 27
        %v2163 = vpop.permute.xlu0 %2162
        %2164 = vrot.lane.b32.xlu0 %v2077, 27
        %v2165 = vpop.permute.xlu0 %2164
        %2166 = vrot.lane.b32.xlu0 %v2078, 27
        %v2167 = vpop.permute.xlu0 %2166
        %2168 = vrot.lane.b32.xlu0 %v2079, 27
        %v2169 = vpop.permute.xlu0 %2168
        %2170 = vrot.lane.b32.xlu0 %v2080, 27
        %v2171 = vpop.permute.xlu0 %2170
        %2172 = vrot.lane.b32.xlu0 %v2081, 27
        %v2173 = vpop.permute.xlu0 %2172
        %2174 = vrot.lane.b32.xlu0 %v2082, 27
        %v2175 = vpop.permute.xlu0 %2174
        %2176 = vrot.lane.b32.xlu0 %v2083, 27
        %v2177 = vpop.permute.xlu0 %2176
        %2178 = vrot.lane.b32.xlu0 %v2084, 27
        %v2179 = vpop.permute.xlu0 %2178
        %2180 = vrot.lane.b32.xlu0 %v2085, 27
        %v2181 = vpop.permute.xlu0 %2180
        %vm2214 = vcmask 244952
        %2215 = vst.msk [vmem:[#allocation5] sm:$0xff] %vm2214, %v2119
        %2216 = vst.msk [vmem:[#allocation5 + $0x8] sm:$0xff] %vm2214, %v2121
        %2217 = vst.msk [vmem:[#allocation5 + $0x10] sm:$0xff] %vm2214, %v2123
        %2218 = vst.msk [vmem:[#allocation5 + $0x18] sm:$0xff] %vm2214, %v2125
        %2219 = vst.msk [vmem:[#allocation5 + $0x20] sm:$0xff] %vm2214, %v2127
        %2220 = vst.msk [vmem:[#allocation5 + $0x28] sm:$0xff] %vm2214, %v2129
        %2221 = vst.msk [vmem:[#allocation5 + $0x30] sm:$0xff] %vm2214, %v2131
        %2222 = vst.msk [vmem:[#allocation5 + $0x38] sm:$0xff] %vm2214, %v2133
        %2223 = vst.msk [vmem:[#allocation5 + $0x40] sm:$0xff] %vm2214, %v2135
        %2224 = vst.msk [vmem:[#allocation5 + $0x48] sm:$0xff] %vm2214, %v2137
        %2225 = vst.msk [vmem:[#allocation5 + $0x50] sm:$0xff] %vm2214, %v2139
        %2226 = vst.msk [vmem:[#allocation5 + $0x58] sm:$0xff] %vm2214, %v2141
        %2227 = vst.msk [vmem:[#allocation5 + $0x60] sm:$0xff] %vm2214, %v2143
        %2228 = vst.msk [vmem:[#allocation5 + $0x68] sm:$0xff] %vm2214, %v2145
        %2229 = vst.msk [vmem:[#allocation5 + $0x70] sm:$0xff] %vm2214, %v2147
        %2230 = vst.msk [vmem:[#allocation5 + $0x78] sm:$0xff] %vm2214, %v2149
        %2231 = vst.msk [vmem:[#allocation5 + $0x80] sm:$0xff] %vm2214, %v2151
        %2232 = vst.msk [vmem:[#allocation5 + $0x88] sm:$0xff] %vm2214, %v2153
        %2233 = vst.msk [vmem:[#allocation5 + $0x90] sm:$0xff] %vm2214, %v2155
        %2234 = vst.msk [vmem:[#allocation5 + $0x98] sm:$0xff] %vm2214, %v2157
        %2235 = vst.msk [vmem:[#allocation5 + $0xa0] sm:$0xff] %vm2214, %v2159
        %2236 = vst.msk [vmem:[#allocation5 + $0xa8] sm:$0xff] %vm2214, %v2161
        %2237 = vst.msk [vmem:[#allocation5 + $0xb0] sm:$0xff] %vm2214, %v2163
        %2238 = vst.msk [vmem:[#allocation5 + $0xb8] sm:$0xff] %vm2214, %v2165
        %2239 = vst.msk [vmem:[#allocation5 + $0xc0] sm:$0xff] %vm2214, %v2167
        %2240 = vst.msk [vmem:[#allocation5 + $0xc8] sm:$0xff] %vm2214, %v2169
        %2241 = vst.msk [vmem:[#allocation5 + $0xd0] sm:$0xff] %vm2214, %v2171
        %2242 = vst.msk [vmem:[#allocation5 + $0xd8] sm:$0xff] %vm2214, %v2173
        %2243 = vst.msk [vmem:[#allocation5 + $0xe0] sm:$0xff] %vm2214, %v2175
        %2244 = vst.msk [vmem:[#allocation5 + $0xe8] sm:$0xff] %vm2214, %v2177
        %2245 = vst.msk [vmem:[#allocation5 + $0xf0] sm:$0xff] %vm2214, %v2179
        %2246 = vst.msk [vmem:[#allocation5 + $0xf8] sm:$0xff] %vm2214, %v2181
        %v2247 = vld [vmem:[%s412] sm:$0xff]
        %v2248 = vld [vmem:[%s412 + $0x8] sm:$0xff]
        %v2249 = vld [vmem:[%s412 + $0x18] sm:$0xff]
        %v2250 = vld [vmem:[%s412 + $0x20] sm:$0xff]
        %v2251 = vld [vmem:[%s412 + $0x30] sm:$0xff]
        %v2252 = vld [vmem:[%s412 + $0x38] sm:$0xff]
        %v2253 = vld [vmem:[%s412 + $0x48] sm:$0xff]
        %v2254 = vld [vmem:[%s412 + $0x50] sm:$0xff]
        %v2255 = vld [vmem:[%s412 + $0x60] sm:$0xff]
        %v2256 = vld [vmem:[%s412 + $0x68] sm:$0xff]
        %v2257 = vld [vmem:[%s412 + $0x78] sm:$0xff]
        %v2258 = vld [vmem:[%s412 + $0x80] sm:$0xff]
        %v2259 = vld [vmem:[%s412 + $0x90] sm:$0xff]
        %v2260 = vld [vmem:[%s412 + $0x98] sm:$0xff]
        %v2261 = vld [vmem:[%s412 + $0xa8] sm:$0xff]
        %v2262 = vld [vmem:[%s412 + $0xb0] sm:$0xff]
        %v2263 = vld [vmem:[%s412 + $0xc0] sm:$0xff]
        %v2264 = vld [vmem:[%s412 + $0xc8] sm:$0xff]
        %v2265 = vld [vmem:[%s412 + $0xd8] sm:$0xff]
        %v2266 = vld [vmem:[%s412 + $0xe0] sm:$0xff]
        %v2267 = vld [vmem:[%s412 + $0xf0] sm:$0xff]
        %v2268 = vld [vmem:[%s412 + $0xf8] sm:$0xff]
        %v2269 = vld [vmem:[%s412 + $0x108] sm:$0xff]
        %v2270 = vld [vmem:[%s412 + $0x110] sm:$0xff]
        %v2271 = vld [vmem:[%s412 + $0x120] sm:$0xff]
        %v2272 = vld [vmem:[%s412 + $0x128] sm:$0xff]
        %v2273 = vld [vmem:[%s412 + $0x138] sm:$0xff]
        %v2274 = vld [vmem:[%s412 + $0x140] sm:$0xff]
        %v2275 = vld [vmem:[%s412 + $0x150] sm:$0xff]
        %v2276 = vld [vmem:[%s412 + $0x158] sm:$0xff]
        %v2277 = vld [vmem:[%s412 + $0x168] sm:$0xff]
        %v2278 = vld [vmem:[%s412 + $0x170] sm:$0xff]
        %2311 = vrot.lane.b32.xlu0 %v2247, 30
        %v2312 = vpop.permute.xlu0 %2311
        %2313 = vrot.lane.b32.xlu0 %v2248, 30
        %v2314 = vpop.permute.xlu0 %2313
        %2315 = vrot.lane.b32.xlu0 %v2249, 30
        %v2316 = vpop.permute.xlu0 %2315
        %2317 = vrot.lane.b32.xlu0 %v2250, 30
        %v2318 = vpop.permute.xlu0 %2317
        %2319 = vrot.lane.b32.xlu0 %v2251, 30
        %v2320 = vpop.permute.xlu0 %2319
        %2321 = vrot.lane.b32.xlu0 %v2252, 30
        %v2322 = vpop.permute.xlu0 %2321
        %2323 = vrot.lane.b32.xlu0 %v2253, 30
        %v2324 = vpop.permute.xlu0 %2323
        %2325 = vrot.lane.b32.xlu0 %v2254, 30
        %v2326 = vpop.permute.xlu0 %2325
        %2327 = vrot.lane.b32.xlu0 %v2255, 30
        %v2328 = vpop.permute.xlu0 %2327
        %2329 = vrot.lane.b32.xlu0 %v2256, 30
        %v2330 = vpop.permute.xlu0 %2329
        %2331 = vrot.lane.b32.xlu0 %v2257, 30
        %v2332 = vpop.permute.xlu0 %2331
        %2333 = vrot.lane.b32.xlu0 %v2258, 30
        %v2334 = vpop.permute.xlu0 %2333
        %2335 = vrot.lane.b32.xlu0 %v2259, 30
        %v2336 = vpop.permute.xlu0 %2335
        %2337 = vrot.lane.b32.xlu0 %v2260, 30
        %v2338 = vpop.permute.xlu0 %2337
        %2339 = vrot.lane.b32.xlu0 %v2261, 30
        %v2340 = vpop.permute.xlu0 %2339
        %2341 = vrot.lane.b32.xlu0 %v2262, 30
        %v2342 = vpop.permute.xlu0 %2341
        %2343 = vrot.lane.b32.xlu0 %v2263, 30
        %v2344 = vpop.permute.xlu0 %2343
        %2345 = vrot.lane.b32.xlu0 %v2264, 30
        %v2346 = vpop.permute.xlu0 %2345
        %2347 = vrot.lane.b32.xlu0 %v2265, 30
        %v2348 = vpop.permute.xlu0 %2347
        %2349 = vrot.lane.b32.xlu0 %v2266, 30
        %v2350 = vpop.permute.xlu0 %2349
        %2351 = vrot.lane.b32.xlu0 %v2267, 30
        %v2352 = vpop.permute.xlu0 %2351
        %2353 = vrot.lane.b32.xlu0 %v2268, 30
        %v2354 = vpop.permute.xlu0 %2353
        %2355 = vrot.lane.b32.xlu0 %v2269, 30
        %v2356 = vpop.permute.xlu0 %2355
        %2357 = vrot.lane.b32.xlu0 %v2270, 30
        %v2358 = vpop.permute.xlu0 %2357
        %2359 = vrot.lane.b32.xlu0 %v2271, 30
        %v2360 = vpop.permute.xlu0 %2359
        %2361 = vrot.lane.b32.xlu0 %v2272, 30
        %v2362 = vpop.permute.xlu0 %2361
        %2363 = vrot.lane.b32.xlu0 %v2273, 30
        %v2364 = vpop.permute.xlu0 %2363
        %2365 = vrot.lane.b32.xlu0 %v2274, 30
        %v2366 = vpop.permute.xlu0 %2365
        %2367 = vrot.lane.b32.xlu0 %v2275, 30
        %v2368 = vpop.permute.xlu0 %2367
        %2369 = vrot.lane.b32.xlu0 %v2276, 30
        %v2370 = vpop.permute.xlu0 %2369
        %2371 = vrot.lane.b32.xlu0 %v2277, 30
        %v2372 = vpop.permute.xlu0 %2371
        %2373 = vrot.lane.b32.xlu0 %v2278, 30
        %v2374 = vpop.permute.xlu0 %2373
        %vm2407 = vcmask 269552
        %2408 = vst.msk [vmem:[#allocation5] sm:$0xff] %vm2407, %v2312
        %2409 = vst.msk [vmem:[#allocation5 + $0x8] sm:$0xff] %vm2407, %v2314
        %2410 = vst.msk [vmem:[#allocation5 + $0x10] sm:$0xff] %vm2407, %v2316
        %2411 = vst.msk [vmem:[#allocation5 + $0x18] sm:$0xff] %vm2407, %v2318
        %2412 = vst.msk [vmem:[#allocation5 + $0x20] sm:$0xff] %vm2407, %v2320
        %2413 = vst.msk [vmem:[#allocation5 + $0x28] sm:$0xff] %vm2407, %v2322
        %2414 = vst.msk [vmem:[#allocation5 + $0x30] sm:$0xff] %vm2407, %v2324
        %2415 = vst.msk [vmem:[#allocation5 + $0x38] sm:$0xff] %vm2407, %v2326
        %2416 = vst.msk [vmem:[#allocation5 + $0x40] sm:$0xff] %vm2407, %v2328
        %2417 = vst.msk [vmem:[#allocation5 + $0x48] sm:$0xff] %vm2407, %v2330
        %2418 = vst.msk [vmem:[#allocation5 + $0x50] sm:$0xff] %vm2407, %v2332
        %2419 = vst.msk [vmem:[#allocation5 + $0x58] sm:$0xff] %vm2407, %v2334
        %2420 = vst.msk [vmem:[#allocation5 + $0x60] sm:$0xff] %vm2407, %v2336
        %2421 = vst.msk [vmem:[#allocation5 + $0x68] sm:$0xff] %vm2407, %v2338
        %2422 = vst.msk [vmem:[#allocation5 + $0x70] sm:$0xff] %vm2407, %v2340
        %2423 = vst.msk [vmem:[#allocation5 + $0x78] sm:$0xff] %vm2407, %v2342
        %2424 = vst.msk [vmem:[#allocation5 + $0x80] sm:$0xff] %vm2407, %v2344
        %2425 = vst.msk [vmem:[#allocation5 + $0x88] sm:$0xff] %vm2407, %v2346
        %2426 = vst.msk [vmem:[#allocation5 + $0x90] sm:$0xff] %vm2407, %v2348
        %2427 = vst.msk [vmem:[#allocation5 + $0x98] sm:$0xff] %vm2407, %v2350
        %2428 = vst.msk [vmem:[#allocation5 + $0xa0] sm:$0xff] %vm2407, %v2352
        %2429 = vst.msk [vmem:[#allocation5 + $0xa8] sm:$0xff] %vm2407, %v2354
        %2430 = vst.msk [vmem:[#allocation5 + $0xb0] sm:$0xff] %vm2407, %v2356
        %2431 = vst.msk [vmem:[#allocation5 + $0xb8] sm:$0xff] %vm2407, %v2358
        %2432 = vst.msk [vmem:[#allocation5 + $0xc0] sm:$0xff] %vm2407, %v2360
        %2433 = vst.msk [vmem:[#allocation5 + $0xc8] sm:$0xff] %vm2407, %v2362
        %2434 = vst.msk [vmem:[#allocation5 + $0xd0] sm:$0xff] %vm2407, %v2364
        %2435 = vst.msk [vmem:[#allocation5 + $0xd8] sm:$0xff] %vm2407, %v2366
        %2436 = vst.msk [vmem:[#allocation5 + $0xe0] sm:$0xff] %vm2407, %v2368
        %2437 = vst.msk [vmem:[#allocation5 + $0xe8] sm:$0xff] %vm2407, %v2370
        %2438 = vst.msk [vmem:[#allocation5 + $0xf0] sm:$0xff] %vm2407, %v2372
        %2439 = vst.msk [vmem:[#allocation5 + $0xf8] sm:$0xff] %vm2407, %v2374
        %v2440 = vld [vmem:[%s412 + $0x1] sm:$0xff]
        %v2441 = vld [vmem:[%s412 + $0x9] sm:$0xff]
        %v2442 = vld [vmem:[%s412 + $0x19] sm:$0xff]
        %v2443 = vld [vmem:[%s412 + $0x21] sm:$0xff]
        %v2444 = vld [vmem:[%s412 + $0x31] sm:$0xff]
        %v2445 = vld [vmem:[%s412 + $0x39] sm:$0xff]
        %v2446 = vld [vmem:[%s412 + $0x49] sm:$0xff]
        %v2447 = vld [vmem:[%s412 + $0x51] sm:$0xff]
        %v2448 = vld [vmem:[%s412 + $0x61] sm:$0xff]
        %v2449 = vld [vmem:[%s412 + $0x69] sm:$0xff]
        %v2450 = vld [vmem:[%s412 + $0x79] sm:$0xff]
        %v2451 = vld [vmem:[%s412 + $0x81] sm:$0xff]
        %v2452 = vld [vmem:[%s412 + $0x91] sm:$0xff]
        %v2453 = vld [vmem:[%s412 + $0x99] sm:$0xff]
        %v2454 = vld [vmem:[%s412 + $0xa9] sm:$0xff]
        %v2455 = vld [vmem:[%s412 + $0xb1] sm:$0xff]
        %v2456 = vld [vmem:[%s412 + $0xc1] sm:$0xff]
        %v2457 = vld [vmem:[%s412 + $0xc9] sm:$0xff]
        %v2458 = vld [vmem:[%s412 + $0xd9] sm:$0xff]
        %v2459 = vld [vmem:[%s412 + $0xe1] sm:$0xff]
        %v2460 = vld [vmem:[%s412 + $0xf1] sm:$0xff]
        %v2461 = vld [vmem:[%s412 + $0xf9] sm:$0xff]
        %v2462 = vld [vmem:[%s412 + $0x109] sm:$0xff]
        %v2463 = vld [vmem:[%s412 + $0x111] sm:$0xff]
        %v2464 = vld [vmem:[%s412 + $0x121] sm:$0xff]
        %v2465 = vld [vmem:[%s412 + $0x129] sm:$0xff]
        %v2466 = vld [vmem:[%s412 + $0x139] sm:$0xff]
        %v2467 = vld [vmem:[%s412 + $0x141] sm:$0xff]
        %v2468 = vld [vmem:[%s412 + $0x151] sm:$0xff]
        %v2469 = vld [vmem:[%s412 + $0x159] sm:$0xff]
        %v2470 = vld [vmem:[%s412 + $0x169] sm:$0xff]
        %v2471 = vld [vmem:[%s412 + $0x171] sm:$0xff]
        %2504 = vrot.lane.b32.xlu0 %v2440, 33
        %v2505 = vpop.permute.xlu0 %2504
        %2506 = vrot.lane.b32.xlu0 %v2441, 33
        %v2507 = vpop.permute.xlu0 %2506
        %2508 = vrot.lane.b32.xlu0 %v2442, 33
        %v2509 = vpop.permute.xlu0 %2508
        %2510 = vrot.lane.b32.xlu0 %v2443, 33
        %v2511 = vpop.permute.xlu0 %2510
        %2512 = vrot.lane.b32.xlu0 %v2444, 33
        %v2513 = vpop.permute.xlu0 %2512
        %2514 = vrot.lane.b32.xlu0 %v2445, 33
        %v2515 = vpop.permute.xlu0 %2514
        %2516 = vrot.lane.b32.xlu0 %v2446, 33
        %v2517 = vpop.permute.xlu0 %2516
        %2518 = vrot.lane.b32.xlu0 %v2447, 33
        %v2519 = vpop.permute.xlu0 %2518
        %2520 = vrot.lane.b32.xlu0 %v2448, 33
        %v2521 = vpop.permute.xlu0 %2520
        %2522 = vrot.lane.b32.xlu0 %v2449, 33
        %v2523 = vpop.permute.xlu0 %2522
        %2524 = vrot.lane.b32.xlu0 %v2450, 33
        %v2525 = vpop.permute.xlu0 %2524
        %2526 = vrot.lane.b32.xlu0 %v2451, 33
        %v2527 = vpop.permute.xlu0 %2526
        %2528 = vrot.lane.b32.xlu0 %v2452, 33
        %v2529 = vpop.permute.xlu0 %2528
        %2530 = vrot.lane.b32.xlu0 %v2453, 33
        %v2531 = vpop.permute.xlu0 %2530
        %2532 = vrot.lane.b32.xlu0 %v2454, 33
        %v2533 = vpop.permute.xlu0 %2532
        %2534 = vrot.lane.b32.xlu0 %v2455, 33
        %v2535 = vpop.permute.xlu0 %2534
        %2536 = vrot.lane.b32.xlu0 %v2456, 33
        %v2537 = vpop.permute.xlu0 %2536
        %2538 = vrot.lane.b32.xlu0 %v2457, 33
        %v2539 = vpop.permute.xlu0 %2538
        %2540 = vrot.lane.b32.xlu0 %v2458, 33
        %v2541 = vpop.permute.xlu0 %2540
        %2542 = vrot.lane.b32.xlu0 %v2459, 33
        %v2543 = vpop.permute.xlu0 %2542
        %2544 = vrot.lane.b32.xlu0 %v2460, 33
        %v2545 = vpop.permute.xlu0 %2544
        %2546 = vrot.lane.b32.xlu0 %v2461, 33
        %v2547 = vpop.permute.xlu0 %2546
        %2548 = vrot.lane.b32.xlu0 %v2462, 33
        %v2549 = vpop.permute.xlu0 %2548
        %2550 = vrot.lane.b32.xlu0 %v2463, 33
        %v2551 = vpop.permute.xlu0 %2550
        %2552 = vrot.lane.b32.xlu0 %v2464, 33
        %v2553 = vpop.permute.xlu0 %2552
        %2554 = vrot.lane.b32.xlu0 %v2465, 33
        %v2555 = vpop.permute.xlu0 %2554
        %2556 = vrot.lane.b32.xlu0 %v2466, 33
        %v2557 = vpop.permute.xlu0 %2556
        %2558 = vrot.lane.b32.xlu0 %v2467, 33
        %v2559 = vpop.permute.xlu0 %2558
        %2560 = vrot.lane.b32.xlu0 %v2468, 33
        %v2561 = vpop.permute.xlu0 %2560
        %2562 = vrot.lane.b32.xlu0 %v2469, 33
        %v2563 = vpop.permute.xlu0 %2562
        %2564 = vrot.lane.b32.xlu0 %v2470, 33
        %v2565 = vpop.permute.xlu0 %2564
        %2566 = vrot.lane.b32.xlu0 %v2471, 33
        %v2567 = vpop.permute.xlu0 %2566
        %vm2600 = vcmask 294152
        %2601 = vst.msk [vmem:[#allocation5] sm:$0xff] %vm2600, %v2505
        %2602 = vst.msk [vmem:[#allocation5 + $0x8] sm:$0xff] %vm2600, %v2507
        %2603 = vst.msk [vmem:[#allocation5 + $0x10] sm:$0xff] %vm2600, %v2509
        %2604 = vst.msk [vmem:[#allocation5 + $0x18] sm:$0xff] %vm2600, %v2511
        %2605 = vst.msk [vmem:[#allocation5 + $0x20] sm:$0xff] %vm2600, %v2513
        %2606 = vst.msk [vmem:[#allocation5 + $0x28] sm:$0xff] %vm2600, %v2515
        %2607 = vst.msk [vmem:[#allocation5 + $0x30] sm:$0xff] %vm2600, %v2517
        %2608 = vst.msk [vmem:[#allocation5 + $0x38] sm:$0xff] %vm2600, %v2519
        %2609 = vst.msk [vmem:[#allocation5 + $0x40] sm:$0xff] %vm2600, %v2521
        %2610 = vst.msk [vmem:[#allocation5 + $0x48] sm:$0xff] %vm2600, %v2523
        %2611 = vst.msk [vmem:[#allocation5 + $0x50] sm:$0xff] %vm2600, %v2525
        %2612 = vst.msk [vmem:[#allocation5 + $0x58] sm:$0xff] %vm2600, %v2527
        %2613 = vst.msk [vmem:[#allocation5 + $0x60] sm:$0xff] %vm2600, %v2529
        %2614 = vst.msk [vmem:[#allocation5 + $0x68] sm:$0xff] %vm2600, %v2531
        %2615 = vst.msk [vmem:[#allocation5 + $0x70] sm:$0xff] %vm2600, %v2533
        %2616 = vst.msk [vmem:[#allocation5 + $0x78] sm:$0xff] %vm2600, %v2535
        %2617 = vst.msk [vmem:[#allocation5 + $0x80] sm:$0xff] %vm2600, %v2537
        %2618 = vst.msk [vmem:[#allocation5 + $0x88] sm:$0xff] %vm2600, %v2539
        %2619 = vst.msk [vmem:[#allocation5 + $0x90] sm:$0xff] %vm2600, %v2541
        %2620 = vst.msk [vmem:[#allocation5 + $0x98] sm:$0xff] %vm2600, %v2543
        %2621 = vst.msk [vmem:[#allocation5 + $0xa0] sm:$0xff] %vm2600, %v2545
        %2622 = vst.msk [vmem:[#allocation5 + $0xa8] sm:$0xff] %vm2600, %v2547
        %2623 = vst.msk [vmem:[#allocation5 + $0xb0] sm:$0xff] %vm2600, %v2549
        %2624 = vst.msk [vmem:[#allocation5 + $0xb8] sm:$0xff] %vm2600, %v2551
        %2625 = vst.msk [vmem:[#allocation5 + $0xc0] sm:$0xff] %vm2600, %v2553
        %2626 = vst.msk [vmem:[#allocation5 + $0xc8] sm:$0xff] %vm2600, %v2555
        %2627 = vst.msk [vmem:[#allocation5 + $0xd0] sm:$0xff] %vm2600, %v2557
        %2628 = vst.msk [vmem:[#allocation5 + $0xd8] sm:$0xff] %vm2600, %v2559
        %2629 = vst.msk [vmem:[#allocation5 + $0xe0] sm:$0xff] %vm2600, %v2561
        %2630 = vst.msk [vmem:[#allocation5 + $0xe8] sm:$0xff] %vm2600, %v2563
        %2631 = vst.msk [vmem:[#allocation5 + $0xf0] sm:$0xff] %vm2600, %v2565
        %2632 = vst.msk [vmem:[#allocation5 + $0xf8] sm:$0xff] %vm2600, %v2567
        %v2633 = vld [vmem:[%s412 + $0x2] sm:$0xff]
        %v2634 = vld [vmem:[%s412 + $0xa] sm:$0xff]
        %v2635 = vld [vmem:[%s412 + $0x1a] sm:$0xff]
        %v2636 = vld [vmem:[%s412 + $0x22] sm:$0xff]
        %v2637 = vld [vmem:[%s412 + $0x32] sm:$0xff]
        %v2638 = vld [vmem:[%s412 + $0x3a] sm:$0xff]
        %v2639 = vld [vmem:[%s412 + $0x4a] sm:$0xff]
        %v2640 = vld [vmem:[%s412 + $0x52] sm:$0xff]
        %v2641 = vld [vmem:[%s412 + $0x62] sm:$0xff]
        %v2642 = vld [vmem:[%s412 + $0x6a] sm:$0xff]
        %v2643 = vld [vmem:[%s412 + $0x7a] sm:$0xff]
        %v2644 = vld [vmem:[%s412 + $0x82] sm:$0xff]
        %v2645 = vld [vmem:[%s412 + $0x92] sm:$0xff]
        %v2646 = vld [vmem:[%s412 + $0x9a] sm:$0xff]
        %v2647 = vld [vmem:[%s412 + $0xaa] sm:$0xff]
        %v2648 = vld [vmem:[%s412 + $0xb2] sm:$0xff]
        %v2649 = vld [vmem:[%s412 + $0xc2] sm:$0xff]
        %v2650 = vld [vmem:[%s412 + $0xca] sm:$0xff]
        %v2651 = vld [vmem:[%s412 + $0xda] sm:$0xff]
        %v2652 = vld [vmem:[%s412 + $0xe2] sm:$0xff]
        %v2653 = vld [vmem:[%s412 + $0xf2] sm:$0xff]
        %v2654 = vld [vmem:[%s412 + $0xfa] sm:$0xff]
        %v2655 = vld [vmem:[%s412 + $0x10a] sm:$0xff]
        %v2656 = vld [vmem:[%s412 + $0x112] sm:$0xff]
        %v2657 = vld [vmem:[%s412 + $0x122] sm:$0xff]
        %v2658 = vld [vmem:[%s412 + $0x12a] sm:$0xff]
        %v2659 = vld [vmem:[%s412 + $0x13a] sm:$0xff]
        %v2660 = vld [vmem:[%s412 + $0x142] sm:$0xff]
        %v2661 = vld [vmem:[%s412 + $0x152] sm:$0xff]
        %v2662 = vld [vmem:[%s412 + $0x15a] sm:$0xff]
        %v2663 = vld [vmem:[%s412 + $0x16a] sm:$0xff]
        %v2664 = vld [vmem:[%s412 + $0x172] sm:$0xff]
        %2697 = vrot.lane.b32.xlu0 %v2633, 36
        %v2698 = vpop.permute.xlu0 %2697
        %2699 = vrot.lane.b32.xlu0 %v2634, 36
        %v2700 = vpop.permute.xlu0 %2699
        %2701 = vrot.lane.b32.xlu0 %v2635, 36
        %v2702 = vpop.permute.xlu0 %2701
        %2703 = vrot.lane.b32.xlu0 %v2636, 36
        %v2704 = vpop.permute.xlu0 %2703
        %2705 = vrot.lane.b32.xlu0 %v2637, 36
        %v2706 = vpop.permute.xlu0 %2705
        %2707 = vrot.lane.b32.xlu0 %v2638, 36
        %v2708 = vpop.permute.xlu0 %2707
        %2709 = vrot.lane.b32.xlu0 %v2639, 36
        %v2710 = vpop.permute.xlu0 %2709
        %2711 = vrot.lane.b32.xlu0 %v2640, 36
        %v2712 = vpop.permute.xlu0 %2711
        %2713 = vrot.lane.b32.xlu0 %v2641, 36
        %v2714 = vpop.permute.xlu0 %2713
        %2715 = vrot.lane.b32.xlu0 %v2642, 36
        %v2716 = vpop.permute.xlu0 %2715
        %2717 = vrot.lane.b32.xlu0 %v2643, 36
        %v2718 = vpop.permute.xlu0 %2717
        %2719 = vrot.lane.b32.xlu0 %v2644, 36
        %v2720 = vpop.permute.xlu0 %2719
        %2721 = vrot.lane.b32.xlu0 %v2645, 36
        %v2722 = vpop.permute.xlu0 %2721
        %2723 = vrot.lane.b32.xlu0 %v2646, 36
        %v2724 = vpop.permute.xlu0 %2723
        %2725 = vrot.lane.b32.xlu0 %v2647, 36
        %v2726 = vpop.permute.xlu0 %2725
        %2727 = vrot.lane.b32.xlu0 %v2648, 36
        %v2728 = vpop.permute.xlu0 %2727
        %2729 = vrot.lane.b32.xlu0 %v2649, 36
        %v2730 = vpop.permute.xlu0 %2729
        %2731 = vrot.lane.b32.xlu0 %v2650, 36
        %v2732 = vpop.permute.xlu0 %2731
        %2733 = vrot.lane.b32.xlu0 %v2651, 36
        %v2734 = vpop.permute.xlu0 %2733
        %2735 = vrot.lane.b32.xlu0 %v2652, 36
        %v2736 = vpop.permute.xlu0 %2735
        %2737 = vrot.lane.b32.xlu0 %v2653, 36
        %v2738 = vpop.permute.xlu0 %2737
        %2739 = vrot.lane.b32.xlu0 %v2654, 36
        %v2740 = vpop.permute.xlu0 %2739
        %2741 = vrot.lane.b32.xlu0 %v2655, 36
        %v2742 = vpop.permute.xlu0 %2741
        %2743 = vrot.lane.b32.xlu0 %v2656, 36
        %v2744 = vpop.permute.xlu0 %2743
        %2745 = vrot.lane.b32.xlu0 %v2657, 36
        %v2746 = vpop.permute.xlu0 %2745
        %2747 = vrot.lane.b32.xlu0 %v2658, 36
        %v2748 = vpop.permute.xlu0 %2747
        %2749 = vrot.lane.b32.xlu0 %v2659, 36
        %v2750 = vpop.permute.xlu0 %2749
        %2751 = vrot.lane.b32.xlu0 %v2660, 36
        %v2752 = vpop.permute.xlu0 %2751
        %2753 = vrot.lane.b32.xlu0 %v2661, 36
        %v2754 = vpop.permute.xlu0 %2753
        %2755 = vrot.lane.b32.xlu0 %v2662, 36
        %v2756 = vpop.permute.xlu0 %2755
        %2757 = vrot.lane.b32.xlu0 %v2663, 36
        %v2758 = vpop.permute.xlu0 %2757
        %2759 = vrot.lane.b32.xlu0 %v2664, 36
        %v2760 = vpop.permute.xlu0 %2759
        %vm2793 = vcmask 318752
        %2794 = vst.msk [vmem:[#allocation5] sm:$0xff] %vm2793, %v2698
        %2795 = vst.msk [vmem:[#allocation5 + $0x8] sm:$0xff] %vm2793, %v2700
        %2796 = vst.msk [vmem:[#allocation5 + $0x10] sm:$0xff] %vm2793, %v2702
        %2797 = vst.msk [vmem:[#allocation5 + $0x18] sm:$0xff] %vm2793, %v2704
        %2798 = vst.msk [vmem:[#allocation5 + $0x20] sm:$0xff] %vm2793, %v2706
        %2799 = vst.msk [vmem:[#allocation5 + $0x28] sm:$0xff] %vm2793, %v2708
        %2800 = vst.msk [vmem:[#allocation5 + $0x30] sm:$0xff] %vm2793, %v2710
        %2801 = vst.msk [vmem:[#allocation5 + $0x38] sm:$0xff] %vm2793, %v2712
        %2802 = vst.msk [vmem:[#allocation5 + $0x40] sm:$0xff] %vm2793, %v2714
        %2803 = vst.msk [vmem:[#allocation5 + $0x48] sm:$0xff] %vm2793, %v2716
        %2804 = vst.msk [vmem:[#allocation5 + $0x50] sm:$0xff] %vm2793, %v2718
        %2805 = vst.msk [vmem:[#allocation5 + $0x58] sm:$0xff] %vm2793, %v2720
        %2806 = vst.msk [vmem:[#allocation5 + $0x60] sm:$0xff] %vm2793, %v2722
        %2807 = vst.msk [vmem:[#allocation5 + $0x68] sm:$0xff] %vm2793, %v2724
        %2808 = vst.msk [vmem:[#allocation5 + $0x70] sm:$0xff] %vm2793, %v2726
        %2809 = vst.msk [vmem:[#allocation5 + $0x78] sm:$0xff] %vm2793, %v2728
        %2810 = vst.msk [vmem:[#allocation5 + $0x80] sm:$0xff] %vm2793, %v2730
        %2811 = vst.msk [vmem:[#allocation5 + $0x88] sm:$0xff] %vm2793, %v2732
        %2812 = vst.msk [vmem:[#allocation5 + $0x90] sm:$0xff] %vm2793, %v2734
        %2813 = vst.msk [vmem:[#allocation5 + $0x98] sm:$0xff] %vm2793, %v2736
        %2814 = vst.msk [vmem:[#allocation5 + $0xa0] sm:$0xff] %vm2793, %v2738
        %2815 = vst.msk [vmem:[#allocation5 + $0xa8] sm:$0xff] %vm2793, %v2740
        %2816 = vst.msk [vmem:[#allocation5 + $0xb0] sm:$0xff] %vm2793, %v2742
        %2817 = vst.msk [vmem:[#allocation5 + $0xb8] sm:$0xff] %vm2793, %v2744
        %2818 = vst.msk [vmem:[#allocation5 + $0xc0] sm:$0xff] %vm2793, %v2746
        %2819 = vst.msk [vmem:[#allocation5 + $0xc8] sm:$0xff] %vm2793, %v2748
        %2820 = vst.msk [vmem:[#allocation5 + $0xd0] sm:$0xff] %vm2793, %v2750
        %2821 = vst.msk [vmem:[#allocation5 + $0xd8] sm:$0xff] %vm2793, %v2752
        %2822 = vst.msk [vmem:[#allocation5 + $0xe0] sm:$0xff] %vm2793, %v2754
        %2823 = vst.msk [vmem:[#allocation5 + $0xe8] sm:$0xff] %vm2793, %v2756
        %2824 = vst.msk [vmem:[#allocation5 + $0xf0] sm:$0xff] %vm2793, %v2758
        %2825 = vst.msk [vmem:[#allocation5 + $0xf8] sm:$0xff] %vm2793, %v2760
        %v2826 = vld [vmem:[%s412 + $0x3] sm:$0xff]
        %v2827 = vld [vmem:[%s412 + $0xb] sm:$0xff]
        %v2828 = vld [vmem:[%s412 + $0x1b] sm:$0xff]
        %v2829 = vld [vmem:[%s412 + $0x23] sm:$0xff]
        %v2830 = vld [vmem:[%s412 + $0x33] sm:$0xff]
        %v2831 = vld [vmem:[%s412 + $0x3b] sm:$0xff]
        %v2832 = vld [vmem:[%s412 + $0x4b] sm:$0xff]
        %v2833 = vld [vmem:[%s412 + $0x53] sm:$0xff]
        %v2834 = vld [vmem:[%s412 + $0x63] sm:$0xff]
        %v2835 = vld [vmem:[%s412 + $0x6b] sm:$0xff]
        %v2836 = vld [vmem:[%s412 + $0x7b] sm:$0xff]
        %v2837 = vld [vmem:[%s412 + $0x83] sm:$0xff]
        %v2838 = vld [vmem:[%s412 + $0x93] sm:$0xff]
        %v2839 = vld [vmem:[%s412 + $0x9b] sm:$0xff]
        %v2840 = vld [vmem:[%s412 + $0xab] sm:$0xff]
        %v2841 = vld [vmem:[%s412 + $0xb3] sm:$0xff]
        %v2842 = vld [vmem:[%s412 + $0xc3] sm:$0xff]
        %v2843 = vld [vmem:[%s412 + $0xcb] sm:$0xff]
        %v2844 = vld [vmem:[%s412 + $0xdb] sm:$0xff]
        %v2845 = vld [vmem:[%s412 + $0xe3] sm:$0xff]
        %v2846 = vld [vmem:[%s412 + $0xf3] sm:$0xff]
        %v2847 = vld [vmem:[%s412 + $0xfb] sm:$0xff]
        %v2848 = vld [vmem:[%s412 + $0x10b] sm:$0xff]
        %v2849 = vld [vmem:[%s412 + $0x113] sm:$0xff]
        %v2850 = vld [vmem:[%s412 + $0x123] sm:$0xff]
        %v2851 = vld [vmem:[%s412 + $0x12b] sm:$0xff]
        %v2852 = vld [vmem:[%s412 + $0x13b] sm:$0xff]
        %v2853 = vld [vmem:[%s412 + $0x143] sm:$0xff]
        %v2854 = vld [vmem:[%s412 + $0x153] sm:$0xff]
        %v2855 = vld [vmem:[%s412 + $0x15b] sm:$0xff]
        %v2856 = vld [vmem:[%s412 + $0x16b] sm:$0xff]
        %v2857 = vld [vmem:[%s412 + $0x173] sm:$0xff]
        %2890 = vrot.lane.b32.xlu0 %v2826, 39
        %v2891 = vpop.permute.xlu0 %2890
        %2892 = vrot.lane.b32.xlu0 %v2827, 39
        %v2893 = vpop.permute.xlu0 %2892
        %2894 = vrot.lane.b32.xlu0 %v2828, 39
        %v2895 = vpop.permute.xlu0 %2894
        %2896 = vrot.lane.b32.xlu0 %v2829, 39
        %v2897 = vpop.permute.xlu0 %2896
        %2898 = vrot.lane.b32.xlu0 %v2830, 39
        %v2899 = vpop.permute.xlu0 %2898
        %2900 = vrot.lane.b32.xlu0 %v2831, 39
        %v2901 = vpop.permute.xlu0 %2900
        %2902 = vrot.lane.b32.xlu0 %v2832, 39
        %v2903 = vpop.permute.xlu0 %2902
        %2904 = vrot.lane.b32.xlu0 %v2833, 39
        %v2905 = vpop.permute.xlu0 %2904
        %2906 = vrot.lane.b32.xlu0 %v2834, 39
        %v2907 = vpop.permute.xlu0 %2906
        %2908 = vrot.lane.b32.xlu0 %v2835, 39
        %v2909 = vpop.permute.xlu0 %2908
        %2910 = vrot.lane.b32.xlu0 %v2836, 39
        %v2911 = vpop.permute.xlu0 %2910
        %2912 = vrot.lane.b32.xlu0 %v2837, 39
        %v2913 = vpop.permute.xlu0 %2912
        %2914 = vrot.lane.b32.xlu0 %v2838, 39
        %v2915 = vpop.permute.xlu0 %2914
        %2916 = vrot.lane.b32.xlu0 %v2839, 39
        %v2917 = vpop.permute.xlu0 %2916
        %2918 = vrot.lane.b32.xlu0 %v2840, 39
        %v2919 = vpop.permute.xlu0 %2918
        %2920 = vrot.lane.b32.xlu0 %v2841, 39
        %v2921 = vpop.permute.xlu0 %2920
        %2922 = vrot.lane.b32.xlu0 %v2842, 39
        %v2923 = vpop.permute.xlu0 %2922
        %2924 = vrot.lane.b32.xlu0 %v2843, 39
        %v2925 = vpop.permute.xlu0 %2924
        %2926 = vrot.lane.b32.xlu0 %v2844, 39
        %v2927 = vpop.permute.xlu0 %2926
        %2928 = vrot.lane.b32.xlu0 %v2845, 39
        %v2929 = vpop.permute.xlu0 %2928
        %2930 = vrot.lane.b32.xlu0 %v2846, 39
        %v2931 = vpop.permute.xlu0 %2930
        %2932 = vrot.lane.b32.xlu0 %v2847, 39
        %v2933 = vpop.permute.xlu0 %2932
        %2934 = vrot.lane.b32.xlu0 %v2848, 39
        %v2935 = vpop.permute.xlu0 %2934
        %2936 = vrot.lane.b32.xlu0 %v2849, 39
        %v2937 = vpop.permute.xlu0 %2936
        %2938 = vrot.lane.b32.xlu0 %v2850, 39
        %v2939 = vpop.permute.xlu0 %2938
        %2940 = vrot.lane.b32.xlu0 %v2851, 39
        %v2941 = vpop.permute.xlu0 %2940
        %2942 = vrot.lane.b32.xlu0 %v2852, 39
        %v2943 = vpop.permute.xlu0 %2942
        %2944 = vrot.lane.b32.xlu0 %v2853, 39
        %v2945 = vpop.permute.xlu0 %2944
        %2946 = vrot.lane.b32.xlu0 %v2854, 39
        %v2947 = vpop.permute.xlu0 %2946
        %2948 = vrot.lane.b32.xlu0 %v2855, 39
        %v2949 = vpop.permute.xlu0 %2948
        %2950 = vrot.lane.b32.xlu0 %v2856, 39
        %v2951 = vpop.permute.xlu0 %2950
        %2952 = vrot.lane.b32.xlu0 %v2857, 39
        %v2953 = vpop.permute.xlu0 %2952
        %vm2986 = vcmask 343352
        %2987 = vst.msk [vmem:[#allocation5] sm:$0xff] %vm2986, %v2891
        %2988 = vst.msk [vmem:[#allocation5 + $0x8] sm:$0xff] %vm2986, %v2893
        %2989 = vst.msk [vmem:[#allocation5 + $0x10] sm:$0xff] %vm2986, %v2895
        %2990 = vst.msk [vmem:[#allocation5 + $0x18] sm:$0xff] %vm2986, %v2897
        %2991 = vst.msk [vmem:[#allocation5 + $0x20] sm:$0xff] %vm2986, %v2899
        %2992 = vst.msk [vmem:[#allocation5 + $0x28] sm:$0xff] %vm2986, %v2901
        %2993 = vst.msk [vmem:[#allocation5 + $0x30] sm:$0xff] %vm2986, %v2903
        %2994 = vst.msk [vmem:[#allocation5 + $0x38] sm:$0xff] %vm2986, %v2905
        %2995 = vst.msk [vmem:[#allocation5 + $0x40] sm:$0xff] %vm2986, %v2907
        %2996 = vst.msk [vmem:[#allocation5 + $0x48] sm:$0xff] %vm2986, %v2909
        %2997 = vst.msk [vmem:[#allocation5 + $0x50] sm:$0xff] %vm2986, %v2911
        %2998 = vst.msk [vmem:[#allocation5 + $0x58] sm:$0xff] %vm2986, %v2913
        %2999 = vst.msk [vmem:[#allocation5 + $0x60] sm:$0xff] %vm2986, %v2915
        %3000 = vst.msk [vmem:[#allocation5 + $0x68] sm:$0xff] %vm2986, %v2917
        %3001 = vst.msk [vmem:[#allocation5 + $0x70] sm:$0xff] %vm2986, %v2919
        %3002 = vst.msk [vmem:[#allocation5 + $0x78] sm:$0xff] %vm2986, %v2921
        %3003 = vst.msk [vmem:[#allocation5 + $0x80] sm:$0xff] %vm2986, %v2923
        %3004 = vst.msk [vmem:[#allocation5 + $0x88] sm:$0xff] %vm2986, %v2925
        %3005 = vst.msk [vmem:[#allocation5 + $0x90] sm:$0xff] %vm2986, %v2927
        %3006 = vst.msk [vmem:[#allocation5 + $0x98] sm:$0xff] %vm2986, %v2929
        %3007 = vst.msk [vmem:[#allocation5 + $0xa0] sm:$0xff] %vm2986, %v2931
        %3008 = vst.msk [vmem:[#allocation5 + $0xa8] sm:$0xff] %vm2986, %v2933
        %3009 = vst.msk [vmem:[#allocation5 + $0xb0] sm:$0xff] %vm2986, %v2935
        %3010 = vst.msk [vmem:[#allocation5 + $0xb8] sm:$0xff] %vm2986, %v2937
        %3011 = vst.msk [vmem:[#allocation5 + $0xc0] sm:$0xff] %vm2986, %v2939
        %3012 = vst.msk [vmem:[#allocation5 + $0xc8] sm:$0xff] %vm2986, %v2941
        %3013 = vst.msk [vmem:[#allocation5 + $0xd0] sm:$0xff] %vm2986, %v2943
        %3014 = vst.msk [vmem:[#allocation5 + $0xd8] sm:$0xff] %vm2986, %v2945
        %3015 = vst.msk [vmem:[#allocation5 + $0xe0] sm:$0xff] %vm2986, %v2947
        %3016 = vst.msk [vmem:[#allocation5 + $0xe8] sm:$0xff] %vm2986, %v2949
        %3017 = vst.msk [vmem:[#allocation5 + $0xf0] sm:$0xff] %vm2986, %v2951
        %3018 = vst.msk [vmem:[#allocation5 + $0xf8] sm:$0xff] %vm2986, %v2953
        %v3019 = vld [vmem:[%s412 + $0x4] sm:$0xff]
        %v3020 = vld [vmem:[%s412 + $0xc] sm:$0xff]
        %v3021 = vld [vmem:[%s412 + $0x1c] sm:$0xff]
        %v3022 = vld [vmem:[%s412 + $0x24] sm:$0xff]
        %v3023 = vld [vmem:[%s412 + $0x34] sm:$0xff]
        %v3024 = vld [vmem:[%s412 + $0x3c] sm:$0xff]
        %v3025 = vld [vmem:[%s412 + $0x4c] sm:$0xff]
        %v3026 = vld [vmem:[%s412 + $0x54] sm:$0xff]
        %v3027 = vld [vmem:[%s412 + $0x64] sm:$0xff]
        %v3028 = vld [vmem:[%s412 + $0x6c] sm:$0xff]
        %v3029 = vld [vmem:[%s412 + $0x7c] sm:$0xff]
        %v3030 = vld [vmem:[%s412 + $0x84] sm:$0xff]
        %v3031 = vld [vmem:[%s412 + $0x94] sm:$0xff]
        %v3032 = vld [vmem:[%s412 + $0x9c] sm:$0xff]
        %v3033 = vld [vmem:[%s412 + $0xac] sm:$0xff]
        %v3034 = vld [vmem:[%s412 + $0xb4] sm:$0xff]
        %v3035 = vld [vmem:[%s412 + $0xc4] sm:$0xff]
        %v3036 = vld [vmem:[%s412 + $0xcc] sm:$0xff]
        %v3037 = vld [vmem:[%s412 + $0xdc] sm:$0xff]
        %v3038 = vld [vmem:[%s412 + $0xe4] sm:$0xff]
        %v3039 = vld [vmem:[%s412 + $0xf4] sm:$0xff]
        %v3040 = vld [vmem:[%s412 + $0xfc] sm:$0xff]
        %v3041 = vld [vmem:[%s412 + $0x10c] sm:$0xff]
        %v3042 = vld [vmem:[%s412 + $0x114] sm:$0xff]
        %v3043 = vld [vmem:[%s412 + $0x124] sm:$0xff]
        %v3044 = vld [vmem:[%s412 + $0x12c] sm:$0xff]
        %v3045 = vld [vmem:[%s412 + $0x13c] sm:$0xff]
        %v3046 = vld [vmem:[%s412 + $0x144] sm:$0xff]
        %v3047 = vld [vmem:[%s412 + $0x154] sm:$0xff]
        %v3048 = vld [vmem:[%s412 + $0x15c] sm:$0xff]
        %v3049 = vld [vmem:[%s412 + $0x16c] sm:$0xff]
        %v3050 = vld [vmem:[%s412 + $0x174] sm:$0xff]
        %3083 = vrot.lane.b32.xlu0 %v3019, 42
        %v3084 = vpop.permute.xlu0 %3083
        %3085 = vrot.lane.b32.xlu0 %v3020, 42
        %v3086 = vpop.permute.xlu0 %3085
        %3087 = vrot.lane.b32.xlu0 %v3021, 42
        %v3088 = vpop.permute.xlu0 %3087
        %3089 = vrot.lane.b32.xlu0 %v3022, 42
        %v3090 = vpop.permute.xlu0 %3089
        %3091 = vrot.lane.b32.xlu0 %v3023, 42
        %v3092 = vpop.permute.xlu0 %3091
        %3093 = vrot.lane.b32.xlu0 %v3024, 42
        %v3094 = vpop.permute.xlu0 %3093
        %3095 = vrot.lane.b32.xlu0 %v3025, 42
        %v3096 = vpop.permute.xlu0 %3095
        %3097 = vrot.lane.b32.xlu0 %v3026, 42
        %v3098 = vpop.permute.xlu0 %3097
        %3099 = vrot.lane.b32.xlu0 %v3027, 42
        %v3100 = vpop.permute.xlu0 %3099
        %3101 = vrot.lane.b32.xlu0 %v3028, 42
        %v3102 = vpop.permute.xlu0 %3101
        %3103 = vrot.lane.b32.xlu0 %v3029, 42
        %v3104 = vpop.permute.xlu0 %3103
        %3105 = vrot.lane.b32.xlu0 %v3030, 42
        %v3106 = vpop.permute.xlu0 %3105
        %3107 = vrot.lane.b32.xlu0 %v3031, 42
        %v3108 = vpop.permute.xlu0 %3107
        %3109 = vrot.lane.b32.xlu0 %v3032, 42
        %v3110 = vpop.permute.xlu0 %3109
        %3111 = vrot.lane.b32.xlu0 %v3033, 42
        %v3112 = vpop.permute.xlu0 %3111
        %3113 = vrot.lane.b32.xlu0 %v3034, 42
        %v3114 = vpop.permute.xlu0 %3113
        %3115 = vrot.lane.b32.xlu0 %v3035, 42
        %v3116 = vpop.permute.xlu0 %3115
        %3117 = vrot.lane.b32.xlu0 %v3036, 42
        %v3118 = vpop.permute.xlu0 %3117
        %3119 = vrot.lane.b32.xlu0 %v3037, 42
        %v3120 = vpop.permute.xlu0 %3119
        %3121 = vrot.lane.b32.xlu0 %v3038, 42
        %v3122 = vpop.permute.xlu0 %3121
        %3123 = vrot.lane.b32.xlu0 %v3039, 42
        %v3124 = vpop.permute.xlu0 %3123
        %3125 = vrot.lane.b32.xlu0 %v3040, 42
        %v3126 = vpop.permute.xlu0 %3125
        %3127 = vrot.lane.b32.xlu0 %v3041, 42
        %v3128 = vpop.permute.xlu0 %3127
        %3129 = vrot.lane.b32.xlu0 %v3042, 42
        %v3130 = vpop.permute.xlu0 %3129
        %3131 = vrot.lane.b32.xlu0 %v3043, 42
        %v3132 = vpop.permute.xlu0 %3131
        %3133 = vrot.lane.b32.xlu0 %v3044, 42
        %v3134 = vpop.permute.xlu0 %3133
        %3135 = vrot.lane.b32.xlu0 %v3045, 42
        %v3136 = vpop.permute.xlu0 %3135
        %3137 = vrot.lane.b32.xlu0 %v3046, 42
        %v3138 = vpop.permute.xlu0 %3137
        %3139 = vrot.lane.b32.xlu0 %v3047, 42
        %v3140 = vpop.permute.xlu0 %3139
        %3141 = vrot.lane.b32.xlu0 %v3048, 42
        %v3142 = vpop.permute.xlu0 %3141
        %3143 = vrot.lane.b32.xlu0 %v3049, 42
        %v3144 = vpop.permute.xlu0 %3143
        %3145 = vrot.lane.b32.xlu0 %v3050, 42
        %v3146 = vpop.permute.xlu0 %3145
        %vm3179 = vcmask 367952
        %3180 = vst.msk [vmem:[#allocation5] sm:$0xff] %vm3179, %v3084
        %3181 = vst.msk [vmem:[#allocation5 + $0x8] sm:$0xff] %vm3179, %v3086
        %3182 = vst.msk [vmem:[#allocation5 + $0x10] sm:$0xff] %vm3179, %v3088
        %3183 = vst.msk [vmem:[#allocation5 + $0x18] sm:$0xff] %vm3179, %v3090
        %3184 = vst.msk [vmem:[#allocation5 + $0x20] sm:$0xff] %vm3179, %v3092
        %3185 = vst.msk [vmem:[#allocation5 + $0x28] sm:$0xff] %vm3179, %v3094
        %3186 = vst.msk [vmem:[#allocation5 + $0x30] sm:$0xff] %vm3179, %v3096
        %3187 = vst.msk [vmem:[#allocation5 + $0x38] sm:$0xff] %vm3179, %v3098
        %3188 = vst.msk [vmem:[#allocation5 + $0x40] sm:$0xff] %vm3179, %v3100
        %3189 = vst.msk [vmem:[#allocation5 + $0x48] sm:$0xff] %vm3179, %v3102
        %3190 = vst.msk [vmem:[#allocation5 + $0x50] sm:$0xff] %vm3179, %v3104
        %3191 = vst.msk [vmem:[#allocation5 + $0x58] sm:$0xff] %vm3179, %v3106
        %3192 = vst.msk [vmem:[#allocation5 + $0x60] sm:$0xff] %vm3179, %v3108
        %3193 = vst.msk [vmem:[#allocation5 + $0x68] sm:$0xff] %vm3179, %v3110
        %3194 = vst.msk [vmem:[#allocation5 + $0x70] sm:$0xff] %vm3179, %v3112
        %3195 = vst.msk [vmem:[#allocation5 + $0x78] sm:$0xff] %vm3179, %v3114
        %3196 = vst.msk [vmem:[#allocation5 + $0x80] sm:$0xff] %vm3179, %v3116
        %3197 = vst.msk [vmem:[#allocation5 + $0x88] sm:$0xff] %vm3179, %v3118
        %3198 = vst.msk [vmem:[#allocation5 + $0x90] sm:$0xff] %vm3179, %v3120
        %3199 = vst.msk [vmem:[#allocation5 + $0x98] sm:$0xff] %vm3179, %v3122
        %3200 = vst.msk [vmem:[#allocation5 + $0xa0] sm:$0xff] %vm3179, %v3124
        %3201 = vst.msk [vmem:[#allocation5 + $0xa8] sm:$0xff] %vm3179, %v3126
        %3202 = vst.msk [vmem:[#allocation5 + $0xb0] sm:$0xff] %vm3179, %v3128
        %3203 = vst.msk [vmem:[#allocation5 + $0xb8] sm:$0xff] %vm3179, %v3130
        %3204 = vst.msk [vmem:[#allocation5 + $0xc0] sm:$0xff] %vm3179, %v3132
        %3205 = vst.msk [vmem:[#allocation5 + $0xc8] sm:$0xff] %vm3179, %v3134
        %3206 = vst.msk [vmem:[#allocation5 + $0xd0] sm:$0xff] %vm3179, %v3136
        %3207 = vst.msk [vmem:[#allocation5 + $0xd8] sm:$0xff] %vm3179, %v3138
        %3208 = vst.msk [vmem:[#allocation5 + $0xe0] sm:$0xff] %vm3179, %v3140
        %3209 = vst.msk [vmem:[#allocation5 + $0xe8] sm:$0xff] %vm3179, %v3142
        %3210 = vst.msk [vmem:[#allocation5 + $0xf0] sm:$0xff] %vm3179, %v3144
        %3211 = vst.msk [vmem:[#allocation5 + $0xf8] sm:$0xff] %vm3179, %v3146
        %s3212 = scalar_lea.vmem [#allocation2], 72
        %v3213 = vld [vmem:[%s3212] sm:$0xff]
        %v3214 = vld [vmem:[%s3212 + $0x8] sm:$0xff]
        %v3215 = vld [vmem:[%s3212 + $0x18] sm:$0xff]
        %v3216 = vld [vmem:[%s3212 + $0x20] sm:$0xff]
        %v3217 = vld [vmem:[%s3212 + $0x30] sm:$0xff]
        %v3218 = vld [vmem:[%s3212 + $0x38] sm:$0xff]
        %v3219 = vld [vmem:[%s3212 + $0x48] sm:$0xff]
        %v3220 = vld [vmem:[%s3212 + $0x50] sm:$0xff]
        %v3221 = vld [vmem:[%s3212 + $0x60] sm:$0xff]
        %v3222 = vld [vmem:[%s3212 + $0x68] sm:$0xff]
        %v3223 = vld [vmem:[%s3212 + $0x78] sm:$0xff]
        %v3224 = vld [vmem:[%s3212 + $0x80] sm:$0xff]
        %v3225 = vld [vmem:[%s3212 + $0x90] sm:$0xff]
        %v3226 = vld [vmem:[%s3212 + $0x98] sm:$0xff]
        %v3227 = vld [vmem:[%s3212 + $0xa8] sm:$0xff]
        %v3228 = vld [vmem:[%s3212 + $0xb0] sm:$0xff]
        %v3229 = vld [vmem:[%s3212 + $0xc0] sm:$0xff]
        %v3230 = vld [vmem:[%s3212 + $0xc8] sm:$0xff]
        %v3231 = vld [vmem:[%s3212 + $0xd8] sm:$0xff]
        %v3232 = vld [vmem:[%s3212 + $0xe0] sm:$0xff]
        %v3233 = vld [vmem:[%s3212 + $0xf0] sm:$0xff]
        %v3234 = vld [vmem:[%s3212 + $0xf8] sm:$0xff]
        %v3235 = vld [vmem:[%s3212 + $0x108] sm:$0xff]
        %v3236 = vld [vmem:[%s3212 + $0x110] sm:$0xff]
        %v3237 = vld [vmem:[%s3212 + $0x120] sm:$0xff]
        %v3238 = vld [vmem:[%s3212 + $0x128] sm:$0xff]
        %v3239 = vld [vmem:[%s3212 + $0x138] sm:$0xff]
        %v3240 = vld [vmem:[%s3212 + $0x140] sm:$0xff]
        %v3241 = vld [vmem:[%s3212 + $0x150] sm:$0xff]
        %v3242 = vld [vmem:[%s3212 + $0x158] sm:$0xff]
        %v3243 = vld [vmem:[%s3212 + $0x168] sm:$0xff]
        %v3244 = vld [vmem:[%s3212 + $0x170] sm:$0xff]
        %3277 = vrot.lane.b32.xlu0 %v3213, 45
        %v3278 = vpop.permute.xlu0 %3277
        %3279 = vrot.lane.b32.xlu0 %v3214, 45
        %v3280 = vpop.permute.xlu0 %3279
        %3281 = vrot.lane.b32.xlu0 %v3215, 45
        %v3282 = vpop.permute.xlu0 %3281
        %3283 = vrot.lane.b32.xlu0 %v3216, 45
        %v3284 = vpop.permute.xlu0 %3283
        %3285 = vrot.lane.b32.xlu0 %v3217, 45
        %v3286 = vpop.permute.xlu0 %3285
        %3287 = vrot.lane.b32.xlu0 %v3218, 45
        %v3288 = vpop.permute.xlu0 %3287
        %3289 = vrot.lane.b32.xlu0 %v3219, 45
        %v3290 = vpop.permute.xlu0 %3289
        %3291 = vrot.lane.b32.xlu0 %v3220, 45
        %v3292 = vpop.permute.xlu0 %3291
        %3293 = vrot.lane.b32.xlu0 %v3221, 45
        %v3294 = vpop.permute.xlu0 %3293
        %3295 = vrot.lane.b32.xlu0 %v3222, 45
        %v3296 = vpop.permute.xlu0 %3295
        %3297 = vrot.lane.b32.xlu0 %v3223, 45
        %v3298 = vpop.permute.xlu0 %3297
        %3299 = vrot.lane.b32.xlu0 %v3224, 45
        %v3300 = vpop.permute.xlu0 %3299
        %3301 = vrot.lane.b32.xlu0 %v3225, 45
        %v3302 = vpop.permute.xlu0 %3301
        %3303 = vrot.lane.b32.xlu0 %v3226, 45
        %v3304 = vpop.permute.xlu0 %3303
        %3305 = vrot.lane.b32.xlu0 %v3227, 45
        %v3306 = vpop.permute.xlu0 %3305
        %3307 = vrot.lane.b32.xlu0 %v3228, 45
        %v3308 = vpop.permute.xlu0 %3307
        %3309 = vrot.lane.b32.xlu0 %v3229, 45
        %v3310 = vpop.permute.xlu0 %3309
        %3311 = vrot.lane.b32.xlu0 %v3230, 45
        %v3312 = vpop.permute.xlu0 %3311
        %3313 = vrot.lane.b32.xlu0 %v3231, 45
        %v3314 = vpop.permute.xlu0 %3313
        %3315 = vrot.lane.b32.xlu0 %v3232, 45
        %v3316 = vpop.permute.xlu0 %3315
        %3317 = vrot.lane.b32.xlu0 %v3233, 45
        %v3318 = vpop.permute.xlu0 %3317
        %3319 = vrot.lane.b32.xlu0 %v3234, 45
        %v3320 = vpop.permute.xlu0 %3319
        %3321 = vrot.lane.b32.xlu0 %v3235, 45
        %v3322 = vpop.permute.xlu0 %3321
        %3323 = vrot.lane.b32.xlu0 %v3236, 45
        %v3324 = vpop.permute.xlu0 %3323
        %3325 = vrot.lane.b32.xlu0 %v3237, 45
        %v3326 = vpop.permute.xlu0 %3325
        %3327 = vrot.lane.b32.xlu0 %v3238, 45
        %v3328 = vpop.permute.xlu0 %3327
        %3329 = vrot.lane.b32.xlu0 %v3239, 45
        %v3330 = vpop.permute.xlu0 %3329
        %3331 = vrot.lane.b32.xlu0 %v3240, 45
        %v3332 = vpop.permute.xlu0 %3331
        %3333 = vrot.lane.b32.xlu0 %v3241, 45
        %v3334 = vpop.permute.xlu0 %3333
        %3335 = vrot.lane.b32.xlu0 %v3242, 45
        %v3336 = vpop.permute.xlu0 %3335
        %3337 = vrot.lane.b32.xlu0 %v3243, 45
        %v3338 = vpop.permute.xlu0 %3337
        %3339 = vrot.lane.b32.xlu0 %v3244, 45
        %v3340 = vpop.permute.xlu0 %3339
        %vm3373 = vcmask 392552
        %3374 = vst.msk [vmem:[#allocation5] sm:$0xff] %vm3373, %v3278
        %3375 = vst.msk [vmem:[#allocation5 + $0x8] sm:$0xff] %vm3373, %v3280
        %3376 = vst.msk [vmem:[#allocation5 + $0x10] sm:$0xff] %vm3373, %v3282
        %3377 = vst.msk [vmem:[#allocation5 + $0x18] sm:$0xff] %vm3373, %v3284
        %3378 = vst.msk [vmem:[#allocation5 + $0x20] sm:$0xff] %vm3373, %v3286
        %3379 = vst.msk [vmem:[#allocation5 + $0x28] sm:$0xff] %vm3373, %v3288
        %3380 = vst.msk [vmem:[#allocation5 + $0x30] sm:$0xff] %vm3373, %v3290
        %3381 = vst.msk [vmem:[#allocation5 + $0x38] sm:$0xff] %vm3373, %v3292
        %3382 = vst.msk [vmem:[#allocation5 + $0x40] sm:$0xff] %vm3373, %v3294
        %3383 = vst.msk [vmem:[#allocation5 + $0x48] sm:$0xff] %vm3373, %v3296
        %3384 = vst.msk [vmem:[#allocation5 + $0x50] sm:$0xff] %vm3373, %v3298
        %3385 = vst.msk [vmem:[#allocation5 + $0x58] sm:$0xff] %vm3373, %v3300
        %3386 = vst.msk [vmem:[#allocation5 + $0x60] sm:$0xff] %vm3373, %v3302
        %3387 = vst.msk [vmem:[#allocation5 + $0x68] sm:$0xff] %vm3373, %v3304
        %3388 = vst.msk [vmem:[#allocation5 + $0x70] sm:$0xff] %vm3373, %v3306
        %3389 = vst.msk [vmem:[#allocation5 + $0x78] sm:$0xff] %vm3373, %v3308
        %3390 = vst.msk [vmem:[#allocation5 + $0x80] sm:$0xff] %vm3373, %v3310
        %3391 = vst.msk [vmem:[#allocation5 + $0x88] sm:$0xff] %vm3373, %v3312
        %3392 = vst.msk [vmem:[#allocation5 + $0x90] sm:$0xff] %vm3373, %v3314
        %3393 = vst.msk [vmem:[#allocation5 + $0x98] sm:$0xff] %vm3373, %v3316
        %3394 = vst.msk [vmem:[#allocation5 + $0xa0] sm:$0xff] %vm3373, %v3318
        %3395 = vst.msk [vmem:[#allocation5 + $0xa8] sm:$0xff] %vm3373, %v3320
        %3396 = vst.msk [vmem:[#allocation5 + $0xb0] sm:$0xff] %vm3373, %v3322
        %3397 = vst.msk [vmem:[#allocation5 + $0xb8] sm:$0xff] %vm3373, %v3324
        %3398 = vst.msk [vmem:[#allocation5 + $0xc0] sm:$0xff] %vm3373, %v3326
        %3399 = vst.msk [vmem:[#allocation5 + $0xc8] sm:$0xff] %vm3373, %v3328
        %3400 = vst.msk [vmem:[#allocation5 + $0xd0] sm:$0xff] %vm3373, %v3330
        %3401 = vst.msk [vmem:[#allocation5 + $0xd8] sm:$0xff] %vm3373, %v3332
        %3402 = vst.msk [vmem:[#allocation5 + $0xe0] sm:$0xff] %vm3373, %v3334
        %3403 = vst.msk [vmem:[#allocation5 + $0xe8] sm:$0xff] %vm3373, %v3336
        %3404 = vst.msk [vmem:[#allocation5 + $0xf0] sm:$0xff] %vm3373, %v3338
        %3405 = vst.msk [vmem:[#allocation5 + $0xf8] sm:$0xff] %vm3373, %v3340
        %v3406 = vld [vmem:[%s3212 + $0x1] sm:$0xff]
        %v3407 = vld [vmem:[%s3212 + $0x9] sm:$0xff]
        %v3408 = vld [vmem:[%s3212 + $0x19] sm:$0xff]
        %v3409 = vld [vmem:[%s3212 + $0x21] sm:$0xff]
        %v3410 = vld [vmem:[%s3212 + $0x31] sm:$0xff]
        %v3411 = vld [vmem:[%s3212 + $0x39] sm:$0xff]
        %v3412 = vld [vmem:[%s3212 + $0x49] sm:$0xff]
        %v3413 = vld [vmem:[%s3212 + $0x51] sm:$0xff]
        %v3414 = vld [vmem:[%s3212 + $0x61] sm:$0xff]
        %v3415 = vld [vmem:[%s3212 + $0x69] sm:$0xff]
        %v3416 = vld [vmem:[%s3212 + $0x79] sm:$0xff]
        %v3417 = vld [vmem:[%s3212 + $0x81] sm:$0xff]
        %v3418 = vld [vmem:[%s3212 + $0x91] sm:$0xff]
        %v3419 = vld [vmem:[%s3212 + $0x99] sm:$0xff]
        %v3420 = vld [vmem:[%s3212 + $0xa9] sm:$0xff]
        %v3421 = vld [vmem:[%s3212 + $0xb1] sm:$0xff]
        %v3422 = vld [vmem:[%s3212 + $0xc1] sm:$0xff]
        %v3423 = vld [vmem:[%s3212 + $0xc9] sm:$0xff]
        %v3424 = vld [vmem:[%s3212 + $0xd9] sm:$0xff]
        %v3425 = vld [vmem:[%s3212 + $0xe1] sm:$0xff]
        %v3426 = vld [vmem:[%s3212 + $0xf1] sm:$0xff]
        %v3427 = vld [vmem:[%s3212 + $0xf9] sm:$0xff]
        %v3428 = vld [vmem:[%s3212 + $0x109] sm:$0xff]
        %v3429 = vld [vmem:[%s3212 + $0x111] sm:$0xff]
        %v3430 = vld [vmem:[%s3212 + $0x121] sm:$0xff]
        %v3431 = vld [vmem:[%s3212 + $0x129] sm:$0xff]
        %v3432 = vld [vmem:[%s3212 + $0x139] sm:$0xff]
        %v3433 = vld [vmem:[%s3212 + $0x141] sm:$0xff]
        %v3434 = vld [vmem:[%s3212 + $0x151] sm:$0xff]
        %v3435 = vld [vmem:[%s3212 + $0x159] sm:$0xff]
        %v3436 = vld [vmem:[%s3212 + $0x169] sm:$0xff]
        %v3437 = vld [vmem:[%s3212 + $0x171] sm:$0xff]
        %3470 = vrot.lane.b32.xlu0 %v3406, 48
        %v3471 = vpop.permute.xlu0 %3470
        %3472 = vrot.lane.b32.xlu0 %v3407, 48
        %v3473 = vpop.permute.xlu0 %3472
        %3474 = vrot.lane.b32.xlu0 %v3408, 48
        %v3475 = vpop.permute.xlu0 %3474
        %3476 = vrot.lane.b32.xlu0 %v3409, 48
        %v3477 = vpop.permute.xlu0 %3476
        %3478 = vrot.lane.b32.xlu0 %v3410, 48
        %v3479 = vpop.permute.xlu0 %3478
        %3480 = vrot.lane.b32.xlu0 %v3411, 48
        %v3481 = vpop.permute.xlu0 %3480
        %3482 = vrot.lane.b32.xlu0 %v3412, 48
        %v3483 = vpop.permute.xlu0 %3482
        %3484 = vrot.lane.b32.xlu0 %v3413, 48
        %v3485 = vpop.permute.xlu0 %3484
        %3486 = vrot.lane.b32.xlu0 %v3414, 48
        %v3487 = vpop.permute.xlu0 %3486
        %3488 = vrot.lane.b32.xlu0 %v3415, 48
        %v3489 = vpop.permute.xlu0 %3488
        %3490 = vrot.lane.b32.xlu0 %v3416, 48
        %v3491 = vpop.permute.xlu0 %3490
        %3492 = vrot.lane.b32.xlu0 %v3417, 48
        %v3493 = vpop.permute.xlu0 %3492
        %3494 = vrot.lane.b32.xlu0 %v3418, 48
        %v3495 = vpop.permute.xlu0 %3494
        %3496 = vrot.lane.b32.xlu0 %v3419, 48
        %v3497 = vpop.permute.xlu0 %3496
        %3498 = vrot.lane.b32.xlu0 %v3420, 48
        %v3499 = vpop.permute.xlu0 %3498
        %3500 = vrot.lane.b32.xlu0 %v3421, 48
        %v3501 = vpop.permute.xlu0 %3500
        %3502 = vrot.lane.b32.xlu0 %v3422, 48
        %v3503 = vpop.permute.xlu0 %3502
        %3504 = vrot.lane.b32.xlu0 %v3423, 48
        %v3505 = vpop.permute.xlu0 %3504
        %3506 = vrot.lane.b32.xlu0 %v3424, 48
        %v3507 = vpop.permute.xlu0 %3506
        %3508 = vrot.lane.b32.xlu0 %v3425, 48
        %v3509 = vpop.permute.xlu0 %3508
        %3510 = vrot.lane.b32.xlu0 %v3426, 48
        %v3511 = vpop.permute.xlu0 %3510
        %3512 = vrot.lane.b32.xlu0 %v3427, 48
        %v3513 = vpop.permute.xlu0 %3512
        %3514 = vrot.lane.b32.xlu0 %v3428, 48
        %v3515 = vpop.permute.xlu0 %3514
        %3516 = vrot.lane.b32.xlu0 %v3429, 48
        %v3517 = vpop.permute.xlu0 %3516
        %3518 = vrot.lane.b32.xlu0 %v3430, 48
        %v3519 = vpop.permute.xlu0 %3518
        %3520 = vrot.lane.b32.xlu0 %v3431, 48
        %v3521 = vpop.permute.xlu0 %3520
        %3522 = vrot.lane.b32.xlu0 %v3432, 48
        %v3523 = vpop.permute.xlu0 %3522
        %3524 = vrot.lane.b32.xlu0 %v3433, 48
        %v3525 = vpop.permute.xlu0 %3524
        %3526 = vrot.lane.b32.xlu0 %v3434, 48
        %v3527 = vpop.permute.xlu0 %3526
        %3528 = vrot.lane.b32.xlu0 %v3435, 48
        %v3529 = vpop.permute.xlu0 %3528
        %3530 = vrot.lane.b32.xlu0 %v3436, 48
        %v3531 = vpop.permute.xlu0 %3530
        %3532 = vrot.lane.b32.xlu0 %v3437, 48
        %v3533 = vpop.permute.xlu0 %3532
        %vm3566 = vcmask 417152
        %3567 = vst.msk [vmem:[#allocation5] sm:$0xff] %vm3566, %v3471
        %3568 = vst.msk [vmem:[#allocation5 + $0x8] sm:$0xff] %vm3566, %v3473
        %3569 = vst.msk [vmem:[#allocation5 + $0x10] sm:$0xff] %vm3566, %v3475
        %3570 = vst.msk [vmem:[#allocation5 + $0x18] sm:$0xff] %vm3566, %v3477
        %3571 = vst.msk [vmem:[#allocation5 + $0x20] sm:$0xff] %vm3566, %v3479
        %3572 = vst.msk [vmem:[#allocation5 + $0x28] sm:$0xff] %vm3566, %v3481
        %3573 = vst.msk [vmem:[#allocation5 + $0x30] sm:$0xff] %vm3566, %v3483
        %3574 = vst.msk [vmem:[#allocation5 + $0x38] sm:$0xff] %vm3566, %v3485
        %3575 = vst.msk [vmem:[#allocation5 + $0x40] sm:$0xff] %vm3566, %v3487
        %3576 = vst.msk [vmem:[#allocation5 + $0x48] sm:$0xff] %vm3566, %v3489
        %3577 = vst.msk [vmem:[#allocation5 + $0x50] sm:$0xff] %vm3566, %v3491
        %3578 = vst.msk [vmem:[#allocation5 + $0x58] sm:$0xff] %vm3566, %v3493
        %3579 = vst.msk [vmem:[#allocation5 + $0x60] sm:$0xff] %vm3566, %v3495
        %3580 = vst.msk [vmem:[#allocation5 + $0x68] sm:$0xff] %vm3566, %v3497
        %3581 = vst.msk [vmem:[#allocation5 + $0x70] sm:$0xff] %vm3566, %v3499
        %3582 = vst.msk [vmem:[#allocation5 + $0x78] sm:$0xff] %vm3566, %v3501
        %3583 = vst.msk [vmem:[#allocation5 + $0x80] sm:$0xff] %vm3566, %v3503
        %3584 = vst.msk [vmem:[#allocation5 + $0x88] sm:$0xff] %vm3566, %v3505
        %3585 = vst.msk [vmem:[#allocation5 + $0x90] sm:$0xff] %vm3566, %v3507
        %3586 = vst.msk [vmem:[#allocation5 + $0x98] sm:$0xff] %vm3566, %v3509
        %3587 = vst.msk [vmem:[#allocation5 + $0xa0] sm:$0xff] %vm3566, %v3511
        %3588 = vst.msk [vmem:[#allocation5 + $0xa8] sm:$0xff] %vm3566, %v3513
        %3589 = vst.msk [vmem:[#allocation5 + $0xb0] sm:$0xff] %vm3566, %v3515
        %3590 = vst.msk [vmem:[#allocation5 + $0xb8] sm:$0xff] %vm3566, %v3517
        %3591 = vst.msk [vmem:[#allocation5 + $0xc0] sm:$0xff] %vm3566, %v3519
        %3592 = vst.msk [vmem:[#allocation5 + $0xc8] sm:$0xff] %vm3566, %v3521
        %3593 = vst.msk [vmem:[#allocation5 + $0xd0] sm:$0xff] %vm3566, %v3523
        %3594 = vst.msk [vmem:[#allocation5 + $0xd8] sm:$0xff] %vm3566, %v3525
        %3595 = vst.msk [vmem:[#allocation5 + $0xe0] sm:$0xff] %vm3566, %v3527
        %3596 = vst.msk [vmem:[#allocation5 + $0xe8] sm:$0xff] %vm3566, %v3529
        %3597 = vst.msk [vmem:[#allocation5 + $0xf0] sm:$0xff] %vm3566, %v3531
        %3598 = vst.msk [vmem:[#allocation5 + $0xf8] sm:$0xff] %vm3566, %v3533
        %v3599 = vld [vmem:[%s3212 + $0x2] sm:$0xff]
        %v3600 = vld [vmem:[%s3212 + $0xa] sm:$0xff]
        %v3601 = vld [vmem:[%s3212 + $0x1a] sm:$0xff]
        %v3602 = vld [vmem:[%s3212 + $0x22] sm:$0xff]
        %v3603 = vld [vmem:[%s3212 + $0x32] sm:$0xff]
        %v3604 = vld [vmem:[%s3212 + $0x3a] sm:$0xff]
        %v3605 = vld [vmem:[%s3212 + $0x4a] sm:$0xff]
        %v3606 = vld [vmem:[%s3212 + $0x52] sm:$0xff]
        %v3607 = vld [vmem:[%s3212 + $0x62] sm:$0xff]
        %v3608 = vld [vmem:[%s3212 + $0x6a] sm:$0xff]
        %v3609 = vld [vmem:[%s3212 + $0x7a] sm:$0xff]
        %v3610 = vld [vmem:[%s3212 + $0x82] sm:$0xff]
        %v3611 = vld [vmem:[%s3212 + $0x92] sm:$0xff]
        %v3612 = vld [vmem:[%s3212 + $0x9a] sm:$0xff]
        %v3613 = vld [vmem:[%s3212 + $0xaa] sm:$0xff]
        %v3614 = vld [vmem:[%s3212 + $0xb2] sm:$0xff]
        %v3615 = vld [vmem:[%s3212 + $0xc2] sm:$0xff]
        %v3616 = vld [vmem:[%s3212 + $0xca] sm:$0xff]
        %v3617 = vld [vmem:[%s3212 + $0xda] sm:$0xff]
        %v3618 = vld [vmem:[%s3212 + $0xe2] sm:$0xff]
        %v3619 = vld [vmem:[%s3212 + $0xf2] sm:$0xff]
        %v3620 = vld [vmem:[%s3212 + $0xfa] sm:$0xff]
        %v3621 = vld [vmem:[%s3212 + $0x10a] sm:$0xff]
        %v3622 = vld [vmem:[%s3212 + $0x112] sm:$0xff]
        %v3623 = vld [vmem:[%s3212 + $0x122] sm:$0xff]
        %v3624 = vld [vmem:[%s3212 + $0x12a] sm:$0xff]
        %v3625 = vld [vmem:[%s3212 + $0x13a] sm:$0xff]
        %v3626 = vld [vmem:[%s3212 + $0x142] sm:$0xff]
        %v3627 = vld [vmem:[%s3212 + $0x152] sm:$0xff]
        %v3628 = vld [vmem:[%s3212 + $0x15a] sm:$0xff]
        %v3629 = vld [vmem:[%s3212 + $0x16a] sm:$0xff]
        %v3630 = vld [vmem:[%s3212 + $0x172] sm:$0xff]
        %3663 = vrot.lane.b32.xlu0 %v3599, 51
        %v3664 = vpop.permute.xlu0 %3663
        %3665 = vrot.lane.b32.xlu0 %v3600, 51
        %v3666 = vpop.permute.xlu0 %3665
        %3667 = vrot.lane.b32.xlu0 %v3601, 51
        %v3668 = vpop.permute.xlu0 %3667
        %3669 = vrot.lane.b32.xlu0 %v3602, 51
        %v3670 = vpop.permute.xlu0 %3669
        %3671 = vrot.lane.b32.xlu0 %v3603, 51
        %v3672 = vpop.permute.xlu0 %3671
        %3673 = vrot.lane.b32.xlu0 %v3604, 51
        %v3674 = vpop.permute.xlu0 %3673
        %3675 = vrot.lane.b32.xlu0 %v3605, 51
        %v3676 = vpop.permute.xlu0 %3675
        %3677 = vrot.lane.b32.xlu0 %v3606, 51
        %v3678 = vpop.permute.xlu0 %3677
        %3679 = vrot.lane.b32.xlu0 %v3607, 51
        %v3680 = vpop.permute.xlu0 %3679
        %3681 = vrot.lane.b32.xlu0 %v3608, 51
        %v3682 = vpop.permute.xlu0 %3681
        %3683 = vrot.lane.b32.xlu0 %v3609, 51
        %v3684 = vpop.permute.xlu0 %3683
        %3685 = vrot.lane.b32.xlu0 %v3610, 51
        %v3686 = vpop.permute.xlu0 %3685
        %3687 = vrot.lane.b32.xlu0 %v3611, 51
        %v3688 = vpop.permute.xlu0 %3687
        %3689 = vrot.lane.b32.xlu0 %v3612, 51
        %v3690 = vpop.permute.xlu0 %3689
        %3691 = vrot.lane.b32.xlu0 %v3613, 51
        %v3692 = vpop.permute.xlu0 %3691
        %3693 = vrot.lane.b32.xlu0 %v3614, 51
        %v3694 = vpop.permute.xlu0 %3693
        %3695 = vrot.lane.b32.xlu0 %v3615, 51
        %v3696 = vpop.permute.xlu0 %3695
        %3697 = vrot.lane.b32.xlu0 %v3616, 51
        %v3698 = vpop.permute.xlu0 %3697
        %3699 = vrot.lane.b32.xlu0 %v3617, 51
        %v3700 = vpop.permute.xlu0 %3699
        %3701 = vrot.lane.b32.xlu0 %v3618, 51
        %v3702 = vpop.permute.xlu0 %3701
        %3703 = vrot.lane.b32.xlu0 %v3619, 51
        %v3704 = vpop.permute.xlu0 %3703
        %3705 = vrot.lane.b32.xlu0 %v3620, 51
        %v3706 = vpop.permute.xlu0 %3705
        %3707 = vrot.lane.b32.xlu0 %v3621, 51
        %v3708 = vpop.permute.xlu0 %3707
        %3709 = vrot.lane.b32.xlu0 %v3622, 51
        %v3710 = vpop.permute.xlu0 %3709
        %3711 = vrot.lane.b32.xlu0 %v3623, 51
        %v3712 = vpop.permute.xlu0 %3711
        %3713 = vrot.lane.b32.xlu0 %v3624, 51
        %v3714 = vpop.permute.xlu0 %3713
        %3715 = vrot.lane.b32.xlu0 %v3625, 51
        %v3716 = vpop.permute.xlu0 %3715
        %3717 = vrot.lane.b32.xlu0 %v3626, 51
        %v3718 = vpop.permute.xlu0 %3717
        %3719 = vrot.lane.b32.xlu0 %v3627, 51
        %v3720 = vpop.permute.xlu0 %3719
        %3721 = vrot.lane.b32.xlu0 %v3628, 51
        %v3722 = vpop.permute.xlu0 %3721
        %3723 = vrot.lane.b32.xlu0 %v3629, 51
        %v3724 = vpop.permute.xlu0 %3723
        %3725 = vrot.lane.b32.xlu0 %v3630, 51
        %v3726 = vpop.permute.xlu0 %3725
        %vm3759 = vcmask 441752
        %3760 = vst.msk [vmem:[#allocation5] sm:$0xff] %vm3759, %v3664
        %3761 = vst.msk [vmem:[#allocation5 + $0x8] sm:$0xff] %vm3759, %v3666
        %3762 = vst.msk [vmem:[#allocation5 + $0x10] sm:$0xff] %vm3759, %v3668
        %3763 = vst.msk [vmem:[#allocation5 + $0x18] sm:$0xff] %vm3759, %v3670
        %3764 = vst.msk [vmem:[#allocation5 + $0x20] sm:$0xff] %vm3759, %v3672
        %3765 = vst.msk [vmem:[#allocation5 + $0x28] sm:$0xff] %vm3759, %v3674
        %3766 = vst.msk [vmem:[#allocation5 + $0x30] sm:$0xff] %vm3759, %v3676
        %3767 = vst.msk [vmem:[#allocation5 + $0x38] sm:$0xff] %vm3759, %v3678
        %3768 = vst.msk [vmem:[#allocation5 + $0x40] sm:$0xff] %vm3759, %v3680
        %3769 = vst.msk [vmem:[#allocation5 + $0x48] sm:$0xff] %vm3759, %v3682
        %3770 = vst.msk [vmem:[#allocation5 + $0x50] sm:$0xff] %vm3759, %v3684
        %3771 = vst.msk [vmem:[#allocation5 + $0x58] sm:$0xff] %vm3759, %v3686
        %3772 = vst.msk [vmem:[#allocation5 + $0x60] sm:$0xff] %vm3759, %v3688
        %3773 = vst.msk [vmem:[#allocation5 + $0x68] sm:$0xff] %vm3759, %v3690
        %3774 = vst.msk [vmem:[#allocation5 + $0x70] sm:$0xff] %vm3759, %v3692
        %3775 = vst.msk [vmem:[#allocation5 + $0x78] sm:$0xff] %vm3759, %v3694
        %3776 = vst.msk [vmem:[#allocation5 + $0x80] sm:$0xff] %vm3759, %v3696
        %3777 = vst.msk [vmem:[#allocation5 + $0x88] sm:$0xff] %vm3759, %v3698
        %3778 = vst.msk [vmem:[#allocation5 + $0x90] sm:$0xff] %vm3759, %v3700
        %3779 = vst.msk [vmem:[#allocation5 + $0x98] sm:$0xff] %vm3759, %v3702
        %3780 = vst.msk [vmem:[#allocation5 + $0xa0] sm:$0xff] %vm3759, %v3704
        %3781 = vst.msk [vmem:[#allocation5 + $0xa8] sm:$0xff] %vm3759, %v3706
        %3782 = vst.msk [vmem:[#allocation5 + $0xb0] sm:$0xff] %vm3759, %v3708
        %3783 = vst.msk [vmem:[#allocation5 + $0xb8] sm:$0xff] %vm3759, %v3710
        %3784 = vst.msk [vmem:[#allocation5 + $0xc0] sm:$0xff] %vm3759, %v3712
        %3785 = vst.msk [vmem:[#allocation5 + $0xc8] sm:$0xff] %vm3759, %v3714
        %3786 = vst.msk [vmem:[#allocation5 + $0xd0] sm:$0xff] %vm3759, %v3716
        %3787 = vst.msk [vmem:[#allocation5 + $0xd8] sm:$0xff] %vm3759, %v3718
        %3788 = vst.msk [vmem:[#allocation5 + $0xe0] sm:$0xff] %vm3759, %v3720
        %3789 = vst.msk [vmem:[#allocation5 + $0xe8] sm:$0xff] %vm3759, %v3722
        %3790 = vst.msk [vmem:[#allocation5 + $0xf0] sm:$0xff] %vm3759, %v3724
        %3791 = vst.msk [vmem:[#allocation5 + $0xf8] sm:$0xff] %vm3759, %v3726
        %v3792 = vld [vmem:[%s3212 + $0x3] sm:$0xff]
        %v3793 = vld [vmem:[%s3212 + $0xb] sm:$0xff]
        %v3794 = vld [vmem:[%s3212 + $0x1b] sm:$0xff]
        %v3795 = vld [vmem:[%s3212 + $0x23] sm:$0xff]
        %v3796 = vld [vmem:[%s3212 + $0x33] sm:$0xff]
        %v3797 = vld [vmem:[%s3212 + $0x3b] sm:$0xff]
        %v3798 = vld [vmem:[%s3212 + $0x4b] sm:$0xff]
        %v3799 = vld [vmem:[%s3212 + $0x53] sm:$0xff]
        %v3800 = vld [vmem:[%s3212 + $0x63] sm:$0xff]
        %v3801 = vld [vmem:[%s3212 + $0x6b] sm:$0xff]
        %v3802 = vld [vmem:[%s3212 + $0x7b] sm:$0xff]
        %v3803 = vld [vmem:[%s3212 + $0x83] sm:$0xff]
        %v3804 = vld [vmem:[%s3212 + $0x93] sm:$0xff]
        %v3805 = vld [vmem:[%s3212 + $0x9b] sm:$0xff]
        %v3806 = vld [vmem:[%s3212 + $0xab] sm:$0xff]
        %v3807 = vld [vmem:[%s3212 + $0xb3] sm:$0xff]
        %v3808 = vld [vmem:[%s3212 + $0xc3] sm:$0xff]
        %v3809 = vld [vmem:[%s3212 + $0xcb] sm:$0xff]
        %v3810 = vld [vmem:[%s3212 + $0xdb] sm:$0xff]
        %v3811 = vld [vmem:[%s3212 + $0xe3] sm:$0xff]
        %v3812 = vld [vmem:[%s3212 + $0xf3] sm:$0xff]
        %v3813 = vld [vmem:[%s3212 + $0xfb] sm:$0xff]
        %v3814 = vld [vmem:[%s3212 + $0x10b] sm:$0xff]
        %v3815 = vld [vmem:[%s3212 + $0x113] sm:$0xff]
        %v3816 = vld [vmem:[%s3212 + $0x123] sm:$0xff]
        %v3817 = vld [vmem:[%s3212 + $0x12b] sm:$0xff]
        %v3818 = vld [vmem:[%s3212 + $0x13b] sm:$0xff]
        %v3819 = vld [vmem:[%s3212 + $0x143] sm:$0xff]
        %v3820 = vld [vmem:[%s3212 + $0x153] sm:$0xff]
        %v3821 = vld [vmem:[%s3212 + $0x15b] sm:$0xff]
        %v3822 = vld [vmem:[%s3212 + $0x16b] sm:$0xff]
        %v3823 = vld [vmem:[%s3212 + $0x173] sm:$0xff]
        %3856 = vrot.lane.b32.xlu0 %v3792, 54
        %v3857 = vpop.permute.xlu0 %3856
        %3858 = vrot.lane.b32.xlu0 %v3793, 54
        %v3859 = vpop.permute.xlu0 %3858
        %3860 = vrot.lane.b32.xlu0 %v3794, 54
        %v3861 = vpop.permute.xlu0 %3860
        %3862 = vrot.lane.b32.xlu0 %v3795, 54
        %v3863 = vpop.permute.xlu0 %3862
        %3864 = vrot.lane.b32.xlu0 %v3796, 54
        %v3865 = vpop.permute.xlu0 %3864
        %3866 = vrot.lane.b32.xlu0 %v3797, 54
        %v3867 = vpop.permute.xlu0 %3866
        %3868 = vrot.lane.b32.xlu0 %v3798, 54
        %v3869 = vpop.permute.xlu0 %3868
        %3870 = vrot.lane.b32.xlu0 %v3799, 54
        %v3871 = vpop.permute.xlu0 %3870
        %3872 = vrot.lane.b32.xlu0 %v3800, 54
        %v3873 = vpop.permute.xlu0 %3872
        %3874 = vrot.lane.b32.xlu0 %v3801, 54
        %v3875 = vpop.permute.xlu0 %3874
        %3876 = vrot.lane.b32.xlu0 %v3802, 54
        %v3877 = vpop.permute.xlu0 %3876
        %3878 = vrot.lane.b32.xlu0 %v3803, 54
        %v3879 = vpop.permute.xlu0 %3878
        %3880 = vrot.lane.b32.xlu0 %v3804, 54
        %v3881 = vpop.permute.xlu0 %3880
        %3882 = vrot.lane.b32.xlu0 %v3805, 54
        %v3883 = vpop.permute.xlu0 %3882
        %3884 = vrot.lane.b32.xlu0 %v3806, 54
        %v3885 = vpop.permute.xlu0 %3884
        %3886 = vrot.lane.b32.xlu0 %v3807, 54
        %v3887 = vpop.permute.xlu0 %3886
        %3888 = vrot.lane.b32.xlu0 %v3808, 54
        %v3889 = vpop.permute.xlu0 %3888
        %3890 = vrot.lane.b32.xlu0 %v3809, 54
        %v3891 = vpop.permute.xlu0 %3890
        %3892 = vrot.lane.b32.xlu0 %v3810, 54
        %v3893 = vpop.permute.xlu0 %3892
        %3894 = vrot.lane.b32.xlu0 %v3811, 54
        %v3895 = vpop.permute.xlu0 %3894
        %3896 = vrot.lane.b32.xlu0 %v3812, 54
        %v3897 = vpop.permute.xlu0 %3896
        %3898 = vrot.lane.b32.xlu0 %v3813, 54
        %v3899 = vpop.permute.xlu0 %3898
        %3900 = vrot.lane.b32.xlu0 %v3814, 54
        %v3901 = vpop.permute.xlu0 %3900
        %3902 = vrot.lane.b32.xlu0 %v3815, 54
        %v3903 = vpop.permute.xlu0 %3902
        %3904 = vrot.lane.b32.xlu0 %v3816, 54
        %v3905 = vpop.permute.xlu0 %3904
        %3906 = vrot.lane.b32.xlu0 %v3817, 54
        %v3907 = vpop.permute.xlu0 %3906
        %3908 = vrot.lane.b32.xlu0 %v3818, 54
        %v3909 = vpop.permute.xlu0 %3908
        %3910 = vrot.lane.b32.xlu0 %v3819, 54
        %v3911 = vpop.permute.xlu0 %3910
        %3912 = vrot.lane.b32.xlu0 %v3820, 54
        %v3913 = vpop.permute.xlu0 %3912
        %3914 = vrot.lane.b32.xlu0 %v3821, 54
        %v3915 = vpop.permute.xlu0 %3914
        %3916 = vrot.lane.b32.xlu0 %v3822, 54
        %v3917 = vpop.permute.xlu0 %3916
        %3918 = vrot.lane.b32.xlu0 %v3823, 54
        %v3919 = vpop.permute.xlu0 %3918
        %vm3952 = vcmask 466352
        %3953 = vst.msk [vmem:[#allocation5] sm:$0xff] %vm3952, %v3857
        %3954 = vst.msk [vmem:[#allocation5 + $0x8] sm:$0xff] %vm3952, %v3859
        %3955 = vst.msk [vmem:[#allocation5 + $0x10] sm:$0xff] %vm3952, %v3861
        %3956 = vst.msk [vmem:[#allocation5 + $0x18] sm:$0xff] %vm3952, %v3863
        %3957 = vst.msk [vmem:[#allocation5 + $0x20] sm:$0xff] %vm3952, %v3865
        %3958 = vst.msk [vmem:[#allocation5 + $0x28] sm:$0xff] %vm3952, %v3867
        %3959 = vst.msk [vmem:[#allocation5 + $0x30] sm:$0xff] %vm3952, %v3869
        %3960 = vst.msk [vmem:[#allocation5 + $0x38] sm:$0xff] %vm3952, %v3871
        %3961 = vst.msk [vmem:[#allocation5 + $0x40] sm:$0xff] %vm3952, %v3873
        %3962 = vst.msk [vmem:[#allocation5 + $0x48] sm:$0xff] %vm3952, %v3875
        %3963 = vst.msk [vmem:[#allocation5 + $0x50] sm:$0xff] %vm3952, %v3877
        %3964 = vst.msk [vmem:[#allocation5 + $0x58] sm:$0xff] %vm3952, %v3879
        %3965 = vst.msk [vmem:[#allocation5 + $0x60] sm:$0xff] %vm3952, %v3881
        %3966 = vst.msk [vmem:[#allocation5 + $0x68] sm:$0xff] %vm3952, %v3883
        %3967 = vst.msk [vmem:[#allocation5 + $0x70] sm:$0xff] %vm3952, %v3885
        %3968 = vst.msk [vmem:[#allocation5 + $0x78] sm:$0xff] %vm3952, %v3887
        %3969 = vst.msk [vmem:[#allocation5 + $0x80] sm:$0xff] %vm3952, %v3889
        %3970 = vst.msk [vmem:[#allocation5 + $0x88] sm:$0xff] %vm3952, %v3891
        %3971 = vst.msk [vmem:[#allocation5 + $0x90] sm:$0xff] %vm3952, %v3893
        %3972 = vst.msk [vmem:[#allocation5 + $0x98] sm:$0xff] %vm3952, %v3895
        %3973 = vst.msk [vmem:[#allocation5 + $0xa0] sm:$0xff] %vm3952, %v3897
        %3974 = vst.msk [vmem:[#allocation5 + $0xa8] sm:$0xff] %vm3952, %v3899
        %3975 = vst.msk [vmem:[#allocation5 + $0xb0] sm:$0xff] %vm3952, %v3901
        %3976 = vst.msk [vmem:[#allocation5 + $0xb8] sm:$0xff] %vm3952, %v3903
        %3977 = vst.msk [vmem:[#allocation5 + $0xc0] sm:$0xff] %vm3952, %v3905
        %3978 = vst.msk [vmem:[#allocation5 + $0xc8] sm:$0xff] %vm3952, %v3907
        %3979 = vst.msk [vmem:[#allocation5 + $0xd0] sm:$0xff] %vm3952, %v3909
        %3980 = vst.msk [vmem:[#allocation5 + $0xd8] sm:$0xff] %vm3952, %v3911
        %3981 = vst.msk [vmem:[#allocation5 + $0xe0] sm:$0xff] %vm3952, %v3913
        %3982 = vst.msk [vmem:[#allocation5 + $0xe8] sm:$0xff] %vm3952, %v3915
        %3983 = vst.msk [vmem:[#allocation5 + $0xf0] sm:$0xff] %vm3952, %v3917
        %3984 = vst.msk [vmem:[#allocation5 + $0xf8] sm:$0xff] %vm3952, %v3919
        %v3985 = vld [vmem:[%s3212 + $0x4] sm:$0xff]
        %v3986 = vld [vmem:[%s3212 + $0xc] sm:$0xff]
        %v3987 = vld [vmem:[%s3212 + $0x1c] sm:$0xff]
        %v3988 = vld [vmem:[%s3212 + $0x24] sm:$0xff]
        %v3989 = vld [vmem:[%s3212 + $0x34] sm:$0xff]
        %v3990 = vld [vmem:[%s3212 + $0x3c] sm:$0xff]
        %v3991 = vld [vmem:[%s3212 + $0x4c] sm:$0xff]
        %v3992 = vld [vmem:[%s3212 + $0x54] sm:$0xff]
        %v3993 = vld [vmem:[%s3212 + $0x64] sm:$0xff]
        %v3994 = vld [vmem:[%s3212 + $0x6c] sm:$0xff]
        %v3995 = vld [vmem:[%s3212 + $0x7c] sm:$0xff]
        %v3996 = vld [vmem:[%s3212 + $0x84] sm:$0xff]
        %v3997 = vld [vmem:[%s3212 + $0x94] sm:$0xff]
        %v3998 = vld [vmem:[%s3212 + $0x9c] sm:$0xff]
        %v3999 = vld [vmem:[%s3212 + $0xac] sm:$0xff]
        %v4000 = vld [vmem:[%s3212 + $0xb4] sm:$0xff]
        %v4001 = vld [vmem:[%s3212 + $0xc4] sm:$0xff]
        %v4002 = vld [vmem:[%s3212 + $0xcc] sm:$0xff]
        %v4003 = vld [vmem:[%s3212 + $0xdc] sm:$0xff]
        %v4004 = vld [vmem:[%s3212 + $0xe4] sm:$0xff]
        %v4005 = vld [vmem:[%s3212 + $0xf4] sm:$0xff]
        %v4006 = vld [vmem:[%s3212 + $0xfc] sm:$0xff]
        %v4007 = vld [vmem:[%s3212 + $0x10c] sm:$0xff]
        %v4008 = vld [vmem:[%s3212 + $0x114] sm:$0xff]
        %v4009 = vld [vmem:[%s3212 + $0x124] sm:$0xff]
        %v4010 = vld [vmem:[%s3212 + $0x12c] sm:$0xff]
        %v4011 = vld [vmem:[%s3212 + $0x13c] sm:$0xff]
        %v4012 = vld [vmem:[%s3212 + $0x144] sm:$0xff]
        %v4013 = vld [vmem:[%s3212 + $0x154] sm:$0xff]
        %v4014 = vld [vmem:[%s3212 + $0x15c] sm:$0xff]
        %v4015 = vld [vmem:[%s3212 + $0x16c] sm:$0xff]
        %v4016 = vld [vmem:[%s3212 + $0x174] sm:$0xff]
        %4049 = vrot.lane.b32.xlu0 %v3985, 57
        %v4050 = vpop.permute.xlu0 %4049
        %4051 = vrot.lane.b32.xlu0 %v3986, 57
        %v4052 = vpop.permute.xlu0 %4051
        %4053 = vrot.lane.b32.xlu0 %v3987, 57
        %v4054 = vpop.permute.xlu0 %4053
        %4055 = vrot.lane.b32.xlu0 %v3988, 57
        %v4056 = vpop.permute.xlu0 %4055
        %4057 = vrot.lane.b32.xlu0 %v3989, 57
        %v4058 = vpop.permute.xlu0 %4057
        %4059 = vrot.lane.b32.xlu0 %v3990, 57
        %v4060 = vpop.permute.xlu0 %4059
        %4061 = vrot.lane.b32.xlu0 %v3991, 57
        %v4062 = vpop.permute.xlu0 %4061
        %4063 = vrot.lane.b32.xlu0 %v3992, 57
        %v4064 = vpop.permute.xlu0 %4063
        %4065 = vrot.lane.b32.xlu0 %v3993, 57
        %v4066 = vpop.permute.xlu0 %4065
        %4067 = vrot.lane.b32.xlu0 %v3994, 57
        %v4068 = vpop.permute.xlu0 %4067
        %4069 = vrot.lane.b32.xlu0 %v3995, 57
        %v4070 = vpop.permute.xlu0 %4069
        %4071 = vrot.lane.b32.xlu0 %v3996, 57
        %v4072 = vpop.permute.xlu0 %4071
        %4073 = vrot.lane.b32.xlu0 %v3997, 57
        %v4074 = vpop.permute.xlu0 %4073
        %4075 = vrot.lane.b32.xlu0 %v3998, 57
        %v4076 = vpop.permute.xlu0 %4075
        %4077 = vrot.lane.b32.xlu0 %v3999, 57
        %v4078 = vpop.permute.xlu0 %4077
        %4079 = vrot.lane.b32.xlu0 %v4000, 57
        %v4080 = vpop.permute.xlu0 %4079
        %4081 = vrot.lane.b32.xlu0 %v4001, 57
        %v4082 = vpop.permute.xlu0 %4081
        %4083 = vrot.lane.b32.xlu0 %v4002, 57
        %v4084 = vpop.permute.xlu0 %4083
        %4085 = vrot.lane.b32.xlu0 %v4003, 57
        %v4086 = vpop.permute.xlu0 %4085
        %4087 = vrot.lane.b32.xlu0 %v4004, 57
        %v4088 = vpop.permute.xlu0 %4087
        %4089 = vrot.lane.b32.xlu0 %v4005, 57
        %v4090 = vpop.permute.xlu0 %4089
        %4091 = vrot.lane.b32.xlu0 %v4006, 57
        %v4092 = vpop.permute.xlu0 %4091
        %4093 = vrot.lane.b32.xlu0 %v4007, 57
        %v4094 = vpop.permute.xlu0 %4093
        %4095 = vrot.lane.b32.xlu0 %v4008, 57
        %v4096 = vpop.permute.xlu0 %4095
        %4097 = vrot.lane.b32.xlu0 %v4009, 57
        %v4098 = vpop.permute.xlu0 %4097
        %4099 = vrot.lane.b32.xlu0 %v4010, 57
        %v4100 = vpop.permute.xlu0 %4099
        %4101 = vrot.lane.b32.xlu0 %v4011, 57
        %v4102 = vpop.permute.xlu0 %4101
        %4103 = vrot.lane.b32.xlu0 %v4012, 57
        %v4104 = vpop.permute.xlu0 %4103
        %4105 = vrot.lane.b32.xlu0 %v4013, 57
        %v4106 = vpop.permute.xlu0 %4105
        %4107 = vrot.lane.b32.xlu0 %v4014, 57
        %v4108 = vpop.permute.xlu0 %4107
        %4109 = vrot.lane.b32.xlu0 %v4015, 57
        %v4110 = vpop.permute.xlu0 %4109
        %4111 = vrot.lane.b32.xlu0 %v4016, 57
        %v4112 = vpop.permute.xlu0 %4111
        %vm4145 = vcmask 490952
        %4146 = vst.msk [vmem:[#allocation5] sm:$0xff] %vm4145, %v4050
        %4147 = vst.msk [vmem:[#allocation5 + $0x8] sm:$0xff] %vm4145, %v4052
        %4148 = vst.msk [vmem:[#allocation5 + $0x10] sm:$0xff] %vm4145, %v4054
        %4149 = vst.msk [vmem:[#allocation5 + $0x18] sm:$0xff] %vm4145, %v4056
        %4150 = vst.msk [vmem:[#allocation5 + $0x20] sm:$0xff] %vm4145, %v4058
        %4151 = vst.msk [vmem:[#allocation5 + $0x28] sm:$0xff] %vm4145, %v4060
        %4152 = vst.msk [vmem:[#allocation5 + $0x30] sm:$0xff] %vm4145, %v4062
        %4153 = vst.msk [vmem:[#allocation5 + $0x38] sm:$0xff] %vm4145, %v4064
        %4154 = vst.msk [vmem:[#allocation5 + $0x40] sm:$0xff] %vm4145, %v4066
        %4155 = vst.msk [vmem:[#allocation5 + $0x48] sm:$0xff] %vm4145, %v4068
        %4156 = vst.msk [vmem:[#allocation5 + $0x50] sm:$0xff] %vm4145, %v4070
        %4157 = vst.msk [vmem:[#allocation5 + $0x58] sm:$0xff] %vm4145, %v4072
        %4158 = vst.msk [vmem:[#allocation5 + $0x60] sm:$0xff] %vm4145, %v4074
        %4159 = vst.msk [vmem:[#allocation5 + $0x68] sm:$0xff] %vm4145, %v4076
        %4160 = vst.msk [vmem:[#allocation5 + $0x70] sm:$0xff] %vm4145, %v4078
        %4161 = vst.msk [vmem:[#allocation5 + $0x78] sm:$0xff] %vm4145, %v4080
        %4162 = vst.msk [vmem:[#allocation5 + $0x80] sm:$0xff] %vm4145, %v4082
        %4163 = vst.msk [vmem:[#allocation5 + $0x88] sm:$0xff] %vm4145, %v4084
        %4164 = vst.msk [vmem:[#allocation5 + $0x90] sm:$0xff] %vm4145, %v4086
        %4165 = vst.msk [vmem:[#allocation5 + $0x98] sm:$0xff] %vm4145, %v4088
        %4166 = vst.msk [vmem:[#allocation5 + $0xa0] sm:$0xff] %vm4145, %v4090
        %4167 = vst.msk [vmem:[#allocation5 + $0xa8] sm:$0xff] %vm4145, %v4092
        %4168 = vst.msk [vmem:[#allocation5 + $0xb0] sm:$0xff] %vm4145, %v4094
        %4169 = vst.msk [vmem:[#allocation5 + $0xb8] sm:$0xff] %vm4145, %v4096
        %4170 = vst.msk [vmem:[#allocation5 + $0xc0] sm:$0xff] %vm4145, %v4098
        %4171 = vst.msk [vmem:[#allocation5 + $0xc8] sm:$0xff] %vm4145, %v4100
        %4172 = vst.msk [vmem:[#allocation5 + $0xd0] sm:$0xff] %vm4145, %v4102
        %4173 = vst.msk [vmem:[#allocation5 + $0xd8] sm:$0xff] %vm4145, %v4104
        %4174 = vst.msk [vmem:[#allocation5 + $0xe0] sm:$0xff] %vm4145, %v4106
        %4175 = vst.msk [vmem:[#allocation5 + $0xe8] sm:$0xff] %vm4145, %v4108
        %4176 = vst.msk [vmem:[#allocation5 + $0xf0] sm:$0xff] %vm4145, %v4110
        %4177 = vst.msk [vmem:[#allocation5 + $0xf8] sm:$0xff] %vm4145, %v4112
        %s4178 = scalar_lea.vmem [#allocation2], 96
        %v4179 = vld [vmem:[%s4178] sm:$0xff]
        %v4180 = vld [vmem:[%s4178 + $0x8] sm:$0xff]
        %v4181 = vld [vmem:[%s4178 + $0x18] sm:$0xff]
        %v4182 = vld [vmem:[%s4178 + $0x20] sm:$0xff]
        %v4183 = vld [vmem:[%s4178 + $0x30] sm:$0xff]
        %v4184 = vld [vmem:[%s4178 + $0x38] sm:$0xff]
        %v4185 = vld [vmem:[%s4178 + $0x48] sm:$0xff]
        %v4186 = vld [vmem:[%s4178 + $0x50] sm:$0xff]
        %v4187 = vld [vmem:[%s4178 + $0x60] sm:$0xff]
        %v4188 = vld [vmem:[%s4178 + $0x68] sm:$0xff]
        %v4189 = vld [vmem:[%s4178 + $0x78] sm:$0xff]
        %v4190 = vld [vmem:[%s4178 + $0x80] sm:$0xff]
        %v4191 = vld [vmem:[%s4178 + $0x90] sm:$0xff]
        %v4192 = vld [vmem:[%s4178 + $0x98] sm:$0xff]
        %v4193 = vld [vmem:[%s4178 + $0xa8] sm:$0xff]
        %v4194 = vld [vmem:[%s4178 + $0xb0] sm:$0xff]
        %v4195 = vld [vmem:[%s4178 + $0xc0] sm:$0xff]
        %v4196 = vld [vmem:[%s4178 + $0xc8] sm:$0xff]
        %v4197 = vld [vmem:[%s4178 + $0xd8] sm:$0xff]
        %v4198 = vld [vmem:[%s4178 + $0xe0] sm:$0xff]
        %v4199 = vld [vmem:[%s4178 + $0xf0] sm:$0xff]
        %v4200 = vld [vmem:[%s4178 + $0xf8] sm:$0xff]
        %v4201 = vld [vmem:[%s4178 + $0x108] sm:$0xff]
        %v4202 = vld [vmem:[%s4178 + $0x110] sm:$0xff]
        %v4203 = vld [vmem:[%s4178 + $0x120] sm:$0xff]
        %v4204 = vld [vmem:[%s4178 + $0x128] sm:$0xff]
        %v4205 = vld [vmem:[%s4178 + $0x138] sm:$0xff]
        %v4206 = vld [vmem:[%s4178 + $0x140] sm:$0xff]
        %v4207 = vld [vmem:[%s4178 + $0x150] sm:$0xff]
        %v4208 = vld [vmem:[%s4178 + $0x158] sm:$0xff]
        %v4209 = vld [vmem:[%s4178 + $0x168] sm:$0xff]
        %v4210 = vld [vmem:[%s4178 + $0x170] sm:$0xff]
        %4243 = vrot.lane.b32.xlu0 %v4179, 60
        %v4244 = vpop.permute.xlu0 %4243
        %4245 = vrot.lane.b32.xlu0 %v4180, 60
        %v4246 = vpop.permute.xlu0 %4245
        %4247 = vrot.lane.b32.xlu0 %v4181, 60
        %v4248 = vpop.permute.xlu0 %4247
        %4249 = vrot.lane.b32.xlu0 %v4182, 60
        %v4250 = vpop.permute.xlu0 %4249
        %4251 = vrot.lane.b32.xlu0 %v4183, 60
        %v4252 = vpop.permute.xlu0 %4251
        %4253 = vrot.lane.b32.xlu0 %v4184, 60
        %v4254 = vpop.permute.xlu0 %4253
        %4255 = vrot.lane.b32.xlu0 %v4185, 60
        %v4256 = vpop.permute.xlu0 %4255
        %4257 = vrot.lane.b32.xlu0 %v4186, 60
        %v4258 = vpop.permute.xlu0 %4257
        %4259 = vrot.lane.b32.xlu0 %v4187, 60
        %v4260 = vpop.permute.xlu0 %4259
        %4261 = vrot.lane.b32.xlu0 %v4188, 60
        %v4262 = vpop.permute.xlu0 %4261
        %4263 = vrot.lane.b32.xlu0 %v4189, 60
        %v4264 = vpop.permute.xlu0 %4263
        %4265 = vrot.lane.b32.xlu0 %v4190, 60
        %v4266 = vpop.permute.xlu0 %4265
        %4267 = vrot.lane.b32.xlu0 %v4191, 60
        %v4268 = vpop.permute.xlu0 %4267
        %4269 = vrot.lane.b32.xlu0 %v4192, 60
        %v4270 = vpop.permute.xlu0 %4269
        %4271 = vrot.lane.b32.xlu0 %v4193, 60
        %v4272 = vpop.permute.xlu0 %4271
        %4273 = vrot.lane.b32.xlu0 %v4194, 60
        %v4274 = vpop.permute.xlu0 %4273
        %4275 = vrot.lane.b32.xlu0 %v4195, 60
        %v4276 = vpop.permute.xlu0 %4275
        %4277 = vrot.lane.b32.xlu0 %v4196, 60
        %v4278 = vpop.permute.xlu0 %4277
        %4279 = vrot.lane.b32.xlu0 %v4197, 60
        %v4280 = vpop.permute.xlu0 %4279
        %4281 = vrot.lane.b32.xlu0 %v4198, 60
        %v4282 = vpop.permute.xlu0 %4281
        %4283 = vrot.lane.b32.xlu0 %v4199, 60
        %v4284 = vpop.permute.xlu0 %4283
        %4285 = vrot.lane.b32.xlu0 %v4200, 60
        %v4286 = vpop.permute.xlu0 %4285
        %4287 = vrot.lane.b32.xlu0 %v4201, 60
        %v4288 = vpop.permute.xlu0 %4287
        %4289 = vrot.lane.b32.xlu0 %v4202, 60
        %v4290 = vpop.permute.xlu0 %4289
        %4291 = vrot.lane.b32.xlu0 %v4203, 60
        %v4292 = vpop.permute.xlu0 %4291
        %4293 = vrot.lane.b32.xlu0 %v4204, 60
        %v4294 = vpop.permute.xlu0 %4293
        %4295 = vrot.lane.b32.xlu0 %v4205, 60
        %v4296 = vpop.permute.xlu0 %4295
        %4297 = vrot.lane.b32.xlu0 %v4206, 60
        %v4298 = vpop.permute.xlu0 %4297
        %4299 = vrot.lane.b32.xlu0 %v4207, 60
        %v4300 = vpop.permute.xlu0 %4299
        %4301 = vrot.lane.b32.xlu0 %v4208, 60
        %v4302 = vpop.permute.xlu0 %4301
        %4303 = vrot.lane.b32.xlu0 %v4209, 60
        %v4304 = vpop.permute.xlu0 %4303
        %4305 = vrot.lane.b32.xlu0 %v4210, 60
        %v4306 = vpop.permute.xlu0 %4305
        %vm4339 = vcmask 515552
        %4340 = vst.msk [vmem:[#allocation5] sm:$0xff] %vm4339, %v4244
        %4341 = vst.msk [vmem:[#allocation5 + $0x8] sm:$0xff] %vm4339, %v4246
        %4342 = vst.msk [vmem:[#allocation5 + $0x10] sm:$0xff] %vm4339, %v4248
        %4343 = vst.msk [vmem:[#allocation5 + $0x18] sm:$0xff] %vm4339, %v4250
        %4344 = vst.msk [vmem:[#allocation5 + $0x20] sm:$0xff] %vm4339, %v4252
        %4345 = vst.msk [vmem:[#allocation5 + $0x28] sm:$0xff] %vm4339, %v4254
        %4346 = vst.msk [vmem:[#allocation5 + $0x30] sm:$0xff] %vm4339, %v4256
        %4347 = vst.msk [vmem:[#allocation5 + $0x38] sm:$0xff] %vm4339, %v4258
        %4348 = vst.msk [vmem:[#allocation5 + $0x40] sm:$0xff] %vm4339, %v4260
        %4349 = vst.msk [vmem:[#allocation5 + $0x48] sm:$0xff] %vm4339, %v4262
        %4350 = vst.msk [vmem:[#allocation5 + $0x50] sm:$0xff] %vm4339, %v4264
        %4351 = vst.msk [vmem:[#allocation5 + $0x58] sm:$0xff] %vm4339, %v4266
        %4352 = vst.msk [vmem:[#allocation5 + $0x60] sm:$0xff] %vm4339, %v4268
        %4353 = vst.msk [vmem:[#allocation5 + $0x68] sm:$0xff] %vm4339, %v4270
        %4354 = vst.msk [vmem:[#allocation5 + $0x70] sm:$0xff] %vm4339, %v4272
        %4355 = vst.msk [vmem:[#allocation5 + $0x78] sm:$0xff] %vm4339, %v4274
        %4356 = vst.msk [vmem:[#allocation5 + $0x80] sm:$0xff] %vm4339, %v4276
        %4357 = vst.msk [vmem:[#allocation5 + $0x88] sm:$0xff] %vm4339, %v4278
        %4358 = vst.msk [vmem:[#allocation5 + $0x90] sm:$0xff] %vm4339, %v4280
        %4359 = vst.msk [vmem:[#allocation5 + $0x98] sm:$0xff] %vm4339, %v4282
        %4360 = vst.msk [vmem:[#allocation5 + $0xa0] sm:$0xff] %vm4339, %v4284
        %4361 = vst.msk [vmem:[#allocation5 + $0xa8] sm:$0xff] %vm4339, %v4286
        %4362 = vst.msk [vmem:[#allocation5 + $0xb0] sm:$0xff] %vm4339, %v4288
        %4363 = vst.msk [vmem:[#allocation5 + $0xb8] sm:$0xff] %vm4339, %v4290
        %4364 = vst.msk [vmem:[#allocation5 + $0xc0] sm:$0xff] %vm4339, %v4292
        %4365 = vst.msk [vmem:[#allocation5 + $0xc8] sm:$0xff] %vm4339, %v4294
        %4366 = vst.msk [vmem:[#allocation5 + $0xd0] sm:$0xff] %vm4339, %v4296
        %4367 = vst.msk [vmem:[#allocation5 + $0xd8] sm:$0xff] %vm4339, %v4298
        %4368 = vst.msk [vmem:[#allocation5 + $0xe0] sm:$0xff] %vm4339, %v4300
        %4369 = vst.msk [vmem:[#allocation5 + $0xe8] sm:$0xff] %vm4339, %v4302
        %4370 = vst.msk [vmem:[#allocation5 + $0xf0] sm:$0xff] %vm4339, %v4304
        %4371 = vst.msk [vmem:[#allocation5 + $0xf8] sm:$0xff] %vm4339, %v4306
        %v4372 = vld [vmem:[%s4178 + $0x1] sm:$0xff]
        %v4373 = vld [vmem:[%s4178 + $0x9] sm:$0xff]
        %v4374 = vld [vmem:[%s4178 + $0x19] sm:$0xff]
        %v4375 = vld [vmem:[%s4178 + $0x21] sm:$0xff]
        %v4376 = vld [vmem:[%s4178 + $0x31] sm:$0xff]
        %v4377 = vld [vmem:[%s4178 + $0x39] sm:$0xff]
        %v4378 = vld [vmem:[%s4178 + $0x49] sm:$0xff]
        %v4379 = vld [vmem:[%s4178 + $0x51] sm:$0xff]
        %v4380 = vld [vmem:[%s4178 + $0x61] sm:$0xff]
        %v4381 = vld [vmem:[%s4178 + $0x69] sm:$0xff]
        %v4382 = vld [vmem:[%s4178 + $0x79] sm:$0xff]
        %v4383 = vld [vmem:[%s4178 + $0x81] sm:$0xff]
        %v4384 = vld [vmem:[%s4178 + $0x91] sm:$0xff]
        %v4385 = vld [vmem:[%s4178 + $0x99] sm:$0xff]
        %v4386 = vld [vmem:[%s4178 + $0xa9] sm:$0xff]
        %v4387 = vld [vmem:[%s4178 + $0xb1] sm:$0xff]
        %v4388 = vld [vmem:[%s4178 + $0xc1] sm:$0xff]
        %v4389 = vld [vmem:[%s4178 + $0xc9] sm:$0xff]
        %v4390 = vld [vmem:[%s4178 + $0xd9] sm:$0xff]
        %v4391 = vld [vmem:[%s4178 + $0xe1] sm:$0xff]
        %v4392 = vld [vmem:[%s4178 + $0xf1] sm:$0xff]
        %v4393 = vld [vmem:[%s4178 + $0xf9] sm:$0xff]
        %v4394 = vld [vmem:[%s4178 + $0x109] sm:$0xff]
        %v4395 = vld [vmem:[%s4178 + $0x111] sm:$0xff]
        %v4396 = vld [vmem:[%s4178 + $0x121] sm:$0xff]
        %v4397 = vld [vmem:[%s4178 + $0x129] sm:$0xff]
        %v4398 = vld [vmem:[%s4178 + $0x139] sm:$0xff]
        %v4399 = vld [vmem:[%s4178 + $0x141] sm:$0xff]
        %v4400 = vld [vmem:[%s4178 + $0x151] sm:$0xff]
        %v4401 = vld [vmem:[%s4178 + $0x159] sm:$0xff]
        %v4402 = vld [vmem:[%s4178 + $0x169] sm:$0xff]
        %v4403 = vld [vmem:[%s4178 + $0x171] sm:$0xff]
        %4436 = vrot.lane.b32.xlu0 %v4372, 63
        %v4437 = vpop.permute.xlu0 %4436
        %4438 = vrot.lane.b32.xlu0 %v4373, 63
        %v4439 = vpop.permute.xlu0 %4438
        %4440 = vrot.lane.b32.xlu0 %v4374, 63
        %v4441 = vpop.permute.xlu0 %4440
        %4442 = vrot.lane.b32.xlu0 %v4375, 63
        %v4443 = vpop.permute.xlu0 %4442
        %4444 = vrot.lane.b32.xlu0 %v4376, 63
        %v4445 = vpop.permute.xlu0 %4444
        %4446 = vrot.lane.b32.xlu0 %v4377, 63
        %v4447 = vpop.permute.xlu0 %4446
        %4448 = vrot.lane.b32.xlu0 %v4378, 63
        %v4449 = vpop.permute.xlu0 %4448
        %4450 = vrot.lane.b32.xlu0 %v4379, 63
        %v4451 = vpop.permute.xlu0 %4450
        %4452 = vrot.lane.b32.xlu0 %v4380, 63
        %v4453 = vpop.permute.xlu0 %4452
        %4454 = vrot.lane.b32.xlu0 %v4381, 63
        %v4455 = vpop.permute.xlu0 %4454
        %4456 = vrot.lane.b32.xlu0 %v4382, 63
        %v4457 = vpop.permute.xlu0 %4456
        %4458 = vrot.lane.b32.xlu0 %v4383, 63
        %v4459 = vpop.permute.xlu0 %4458
        %4460 = vrot.lane.b32.xlu0 %v4384, 63
        %v4461 = vpop.permute.xlu0 %4460
        %4462 = vrot.lane.b32.xlu0 %v4385, 63
        %v4463 = vpop.permute.xlu0 %4462
        %4464 = vrot.lane.b32.xlu0 %v4386, 63
        %v4465 = vpop.permute.xlu0 %4464
        %4466 = vrot.lane.b32.xlu0 %v4387, 63
        %v4467 = vpop.permute.xlu0 %4466
        %4468 = vrot.lane.b32.xlu0 %v4388, 63
        %v4469 = vpop.permute.xlu0 %4468
        %4470 = vrot.lane.b32.xlu0 %v4389, 63
        %v4471 = vpop.permute.xlu0 %4470
        %4472 = vrot.lane.b32.xlu0 %v4390, 63
        %v4473 = vpop.permute.xlu0 %4472
        %4474 = vrot.lane.b32.xlu0 %v4391, 63
        %v4475 = vpop.permute.xlu0 %4474
        %4476 = vrot.lane.b32.xlu0 %v4392, 63
        %v4477 = vpop.permute.xlu0 %4476
        %4478 = vrot.lane.b32.xlu0 %v4393, 63
        %v4479 = vpop.permute.xlu0 %4478
        %4480 = vrot.lane.b32.xlu0 %v4394, 63
        %v4481 = vpop.permute.xlu0 %4480
        %4482 = vrot.lane.b32.xlu0 %v4395, 63
        %v4483 = vpop.permute.xlu0 %4482
        %4484 = vrot.lane.b32.xlu0 %v4396, 63
        %v4485 = vpop.permute.xlu0 %4484
        %4486 = vrot.lane.b32.xlu0 %v4397, 63
        %v4487 = vpop.permute.xlu0 %4486
        %4488 = vrot.lane.b32.xlu0 %v4398, 63
        %v4489 = vpop.permute.xlu0 %4488
        %4490 = vrot.lane.b32.xlu0 %v4399, 63
        %v4491 = vpop.permute.xlu0 %4490
        %4492 = vrot.lane.b32.xlu0 %v4400, 63
        %v4493 = vpop.permute.xlu0 %4492
        %4494 = vrot.lane.b32.xlu0 %v4401, 63
        %v4495 = vpop.permute.xlu0 %4494
        %4496 = vrot.lane.b32.xlu0 %v4402, 63
        %v4497 = vpop.permute.xlu0 %4496
        %4498 = vrot.lane.b32.xlu0 %v4403, 63
        %v4499 = vpop.permute.xlu0 %4498
        %vm4532 = vcmask 540152
        %4533 = vst.msk [vmem:[#allocation5] sm:$0xff] %vm4532, %v4437
        %4534 = vst.msk [vmem:[#allocation5 + $0x8] sm:$0xff] %vm4532, %v4439
        %4535 = vst.msk [vmem:[#allocation5 + $0x10] sm:$0xff] %vm4532, %v4441
        %4536 = vst.msk [vmem:[#allocation5 + $0x18] sm:$0xff] %vm4532, %v4443
        %4537 = vst.msk [vmem:[#allocation5 + $0x20] sm:$0xff] %vm4532, %v4445
        %4538 = vst.msk [vmem:[#allocation5 + $0x28] sm:$0xff] %vm4532, %v4447
        %4539 = vst.msk [vmem:[#allocation5 + $0x30] sm:$0xff] %vm4532, %v4449
        %4540 = vst.msk [vmem:[#allocation5 + $0x38] sm:$0xff] %vm4532, %v4451
        %4541 = vst.msk [vmem:[#allocation5 + $0x40] sm:$0xff] %vm4532, %v4453
        %4542 = vst.msk [vmem:[#allocation5 + $0x48] sm:$0xff] %vm4532, %v4455
        %4543 = vst.msk [vmem:[#allocation5 + $0x50] sm:$0xff] %vm4532, %v4457
        %4544 = vst.msk [vmem:[#allocation5 + $0x58] sm:$0xff] %vm4532, %v4459
        %4545 = vst.msk [vmem:[#allocation5 + $0x60] sm:$0xff] %vm4532, %v4461
        %4546 = vst.msk [vmem:[#allocation5 + $0x68] sm:$0xff] %vm4532, %v4463
        %4547 = vst.msk [vmem:[#allocation5 + $0x70] sm:$0xff] %vm4532, %v4465
        %4548 = vst.msk [vmem:[#allocation5 + $0x78] sm:$0xff] %vm4532, %v4467
        %4549 = vst.msk [vmem:[#allocation5 + $0x80] sm:$0xff] %vm4532, %v4469
        %4550 = vst.msk [vmem:[#allocation5 + $0x88] sm:$0xff] %vm4532, %v4471
        %4551 = vst.msk [vmem:[#allocation5 + $0x90] sm:$0xff] %vm4532, %v4473
        %4552 = vst.msk [vmem:[#allocation5 + $0x98] sm:$0xff] %vm4532, %v4475
        %4553 = vst.msk [vmem:[#allocation5 + $0xa0] sm:$0xff] %vm4532, %v4477
        %4554 = vst.msk [vmem:[#allocation5 + $0xa8] sm:$0xff] %vm4532, %v4479
        %4555 = vst.msk [vmem:[#allocation5 + $0xb0] sm:$0xff] %vm4532, %v4481
        %4556 = vst.msk [vmem:[#allocation5 + $0xb8] sm:$0xff] %vm4532, %v4483
        %4557 = vst.msk [vmem:[#allocation5 + $0xc0] sm:$0xff] %vm4532, %v4485
        %4558 = vst.msk [vmem:[#allocation5 + $0xc8] sm:$0xff] %vm4532, %v4487
        %4559 = vst.msk [vmem:[#allocation5 + $0xd0] sm:$0xff] %vm4532, %v4489
        %4560 = vst.msk [vmem:[#allocation5 + $0xd8] sm:$0xff] %vm4532, %v4491
        %4561 = vst.msk [vmem:[#allocation5 + $0xe0] sm:$0xff] %vm4532, %v4493
        %4562 = vst.msk [vmem:[#allocation5 + $0xe8] sm:$0xff] %vm4532, %v4495
        %4563 = vst.msk [vmem:[#allocation5 + $0xf0] sm:$0xff] %vm4532, %v4497
        %4564 = vst.msk [vmem:[#allocation5 + $0xf8] sm:$0xff] %vm4532, %v4499
        %v4565 = vld [vmem:[%s4178 + $0x2] sm:$0xff]
        %v4566 = vld [vmem:[%s4178 + $0xa] sm:$0xff]
        %v4567 = vld [vmem:[%s4178 + $0x1a] sm:$0xff]
        %v4568 = vld [vmem:[%s4178 + $0x22] sm:$0xff]
        %v4569 = vld [vmem:[%s4178 + $0x32] sm:$0xff]
        %v4570 = vld [vmem:[%s4178 + $0x3a] sm:$0xff]
        %v4571 = vld [vmem:[%s4178 + $0x4a] sm:$0xff]
        %v4572 = vld [vmem:[%s4178 + $0x52] sm:$0xff]
        %v4573 = vld [vmem:[%s4178 + $0x62] sm:$0xff]
        %v4574 = vld [vmem:[%s4178 + $0x6a] sm:$0xff]
        %v4575 = vld [vmem:[%s4178 + $0x7a] sm:$0xff]
        %v4576 = vld [vmem:[%s4178 + $0x82] sm:$0xff]
        %v4577 = vld [vmem:[%s4178 + $0x92] sm:$0xff]
        %v4578 = vld [vmem:[%s4178 + $0x9a] sm:$0xff]
        %v4579 = vld [vmem:[%s4178 + $0xaa] sm:$0xff]
        %v4580 = vld [vmem:[%s4178 + $0xb2] sm:$0xff]
        %v4581 = vld [vmem:[%s4178 + $0xc2] sm:$0xff]
        %v4582 = vld [vmem:[%s4178 + $0xca] sm:$0xff]
        %v4583 = vld [vmem:[%s4178 + $0xda] sm:$0xff]
        %v4584 = vld [vmem:[%s4178 + $0xe2] sm:$0xff]
        %v4585 = vld [vmem:[%s4178 + $0xf2] sm:$0xff]
        %v4586 = vld [vmem:[%s4178 + $0xfa] sm:$0xff]
        %v4587 = vld [vmem:[%s4178 + $0x10a] sm:$0xff]
        %v4588 = vld [vmem:[%s4178 + $0x112] sm:$0xff]
        %v4589 = vld [vmem:[%s4178 + $0x122] sm:$0xff]
        %v4590 = vld [vmem:[%s4178 + $0x12a] sm:$0xff]
        %v4591 = vld [vmem:[%s4178 + $0x13a] sm:$0xff]
        %v4592 = vld [vmem:[%s4178 + $0x142] sm:$0xff]
        %v4593 = vld [vmem:[%s4178 + $0x152] sm:$0xff]
        %v4594 = vld [vmem:[%s4178 + $0x15a] sm:$0xff]
        %v4595 = vld [vmem:[%s4178 + $0x16a] sm:$0xff]
        %v4596 = vld [vmem:[%s4178 + $0x172] sm:$0xff]
        %4629 = vrot.lane.b32.xlu0 %v4565, 66
        %v4630 = vpop.permute.xlu0 %4629
        %4631 = vrot.lane.b32.xlu0 %v4566, 66
        %v4632 = vpop.permute.xlu0 %4631
        %4633 = vrot.lane.b32.xlu0 %v4567, 66
        %v4634 = vpop.permute.xlu0 %4633
        %4635 = vrot.lane.b32.xlu0 %v4568, 66
        %v4636 = vpop.permute.xlu0 %4635
        %4637 = vrot.lane.b32.xlu0 %v4569, 66
        %v4638 = vpop.permute.xlu0 %4637
        %4639 = vrot.lane.b32.xlu0 %v4570, 66
        %v4640 = vpop.permute.xlu0 %4639
        %4641 = vrot.lane.b32.xlu0 %v4571, 66
        %v4642 = vpop.permute.xlu0 %4641
        %4643 = vrot.lane.b32.xlu0 %v4572, 66
        %v4644 = vpop.permute.xlu0 %4643
        %4645 = vrot.lane.b32.xlu0 %v4573, 66
        %v4646 = vpop.permute.xlu0 %4645
        %4647 = vrot.lane.b32.xlu0 %v4574, 66
        %v4648 = vpop.permute.xlu0 %4647
        %4649 = vrot.lane.b32.xlu0 %v4575, 66
        %v4650 = vpop.permute.xlu0 %4649
        %4651 = vrot.lane.b32.xlu0 %v4576, 66
        %v4652 = vpop.permute.xlu0 %4651
        %4653 = vrot.lane.b32.xlu0 %v4577, 66
        %v4654 = vpop.permute.xlu0 %4653
        %4655 = vrot.lane.b32.xlu0 %v4578, 66
        %v4656 = vpop.permute.xlu0 %4655
        %4657 = vrot.lane.b32.xlu0 %v4579, 66
        %v4658 = vpop.permute.xlu0 %4657
        %4659 = vrot.lane.b32.xlu0 %v4580, 66
        %v4660 = vpop.permute.xlu0 %4659
        %4661 = vrot.lane.b32.xlu0 %v4581, 66
        %v4662 = vpop.permute.xlu0 %4661
        %4663 = vrot.lane.b32.xlu0 %v4582, 66
        %v4664 = vpop.permute.xlu0 %4663
        %4665 = vrot.lane.b32.xlu0 %v4583, 66
        %v4666 = vpop.permute.xlu0 %4665
        %4667 = vrot.lane.b32.xlu0 %v4584, 66
        %v4668 = vpop.permute.xlu0 %4667
        %4669 = vrot.lane.b32.xlu0 %v4585, 66
        %v4670 = vpop.permute.xlu0 %4669
        %4671 = vrot.lane.b32.xlu0 %v4586, 66
        %v4672 = vpop.permute.xlu0 %4671
        %4673 = vrot.lane.b32.xlu0 %v4587, 66
        %v4674 = vpop.permute.xlu0 %4673
        %4675 = vrot.lane.b32.xlu0 %v4588, 66
        %v4676 = vpop.permute.xlu0 %4675
        %4677 = vrot.lane.b32.xlu0 %v4589, 66
        %v4678 = vpop.permute.xlu0 %4677
        %4679 = vrot.lane.b32.xlu0 %v4590, 66
        %v4680 = vpop.permute.xlu0 %4679
        %4681 = vrot.lane.b32.xlu0 %v4591, 66
        %v4682 = vpop.permute.xlu0 %4681
        %4683 = vrot.lane.b32.xlu0 %v4592, 66
        %v4684 = vpop.permute.xlu0 %4683
        %4685 = vrot.lane.b32.xlu0 %v4593, 66
        %v4686 = vpop.permute.xlu0 %4685
        %4687 = vrot.lane.b32.xlu0 %v4594, 66
        %v4688 = vpop.permute.xlu0 %4687
        %4689 = vrot.lane.b32.xlu0 %v4595, 66
        %v4690 = vpop.permute.xlu0 %4689
        %4691 = vrot.lane.b32.xlu0 %v4596, 66
        %v4692 = vpop.permute.xlu0 %4691
        %vm4725 = vcmask 564752
        %4726 = vst.msk [vmem:[#allocation5] sm:$0xff] %vm4725, %v4630
        %4727 = vst.msk [vmem:[#allocation5 + $0x8] sm:$0xff] %vm4725, %v4632
        %4728 = vst.msk [vmem:[#allocation5 + $0x10] sm:$0xff] %vm4725, %v4634
        %4729 = vst.msk [vmem:[#allocation5 + $0x18] sm:$0xff] %vm4725, %v4636
        %4730 = vst.msk [vmem:[#allocation5 + $0x20] sm:$0xff] %vm4725, %v4638
        %4731 = vst.msk [vmem:[#allocation5 + $0x28] sm:$0xff] %vm4725, %v4640
        %4732 = vst.msk [vmem:[#allocation5 + $0x30] sm:$0xff] %vm4725, %v4642
        %4733 = vst.msk [vmem:[#allocation5 + $0x38] sm:$0xff] %vm4725, %v4644
        %4734 = vst.msk [vmem:[#allocation5 + $0x40] sm:$0xff] %vm4725, %v4646
        %4735 = vst.msk [vmem:[#allocation5 + $0x48] sm:$0xff] %vm4725, %v4648
        %4736 = vst.msk [vmem:[#allocation5 + $0x50] sm:$0xff] %vm4725, %v4650
        %4737 = vst.msk [vmem:[#allocation5 + $0x58] sm:$0xff] %vm4725, %v4652
        %4738 = vst.msk [vmem:[#allocation5 + $0x60] sm:$0xff] %vm4725, %v4654
        %4739 = vst.msk [vmem:[#allocation5 + $0x68] sm:$0xff] %vm4725, %v4656
        %4740 = vst.msk [vmem:[#allocation5 + $0x70] sm:$0xff] %vm4725, %v4658
        %4741 = vst.msk [vmem:[#allocation5 + $0x78] sm:$0xff] %vm4725, %v4660
        %4742 = vst.msk [vmem:[#allocation5 + $0x80] sm:$0xff] %vm4725, %v4662
        %4743 = vst.msk [vmem:[#allocation5 + $0x88] sm:$0xff] %vm4725, %v4664
        %4744 = vst.msk [vmem:[#allocation5 + $0x90] sm:$0xff] %vm4725, %v4666
        %4745 = vst.msk [vmem:[#allocation5 + $0x98] sm:$0xff] %vm4725, %v4668
        %4746 = vst.msk [vmem:[#allocation5 + $0xa0] sm:$0xff] %vm4725, %v4670
        %4747 = vst.msk [vmem:[#allocation5 + $0xa8] sm:$0xff] %vm4725, %v4672
        %4748 = vst.msk [vmem:[#allocation5 + $0xb0] sm:$0xff] %vm4725, %v4674
        %4749 = vst.msk [vmem:[#allocation5 + $0xb8] sm:$0xff] %vm4725, %v4676
        %4750 = vst.msk [vmem:[#allocation5 + $0xc0] sm:$0xff] %vm4725, %v4678
        %4751 = vst.msk [vmem:[#allocation5 + $0xc8] sm:$0xff] %vm4725, %v4680
        %4752 = vst.msk [vmem:[#allocation5 + $0xd0] sm:$0xff] %vm4725, %v4682
        %4753 = vst.msk [vmem:[#allocation5 + $0xd8] sm:$0xff] %vm4725, %v4684
        %4754 = vst.msk [vmem:[#allocation5 + $0xe0] sm:$0xff] %vm4725, %v4686
        %4755 = vst.msk [vmem:[#allocation5 + $0xe8] sm:$0xff] %vm4725, %v4688
        %4756 = vst.msk [vmem:[#allocation5 + $0xf0] sm:$0xff] %vm4725, %v4690
        %4757 = vst.msk [vmem:[#allocation5 + $0xf8] sm:$0xff] %vm4725, %v4692
        %v4758 = vld [vmem:[%s4178 + $0x3] sm:$0xff]
        %v4759 = vld [vmem:[%s4178 + $0xb] sm:$0xff]
        %v4760 = vld [vmem:[%s4178 + $0x1b] sm:$0xff]
        %v4761 = vld [vmem:[%s4178 + $0x23] sm:$0xff]
        %v4762 = vld [vmem:[%s4178 + $0x33] sm:$0xff]
        %v4763 = vld [vmem:[%s4178 + $0x3b] sm:$0xff]
        %v4764 = vld [vmem:[%s4178 + $0x4b] sm:$0xff]
        %v4765 = vld [vmem:[%s4178 + $0x53] sm:$0xff]
        %v4766 = vld [vmem:[%s4178 + $0x63] sm:$0xff]
        %v4767 = vld [vmem:[%s4178 + $0x6b] sm:$0xff]
        %v4768 = vld [vmem:[%s4178 + $0x7b] sm:$0xff]
        %v4769 = vld [vmem:[%s4178 + $0x83] sm:$0xff]
        %v4770 = vld [vmem:[%s4178 + $0x93] sm:$0xff]
        %v4771 = vld [vmem:[%s4178 + $0x9b] sm:$0xff]
        %v4772 = vld [vmem:[%s4178 + $0xab] sm:$0xff]
        %v4773 = vld [vmem:[%s4178 + $0xb3] sm:$0xff]
        %v4774 = vld [vmem:[%s4178 + $0xc3] sm:$0xff]
        %v4775 = vld [vmem:[%s4178 + $0xcb] sm:$0xff]
        %v4776 = vld [vmem:[%s4178 + $0xdb] sm:$0xff]
        %v4777 = vld [vmem:[%s4178 + $0xe3] sm:$0xff]
        %v4778 = vld [vmem:[%s4178 + $0xf3] sm:$0xff]
        %v4779 = vld [vmem:[%s4178 + $0xfb] sm:$0xff]
        %v4780 = vld [vmem:[%s4178 + $0x10b] sm:$0xff]
        %v4781 = vld [vmem:[%s4178 + $0x113] sm:$0xff]
        %v4782 = vld [vmem:[%s4178 + $0x123] sm:$0xff]
        %v4783 = vld [vmem:[%s4178 + $0x12b] sm:$0xff]
        %v4784 = vld [vmem:[%s4178 + $0x13b] sm:$0xff]
        %v4785 = vld [vmem:[%s4178 + $0x143] sm:$0xff]
        %v4786 = vld [vmem:[%s4178 + $0x153] sm:$0xff]
        %v4787 = vld [vmem:[%s4178 + $0x15b] sm:$0xff]
        %v4788 = vld [vmem:[%s4178 + $0x16b] sm:$0xff]
        %v4789 = vld [vmem:[%s4178 + $0x173] sm:$0xff]
        %4822 = vrot.lane.b32.xlu0 %v4758, 69
        %v4823 = vpop.permute.xlu0 %4822
        %4824 = vrot.lane.b32.xlu0 %v4759, 69
        %v4825 = vpop.permute.xlu0 %4824
        %4826 = vrot.lane.b32.xlu0 %v4760, 69
        %v4827 = vpop.permute.xlu0 %4826
        %4828 = vrot.lane.b32.xlu0 %v4761, 69
        %v4829 = vpop.permute.xlu0 %4828
        %4830 = vrot.lane.b32.xlu0 %v4762, 69
        %v4831 = vpop.permute.xlu0 %4830
        %4832 = vrot.lane.b32.xlu0 %v4763, 69
        %v4833 = vpop.permute.xlu0 %4832
        %4834 = vrot.lane.b32.xlu0 %v4764, 69
        %v4835 = vpop.permute.xlu0 %4834
        %4836 = vrot.lane.b32.xlu0 %v4765, 69
        %v4837 = vpop.permute.xlu0 %4836
        %4838 = vrot.lane.b32.xlu0 %v4766, 69
        %v4839 = vpop.permute.xlu0 %4838
        %4840 = vrot.lane.b32.xlu0 %v4767, 69
        %v4841 = vpop.permute.xlu0 %4840
        %4842 = vrot.lane.b32.xlu0 %v4768, 69
        %v4843 = vpop.permute.xlu0 %4842
        %4844 = vrot.lane.b32.xlu0 %v4769, 69
        %v4845 = vpop.permute.xlu0 %4844
        %4846 = vrot.lane.b32.xlu0 %v4770, 69
        %v4847 = vpop.permute.xlu0 %4846
        %4848 = vrot.lane.b32.xlu0 %v4771, 69
        %v4849 = vpop.permute.xlu0 %4848
        %4850 = vrot.lane.b32.xlu0 %v4772, 69
        %v4851 = vpop.permute.xlu0 %4850
        %4852 = vrot.lane.b32.xlu0 %v4773, 69
        %v4853 = vpop.permute.xlu0 %4852
        %4854 = vrot.lane.b32.xlu0 %v4774, 69
        %v4855 = vpop.permute.xlu0 %4854
        %4856 = vrot.lane.b32.xlu0 %v4775, 69
        %v4857 = vpop.permute.xlu0 %4856
        %4858 = vrot.lane.b32.xlu0 %v4776, 69
        %v4859 = vpop.permute.xlu0 %4858
        %4860 = vrot.lane.b32.xlu0 %v4777, 69
        %v4861 = vpop.permute.xlu0 %4860
        %4862 = vrot.lane.b32.xlu0 %v4778, 69
        %v4863 = vpop.permute.xlu0 %4862
        %4864 = vrot.lane.b32.xlu0 %v4779, 69
        %v4865 = vpop.permute.xlu0 %4864
        %4866 = vrot.lane.b32.xlu0 %v4780, 69
        %v4867 = vpop.permute.xlu0 %4866
        %4868 = vrot.lane.b32.xlu0 %v4781, 69
        %v4869 = vpop.permute.xlu0 %4868
        %4870 = vrot.lane.b32.xlu0 %v4782, 69
        %v4871 = vpop.permute.xlu0 %4870
        %4872 = vrot.lane.b32.xlu0 %v4783, 69
        %v4873 = vpop.permute.xlu0 %4872
        %4874 = vrot.lane.b32.xlu0 %v4784, 69
        %v4875 = vpop.permute.xlu0 %4874
        %4876 = vrot.lane.b32.xlu0 %v4785, 69
        %v4877 = vpop.permute.xlu0 %4876
        %4878 = vrot.lane.b32.xlu0 %v4786, 69
        %v4879 = vpop.permute.xlu0 %4878
        %4880 = vrot.lane.b32.xlu0 %v4787, 69
        %v4881 = vpop.permute.xlu0 %4880
        %4882 = vrot.lane.b32.xlu0 %v4788, 69
        %v4883 = vpop.permute.xlu0 %4882
        %4884 = vrot.lane.b32.xlu0 %v4789, 69
        %v4885 = vpop.permute.xlu0 %4884
        %vm4918 = vcmask 589352
        %4919 = vst.msk [vmem:[#allocation5] sm:$0xff] %vm4918, %v4823
        %4920 = vst.msk [vmem:[#allocation5 + $0x8] sm:$0xff] %vm4918, %v4825
        %4921 = vst.msk [vmem:[#allocation5 + $0x10] sm:$0xff] %vm4918, %v4827
        %4922 = vst.msk [vmem:[#allocation5 + $0x18] sm:$0xff] %vm4918, %v4829
        %4923 = vst.msk [vmem:[#allocation5 + $0x20] sm:$0xff] %vm4918, %v4831
        %4924 = vst.msk [vmem:[#allocation5 + $0x28] sm:$0xff] %vm4918, %v4833
        %4925 = vst.msk [vmem:[#allocation5 + $0x30] sm:$0xff] %vm4918, %v4835
        %4926 = vst.msk [vmem:[#allocation5 + $0x38] sm:$0xff] %vm4918, %v4837
        %4927 = vst.msk [vmem:[#allocation5 + $0x40] sm:$0xff] %vm4918, %v4839
        %4928 = vst.msk [vmem:[#allocation5 + $0x48] sm:$0xff] %vm4918, %v4841
        %4929 = vst.msk [vmem:[#allocation5 + $0x50] sm:$0xff] %vm4918, %v4843
        %4930 = vst.msk [vmem:[#allocation5 + $0x58] sm:$0xff] %vm4918, %v4845
        %4931 = vst.msk [vmem:[#allocation5 + $0x60] sm:$0xff] %vm4918, %v4847
        %4932 = vst.msk [vmem:[#allocation5 + $0x68] sm:$0xff] %vm4918, %v4849
        %4933 = vst.msk [vmem:[#allocation5 + $0x70] sm:$0xff] %vm4918, %v4851
        %4934 = vst.msk [vmem:[#allocation5 + $0x78] sm:$0xff] %vm4918, %v4853
        %4935 = vst.msk [vmem:[#allocation5 + $0x80] sm:$0xff] %vm4918, %v4855
        %4936 = vst.msk [vmem:[#allocation5 + $0x88] sm:$0xff] %vm4918, %v4857
        %4937 = vst.msk [vmem:[#allocation5 + $0x90] sm:$0xff] %vm4918, %v4859
        %4938 = vst.msk [vmem:[#allocation5 + $0x98] sm:$0xff] %vm4918, %v4861
        %4939 = vst.msk [vmem:[#allocation5 + $0xa0] sm:$0xff] %vm4918, %v4863
        %4940 = vst.msk [vmem:[#allocation5 + $0xa8] sm:$0xff] %vm4918, %v4865
        %4941 = vst.msk [vmem:[#allocation5 + $0xb0] sm:$0xff] %vm4918, %v4867
        %4942 = vst.msk [vmem:[#allocation5 + $0xb8] sm:$0xff] %vm4918, %v4869
        %4943 = vst.msk [vmem:[#allocation5 + $0xc0] sm:$0xff] %vm4918, %v4871
        %4944 = vst.msk [vmem:[#allocation5 + $0xc8] sm:$0xff] %vm4918, %v4873
        %4945 = vst.msk [vmem:[#allocation5 + $0xd0] sm:$0xff] %vm4918, %v4875
        %4946 = vst.msk [vmem:[#allocation5 + $0xd8] sm:$0xff] %vm4918, %v4877
        %4947 = vst.msk [vmem:[#allocation5 + $0xe0] sm:$0xff] %vm4918, %v4879
        %4948 = vst.msk [vmem:[#allocation5 + $0xe8] sm:$0xff] %vm4918, %v4881
        %4949 = vst.msk [vmem:[#allocation5 + $0xf0] sm:$0xff] %vm4918, %v4883
        %4950 = vst.msk [vmem:[#allocation5 + $0xf8] sm:$0xff] %vm4918, %v4885
        %v4951 = vld [vmem:[%s4178 + $0x4] sm:$0xff]
        %v4952 = vld [vmem:[%s4178 + $0xc] sm:$0xff]
        %v4953 = vld [vmem:[%s4178 + $0x1c] sm:$0xff]
        %v4954 = vld [vmem:[%s4178 + $0x24] sm:$0xff]
        %v4955 = vld [vmem:[%s4178 + $0x34] sm:$0xff]
        %v4956 = vld [vmem:[%s4178 + $0x3c] sm:$0xff]
        %v4957 = vld [vmem:[%s4178 + $0x4c] sm:$0xff]
        %v4958 = vld [vmem:[%s4178 + $0x54] sm:$0xff]
        %v4959 = vld [vmem:[%s4178 + $0x64] sm:$0xff]
        %v4960 = vld [vmem:[%s4178 + $0x6c] sm:$0xff]
        %v4961 = vld [vmem:[%s4178 + $0x7c] sm:$0xff]
        %v4962 = vld [vmem:[%s4178 + $0x84] sm:$0xff]
        %v4963 = vld [vmem:[%s4178 + $0x94] sm:$0xff]
        %v4964 = vld [vmem:[%s4178 + $0x9c] sm:$0xff]
        %v4965 = vld [vmem:[%s4178 + $0xac] sm:$0xff]
        %v4966 = vld [vmem:[%s4178 + $0xb4] sm:$0xff]
        %v4967 = vld [vmem:[%s4178 + $0xc4] sm:$0xff]
        %v4968 = vld [vmem:[%s4178 + $0xcc] sm:$0xff]
        %v4969 = vld [vmem:[%s4178 + $0xdc] sm:$0xff]
        %v4970 = vld [vmem:[%s4178 + $0xe4] sm:$0xff]
        %v4971 = vld [vmem:[%s4178 + $0xf4] sm:$0xff]
        %v4972 = vld [vmem:[%s4178 + $0xfc] sm:$0xff]
        %v4973 = vld [vmem:[%s4178 + $0x10c] sm:$0xff]
        %v4974 = vld [vmem:[%s4178 + $0x114] sm:$0xff]
        %v4975 = vld [vmem:[%s4178 + $0x124] sm:$0xff]
        %v4976 = vld [vmem:[%s4178 + $0x12c] sm:$0xff]
        %v4977 = vld [vmem:[%s4178 + $0x13c] sm:$0xff]
        %v4978 = vld [vmem:[%s4178 + $0x144] sm:$0xff]
        %v4979 = vld [vmem:[%s4178 + $0x154] sm:$0xff]
        %v4980 = vld [vmem:[%s4178 + $0x15c] sm:$0xff]
        %v4981 = vld [vmem:[%s4178 + $0x16c] sm:$0xff]
        %v4982 = vld [vmem:[%s4178 + $0x174] sm:$0xff]
        %5015 = vrot.lane.b32.xlu0 %v4951, 72
        %v5016 = vpop.permute.xlu0 %5015
        %5017 = vrot.lane.b32.xlu0 %v4952, 72
        %v5018 = vpop.permute.xlu0 %5017
        %5019 = vrot.lane.b32.xlu0 %v4953, 72
        %v5020 = vpop.permute.xlu0 %5019
        %5021 = vrot.lane.b32.xlu0 %v4954, 72
        %v5022 = vpop.permute.xlu0 %5021
        %5023 = vrot.lane.b32.xlu0 %v4955, 72
        %v5024 = vpop.permute.xlu0 %5023
        %5025 = vrot.lane.b32.xlu0 %v4956, 72
        %v5026 = vpop.permute.xlu0 %5025
        %5027 = vrot.lane.b32.xlu0 %v4957, 72
        %v5028 = vpop.permute.xlu0 %5027
        %5029 = vrot.lane.b32.xlu0 %v4958, 72
        %v5030 = vpop.permute.xlu0 %5029
        %5031 = vrot.lane.b32.xlu0 %v4959, 72
        %v5032 = vpop.permute.xlu0 %5031
        %5033 = vrot.lane.b32.xlu0 %v4960, 72
        %v5034 = vpop.permute.xlu0 %5033
        %5035 = vrot.lane.b32.xlu0 %v4961, 72
        %v5036 = vpop.permute.xlu0 %5035
        %5037 = vrot.lane.b32.xlu0 %v4962, 72
        %v5038 = vpop.permute.xlu0 %5037
        %5039 = vrot.lane.b32.xlu0 %v4963, 72
        %v5040 = vpop.permute.xlu0 %5039
        %5041 = vrot.lane.b32.xlu0 %v4964, 72
        %v5042 = vpop.permute.xlu0 %5041
        %5043 = vrot.lane.b32.xlu0 %v4965, 72
        %v5044 = vpop.permute.xlu0 %5043
        %5045 = vrot.lane.b32.xlu0 %v4966, 72
        %v5046 = vpop.permute.xlu0 %5045
        %5047 = vrot.lane.b32.xlu0 %v4967, 72
        %v5048 = vpop.permute.xlu0 %5047
        %5049 = vrot.lane.b32.xlu0 %v4968, 72
        %v5050 = vpop.permute.xlu0 %5049
        %5051 = vrot.lane.b32.xlu0 %v4969, 72
        %v5052 = vpop.permute.xlu0 %5051
        %5053 = vrot.lane.b32.xlu0 %v4970, 72
        %v5054 = vpop.permute.xlu0 %5053
        %5055 = vrot.lane.b32.xlu0 %v4971, 72
        %v5056 = vpop.permute.xlu0 %5055
        %5057 = vrot.lane.b32.xlu0 %v4972, 72
        %v5058 = vpop.permute.xlu0 %5057
        %5059 = vrot.lane.b32.xlu0 %v4973, 72
        %v5060 = vpop.permute.xlu0 %5059
        %5061 = vrot.lane.b32.xlu0 %v4974, 72
        %v5062 = vpop.permute.xlu0 %5061
        %5063 = vrot.lane.b32.xlu0 %v4975, 72
        %v5064 = vpop.permute.xlu0 %5063
        %5065 = vrot.lane.b32.xlu0 %v4976, 72
        %v5066 = vpop.permute.xlu0 %5065
        %5067 = vrot.lane.b32.xlu0 %v4977, 72
        %v5068 = vpop.permute.xlu0 %5067
        %5069 = vrot.lane.b32.xlu0 %v4978, 72
        %v5070 = vpop.permute.xlu0 %5069
        %5071 = vrot.lane.b32.xlu0 %v4979, 72
        %v5072 = vpop.permute.xlu0 %5071
        %5073 = vrot.lane.b32.xlu0 %v4980, 72
        %v5074 = vpop.permute.xlu0 %5073
        %5075 = vrot.lane.b32.xlu0 %v4981, 72
        %v5076 = vpop.permute.xlu0 %5075
        %5077 = vrot.lane.b32.xlu0 %v4982, 72
        %v5078 = vpop.permute.xlu0 %5077
        %vm5111 = vcmask 613952
        %5112 = vst.msk [vmem:[#allocation5] sm:$0xff] %vm5111, %v5016
        %5113 = vst.msk [vmem:[#allocation5 + $0x8] sm:$0xff] %vm5111, %v5018
        %5114 = vst.msk [vmem:[#allocation5 + $0x10] sm:$0xff] %vm5111, %v5020
        %5115 = vst.msk [vmem:[#allocation5 + $0x18] sm:$0xff] %vm5111, %v5022
        %5116 = vst.msk [vmem:[#allocation5 + $0x20] sm:$0xff] %vm5111, %v5024
        %5117 = vst.msk [vmem:[#allocation5 + $0x28] sm:$0xff] %vm5111, %v5026
        %5118 = vst.msk [vmem:[#allocation5 + $0x30] sm:$0xff] %vm5111, %v5028
        %5119 = vst.msk [vmem:[#allocation5 + $0x38] sm:$0xff] %vm5111, %v5030
        %5120 = vst.msk [vmem:[#allocation5 + $0x40] sm:$0xff] %vm5111, %v5032
        %5121 = vst.msk [vmem:[#allocation5 + $0x48] sm:$0xff] %vm5111, %v5034
        %5122 = vst.msk [vmem:[#allocation5 + $0x50] sm:$0xff] %vm5111, %v5036
        %5123 = vst.msk [vmem:[#allocation5 + $0x58] sm:$0xff] %vm5111, %v5038
        %5124 = vst.msk [vmem:[#allocation5 + $0x60] sm:$0xff] %vm5111, %v5040
        %5125 = vst.msk [vmem:[#allocation5 + $0x68] sm:$0xff] %vm5111, %v5042
        %5126 = vst.msk [vmem:[#allocation5 + $0x70] sm:$0xff] %vm5111, %v5044
        %5127 = vst.msk [vmem:[#allocation5 + $0x78] sm:$0xff] %vm5111, %v5046
        %5128 = vst.msk [vmem:[#allocation5 + $0x80] sm:$0xff] %vm5111, %v5048
        %5129 = vst.msk [vmem:[#allocation5 + $0x88] sm:$0xff] %vm5111, %v5050
        %5130 = vst.msk [vmem:[#allocation5 + $0x90] sm:$0xff] %vm5111, %v5052
        %5131 = vst.msk [vmem:[#allocation5 + $0x98] sm:$0xff] %vm5111, %v5054
        %5132 = vst.msk [vmem:[#allocation5 + $0xa0] sm:$0xff] %vm5111, %v5056
        %5133 = vst.msk [vmem:[#allocation5 + $0xa8] sm:$0xff] %vm5111, %v5058
        %5134 = vst.msk [vmem:[#allocation5 + $0xb0] sm:$0xff] %vm5111, %v5060
        %5135 = vst.msk [vmem:[#allocation5 + $0xb8] sm:$0xff] %vm5111, %v5062
        %5136 = vst.msk [vmem:[#allocation5 + $0xc0] sm:$0xff] %vm5111, %v5064
        %5137 = vst.msk [vmem:[#allocation5 + $0xc8] sm:$0xff] %vm5111, %v5066
        %5138 = vst.msk [vmem:[#allocation5 + $0xd0] sm:$0xff] %vm5111, %v5068
        %5139 = vst.msk [vmem:[#allocation5 + $0xd8] sm:$0xff] %vm5111, %v5070
        %5140 = vst.msk [vmem:[#allocation5 + $0xe0] sm:$0xff] %vm5111, %v5072
        %5141 = vst.msk [vmem:[#allocation5 + $0xe8] sm:$0xff] %vm5111, %v5074
        %5142 = vst.msk [vmem:[#allocation5 + $0xf0] sm:$0xff] %vm5111, %v5076
        %5143 = vst.msk [vmem:[#allocation5 + $0xf8] sm:$0xff] %vm5111, %v5078
        %v5144 = vld [vmem:[#allocation5] sm:$0xff]
        %v5145 = vld [vmem:[#allocation5 + $0x8] sm:$0xff]
        %v5146 = vld [vmem:[#allocation5 + $0x10] sm:$0xff]
        %v5147 = vld [vmem:[#allocation5 + $0x18] sm:$0xff]
        %v5148 = vld [vmem:[#allocation5 + $0x20] sm:$0xff]
        %v5149 = vld [vmem:[#allocation5 + $0x28] sm:$0xff]
        %v5150 = vld [vmem:[#allocation5 + $0x30] sm:$0xff]
        %v5151 = vld [vmem:[#allocation5 + $0x38] sm:$0xff]
        %v5152 = vld [vmem:[#allocation5 + $0x40] sm:$0xff]
        %v5153 = vld [vmem:[#allocation5 + $0x48] sm:$0xff]
        %v5154 = vld [vmem:[#allocation5 + $0x50] sm:$0xff]
        %v5155 = vld [vmem:[#allocation5 + $0x58] sm:$0xff]
        %v5156 = vld [vmem:[#allocation5 + $0x60] sm:$0xff]
        %v5157 = vld [vmem:[#allocation5 + $0x68] sm:$0xff]
        %v5158 = vld [vmem:[#allocation5 + $0x70] sm:$0xff]
        %v5159 = vld [vmem:[#allocation5 + $0x78] sm:$0xff]
        %v5160 = vld [vmem:[#allocation5 + $0x80] sm:$0xff]
        %v5161 = vld [vmem:[#allocation5 + $0x88] sm:$0xff]
        %v5162 = vld [vmem:[#allocation5 + $0x90] sm:$0xff]
        %v5163 = vld [vmem:[#allocation5 + $0x98] sm:$0xff]
        %v5164 = vld [vmem:[#allocation5 + $0xa0] sm:$0xff]
        %v5165 = vld [vmem:[#allocation5 + $0xa8] sm:$0xff]
        %v5166 = vld [vmem:[#allocation5 + $0xb0] sm:$0xff]
        %v5167 = vld [vmem:[#allocation5 + $0xb8] sm:$0xff]
        %v5168 = vld [vmem:[#allocation5 + $0xc0] sm:$0xff]
        %v5169 = vld [vmem:[#allocation5 + $0xc8] sm:$0xff]
        %v5170 = vld [vmem:[#allocation5 + $0xd0] sm:$0xff]
        %v5171 = vld [vmem:[#allocation5 + $0xd8] sm:$0xff]
        %v5172 = vld [vmem:[#allocation5 + $0xe0] sm:$0xff]
        %v5173 = vld [vmem:[#allocation5 + $0xe8] sm:$0xff]
        %v5174 = vld [vmem:[#allocation5 + $0xf0] sm:$0xff]
        %v5175 = vld [vmem:[#allocation5 + $0xf8] sm:$0xff]
        %v5176 = vpack.c.bf16 %v5145, %v5144
        %v5177 = vpack.c.bf16 %v5147, %v5146
        %v5178 = vpack.c.bf16 %v5149, %v5148
        %v5179 = vpack.c.bf16 %v5151, %v5150
        %v5180 = vpack.c.bf16 %v5153, %v5152
        %v5181 = vpack.c.bf16 %v5155, %v5154
        %v5182 = vpack.c.bf16 %v5157, %v5156
        %v5183 = vpack.c.bf16 %v5159, %v5158
        %v5184 = vpack.c.bf16 %v5161, %v5160
        %v5185 = vpack.c.bf16 %v5163, %v5162
        %v5186 = vpack.c.bf16 %v5165, %v5164
        %v5187 = vpack.c.bf16 %v5167, %v5166
        %v5188 = vpack.c.bf16 %v5169, %v5168
        %v5189 = vpack.c.bf16 %v5171, %v5170
        %v5190 = vpack.c.bf16 %v5173, %v5172
        %v5191 = vpack.c.bf16 %v5175, %v5174
        %v5192 = vld [vmem:[%s1] sm:$0xf]
        %v5193 = vld [vmem:[%s1 + $0x4] sm:$0xf]
        %v5194 = vld [vmem:[%s1 + $0x8] sm:$0xf]
        %v5195 = vld [vmem:[%s1 + $0xc] sm:$0xf]
        %v5196 = vld [vmem:[%s1 + $0x10] sm:$0xf]
        %v5197 = vld [vmem:[%s1 + $0x14] sm:$0xf]
        %v5198 = vld [vmem:[%s1 + $0x18] sm:$0xf]
        %v5199 = vld [vmem:[%s1 + $0x1c] sm:$0xf]
        %v5200 = vld [vmem:[%s1 + $0x20] sm:$0xf]
        %v5201 = vld [vmem:[%s1 + $0x24] sm:$0x3]
        %v5202 = vld [vmem:[#allocation8] sm:$0x1]
        %v5204 = vlaneseq
        %v5205 = vshrl.u32 %v5204, 7
        %v5206 = vsub.s32 0, %v5205
        %v5207 = vrot.slane %v5202, %v5206
        %v5219 = vunpack.c.l.b16 %v5192
        %v5220 = vunpack.c.l.b16 %v5193
        %v5221 = vunpack.c.l.b16 %v5194
        %v5222 = vunpack.c.l.b16 %v5195
        %v5223 = vunpack.c.l.b16 %v5196
        %v5224 = vunpack.c.l.b16 %v5197
        %v5225 = vunpack.c.l.b16 %v5198
        %v5226 = vunpack.c.l.b16 %v5199
        %v5227 = vunpack.c.l.b16 %v5200
        %v5228 = vunpack.c.l.b16 %v5201
        %v5229 = vpack.c.b16 %v5220, %v5219
        %v5230 = vpack.c.b16 %v5222, %v5221
        %v5231 = vpack.c.b16 %v5224, %v5223
        %v5232 = vpack.c.b16 %v5226, %v5225
        %v5233 = vpack.c.b16 %v5228, %v5227
        %vm5238 = vcmask 613376
        %v5240 = vsel %vm5238, %v5176, 0
        %v5243 = vsel %vm5238, %v5177, 0
        %v5246 = vsel %vm5238, %v5178, 0
        %v5249 = vsel %vm5238, %v5179, 0
        %v5252 = vsel %vm5238, %v5180, 0
        %v5255 = vsel %vm5238, %v5181, 0
        %v5258 = vsel %vm5238, %v5182, 0
        %v5261 = vsel %vm5238, %v5183, 0
        %v5264 = vsel %vm5238, %v5184, 0
        %v5267 = vsel %vm5238, %v5185, 0
        %v5270 = vsel %vm5238, %v5186, 0
        %v5273 = vsel %vm5238, %v5187, 0
        %v5276 = vsel %vm5238, %v5188, 0
        %v5279 = vsel %vm5238, %v5189, 0
        %v5282 = vsel %vm5238, %v5190, 0
        %v5285 = vsel %vm5238, %v5191, 0
        %vm5287 = vcmask 1044480
        %vm5288 = vcmask 1045504
        %v5289 = vsel %vm5287, 4294967295, 65535
        %v5290 = vsel %vm5288, %v5289, 0
        %v5292 = vand.u32 %v5233, %v5290
        %5294 = vmatprep.subr.bf16.mxu0 0
        %5295 = vmatpush1.bf16.msra.mxu0 %v5229
        %5296 = vmatprep.subr.bf16.mxu0 0
        %5297 = vmatpush1.bf16.msra.mxu0 %v5230
        %5298 = vmatprep.subr.bf16.mxu0 0
        %5299 = vmatpush1.bf16.msra.mxu0 %v5231
        %5300 = vmatprep.subr.bf16.mxu0 0
        %5301 = vmatpush1.bf16.msra.mxu0 %v5232
        %5302 = vmatprep.subr.bf16.mxu0 0
        %5303 = vmatpush1.bf16.msra.mxu0 %v5292
        %5304 = vmatprep.subr.bf16.mxu0 0
        %5305 = vmatpush1.bf16.msra.mxu0 0
        %5306 = vmatprep.subr.bf16.mxu0 0
        %5307 = vmatpush1.bf16.msra.mxu0 0
        %5308 = vmatprep.subr.bf16.mxu0 0
        %5309 = vmatpush1.bf16.msra.mxu0 0
        %5310 = vmatprep.subr.bf16.mxu0 0
        %5311 = vmatpush1.bf16.msra.mxu0 0
        %5312 = vmatprep.subr.bf16.mxu0 0
        %5313 = vmatpush1.bf16.msra.mxu0 0
        %5314 = vmatprep.subr.bf16.mxu0 0
        %5315 = vmatpush1.bf16.msra.mxu0 0
        %5316 = vmatprep.subr.bf16.mxu0 0
        %5317 = vmatpush1.bf16.msra.mxu0 0
        %5318 = vmatprep.subr.bf16.mxu0 0
        %5319 = vmatpush1.bf16.msra.mxu0 0
        %5320 = vmatprep.subr.bf16.mxu0 0
        %5321 = vmatpush1.bf16.msra.mxu0 0
        %5322 = vmatprep.subr.bf16.mxu0 0
        %5323 = vmatpush1.bf16.msra.mxu0 0
        %5324 = vmatprep.subr.bf16.mxu0 0
        %5325 = vmatpush1.bf16.msra.mxu0 0
        %5326 = vmatprep.mubr.bf16.mxu0 0
        %5327 = vmatmul.mubr.bf16.gmra.mrb[0].mxu0 %v5240
        %v5328 = vpop.f32.mrb[0].mxu0
        %v5329 = vadd.f32 %v5207, %v5328
        %v5330 = vpop.f32.mrb[0].mxu0
        %v5331 = vpop.f32.mrb[0].mxu0
        %v5332 = vadd.f32 %v5207, %v5331
        %v5333 = vpop.f32.mrb[0].mxu0
        %5334 = vmatprep.mubr.bf16.mxu0 0
        %5335 = vmatmul.mubr.bf16.gmra.mrb[0].mxu0 %v5243
        %v5336 = vpop.f32.mrb[0].mxu0
        %v5337 = vadd.f32 %v5207, %v5336
        %v5338 = vpop.f32.mrb[0].mxu0
        %v5339 = vpop.f32.mrb[0].mxu0
        %v5340 = vadd.f32 %v5207, %v5339
        %v5341 = vpop.f32.mrb[0].mxu0
        %5342 = vmatprep.mubr.bf16.mxu0 0
        %5343 = vmatmul.mubr.bf16.gmra.mrb[0].mxu0 %v5246
        %v5344 = vpop.f32.mrb[0].mxu0
        %v5345 = vadd.f32 %v5207, %v5344
        %v5346 = vpop.f32.mrb[0].mxu0
        %v5347 = vpop.f32.mrb[0].mxu0
        %v5348 = vadd.f32 %v5207, %v5347
        %v5349 = vpop.f32.mrb[0].mxu0
        %5350 = vmatprep.mubr.bf16.mxu0 0
        %5351 = vmatmul.mubr.bf16.gmra.mrb[0].mxu0 %v5249
        %v5352 = vpop.f32.mrb[0].mxu0
        %v5353 = vadd.f32 %v5207, %v5352
        %v5354 = vpop.f32.mrb[0].mxu0
        %v5355 = vpop.f32.mrb[0].mxu0
        %v5356 = vadd.f32 %v5207, %v5355
        %v5357 = vpop.f32.mrb[0].mxu0
        %5358 = vmatprep.mubr.bf16.mxu0 0
        %5359 = vmatmul.mubr.bf16.gmra.mrb[0].mxu0 %v5252
        %v5360 = vpop.f32.mrb[0].mxu0
        %v5361 = vadd.f32 %v5207, %v5360
        %v5362 = vpop.f32.mrb[0].mxu0
        %v5363 = vpop.f32.mrb[0].mxu0
        %v5364 = vadd.f32 %v5207, %v5363
        %v5365 = vpop.f32.mrb[0].mxu0
        %5366 = vmatprep.mubr.bf16.mxu0 0
        %5367 = vmatmul.mubr.bf16.gmra.mrb[0].mxu0 %v5255
        %v5368 = vpop.f32.mrb[0].mxu0
        %v5369 = vadd.f32 %v5207, %v5368
        %v5370 = vpop.f32.mrb[0].mxu0
        %v5371 = vpop.f32.mrb[0].mxu0
        %v5372 = vadd.f32 %v5207, %v5371
        %v5373 = vpop.f32.mrb[0].mxu0
        %5374 = vmatprep.mubr.bf16.mxu0 0
        %5375 = vmatmul.mubr.bf16.gmra.mrb[0].mxu0 %v5258
        %v5376 = vpop.f32.mrb[0].mxu0
        %v5377 = vadd.f32 %v5207, %v5376
        %v5378 = vpop.f32.mrb[0].mxu0
        %v5379 = vpop.f32.mrb[0].mxu0
        %v5380 = vadd.f32 %v5207, %v5379
        %v5381 = vpop.f32.mrb[0].mxu0
        %5382 = vmatprep.mubr.bf16.mxu0 0
        %5383 = vmatmul.mubr.bf16.gmra.mrb[0].mxu0 %v5261
        %v5384 = vpop.f32.mrb[0].mxu0
        %v5385 = vadd.f32 %v5207, %v5384
        %v5386 = vpop.f32.mrb[0].mxu0
        %v5387 = vpop.f32.mrb[0].mxu0
        %v5388 = vadd.f32 %v5207, %v5387
        %v5389 = vpop.f32.mrb[0].mxu0
        %5390 = vmatprep.mubr.bf16.mxu0 0
        %5391 = vmatmul.mubr.bf16.gmra.mrb[0].mxu0 %v5264
        %v5392 = vpop.f32.mrb[0].mxu0
        %v5393 = vadd.f32 %v5207, %v5392
        %v5394 = vpop.f32.mrb[0].mxu0
        %v5395 = vpop.f32.mrb[0].mxu0
        %v5396 = vadd.f32 %v5207, %v5395
        %v5397 = vpop.f32.mrb[0].mxu0
        %5398 = vmatprep.mubr.bf16.mxu0 0
        %5399 = vmatmul.mubr.bf16.gmra.mrb[0].mxu0 %v5267
        %v5400 = vpop.f32.mrb[0].mxu0
        %v5401 = vadd.f32 %v5207, %v5400
        %v5402 = vpop.f32.mrb[0].mxu0
        %v5403 = vpop.f32.mrb[0].mxu0
        %v5404 = vadd.f32 %v5207, %v5403
        %v5405 = vpop.f32.mrb[0].mxu0
        %5406 = vmatprep.mubr.bf16.mxu0 0
        %5407 = vmatmul.mubr.bf16.gmra.mrb[0].mxu0 %v5270
        %v5408 = vpop.f32.mrb[0].mxu0
        %v5409 = vadd.f32 %v5207, %v5408
        %v5410 = vpop.f32.mrb[0].mxu0
        %v5411 = vpop.f32.mrb[0].mxu0
        %v5412 = vadd.f32 %v5207, %v5411
        %v5413 = vpop.f32.mrb[0].mxu0
        %5414 = vmatprep.mubr.bf16.mxu0 0
        %5415 = vmatmul.mubr.bf16.gmra.mrb[0].mxu0 %v5273
        %v5416 = vpop.f32.mrb[0].mxu0
        %v5417 = vadd.f32 %v5207, %v5416
        %v5418 = vpop.f32.mrb[0].mxu0
        %v5419 = vpop.f32.mrb[0].mxu0
        %v5420 = vadd.f32 %v5207, %v5419
        %v5421 = vpop.f32.mrb[0].mxu0
        %5422 = vmatprep.mubr.bf16.mxu0 0
        %5423 = vmatmul.mubr.bf16.gmra.mrb[0].mxu0 %v5276
        %v5424 = vpop.f32.mrb[0].mxu0
        %v5425 = vadd.f32 %v5207, %v5424
        %v5426 = vpop.f32.mrb[0].mxu0
        %v5427 = vpop.f32.mrb[0].mxu0
        %v5428 = vadd.f32 %v5207, %v5427
        %v5429 = vpop.f32.mrb[0].mxu0
        %5430 = vmatprep.mubr.bf16.mxu0 0
        %5431 = vmatmul.mubr.bf16.gmra.mrb[0].mxu0 %v5279
        %v5432 = vpop.f32.mrb[0].mxu0
        %v5433 = vadd.f32 %v5207, %v5432
        %v5434 = vpop.f32.mrb[0].mxu0
        %v5435 = vpop.f32.mrb[0].mxu0
        %v5436 = vadd.f32 %v5207, %v5435
        %v5437 = vpop.f32.mrb[0].mxu0
        %5438 = vmatprep.mubr.bf16.mxu0 0
        %5439 = vmatmul.mubr.bf16.gmra.mrb[0].mxu0 %v5282
        %v5440 = vpop.f32.mrb[0].mxu0
        %v5441 = vadd.f32 %v5207, %v5440
        %v5442 = vpop.f32.mrb[0].mxu0
        %v5443 = vpop.f32.mrb[0].mxu0
        %v5444 = vadd.f32 %v5207, %v5443
        %v5445 = vpop.f32.mrb[0].mxu0
        %5446 = vmatprep.mubr.bf16.mxu0 0
        %5447 = vmatmul.mubr.bf16.gmra.mrb[0].mxu0 %v5285
        %v5448 = vpop.f32.mrb[0].mxu0
        %v5449 = vadd.f32 %v5207, %v5448
        %v5450 = vpop.f32.mrb[0].mxu0
        %v5451 = vpop.f32.mrb[0].mxu0
        %v5452 = vadd.f32 %v5207, %v5451
        %v5453 = vpop.f32.mrb[0].mxu0
        %5454 = vdwg.mxu0
        %v5455 = vtanh.pop %v5329
        %v5456 = vtanh.pop %v5332
        %v5457 = vtanh.pop %v5337
        %v5458 = vtanh.pop %v5340
        %v5459 = vtanh.pop %v5345
        %v5460 = vtanh.pop %v5348
        %v5461 = vtanh.pop %v5353
        %v5462 = vtanh.pop %v5356
        %v5463 = vtanh.pop %v5361
        %v5464 = vtanh.pop %v5364
        %v5465 = vtanh.pop %v5369
        %v5466 = vtanh.pop %v5372
        %v5467 = vtanh.pop %v5377
        %v5468 = vtanh.pop %v5380
        %v5469 = vtanh.pop %v5385
        %v5470 = vtanh.pop %v5388
        %v5471 = vtanh.pop %v5393
        %v5472 = vtanh.pop %v5396
        %v5473 = vtanh.pop %v5401
        %v5474 = vtanh.pop %v5404
        %v5475 = vtanh.pop %v5409
        %v5476 = vtanh.pop %v5412
        %v5477 = vtanh.pop %v5417
        %v5478 = vtanh.pop %v5420
        %v5479 = vtanh.pop %v5425
        %v5480 = vtanh.pop %v5428
        %v5481 = vtanh.pop %v5433
        %v5482 = vtanh.pop %v5436
        %v5483 = vtanh.pop %v5441
        %v5484 = vtanh.pop %v5444
        %v5485 = vtanh.pop %v5449
        %v5486 = vtanh.pop %v5452
        %vm5487 = vcmask 523264
        %5488 = vst.msk [vmem:[#allocation3] sm:$0xff] %vm5487, 0.0
        %5489 = vst.msk [vmem:[#allocation3 + $0x8] sm:$0xff] %vm5487, 0.0
        %vm5490 = vcmask 517120
        %5491 = vst.msk [vmem:[#allocation3 + $0x10] sm:$0x3] %vm5490, 0.0
        %5492 = vst.msk [vmem:[#allocation3 + $0x18] sm:$0xff] %vm5487, 0.0
        %5493 = vst.msk [vmem:[#allocation3 + $0x20] sm:$0xff] %vm5487, 0.0
        %5494 = vst.msk [vmem:[#allocation3 + $0x28] sm:$0x3] %vm5490, 0.0
        %5495 = vst.msk [vmem:[#allocation3 + $0x30] sm:$0xff] %vm5487, 0.0
        %5496 = vst.msk [vmem:[#allocation3 + $0x38] sm:$0xff] %vm5487, 0.0
        %5497 = vst.msk [vmem:[#allocation3 + $0x40] sm:$0x3] %vm5490, 0.0
        %5498 = vst.msk [vmem:[#allocation3 + $0x48] sm:$0xff] %vm5487, 0.0
        %5499 = vst.msk [vmem:[#allocation3 + $0x50] sm:$0xff] %vm5487, 0.0
        %5500 = vst.msk [vmem:[#allocation3 + $0x58] sm:$0x3] %vm5490, 0.0
        %5501 = vst.msk [vmem:[#allocation3 + $0x60] sm:$0xff] %vm5487, 0.0
        %5502 = vst.msk [vmem:[#allocation3 + $0x68] sm:$0xff] %vm5487, 0.0
        %5503 = vst.msk [vmem:[#allocation3 + $0x70] sm:$0x3] %vm5490, 0.0
        %5504 = vst.msk [vmem:[#allocation3 + $0x78] sm:$0xff] %vm5487, 0.0
        %5505 = vst.msk [vmem:[#allocation3 + $0x80] sm:$0xff] %vm5487, 0.0
        %5506 = vst.msk [vmem:[#allocation3 + $0x88] sm:$0x3] %vm5490, 0.0
        %5507 = vst.msk [vmem:[#allocation3 + $0x90] sm:$0xff] %vm5487, 0.0
        %5508 = vst.msk [vmem:[#allocation3 + $0x98] sm:$0xff] %vm5487, 0.0
        %5509 = vst.msk [vmem:[#allocation3 + $0xa0] sm:$0x3] %vm5490, 0.0
        %5510 = vst.msk [vmem:[#allocation3 + $0xa8] sm:$0xff] %vm5487, 0.0
        %5511 = vst.msk [vmem:[#allocation3 + $0xb0] sm:$0xff] %vm5487, 0.0
        %5512 = vst.msk [vmem:[#allocation3 + $0xb8] sm:$0x3] %vm5490, 0.0
        %5513 = vst.msk [vmem:[#allocation3 + $0xc0] sm:$0xff] %vm5487, 0.0
        %5514 = vst.msk [vmem:[#allocation3 + $0xc8] sm:$0xff] %vm5487, 0.0
        %5515 = vst.msk [vmem:[#allocation3 + $0xd0] sm:$0x3] %vm5490, 0.0
        %5516 = vst.msk [vmem:[#allocation3 + $0xd8] sm:$0xff] %vm5487, 0.0
        %5517 = vst.msk [vmem:[#allocation3 + $0xe0] sm:$0xff] %vm5487, 0.0
        %5518 = vst.msk [vmem:[#allocation3 + $0xe8] sm:$0x3] %vm5490, 0.0
        %5519 = vst.msk [vmem:[#allocation3 + $0xf0] sm:$0xff] %vm5487, 0.0
        %5520 = vst.msk [vmem:[#allocation3 + $0xf8] sm:$0xff] %vm5487, 0.0
        %5521 = vst.msk [vmem:[#allocation3 + $0x100] sm:$0x3] %vm5490, 0.0
        %5522 = vst.msk [vmem:[#allocation3 + $0x108] sm:$0xff] %vm5487, 0.0
        %5523 = vst.msk [vmem:[#allocation3 + $0x110] sm:$0xff] %vm5487, 0.0
        %5524 = vst.msk [vmem:[#allocation3 + $0x118] sm:$0x3] %vm5490, 0.0
        %5525 = vst.msk [vmem:[#allocation3 + $0x120] sm:$0xff] %vm5487, 0.0
        %5526 = vst.msk [vmem:[#allocation3 + $0x128] sm:$0xff] %vm5487, 0.0
        %5527 = vst.msk [vmem:[#allocation3 + $0x130] sm:$0x3] %vm5490, 0.0
        %5528 = vst.msk [vmem:[#allocation3 + $0x138] sm:$0xff] %vm5487, 0.0
        %5529 = vst.msk [vmem:[#allocation3 + $0x140] sm:$0xff] %vm5487, 0.0
        %5530 = vst.msk [vmem:[#allocation3 + $0x148] sm:$0x3] %vm5490, 0.0
        %5531 = vst.msk [vmem:[#allocation3 + $0x150] sm:$0xff] %vm5487, 0.0
        %5532 = vst.msk [vmem:[#allocation3 + $0x158] sm:$0xff] %vm5487, 0.0
        %5533 = vst.msk [vmem:[#allocation3 + $0x160] sm:$0x3] %vm5490, 0.0
        %5534 = vst.msk [vmem:[#allocation3 + $0x168] sm:$0xff] %vm5487, 0.0
        %5535 = vst.msk [vmem:[#allocation3 + $0x170] sm:$0xff] %vm5487, 0.0
        %5536 = vst.msk [vmem:[#allocation3 + $0x178] sm:$0x3] %vm5490, 0.0
        %5537 = vst.msk [vmem:[#allocation3 + $0x180] sm:$0xff] %vm5487, 0.0
        %5538 = vst.msk [vmem:[#allocation3 + $0x188] sm:$0xff] %vm5487, 0.0
        %5539 = vst.msk [vmem:[#allocation3 + $0x190] sm:$0x3] %vm5490, 0.0
        %5540 = vst.msk [vmem:[#allocation3 + $0x198] sm:$0xff] %vm5487, 0.0
        %5541 = vst.msk [vmem:[#allocation3 + $0x1a0] sm:$0xff] %vm5487, 0.0
        %5542 = vst.msk [vmem:[#allocation3 + $0x1a8] sm:$0x3] %vm5490, 0.0
        %s5543 = scalar_lea.vmem [#allocation3], 24
        %5544 = vst.msk [vmem:[%s5543 + $0x1] sm:$0xff] %vm5487, %v5455
        %5545 = vst.msk [vmem:[%s5543 + $0x9] sm:$0xff] %vm5487, %v5456
        %5546 = vst.msk [vmem:[%s5543 + $0x19] sm:$0xff] %vm5487, %v5457
        %5547 = vst.msk [vmem:[%s5543 + $0x21] sm:$0xff] %vm5487, %v5458
        %5548 = vst.msk [vmem:[%s5543 + $0x31] sm:$0xff] %vm5487, %v5459
        %5549 = vst.msk [vmem:[%s5543 + $0x39] sm:$0xff] %vm5487, %v5460
        %5550 = vst.msk [vmem:[%s5543 + $0x49] sm:$0xff] %vm5487, %v5461
        %5551 = vst.msk [vmem:[%s5543 + $0x51] sm:$0xff] %vm5487, %v5462
        %5552 = vst.msk [vmem:[%s5543 + $0x61] sm:$0xff] %vm5487, %v5463
        %5553 = vst.msk [vmem:[%s5543 + $0x69] sm:$0xff] %vm5487, %v5464
        %5554 = vst.msk [vmem:[%s5543 + $0x79] sm:$0xff] %vm5487, %v5465
        %5555 = vst.msk [vmem:[%s5543 + $0x81] sm:$0xff] %vm5487, %v5466
        %5556 = vst.msk [vmem:[%s5543 + $0x91] sm:$0xff] %vm5487, %v5467
        %5557 = vst.msk [vmem:[%s5543 + $0x99] sm:$0xff] %vm5487, %v5468
        %5558 = vst.msk [vmem:[%s5543 + $0xa9] sm:$0xff] %vm5487, %v5469
        %5559 = vst.msk [vmem:[%s5543 + $0xb1] sm:$0xff] %vm5487, %v5470
        %5560 = vst.msk [vmem:[%s5543 + $0xc1] sm:$0xff] %vm5487, %v5471
        %5561 = vst.msk [vmem:[%s5543 + $0xc9] sm:$0xff] %vm5487, %v5472
        %5562 = vst.msk [vmem:[%s5543 + $0xd9] sm:$0xff] %vm5487, %v5473
        %5563 = vst.msk [vmem:[%s5543 + $0xe1] sm:$0xff] %vm5487, %v5474
        %5564 = vst.msk [vmem:[%s5543 + $0xf1] sm:$0xff] %vm5487, %v5475
        %5565 = vst.msk [vmem:[%s5543 + $0xf9] sm:$0xff] %vm5487, %v5476
        %5566 = vst.msk [vmem:[%s5543 + $0x109] sm:$0xff] %vm5487, %v5477
        %5567 = vst.msk [vmem:[%s5543 + $0x111] sm:$0xff] %vm5487, %v5478
        %5568 = vst.msk [vmem:[%s5543 + $0x121] sm:$0xff] %vm5487, %v5479
        %5569 = vst.msk [vmem:[%s5543 + $0x129] sm:$0xff] %vm5487, %v5480
        %5570 = vst.msk [vmem:[%s5543 + $0x139] sm:$0xff] %vm5487, %v5481
        %5571 = vst.msk [vmem:[%s5543 + $0x141] sm:$0xff] %vm5487, %v5482
        %5572 = vst.msk [vmem:[%s5543 + $0x151] sm:$0xff] %vm5487, %v5483
        %5573 = vst.msk [vmem:[%s5543 + $0x159] sm:$0xff] %vm5487, %v5484
        %5574 = vst.msk [vmem:[%s5543 + $0x169] sm:$0xff] %vm5487, %v5485
        %5575 = vst.msk [vmem:[%s5543 + $0x171] sm:$0xff] %vm5487, %v5486
        %v5576 = vld [vmem:[#allocation3] sm:$0xff]
        %v5577 = vld [vmem:[#allocation3 + $0x8] sm:$0xff]
        %v5578 = vld [vmem:[#allocation3 + $0x18] sm:$0xff]
        %v5579 = vld [vmem:[#allocation3 + $0x20] sm:$0xff]
        %v5580 = vld [vmem:[#allocation3 + $0x30] sm:$0xff]
        %v5581 = vld [vmem:[#allocation3 + $0x38] sm:$0xff]
        %v5582 = vld [vmem:[#allocation3 + $0x48] sm:$0xff]
        %v5583 = vld [vmem:[#allocation3 + $0x50] sm:$0xff]
        %v5584 = vld [vmem:[#allocation3 + $0x60] sm:$0xff]
        %v5585 = vld [vmem:[#allocation3 + $0x68] sm:$0xff]
        %v5586 = vld [vmem:[#allocation3 + $0x78] sm:$0xff]
        %v5587 = vld [vmem:[#allocation3 + $0x80] sm:$0xff]
        %v5588 = vld [vmem:[#allocation3 + $0x90] sm:$0xff]
        %v5589 = vld [vmem:[#allocation3 + $0x98] sm:$0xff]
        %v5590 = vld [vmem:[#allocation3 + $0xa8] sm:$0xff]
        %v5591 = vld [vmem:[#allocation3 + $0xb0] sm:$0xff]
        %v5592 = vld [vmem:[#allocation3 + $0xc0] sm:$0xff]
        %v5593 = vld [vmem:[#allocation3 + $0xc8] sm:$0xff]
        %v5594 = vld [vmem:[#allocation3 + $0xd8] sm:$0xff]
        %v5595 = vld [vmem:[#allocation3 + $0xe0] sm:$0xff]
        %v5596 = vld [vmem:[#allocation3 + $0xf0] sm:$0xff]
        %v5597 = vld [vmem:[#allocation3 + $0xf8] sm:$0xff]
        %v5598 = vld [vmem:[#allocation3 + $0x108] sm:$0xff]
        %v5599 = vld [vmem:[#allocation3 + $0x110] sm:$0xff]
        %v5600 = vld [vmem:[#allocation3 + $0x120] sm:$0xff]
        %v5601 = vld [vmem:[#allocation3 + $0x128] sm:$0xff]
        %v5602 = vld [vmem:[#allocation3 + $0x138] sm:$0xff]
        %v5603 = vld [vmem:[#allocation3 + $0x140] sm:$0xff]
        %v5604 = vld [vmem:[#allocation3 + $0x150] sm:$0xff]
        %v5605 = vld [vmem:[#allocation3 + $0x158] sm:$0xff]
        %v5606 = vld [vmem:[#allocation3 + $0x168] sm:$0xff]
        %v5607 = vld [vmem:[#allocation3 + $0x170] sm:$0xff]
        %5608 = vst.msk [vmem:[#allocation6] sm:$0xff] %vm5487, %v5576
        %5609 = vst.msk [vmem:[#allocation6 + $0x28] sm:$0xff] %vm5487, %v5577
        %5610 = vst.msk [vmem:[#allocation6 + $0x50] sm:$0xff] %vm5487, %v5578
        %5611 = vst.msk [vmem:[#allocation6 + $0x78] sm:$0xff] %vm5487, %v5579
        %5612 = vst.msk [vmem:[#allocation6 + $0xa0] sm:$0xff] %vm5487, %v5580
        %5613 = vst.msk [vmem:[#allocation6 + $0xc8] sm:$0xff] %vm5487, %v5581
        %5614 = vst.msk [vmem:[#allocation6 + $0xf0] sm:$0xff] %vm5487, %v5582
        %5615 = vst.msk [vmem:[#allocation6 + $0x118] sm:$0xff] %vm5487, %v5583
        %5616 = vst.msk [vmem:[#allocation6 + $0x140] sm:$0xff] %vm5487, %v5584
        %5617 = vst.msk [vmem:[#allocation6 + $0x168] sm:$0xff] %vm5487, %v5585
        %5618 = vst.msk [vmem:[#allocation6 + $0x190] sm:$0xff] %vm5487, %v5586
        %5619 = vst.msk [vmem:[#allocation6 + $0x1b8] sm:$0xff] %vm5487, %v5587
        %5620 = vst.msk [vmem:[#allocation6 + $0x1e0] sm:$0xff] %vm5487, %v5588
        %5621 = vst.msk [vmem:[#allocation6 + $0x208] sm:$0xff] %vm5487, %v5589
        %5622 = vst.msk [vmem:[#allocation6 + $0x230] sm:$0xff] %vm5487, %v5590
        %5623 = vst.msk [vmem:[#allocation6 + $0x258] sm:$0xff] %vm5487, %v5591
        %5624 = vst.msk [vmem:[#allocation6 + $0x280] sm:$0xff] %vm5487, %v5592
        %5625 = vst.msk [vmem:[#allocation6 + $0x2a8] sm:$0xff] %vm5487, %v5593
        %5626 = vst.msk [vmem:[#allocation6 + $0x2d0] sm:$0xff] %vm5487, %v5594
        %5627 = vst.msk [vmem:[#allocation6 + $0x2f8] sm:$0xff] %vm5487, %v5595
        %5628 = vst.msk [vmem:[#allocation6 + $0x320] sm:$0xff] %vm5487, %v5596
        %5629 = vst.msk [vmem:[#allocation6 + $0x348] sm:$0xff] %vm5487, %v5597
        %5630 = vst.msk [vmem:[#allocation6 + $0x370] sm:$0xff] %vm5487, %v5598
        %5631 = vst.msk [vmem:[#allocation6 + $0x398] sm:$0xff] %vm5487, %v5599
        %5632 = vst.msk [vmem:[#allocation6 + $0x3c0] sm:$0xff] %vm5487, %v5600
        %5633 = vst.msk [vmem:[#allocation6 + $0x3e8] sm:$0xff] %vm5487, %v5601
        %5634 = vst.msk [vmem:[#allocation6 + $0x410] sm:$0xff] %vm5487, %v5602
        %5635 = vst.msk [vmem:[#allocation6 + $0x438] sm:$0xff] %vm5487, %v5603
        %5636 = vst.msk [vmem:[#allocation6 + $0x460] sm:$0xff] %vm5487, %v5604
        %5637 = vst.msk [vmem:[#allocation6 + $0x488] sm:$0xff] %vm5487, %v5605
        %5638 = vst.msk [vmem:[#allocation6 + $0x4b0] sm:$0xff] %vm5487, %v5606
        %5639 = vst.msk [vmem:[#allocation6 + $0x4d8] sm:$0xff] %vm5487, %v5607
        %v5640 = vld [vmem:[#allocation3 + $0x1] sm:$0xff]
        %v5641 = vld [vmem:[#allocation3 + $0x9] sm:$0xff]
        %v5642 = vld [vmem:[#allocation3 + $0x19] sm:$0xff]
        %v5643 = vld [vmem:[#allocation3 + $0x21] sm:$0xff]
        %v5644 = vld [vmem:[#allocation3 + $0x31] sm:$0xff]
        %v5645 = vld [vmem:[#allocation3 + $0x39] sm:$0xff]
        %v5646 = vld [vmem:[#allocation3 + $0x49] sm:$0xff]
        %v5647 = vld [vmem:[#allocation3 + $0x51] sm:$0xff]
        %v5648 = vld [vmem:[#allocation3 + $0x61] sm:$0xff]
        %v5649 = vld [vmem:[#allocation3 + $0x69] sm:$0xff]
        %v5650 = vld [vmem:[#allocation3 + $0x79] sm:$0xff]
        %v5651 = vld [vmem:[#allocation3 + $0x81] sm:$0xff]
        %v5652 = vld [vmem:[#allocation3 + $0x91] sm:$0xff]
        %v5653 = vld [vmem:[#allocation3 + $0x99] sm:$0xff]
        %v5654 = vld [vmem:[#allocation3 + $0xa9] sm:$0xff]
        %v5655 = vld [vmem:[#allocation3 + $0xb1] sm:$0xff]
        %v5656 = vld [vmem:[#allocation3 + $0xc1] sm:$0xff]
        %v5657 = vld [vmem:[#allocation3 + $0xc9] sm:$0xff]
        %v5658 = vld [vmem:[#allocation3 + $0xd9] sm:$0xff]
        %v5659 = vld [vmem:[#allocation3 + $0xe1] sm:$0xff]
        %v5660 = vld [vmem:[#allocation3 + $0xf1] sm:$0xff]
        %v5661 = vld [vmem:[#allocation3 + $0xf9] sm:$0xff]
        %v5662 = vld [vmem:[#allocation3 + $0x109] sm:$0xff]
        %v5663 = vld [vmem:[#allocation3 + $0x111] sm:$0xff]
        %v5664 = vld [vmem:[#allocation3 + $0x121] sm:$0xff]
        %v5665 = vld [vmem:[#allocation3 + $0x129] sm:$0xff]
        %v5666 = vld [vmem:[#allocation3 + $0x139] sm:$0xff]
        %v5667 = vld [vmem:[#allocation3 + $0x141] sm:$0xff]
        %v5668 = vld [vmem:[#allocation3 + $0x151] sm:$0xff]
        %v5669 = vld [vmem:[#allocation3 + $0x159] sm:$0xff]
        %v5670 = vld [vmem:[#allocation3 + $0x169] sm:$0xff]
        %v5671 = vld [vmem:[#allocation3 + $0x171] sm:$0xff]
        %5704 = vrot.lane.b32.xlu0 %v5640, 64
        %v5705 = vpop.permute.xlu0 %5704
        %5706 = vrot.lane.b32.xlu0 %v5641, 64
        %v5707 = vpop.permute.xlu0 %5706
        %5708 = vrot.lane.b32.xlu0 %v5642, 64
        %v5709 = vpop.permute.xlu0 %5708
        %5710 = vrot.lane.b32.xlu0 %v5643, 64
        %v5711 = vpop.permute.xlu0 %5710
        %5712 = vrot.lane.b32.xlu0 %v5644, 64
        %v5713 = vpop.permute.xlu0 %5712
        %5714 = vrot.lane.b32.xlu0 %v5645, 64
        %v5715 = vpop.permute.xlu0 %5714
        %5716 = vrot.lane.b32.xlu0 %v5646, 64
        %v5717 = vpop.permute.xlu0 %5716
        %5718 = vrot.lane.b32.xlu0 %v5647, 64
        %v5719 = vpop.permute.xlu0 %5718
        %5720 = vrot.lane.b32.xlu0 %v5648, 64
        %v5721 = vpop.permute.xlu0 %5720
        %5722 = vrot.lane.b32.xlu0 %v5649, 64
        %v5723 = vpop.permute.xlu0 %5722
        %5724 = vrot.lane.b32.xlu0 %v5650, 64
        %v5725 = vpop.permute.xlu0 %5724
        %5726 = vrot.lane.b32.xlu0 %v5651, 64
        %v5727 = vpop.permute.xlu0 %5726
        %5728 = vrot.lane.b32.xlu0 %v5652, 64
        %v5729 = vpop.permute.xlu0 %5728
        %5730 = vrot.lane.b32.xlu0 %v5653, 64
        %v5731 = vpop.permute.xlu0 %5730
        %5732 = vrot.lane.b32.xlu0 %v5654, 64
        %v5733 = vpop.permute.xlu0 %5732
        %5734 = vrot.lane.b32.xlu0 %v5655, 64
        %v5735 = vpop.permute.xlu0 %5734
        %5736 = vrot.lane.b32.xlu0 %v5656, 64
        %v5737 = vpop.permute.xlu0 %5736
        %5738 = vrot.lane.b32.xlu0 %v5657, 64
        %v5739 = vpop.permute.xlu0 %5738
        %5740 = vrot.lane.b32.xlu0 %v5658, 64
        %v5741 = vpop.permute.xlu0 %5740
        %5742 = vrot.lane.b32.xlu0 %v5659, 64
        %v5743 = vpop.permute.xlu0 %5742
        %5744 = vrot.lane.b32.xlu0 %v5660, 64
        %v5745 = vpop.permute.xlu0 %5744
        %5746 = vrot.lane.b32.xlu0 %v5661, 64
        %v5747 = vpop.permute.xlu0 %5746
        %5748 = vrot.lane.b32.xlu0 %v5662, 64
        %v5749 = vpop.permute.xlu0 %5748
        %5750 = vrot.lane.b32.xlu0 %v5663, 64
        %v5751 = vpop.permute.xlu0 %5750
        %5752 = vrot.lane.b32.xlu0 %v5664, 64
        %v5753 = vpop.permute.xlu0 %5752
        %5754 = vrot.lane.b32.xlu0 %v5665, 64
        %v5755 = vpop.permute.xlu0 %5754
        %5756 = vrot.lane.b32.xlu0 %v5666, 64
        %v5757 = vpop.permute.xlu0 %5756
        %5758 = vrot.lane.b32.xlu0 %v5667, 64
        %v5759 = vpop.permute.xlu0 %5758
        %5760 = vrot.lane.b32.xlu0 %v5668, 64
        %v5761 = vpop.permute.xlu0 %5760
        %5762 = vrot.lane.b32.xlu0 %v5669, 64
        %v5763 = vpop.permute.xlu0 %5762
        %5764 = vrot.lane.b32.xlu0 %v5670, 64
        %v5765 = vpop.permute.xlu0 %5764
        %5766 = vrot.lane.b32.xlu0 %v5671, 64
        %v5767 = vpop.permute.xlu0 %5766
        %vm5800 = vcmask 1048064
        %5801 = vst.msk [vmem:[#allocation6] sm:$0xff] %vm5800, %v5705
        %5802 = vst.msk [vmem:[#allocation6 + $0x28] sm:$0xff] %vm5800, %v5707
        %5803 = vst.msk [vmem:[#allocation6 + $0x50] sm:$0xff] %vm5800, %v5709
        %5804 = vst.msk [vmem:[#allocation6 + $0x78] sm:$0xff] %vm5800, %v5711
        %5805 = vst.msk [vmem:[#allocation6 + $0xa0] sm:$0xff] %vm5800, %v5713
        %5806 = vst.msk [vmem:[#allocation6 + $0xc8] sm:$0xff] %vm5800, %v5715
        %5807 = vst.msk [vmem:[#allocation6 + $0xf0] sm:$0xff] %vm5800, %v5717
        %5808 = vst.msk [vmem:[#allocation6 + $0x118] sm:$0xff] %vm5800, %v5719
        %5809 = vst.msk [vmem:[#allocation6 + $0x140] sm:$0xff] %vm5800, %v5721
        %5810 = vst.msk [vmem:[#allocation6 + $0x168] sm:$0xff] %vm5800, %v5723
        %5811 = vst.msk [vmem:[#allocation6 + $0x190] sm:$0xff] %vm5800, %v5725
        %5812 = vst.msk [vmem:[#allocation6 + $0x1b8] sm:$0xff] %vm5800, %v5727
        %5813 = vst.msk [vmem:[#allocation6 + $0x1e0] sm:$0xff] %vm5800, %v5729
        %5814 = vst.msk [vmem:[#allocation6 + $0x208] sm:$0xff] %vm5800, %v5731
        %5815 = vst.msk [vmem:[#allocation6 + $0x230] sm:$0xff] %vm5800, %v5733
        %5816 = vst.msk [vmem:[#allocation6 + $0x258] sm:$0xff] %vm5800, %v5735
        %5817 = vst.msk [vmem:[#allocation6 + $0x280] sm:$0xff] %vm5800, %v5737
        %5818 = vst.msk [vmem:[#allocation6 + $0x2a8] sm:$0xff] %vm5800, %v5739
        %5819 = vst.msk [vmem:[#allocation6 + $0x2d0] sm:$0xff] %vm5800, %v5741
        %5820 = vst.msk [vmem:[#allocation6 + $0x2f8] sm:$0xff] %vm5800, %v5743
        %5821 = vst.msk [vmem:[#allocation6 + $0x320] sm:$0xff] %vm5800, %v5745
        %5822 = vst.msk [vmem:[#allocation6 + $0x348] sm:$0xff] %vm5800, %v5747
        %5823 = vst.msk [vmem:[#allocation6 + $0x370] sm:$0xff] %vm5800, %v5749
        %5824 = vst.msk [vmem:[#allocation6 + $0x398] sm:$0xff] %vm5800, %v5751
        %5825 = vst.msk [vmem:[#allocation6 + $0x3c0] sm:$0xff] %vm5800, %v5753
        %5826 = vst.msk [vmem:[#allocation6 + $0x3e8] sm:$0xff] %vm5800, %v5755
        %5827 = vst.msk [vmem:[#allocation6 + $0x410] sm:$0xff] %vm5800, %v5757
        %5828 = vst.msk [vmem:[#allocation6 + $0x438] sm:$0xff] %vm5800, %v5759
        %5829 = vst.msk [vmem:[#allocation6 + $0x460] sm:$0xff] %vm5800, %v5761
        %5830 = vst.msk [vmem:[#allocation6 + $0x488] sm:$0xff] %vm5800, %v5763
        %5831 = vst.msk [vmem:[#allocation6 + $0x4b0] sm:$0xff] %vm5800, %v5765
        %5832 = vst.msk [vmem:[#allocation6 + $0x4d8] sm:$0xff] %vm5800, %v5767
        %v5833 = vld [vmem:[#allocation3 + $0x2] sm:$0xff]
        %v5834 = vld [vmem:[#allocation3 + $0xa] sm:$0xff]
        %v5835 = vld [vmem:[#allocation3 + $0x1a] sm:$0xff]
        %v5836 = vld [vmem:[#allocation3 + $0x22] sm:$0xff]
        %v5837 = vld [vmem:[#allocation3 + $0x32] sm:$0xff]
        %v5838 = vld [vmem:[#allocation3 + $0x3a] sm:$0xff]
        %v5839 = vld [vmem:[#allocation3 + $0x4a] sm:$0xff]
        %v5840 = vld [vmem:[#allocation3 + $0x52] sm:$0xff]
        %v5841 = vld [vmem:[#allocation3 + $0x62] sm:$0xff]
        %v5842 = vld [vmem:[#allocation3 + $0x6a] sm:$0xff]
        %v5843 = vld [vmem:[#allocation3 + $0x7a] sm:$0xff]
        %v5844 = vld [vmem:[#allocation3 + $0x82] sm:$0xff]
        %v5845 = vld [vmem:[#allocation3 + $0x92] sm:$0xff]
        %v5846 = vld [vmem:[#allocation3 + $0x9a] sm:$0xff]
        %v5847 = vld [vmem:[#allocation3 + $0xaa] sm:$0xff]
        %v5848 = vld [vmem:[#allocation3 + $0xb2] sm:$0xff]
        %v5849 = vld [vmem:[#allocation3 + $0xc2] sm:$0xff]
        %v5850 = vld [vmem:[#allocation3 + $0xca] sm:$0xff]
        %v5851 = vld [vmem:[#allocation3 + $0xda] sm:$0xff]
        %v5852 = vld [vmem:[#allocation3 + $0xe2] sm:$0xff]
        %v5853 = vld [vmem:[#allocation3 + $0xf2] sm:$0xff]
        %v5854 = vld [vmem:[#allocation3 + $0xfa] sm:$0xff]
        %v5855 = vld [vmem:[#allocation3 + $0x10a] sm:$0xff]
        %v5856 = vld [vmem:[#allocation3 + $0x112] sm:$0xff]
        %v5857 = vld [vmem:[#allocation3 + $0x122] sm:$0xff]
        %v5858 = vld [vmem:[#allocation3 + $0x12a] sm:$0xff]
        %v5859 = vld [vmem:[#allocation3 + $0x13a] sm:$0xff]
        %v5860 = vld [vmem:[#allocation3 + $0x142] sm:$0xff]
        %v5861 = vld [vmem:[#allocation3 + $0x152] sm:$0xff]
        %v5862 = vld [vmem:[#allocation3 + $0x15a] sm:$0xff]
        %v5863 = vld [vmem:[#allocation3 + $0x16a] sm:$0xff]
        %v5864 = vld [vmem:[#allocation3 + $0x172] sm:$0xff]
        %5865 = vst.msk [vmem:[#allocation6 + $0x8] sm:$0xff] %vm5487, %v5833
        %5866 = vst.msk [vmem:[#allocation6 + $0x30] sm:$0xff] %vm5487, %v5834
        %5867 = vst.msk [vmem:[#allocation6 + $0x58] sm:$0xff] %vm5487, %v5835
        %5868 = vst.msk [vmem:[#allocation6 + $0x80] sm:$0xff] %vm5487, %v5836
        %5869 = vst.msk [vmem:[#allocation6 + $0xa8] sm:$0xff] %vm5487, %v5837
        %5870 = vst.msk [vmem:[#allocation6 + $0xd0] sm:$0xff] %vm5487, %v5838
        %5871 = vst.msk [vmem:[#allocation6 + $0xf8] sm:$0xff] %vm5487, %v5839
        %5872 = vst.msk [vmem:[#allocation6 + $0x120] sm:$0xff] %vm5487, %v5840
        %5873 = vst.msk [vmem:[#allocation6 + $0x148] sm:$0xff] %vm5487, %v5841
        %5874 = vst.msk [vmem:[#allocation6 + $0x170] sm:$0xff] %vm5487, %v5842
        %5875 = vst.msk [vmem:[#allocation6 + $0x198] sm:$0xff] %vm5487, %v5843
        %5876 = vst.msk [vmem:[#allocation6 + $0x1c0] sm:$0xff] %vm5487, %v5844
        %5877 = vst.msk [vmem:[#allocation6 + $0x1e8] sm:$0xff] %vm5487, %v5845
        %5878 = vst.msk [vmem:[#allocation6 + $0x210] sm:$0xff] %vm5487, %v5846
        %5879 = vst.msk [vmem:[#allocation6 + $0x238] sm:$0xff] %vm5487, %v5847
        %5880 = vst.msk [vmem:[#allocation6 + $0x260] sm:$0xff] %vm5487, %v5848
        %5881 = vst.msk [vmem:[#allocation6 + $0x288] sm:$0xff] %vm5487, %v5849
        %5882 = vst.msk [vmem:[#allocation6 + $0x2b0] sm:$0xff] %vm5487, %v5850
        %5883 = vst.msk [vmem:[#allocation6 + $0x2d8] sm:$0xff] %vm5487, %v5851
        %5884 = vst.msk [vmem:[#allocation6 + $0x300] sm:$0xff] %vm5487, %v5852
        %5885 = vst.msk [vmem:[#allocation6 + $0x328] sm:$0xff] %vm5487, %v5853
        %5886 = vst.msk [vmem:[#allocation6 + $0x350] sm:$0xff] %vm5487, %v5854
        %5887 = vst.msk [vmem:[#allocation6 + $0x378] sm:$0xff] %vm5487, %v5855
        %5888 = vst.msk [vmem:[#allocation6 + $0x3a0] sm:$0xff] %vm5487, %v5856
        %5889 = vst.msk [vmem:[#allocation6 + $0x3c8] sm:$0xff] %vm5487, %v5857
        %5890 = vst.msk [vmem:[#allocation6 + $0x3f0] sm:$0xff] %vm5487, %v5858
        %5891 = vst.msk [vmem:[#allocation6 + $0x418] sm:$0xff] %vm5487, %v5859
        %5892 = vst.msk [vmem:[#allocation6 + $0x440] sm:$0xff] %vm5487, %v5860
        %5893 = vst.msk [vmem:[#allocation6 + $0x468] sm:$0xff] %vm5487, %v5861
        %5894 = vst.msk [vmem:[#allocation6 + $0x490] sm:$0xff] %vm5487, %v5862
        %5895 = vst.msk [vmem:[#allocation6 + $0x4b8] sm:$0xff] %vm5487, %v5863
        %5896 = vst.msk [vmem:[#allocation6 + $0x4e0] sm:$0xff] %vm5487, %v5864
        %v5897 = vld [vmem:[%s5543] sm:$0xff]
        %v5898 = vld [vmem:[%s5543 + $0x8] sm:$0xff]
        %v5899 = vld [vmem:[%s5543 + $0x18] sm:$0xff]
        %v5900 = vld [vmem:[%s5543 + $0x20] sm:$0xff]
        %v5901 = vld [vmem:[%s5543 + $0x30] sm:$0xff]
        %v5902 = vld [vmem:[%s5543 + $0x38] sm:$0xff]
        %v5903 = vld [vmem:[%s5543 + $0x48] sm:$0xff]
        %v5904 = vld [vmem:[%s5543 + $0x50] sm:$0xff]
        %v5905 = vld [vmem:[%s5543 + $0x60] sm:$0xff]
        %v5906 = vld [vmem:[%s5543 + $0x68] sm:$0xff]
        %v5907 = vld [vmem:[%s5543 + $0x78] sm:$0xff]
        %v5908 = vld [vmem:[%s5543 + $0x80] sm:$0xff]
        %v5909 = vld [vmem:[%s5543 + $0x90] sm:$0xff]
        %v5910 = vld [vmem:[%s5543 + $0x98] sm:$0xff]
        %v5911 = vld [vmem:[%s5543 + $0xa8] sm:$0xff]
        %v5912 = vld [vmem:[%s5543 + $0xb0] sm:$0xff]
        %v5913 = vld [vmem:[%s5543 + $0xc0] sm:$0xff]
        %v5914 = vld [vmem:[%s5543 + $0xc8] sm:$0xff]
        %v5915 = vld [vmem:[%s5543 + $0xd8] sm:$0xff]
        %v5916 = vld [vmem:[%s5543 + $0xe0] sm:$0xff]
        %v5917 = vld [vmem:[%s5543 + $0xf0] sm:$0xff]
        %v5918 = vld [vmem:[%s5543 + $0xf8] sm:$0xff]
        %v5919 = vld [vmem:[%s5543 + $0x108] sm:$0xff]
        %v5920 = vld [vmem:[%s5543 + $0x110] sm:$0xff]
        %v5921 = vld [vmem:[%s5543 + $0x120] sm:$0xff]
        %v5922 = vld [vmem:[%s5543 + $0x128] sm:$0xff]
        %v5923 = vld [vmem:[%s5543 + $0x138] sm:$0xff]
        %v5924 = vld [vmem:[%s5543 + $0x140] sm:$0xff]
        %v5925 = vld [vmem:[%s5543 + $0x150] sm:$0xff]
        %v5926 = vld [vmem:[%s5543 + $0x158] sm:$0xff]
        %v5927 = vld [vmem:[%s5543 + $0x168] sm:$0xff]
        %v5928 = vld [vmem:[%s5543 + $0x170] sm:$0xff]
        %5961 = vrot.lane.b32.xlu0 %v5897, 64
        %v5962 = vpop.permute.xlu0 %5961
        %5963 = vrot.lane.b32.xlu0 %v5898, 64
        %v5964 = vpop.permute.xlu0 %5963
        %5965 = vrot.lane.b32.xlu0 %v5899, 64
        %v5966 = vpop.permute.xlu0 %5965
        %5967 = vrot.lane.b32.xlu0 %v5900, 64
        %v5968 = vpop.permute.xlu0 %5967
        %5969 = vrot.lane.b32.xlu0 %v5901, 64
        %v5970 = vpop.permute.xlu0 %5969
        %5971 = vrot.lane.b32.xlu0 %v5902, 64
        %v5972 = vpop.permute.xlu0 %5971
        %5973 = vrot.lane.b32.xlu0 %v5903, 64
        %v5974 = vpop.permute.xlu0 %5973
        %5975 = vrot.lane.b32.xlu0 %v5904, 64
        %v5976 = vpop.permute.xlu0 %5975
        %5977 = vrot.lane.b32.xlu0 %v5905, 64
        %v5978 = vpop.permute.xlu0 %5977
        %5979 = vrot.lane.b32.xlu0 %v5906, 64
        %v5980 = vpop.permute.xlu0 %5979
        %5981 = vrot.lane.b32.xlu0 %v5907, 64
        %v5982 = vpop.permute.xlu0 %5981
        %5983 = vrot.lane.b32.xlu0 %v5908, 64
        %v5984 = vpop.permute.xlu0 %5983
        %5985 = vrot.lane.b32.xlu0 %v5909, 64
        %v5986 = vpop.permute.xlu0 %5985
        %5987 = vrot.lane.b32.xlu0 %v5910, 64
        %v5988 = vpop.permute.xlu0 %5987
        %5989 = vrot.lane.b32.xlu0 %v5911, 64
        %v5990 = vpop.permute.xlu0 %5989
        %5991 = vrot.lane.b32.xlu0 %v5912, 64
        %v5992 = vpop.permute.xlu0 %5991
        %5993 = vrot.lane.b32.xlu0 %v5913, 64
        %v5994 = vpop.permute.xlu0 %5993
        %5995 = vrot.lane.b32.xlu0 %v5914, 64
        %v5996 = vpop.permute.xlu0 %5995
        %5997 = vrot.lane.b32.xlu0 %v5915, 64
        %v5998 = vpop.permute.xlu0 %5997
        %5999 = vrot.lane.b32.xlu0 %v5916, 64
        %v6000 = vpop.permute.xlu0 %5999
        %6001 = vrot.lane.b32.xlu0 %v5917, 64
        %v6002 = vpop.permute.xlu0 %6001
        %6003 = vrot.lane.b32.xlu0 %v5918, 64
        %v6004 = vpop.permute.xlu0 %6003
        %6005 = vrot.lane.b32.xlu0 %v5919, 64
        %v6006 = vpop.permute.xlu0 %6005
        %6007 = vrot.lane.b32.xlu0 %v5920, 64
        %v6008 = vpop.permute.xlu0 %6007
        %6009 = vrot.lane.b32.xlu0 %v5921, 64
        %v6010 = vpop.permute.xlu0 %6009
        %6011 = vrot.lane.b32.xlu0 %v5922, 64
        %v6012 = vpop.permute.xlu0 %6011
        %6013 = vrot.lane.b32.xlu0 %v5923, 64
        %v6014 = vpop.permute.xlu0 %6013
        %6015 = vrot.lane.b32.xlu0 %v5924, 64
        %v6016 = vpop.permute.xlu0 %6015
        %6017 = vrot.lane.b32.xlu0 %v5925, 64
        %v6018 = vpop.permute.xlu0 %6017
        %6019 = vrot.lane.b32.xlu0 %v5926, 64
        %v6020 = vpop.permute.xlu0 %6019
        %6021 = vrot.lane.b32.xlu0 %v5927, 64
        %v6022 = vpop.permute.xlu0 %6021
        %6023 = vrot.lane.b32.xlu0 %v5928, 64
        %v6024 = vpop.permute.xlu0 %6023
        %6057 = vst.msk [vmem:[#allocation6 + $0x8] sm:$0xff] %vm5800, %v5962
        %6058 = vst.msk [vmem:[#allocation6 + $0x30] sm:$0xff] %vm5800, %v5964
        %6059 = vst.msk [vmem:[#allocation6 + $0x58] sm:$0xff] %vm5800, %v5966
        %6060 = vst.msk [vmem:[#allocation6 + $0x80] sm:$0xff] %vm5800, %v5968
        %6061 = vst.msk [vmem:[#allocation6 + $0xa8] sm:$0xff] %vm5800, %v5970
        %6062 = vst.msk [vmem:[#allocation6 + $0xd0] sm:$0xff] %vm5800, %v5972
        %6063 = vst.msk [vmem:[#allocation6 + $0xf8] sm:$0xff] %vm5800, %v5974
        %6064 = vst.msk [vmem:[#allocation6 + $0x120] sm:$0xff] %vm5800, %v5976
        %6065 = vst.msk [vmem:[#allocation6 + $0x148] sm:$0xff] %vm5800, %v5978
        %6066 = vst.msk [vmem:[#allocation6 + $0x170] sm:$0xff] %vm5800, %v5980
        %6067 = vst.msk [vmem:[#allocation6 + $0x198] sm:$0xff] %vm5800, %v5982
        %6068 = vst.msk [vmem:[#allocation6 + $0x1c0] sm:$0xff] %vm5800, %v5984
        %6069 = vst.msk [vmem:[#allocation6 + $0x1e8] sm:$0xff] %vm5800, %v5986
        %6070 = vst.msk [vmem:[#allocation6 + $0x210] sm:$0xff] %vm5800, %v5988
        %6071 = vst.msk [vmem:[#allocation6 + $0x238] sm:$0xff] %vm5800, %v5990
        %6072 = vst.msk [vmem:[#allocation6 + $0x260] sm:$0xff] %vm5800, %v5992
        %6073 = vst.msk [vmem:[#allocation6 + $0x288] sm:$0xff] %vm5800, %v5994
        %6074 = vst.msk [vmem:[#allocation6 + $0x2b0] sm:$0xff] %vm5800, %v5996
        %6075 = vst.msk [vmem:[#allocation6 + $0x2d8] sm:$0xff] %vm5800, %v5998
        %6076 = vst.msk [vmem:[#allocation6 + $0x300] sm:$0xff] %vm5800, %v6000
        %6077 = vst.msk [vmem:[#allocation6 + $0x328] sm:$0xff] %vm5800, %v6002
        %6078 = vst.msk [vmem:[#allocation6 + $0x350] sm:$0xff] %vm5800, %v6004
        %6079 = vst.msk [vmem:[#allocation6 + $0x378] sm:$0xff] %vm5800, %v6006
        %6080 = vst.msk [vmem:[#allocation6 + $0x3a0] sm:$0xff] %vm5800, %v6008
        %6081 = vst.msk [vmem:[#allocation6 + $0x3c8] sm:$0xff] %vm5800, %v6010
        %6082 = vst.msk [vmem:[#allocation6 + $0x3f0] sm:$0xff] %vm5800, %v6012
        %6083 = vst.msk [vmem:[#allocation6 + $0x418] sm:$0xff] %vm5800, %v6014
        %6084 = vst.msk [vmem:[#allocation6 + $0x440] sm:$0xff] %vm5800, %v6016
        %6085 = vst.msk [vmem:[#allocation6 + $0x468] sm:$0xff] %vm5800, %v6018
        %6086 = vst.msk [vmem:[#allocation6 + $0x490] sm:$0xff] %vm5800, %v6020
        %6087 = vst.msk [vmem:[#allocation6 + $0x4b8] sm:$0xff] %vm5800, %v6022
        %6088 = vst.msk [vmem:[#allocation6 + $0x4e0] sm:$0xff] %vm5800, %v6024
        %v6089 = vld [vmem:[%s5543 + $0x1] sm:$0xff]
        %v6090 = vld [vmem:[%s5543 + $0x9] sm:$0xff]
        %v6091 = vld [vmem:[%s5543 + $0x19] sm:$0xff]
        %v6092 = vld [vmem:[%s5543 + $0x21] sm:$0xff]
        %v6093 = vld [vmem:[%s5543 + $0x31] sm:$0xff]
        %v6094 = vld [vmem:[%s5543 + $0x39] sm:$0xff]
        %v6095 = vld [vmem:[%s5543 + $0x49] sm:$0xff]
        %v6096 = vld [vmem:[%s5543 + $0x51] sm:$0xff]
        %v6097 = vld [vmem:[%s5543 + $0x61] sm:$0xff]
        %v6098 = vld [vmem:[%s5543 + $0x69] sm:$0xff]
        %v6099 = vld [vmem:[%s5543 + $0x79] sm:$0xff]
        %v6100 = vld [vmem:[%s5543 + $0x81] sm:$0xff]
        %v6101 = vld [vmem:[%s5543 + $0x91] sm:$0xff]
        %v6102 = vld [vmem:[%s5543 + $0x99] sm:$0xff]
        %v6103 = vld [vmem:[%s5543 + $0xa9] sm:$0xff]
        %v6104 = vld [vmem:[%s5543 + $0xb1] sm:$0xff]
        %v6105 = vld [vmem:[%s5543 + $0xc1] sm:$0xff]
        %v6106 = vld [vmem:[%s5543 + $0xc9] sm:$0xff]
        %v6107 = vld [vmem:[%s5543 + $0xd9] sm:$0xff]
        %v6108 = vld [vmem:[%s5543 + $0xe1] sm:$0xff]
        %v6109 = vld [vmem:[%s5543 + $0xf1] sm:$0xff]
        %v6110 = vld [vmem:[%s5543 + $0xf9] sm:$0xff]
        %v6111 = vld [vmem:[%s5543 + $0x109] sm:$0xff]
        %v6112 = vld [vmem:[%s5543 + $0x111] sm:$0xff]
        %v6113 = vld [vmem:[%s5543 + $0x121] sm:$0xff]
        %v6114 = vld [vmem:[%s5543 + $0x129] sm:$0xff]
        %v6115 = vld [vmem:[%s5543 + $0x139] sm:$0xff]
        %v6116 = vld [vmem:[%s5543 + $0x141] sm:$0xff]
        %v6117 = vld [vmem:[%s5543 + $0x151] sm:$0xff]
        %v6118 = vld [vmem:[%s5543 + $0x159] sm:$0xff]
        %v6119 = vld [vmem:[%s5543 + $0x169] sm:$0xff]
        %v6120 = vld [vmem:[%s5543 + $0x171] sm:$0xff]
        %6121 = vst.msk [vmem:[#allocation6 + $0x10] sm:$0xff] %vm5487, %v6089
        %6122 = vst.msk [vmem:[#allocation6 + $0x38] sm:$0xff] %vm5487, %v6090
        %6123 = vst.msk [vmem:[#allocation6 + $0x60] sm:$0xff] %vm5487, %v6091
        %6124 = vst.msk [vmem:[#allocation6 + $0x88] sm:$0xff] %vm5487, %v6092
        %6125 = vst.msk [vmem:[#allocation6 + $0xb0] sm:$0xff] %vm5487, %v6093
        %6126 = vst.msk [vmem:[#allocation6 + $0xd8] sm:$0xff] %vm5487, %v6094
        %6127 = vst.msk [vmem:[#allocation6 + $0x100] sm:$0xff] %vm5487, %v6095
        %6128 = vst.msk [vmem:[#allocation6 + $0x128] sm:$0xff] %vm5487, %v6096
        %6129 = vst.msk [vmem:[#allocation6 + $0x150] sm:$0xff] %vm5487, %v6097
        %6130 = vst.msk [vmem:[#allocation6 + $0x178] sm:$0xff] %vm5487, %v6098
        %6131 = vst.msk [vmem:[#allocation6 + $0x1a0] sm:$0xff] %vm5487, %v6099
        %6132 = vst.msk [vmem:[#allocation6 + $0x1c8] sm:$0xff] %vm5487, %v6100
        %6133 = vst.msk [vmem:[#allocation6 + $0x1f0] sm:$0xff] %vm5487, %v6101
        %6134 = vst.msk [vmem:[#allocation6 + $0x218] sm:$0xff] %vm5487, %v6102
        %6135 = vst.msk [vmem:[#allocation6 + $0x240] sm:$0xff] %vm5487, %v6103
        %6136 = vst.msk [vmem:[#allocation6 + $0x268] sm:$0xff] %vm5487, %v6104
        %6137 = vst.msk [vmem:[#allocation6 + $0x290] sm:$0xff] %vm5487, %v6105
        %6138 = vst.msk [vmem:[#allocation6 + $0x2b8] sm:$0xff] %vm5487, %v6106
        %6139 = vst.msk [vmem:[#allocation6 + $0x2e0] sm:$0xff] %vm5487, %v6107
        %6140 = vst.msk [vmem:[#allocation6 + $0x308] sm:$0xff] %vm5487, %v6108
        %6141 = vst.msk [vmem:[#allocation6 + $0x330] sm:$0xff] %vm5487, %v6109
        %6142 = vst.msk [vmem:[#allocation6 + $0x358] sm:$0xff] %vm5487, %v6110
        %6143 = vst.msk [vmem:[#allocation6 + $0x380] sm:$0xff] %vm5487, %v6111
        %6144 = vst.msk [vmem:[#allocation6 + $0x3a8] sm:$0xff] %vm5487, %v6112
        %6145 = vst.msk [vmem:[#allocation6 + $0x3d0] sm:$0xff] %vm5487, %v6113
        %6146 = vst.msk [vmem:[#allocation6 + $0x3f8] sm:$0xff] %vm5487, %v6114
        %6147 = vst.msk [vmem:[#allocation6 + $0x420] sm:$0xff] %vm5487, %v6115
        %6148 = vst.msk [vmem:[#allocation6 + $0x448] sm:$0xff] %vm5487, %v6116
        %6149 = vst.msk [vmem:[#allocation6 + $0x470] sm:$0xff] %vm5487, %v6117
        %6150 = vst.msk [vmem:[#allocation6 + $0x498] sm:$0xff] %vm5487, %v6118
        %6151 = vst.msk [vmem:[#allocation6 + $0x4c0] sm:$0xff] %vm5487, %v6119
        %6152 = vst.msk [vmem:[#allocation6 + $0x4e8] sm:$0xff] %vm5487, %v6120
        %v6153 = vld [vmem:[%s5543 + $0x2] sm:$0xff]
        %v6154 = vld [vmem:[%s5543 + $0xa] sm:$0xff]
        %v6155 = vld [vmem:[%s5543 + $0x1a] sm:$0xff]
        %v6156 = vld [vmem:[%s5543 + $0x22] sm:$0xff]
        %v6157 = vld [vmem:[%s5543 + $0x32] sm:$0xff]
        %v6158 = vld [vmem:[%s5543 + $0x3a] sm:$0xff]
        %v6159 = vld [vmem:[%s5543 + $0x4a] sm:$0xff]
        %v6160 = vld [vmem:[%s5543 + $0x52] sm:$0xff]
        %v6161 = vld [vmem:[%s5543 + $0x62] sm:$0xff]
        %v6162 = vld [vmem:[%s5543 + $0x6a] sm:$0xff]
        %v6163 = vld [vmem:[%s5543 + $0x7a] sm:$0xff]
        %v6164 = vld [vmem:[%s5543 + $0x82] sm:$0xff]
        %v6165 = vld [vmem:[%s5543 + $0x92] sm:$0xff]
        %v6166 = vld [vmem:[%s5543 + $0x9a] sm:$0xff]
        %v6167 = vld [vmem:[%s5543 + $0xaa] sm:$0xff]
        %v6168 = vld [vmem:[%s5543 + $0xb2] sm:$0xff]
        %v6169 = vld [vmem:[%s5543 + $0xc2] sm:$0xff]
        %v6170 = vld [vmem:[%s5543 + $0xca] sm:$0xff]
        %v6171 = vld [vmem:[%s5543 + $0xda] sm:$0xff]
        %v6172 = vld [vmem:[%s5543 + $0xe2] sm:$0xff]
        %v6173 = vld [vmem:[%s5543 + $0xf2] sm:$0xff]
        %v6174 = vld [vmem:[%s5543 + $0xfa] sm:$0xff]
        %v6175 = vld [vmem:[%s5543 + $0x10a] sm:$0xff]
        %v6176 = vld [vmem:[%s5543 + $0x112] sm:$0xff]
        %v6177 = vld [vmem:[%s5543 + $0x122] sm:$0xff]
        %v6178 = vld [vmem:[%s5543 + $0x12a] sm:$0xff]
        %v6179 = vld [vmem:[%s5543 + $0x13a] sm:$0xff]
        %v6180 = vld [vmem:[%s5543 + $0x142] sm:$0xff]
        %v6181 = vld [vmem:[%s5543 + $0x152] sm:$0xff]
        %v6182 = vld [vmem:[%s5543 + $0x15a] sm:$0xff]
        %v6183 = vld [vmem:[%s5543 + $0x16a] sm:$0xff]
        %v6184 = vld [vmem:[%s5543 + $0x172] sm:$0xff]
        %6217 = vrot.lane.b32.xlu0 %v6153, 64
        %v6218 = vpop.permute.xlu0 %6217
        %6219 = vrot.lane.b32.xlu0 %v6154, 64
        %v6220 = vpop.permute.xlu0 %6219
        %6221 = vrot.lane.b32.xlu0 %v6155, 64
        %v6222 = vpop.permute.xlu0 %6221
        %6223 = vrot.lane.b32.xlu0 %v6156, 64
        %v6224 = vpop.permute.xlu0 %6223
        %6225 = vrot.lane.b32.xlu0 %v6157, 64
        %v6226 = vpop.permute.xlu0 %6225
        %6227 = vrot.lane.b32.xlu0 %v6158, 64
        %v6228 = vpop.permute.xlu0 %6227
        %6229 = vrot.lane.b32.xlu0 %v6159, 64
        %v6230 = vpop.permute.xlu0 %6229
        %6231 = vrot.lane.b32.xlu0 %v6160, 64
        %v6232 = vpop.permute.xlu0 %6231
        %6233 = vrot.lane.b32.xlu0 %v6161, 64
        %v6234 = vpop.permute.xlu0 %6233
        %6235 = vrot.lane.b32.xlu0 %v6162, 64
        %v6236 = vpop.permute.xlu0 %6235
        %6237 = vrot.lane.b32.xlu0 %v6163, 64
        %v6238 = vpop.permute.xlu0 %6237
        %6239 = vrot.lane.b32.xlu0 %v6164, 64
        %v6240 = vpop.permute.xlu0 %6239
        %6241 = vrot.lane.b32.xlu0 %v6165, 64
        %v6242 = vpop.permute.xlu0 %6241
        %6243 = vrot.lane.b32.xlu0 %v6166, 64
        %v6244 = vpop.permute.xlu0 %6243
        %6245 = vrot.lane.b32.xlu0 %v6167, 64
        %v6246 = vpop.permute.xlu0 %6245
        %6247 = vrot.lane.b32.xlu0 %v6168, 64
        %v6248 = vpop.permute.xlu0 %6247
        %6249 = vrot.lane.b32.xlu0 %v6169, 64
        %v6250 = vpop.permute.xlu0 %6249
        %6251 = vrot.lane.b32.xlu0 %v6170, 64
        %v6252 = vpop.permute.xlu0 %6251
        %6253 = vrot.lane.b32.xlu0 %v6171, 64
        %v6254 = vpop.permute.xlu0 %6253
        %6255 = vrot.lane.b32.xlu0 %v6172, 64
        %v6256 = vpop.permute.xlu0 %6255
        %6257 = vrot.lane.b32.xlu0 %v6173, 64
        %v6258 = vpop.permute.xlu0 %6257
        %6259 = vrot.lane.b32.xlu0 %v6174, 64
        %v6260 = vpop.permute.xlu0 %6259
        %6261 = vrot.lane.b32.xlu0 %v6175, 64
        %v6262 = vpop.permute.xlu0 %6261
        %6263 = vrot.lane.b32.xlu0 %v6176, 64
        %v6264 = vpop.permute.xlu0 %6263
        %6265 = vrot.lane.b32.xlu0 %v6177, 64
        %v6266 = vpop.permute.xlu0 %6265
        %6267 = vrot.lane.b32.xlu0 %v6178, 64
        %v6268 = vpop.permute.xlu0 %6267
        %6269 = vrot.lane.b32.xlu0 %v6179, 64
        %v6270 = vpop.permute.xlu0 %6269
        %6271 = vrot.lane.b32.xlu0 %v6180, 64
        %v6272 = vpop.permute.xlu0 %6271
        %6273 = vrot.lane.b32.xlu0 %v6181, 64
        %v6274 = vpop.permute.xlu0 %6273
        %6275 = vrot.lane.b32.xlu0 %v6182, 64
        %v6276 = vpop.permute.xlu0 %6275
        %6277 = vrot.lane.b32.xlu0 %v6183, 64
        %v6278 = vpop.permute.xlu0 %6277
        %6279 = vrot.lane.b32.xlu0 %v6184, 64
        %v6280 = vpop.permute.xlu0 %6279
        %6313 = vst.msk [vmem:[#allocation6 + $0x10] sm:$0xff] %vm5800, %v6218
        %6314 = vst.msk [vmem:[#allocation6 + $0x38] sm:$0xff] %vm5800, %v6220
        %6315 = vst.msk [vmem:[#allocation6 + $0x60] sm:$0xff] %vm5800, %v6222
        %6316 = vst.msk [vmem:[#allocation6 + $0x88] sm:$0xff] %vm5800, %v6224
        %6317 = vst.msk [vmem:[#allocation6 + $0xb0] sm:$0xff] %vm5800, %v6226
        %6318 = vst.msk [vmem:[#allocation6 + $0xd8] sm:$0xff] %vm5800, %v6228
        %6319 = vst.msk [vmem:[#allocation6 + $0x100] sm:$0xff] %vm5800, %v6230
        %6320 = vst.msk [vmem:[#allocation6 + $0x128] sm:$0xff] %vm5800, %v6232
        %6321 = vst.msk [vmem:[#allocation6 + $0x150] sm:$0xff] %vm5800, %v6234
        %6322 = vst.msk [vmem:[#allocation6 + $0x178] sm:$0xff] %vm5800, %v6236
        %6323 = vst.msk [vmem:[#allocation6 + $0x1a0] sm:$0xff] %vm5800, %v6238
        %6324 = vst.msk [vmem:[#allocation6 + $0x1c8] sm:$0xff] %vm5800, %v6240
        %6325 = vst.msk [vmem:[#allocation6 + $0x1f0] sm:$0xff] %vm5800, %v6242
        %6326 = vst.msk [vmem:[#allocation6 + $0x218] sm:$0xff] %vm5800, %v6244
        %6327 = vst.msk [vmem:[#allocation6 + $0x240] sm:$0xff] %vm5800, %v6246
        %6328 = vst.msk [vmem:[#allocation6 + $0x268] sm:$0xff] %vm5800, %v6248
        %6329 = vst.msk [vmem:[#allocation6 + $0x290] sm:$0xff] %vm5800, %v6250
        %6330 = vst.msk [vmem:[#allocation6 + $0x2b8] sm:$0xff] %vm5800, %v6252
        %6331 = vst.msk [vmem:[#allocation6 + $0x2e0] sm:$0xff] %vm5800, %v6254
        %6332 = vst.msk [vmem:[#allocation6 + $0x308] sm:$0xff] %vm5800, %v6256
        %6333 = vst.msk [vmem:[#allocation6 + $0x330] sm:$0xff] %vm5800, %v6258
        %6334 = vst.msk [vmem:[#allocation6 + $0x358] sm:$0xff] %vm5800, %v6260
        %6335 = vst.msk [vmem:[#allocation6 + $0x380] sm:$0xff] %vm5800, %v6262
        %6336 = vst.msk [vmem:[#allocation6 + $0x3a8] sm:$0xff] %vm5800, %v6264
        %6337 = vst.msk [vmem:[#allocation6 + $0x3d0] sm:$0xff] %vm5800, %v6266
        %6338 = vst.msk [vmem:[#allocation6 + $0x3f8] sm:$0xff] %vm5800, %v6268
        %6339 = vst.msk [vmem:[#allocation6 + $0x420] sm:$0xff] %vm5800, %v6270
        %6340 = vst.msk [vmem:[#allocation6 + $0x448] sm:$0xff] %vm5800, %v6272
        %6341 = vst.msk [vmem:[#allocation6 + $0x470] sm:$0xff] %vm5800, %v6274
        %6342 = vst.msk [vmem:[#allocation6 + $0x498] sm:$0xff] %vm5800, %v6276
        %6343 = vst.msk [vmem:[#allocation6 + $0x4c0] sm:$0xff] %vm5800, %v6278
        %6344 = vst.msk [vmem:[#allocation6 + $0x4e8] sm:$0xff] %vm5800, %v6280
        %s6345 = scalar_lea.vmem [#allocation3], 48
        %v6346 = vld [vmem:[%s6345] sm:$0xff]
        %v6347 = vld [vmem:[%s6345 + $0x8] sm:$0xff]
        %v6348 = vld [vmem:[%s6345 + $0x18] sm:$0xff]
        %v6349 = vld [vmem:[%s6345 + $0x20] sm:$0xff]
        %v6350 = vld [vmem:[%s6345 + $0x30] sm:$0xff]
        %v6351 = vld [vmem:[%s6345 + $0x38] sm:$0xff]
        %v6352 = vld [vmem:[%s6345 + $0x48] sm:$0xff]
        %v6353 = vld [vmem:[%s6345 + $0x50] sm:$0xff]
        %v6354 = vld [vmem:[%s6345 + $0x60] sm:$0xff]
        %v6355 = vld [vmem:[%s6345 + $0x68] sm:$0xff]
        %v6356 = vld [vmem:[%s6345 + $0x78] sm:$0xff]
        %v6357 = vld [vmem:[%s6345 + $0x80] sm:$0xff]
        %v6358 = vld [vmem:[%s6345 + $0x90] sm:$0xff]
        %v6359 = vld [vmem:[%s6345 + $0x98] sm:$0xff]
        %v6360 = vld [vmem:[%s6345 + $0xa8] sm:$0xff]
        %v6361 = vld [vmem:[%s6345 + $0xb0] sm:$0xff]
        %v6362 = vld [vmem:[%s6345 + $0xc0] sm:$0xff]
        %v6363 = vld [vmem:[%s6345 + $0xc8] sm:$0xff]
        %v6364 = vld [vmem:[%s6345 + $0xd8] sm:$0xff]
        %v6365 = vld [vmem:[%s6345 + $0xe0] sm:$0xff]
        %v6366 = vld [vmem:[%s6345 + $0xf0] sm:$0xff]
        %v6367 = vld [vmem:[%s6345 + $0xf8] sm:$0xff]
        %v6368 = vld [vmem:[%s6345 + $0x108] sm:$0xff]
        %v6369 = vld [vmem:[%s6345 + $0x110] sm:$0xff]
        %v6370 = vld [vmem:[%s6345 + $0x120] sm:$0xff]
        %v6371 = vld [vmem:[%s6345 + $0x128] sm:$0xff]
        %v6372 = vld [vmem:[%s6345 + $0x138] sm:$0xff]
        %v6373 = vld [vmem:[%s6345 + $0x140] sm:$0xff]
        %v6374 = vld [vmem:[%s6345 + $0x150] sm:$0xff]
        %v6375 = vld [vmem:[%s6345 + $0x158] sm:$0xff]
        %v6376 = vld [vmem:[%s6345 + $0x168] sm:$0xff]
        %v6377 = vld [vmem:[%s6345 + $0x170] sm:$0xff]
        %6378 = vst.msk [vmem:[#allocation6 + $0x18] sm:$0xff] %vm5487, %v6346
        %6379 = vst.msk [vmem:[#allocation6 + $0x40] sm:$0xff] %vm5487, %v6347
        %6380 = vst.msk [vmem:[#allocation6 + $0x68] sm:$0xff] %vm5487, %v6348
        %6381 = vst.msk [vmem:[#allocation6 + $0x90] sm:$0xff] %vm5487, %v6349
        %6382 = vst.msk [vmem:[#allocation6 + $0xb8] sm:$0xff] %vm5487, %v6350
        %6383 = vst.msk [vmem:[#allocation6 + $0xe0] sm:$0xff] %vm5487, %v6351
        %6384 = vst.msk [vmem:[#allocation6 + $0x108] sm:$0xff] %vm5487, %v6352
        %6385 = vst.msk [vmem:[#allocation6 + $0x130] sm:$0xff] %vm5487, %v6353
        %6386 = vst.msk [vmem:[#allocation6 + $0x158] sm:$0xff] %vm5487, %v6354
        %6387 = vst.msk [vmem:[#allocation6 + $0x180] sm:$0xff] %vm5487, %v6355
        %6388 = vst.msk [vmem:[#allocation6 + $0x1a8] sm:$0xff] %vm5487, %v6356
        %6389 = vst.msk [vmem:[#allocation6 + $0x1d0] sm:$0xff] %vm5487, %v6357
        %6390 = vst.msk [vmem:[#allocation6 + $0x1f8] sm:$0xff] %vm5487, %v6358
        %6391 = vst.msk [vmem:[#allocation6 + $0x220] sm:$0xff] %vm5487, %v6359
        %6392 = vst.msk [vmem:[#allocation6 + $0x248] sm:$0xff] %vm5487, %v6360
        %6393 = vst.msk [vmem:[#allocation6 + $0x270] sm:$0xff] %vm5487, %v6361
        %6394 = vst.msk [vmem:[#allocation6 + $0x298] sm:$0xff] %vm5487, %v6362
        %6395 = vst.msk [vmem:[#allocation6 + $0x2c0] sm:$0xff] %vm5487, %v6363
        %6396 = vst.msk [vmem:[#allocation6 + $0x2e8] sm:$0xff] %vm5487, %v6364
        %6397 = vst.msk [vmem:[#allocation6 + $0x310] sm:$0xff] %vm5487, %v6365
        %6398 = vst.msk [vmem:[#allocation6 + $0x338] sm:$0xff] %vm5487, %v6366
        %6399 = vst.msk [vmem:[#allocation6 + $0x360] sm:$0xff] %vm5487, %v6367
        %6400 = vst.msk [vmem:[#allocation6 + $0x388] sm:$0xff] %vm5487, %v6368
        %6401 = vst.msk [vmem:[#allocation6 + $0x3b0] sm:$0xff] %vm5487, %v6369
        %6402 = vst.msk [vmem:[#allocation6 + $0x3d8] sm:$0xff] %vm5487, %v6370
        %6403 = vst.msk [vmem:[#allocation6 + $0x400] sm:$0xff] %vm5487, %v6371
        %6404 = vst.msk [vmem:[#allocation6 + $0x428] sm:$0xff] %vm5487, %v6372
        %6405 = vst.msk [vmem:[#allocation6 + $0x450] sm:$0xff] %vm5487, %v6373
        %6406 = vst.msk [vmem:[#allocation6 + $0x478] sm:$0xff] %vm5487, %v6374
        %6407 = vst.msk [vmem:[#allocation6 + $0x4a0] sm:$0xff] %vm5487, %v6375
        %6408 = vst.msk [vmem:[#allocation6 + $0x4c8] sm:$0xff] %vm5487, %v6376
        %6409 = vst.msk [vmem:[#allocation6 + $0x4f0] sm:$0xff] %vm5487, %v6377
        %v6410 = vld [vmem:[%s6345 + $0x1] sm:$0xff]
        %v6411 = vld [vmem:[%s6345 + $0x9] sm:$0xff]
        %v6412 = vld [vmem:[%s6345 + $0x19] sm:$0xff]
        %v6413 = vld [vmem:[%s6345 + $0x21] sm:$0xff]
        %v6414 = vld [vmem:[%s6345 + $0x31] sm:$0xff]
        %v6415 = vld [vmem:[%s6345 + $0x39] sm:$0xff]
        %v6416 = vld [vmem:[%s6345 + $0x49] sm:$0xff]
        %v6417 = vld [vmem:[%s6345 + $0x51] sm:$0xff]
        %v6418 = vld [vmem:[%s6345 + $0x61] sm:$0xff]
        %v6419 = vld [vmem:[%s6345 + $0x69] sm:$0xff]
        %v6420 = vld [vmem:[%s6345 + $0x79] sm:$0xff]
        %v6421 = vld [vmem:[%s6345 + $0x81] sm:$0xff]
        %v6422 = vld [vmem:[%s6345 + $0x91] sm:$0xff]
        %v6423 = vld [vmem:[%s6345 + $0x99] sm:$0xff]
        %v6424 = vld [vmem:[%s6345 + $0xa9] sm:$0xff]
        %v6425 = vld [vmem:[%s6345 + $0xb1] sm:$0xff]
        %v6426 = vld [vmem:[%s6345 + $0xc1] sm:$0xff]
        %v6427 = vld [vmem:[%s6345 + $0xc9] sm:$0xff]
        %v6428 = vld [vmem:[%s6345 + $0xd9] sm:$0xff]
        %v6429 = vld [vmem:[%s6345 + $0xe1] sm:$0xff]
        %v6430 = vld [vmem:[%s6345 + $0xf1] sm:$0xff]
        %v6431 = vld [vmem:[%s6345 + $0xf9] sm:$0xff]
        %v6432 = vld [vmem:[%s6345 + $0x109] sm:$0xff]
        %v6433 = vld [vmem:[%s6345 + $0x111] sm:$0xff]
        %v6434 = vld [vmem:[%s6345 + $0x121] sm:$0xff]
        %v6435 = vld [vmem:[%s6345 + $0x129] sm:$0xff]
        %v6436 = vld [vmem:[%s6345 + $0x139] sm:$0xff]
        %v6437 = vld [vmem:[%s6345 + $0x141] sm:$0xff]
        %v6438 = vld [vmem:[%s6345 + $0x151] sm:$0xff]
        %v6439 = vld [vmem:[%s6345 + $0x159] sm:$0xff]
        %v6440 = vld [vmem:[%s6345 + $0x169] sm:$0xff]
        %v6441 = vld [vmem:[%s6345 + $0x171] sm:$0xff]
        %6474 = vrot.lane.b32.xlu0 %v6410, 64
        %v6475 = vpop.permute.xlu0 %6474
        %6476 = vrot.lane.b32.xlu0 %v6411, 64
        %v6477 = vpop.permute.xlu0 %6476
        %6478 = vrot.lane.b32.xlu0 %v6412, 64
        %v6479 = vpop.permute.xlu0 %6478
        %6480 = vrot.lane.b32.xlu0 %v6413, 64
        %v6481 = vpop.permute.xlu0 %6480
        %6482 = vrot.lane.b32.xlu0 %v6414, 64
        %v6483 = vpop.permute.xlu0 %6482
        %6484 = vrot.lane.b32.xlu0 %v6415, 64
        %v6485 = vpop.permute.xlu0 %6484
        %6486 = vrot.lane.b32.xlu0 %v6416, 64
        %v6487 = vpop.permute.xlu0 %6486
        %6488 = vrot.lane.b32.xlu0 %v6417, 64
        %v6489 = vpop.permute.xlu0 %6488
        %6490 = vrot.lane.b32.xlu0 %v6418, 64
        %v6491 = vpop.permute.xlu0 %6490
        %6492 = vrot.lane.b32.xlu0 %v6419, 64
        %v6493 = vpop.permute.xlu0 %6492
        %6494 = vrot.lane.b32.xlu0 %v6420, 64
        %v6495 = vpop.permute.xlu0 %6494
        %6496 = vrot.lane.b32.xlu0 %v6421, 64
        %v6497 = vpop.permute.xlu0 %6496
        %6498 = vrot.lane.b32.xlu0 %v6422, 64
        %v6499 = vpop.permute.xlu0 %6498
        %6500 = vrot.lane.b32.xlu0 %v6423, 64
        %v6501 = vpop.permute.xlu0 %6500
        %6502 = vrot.lane.b32.xlu0 %v6424, 64
        %v6503 = vpop.permute.xlu0 %6502
        %6504 = vrot.lane.b32.xlu0 %v6425, 64
        %v6505 = vpop.permute.xlu0 %6504
        %6506 = vrot.lane.b32.xlu0 %v6426, 64
        %v6507 = vpop.permute.xlu0 %6506
        %6508 = vrot.lane.b32.xlu0 %v6427, 64
        %v6509 = vpop.permute.xlu0 %6508
        %6510 = vrot.lane.b32.xlu0 %v6428, 64
        %v6511 = vpop.permute.xlu0 %6510
        %6512 = vrot.lane.b32.xlu0 %v6429, 64
        %v6513 = vpop.permute.xlu0 %6512
        %6514 = vrot.lane.b32.xlu0 %v6430, 64
        %v6515 = vpop.permute.xlu0 %6514
        %6516 = vrot.lane.b32.xlu0 %v6431, 64
        %v6517 = vpop.permute.xlu0 %6516
        %6518 = vrot.lane.b32.xlu0 %v6432, 64
        %v6519 = vpop.permute.xlu0 %6518
        %6520 = vrot.lane.b32.xlu0 %v6433, 64
        %v6521 = vpop.permute.xlu0 %6520
        %6522 = vrot.lane.b32.xlu0 %v6434, 64
        %v6523 = vpop.permute.xlu0 %6522
        %6524 = vrot.lane.b32.xlu0 %v6435, 64
        %v6525 = vpop.permute.xlu0 %6524
        %6526 = vrot.lane.b32.xlu0 %v6436, 64
        %v6527 = vpop.permute.xlu0 %6526
        %6528 = vrot.lane.b32.xlu0 %v6437, 64
        %v6529 = vpop.permute.xlu0 %6528
        %6530 = vrot.lane.b32.xlu0 %v6438, 64
        %v6531 = vpop.permute.xlu0 %6530
        %6532 = vrot.lane.b32.xlu0 %v6439, 64
        %v6533 = vpop.permute.xlu0 %6532
        %6534 = vrot.lane.b32.xlu0 %v6440, 64
        %v6535 = vpop.permute.xlu0 %6534
        %6536 = vrot.lane.b32.xlu0 %v6441, 64
        %v6537 = vpop.permute.xlu0 %6536
        %6570 = vst.msk [vmem:[#allocation6 + $0x18] sm:$0xff] %vm5800, %v6475
        %6571 = vst.msk [vmem:[#allocation6 + $0x40] sm:$0xff] %vm5800, %v6477
        %6572 = vst.msk [vmem:[#allocation6 + $0x68] sm:$0xff] %vm5800, %v6479
        %6573 = vst.msk [vmem:[#allocation6 + $0x90] sm:$0xff] %vm5800, %v6481
        %6574 = vst.msk [vmem:[#allocation6 + $0xb8] sm:$0xff] %vm5800, %v6483
        %6575 = vst.msk [vmem:[#allocation6 + $0xe0] sm:$0xff] %vm5800, %v6485
        %6576 = vst.msk [vmem:[#allocation6 + $0x108] sm:$0xff] %vm5800, %v6487
        %6577 = vst.msk [vmem:[#allocation6 + $0x130] sm:$0xff] %vm5800, %v6489
        %6578 = vst.msk [vmem:[#allocation6 + $0x158] sm:$0xff] %vm5800, %v6491
        %6579 = vst.msk [vmem:[#allocation6 + $0x180] sm:$0xff] %vm5800, %v6493
        %6580 = vst.msk [vmem:[#allocation6 + $0x1a8] sm:$0xff] %vm5800, %v6495
        %6581 = vst.msk [vmem:[#allocation6 + $0x1d0] sm:$0xff] %vm5800, %v6497
        %6582 = vst.msk [vmem:[#allocation6 + $0x1f8] sm:$0xff] %vm5800, %v6499
        %6583 = vst.msk [vmem:[#allocation6 + $0x220] sm:$0xff] %vm5800, %v6501
        %6584 = vst.msk [vmem:[#allocation6 + $0x248] sm:$0xff] %vm5800, %v6503
        %6585 = vst.msk [vmem:[#allocation6 + $0x270] sm:$0xff] %vm5800, %v6505
        %6586 = vst.msk [vmem:[#allocation6 + $0x298] sm:$0xff] %vm5800, %v6507
        %6587 = vst.msk [vmem:[#allocation6 + $0x2c0] sm:$0xff] %vm5800, %v6509
        %6588 = vst.msk [vmem:[#allocation6 + $0x2e8] sm:$0xff] %vm5800, %v6511
        %6589 = vst.msk [vmem:[#allocation6 + $0x310] sm:$0xff] %vm5800, %v6513
        %6590 = vst.msk [vmem:[#allocation6 + $0x338] sm:$0xff] %vm5800, %v6515
        %6591 = vst.msk [vmem:[#allocation6 + $0x360] sm:$0xff] %vm5800, %v6517
        %6592 = vst.msk [vmem:[#allocation6 + $0x388] sm:$0xff] %vm5800, %v6519
        %6593 = vst.msk [vmem:[#allocation6 + $0x3b0] sm:$0xff] %vm5800, %v6521
        %6594 = vst.msk [vmem:[#allocation6 + $0x3d8] sm:$0xff] %vm5800, %v6523
        %6595 = vst.msk [vmem:[#allocation6 + $0x400] sm:$0xff] %vm5800, %v6525
        %6596 = vst.msk [vmem:[#allocation6 + $0x428] sm:$0xff] %vm5800, %v6527
        %6597 = vst.msk [vmem:[#allocation6 + $0x450] sm:$0xff] %vm5800, %v6529
        %6598 = vst.msk [vmem:[#allocation6 + $0x478] sm:$0xff] %vm5800, %v6531
        %6599 = vst.msk [vmem:[#allocation6 + $0x4a0] sm:$0xff] %vm5800, %v6533
        %6600 = vst.msk [vmem:[#allocation6 + $0x4c8] sm:$0xff] %vm5800, %v6535
        %6601 = vst.msk [vmem:[#allocation6 + $0x4f0] sm:$0xff] %vm5800, %v6537
        %v6602 = vld [vmem:[%s6345 + $0x2] sm:$0xff]
        %v6603 = vld [vmem:[%s6345 + $0xa] sm:$0xff]
        %v6604 = vld [vmem:[%s6345 + $0x1a] sm:$0xff]
        %v6605 = vld [vmem:[%s6345 + $0x22] sm:$0xff]
        %v6606 = vld [vmem:[%s6345 + $0x32] sm:$0xff]
        %v6607 = vld [vmem:[%s6345 + $0x3a] sm:$0xff]
        %v6608 = vld [vmem:[%s6345 + $0x4a] sm:$0xff]
        %v6609 = vld [vmem:[%s6345 + $0x52] sm:$0xff]
        %v6610 = vld [vmem:[%s6345 + $0x62] sm:$0xff]
        %v6611 = vld [vmem:[%s6345 + $0x6a] sm:$0xff]
        %v6612 = vld [vmem:[%s6345 + $0x7a] sm:$0xff]
        %v6613 = vld [vmem:[%s6345 + $0x82] sm:$0xff]
        %v6614 = vld [vmem:[%s6345 + $0x92] sm:$0xff]
        %v6615 = vld [vmem:[%s6345 + $0x9a] sm:$0xff]
        %v6616 = vld [vmem:[%s6345 + $0xaa] sm:$0xff]
        %v6617 = vld [vmem:[%s6345 + $0xb2] sm:$0xff]
        %v6618 = vld [vmem:[%s6345 + $0xc2] sm:$0xff]
        %v6619 = vld [vmem:[%s6345 + $0xca] sm:$0xff]
        %v6620 = vld [vmem:[%s6345 + $0xda] sm:$0xff]
        %v6621 = vld [vmem:[%s6345 + $0xe2] sm:$0xff]
        %v6622 = vld [vmem:[%s6345 + $0xf2] sm:$0xff]
        %v6623 = vld [vmem:[%s6345 + $0xfa] sm:$0xff]
        %v6624 = vld [vmem:[%s6345 + $0x10a] sm:$0xff]
        %v6625 = vld [vmem:[%s6345 + $0x112] sm:$0xff]
        %v6626 = vld [vmem:[%s6345 + $0x122] sm:$0xff]
        %v6627 = vld [vmem:[%s6345 + $0x12a] sm:$0xff]
        %v6628 = vld [vmem:[%s6345 + $0x13a] sm:$0xff]
        %v6629 = vld [vmem:[%s6345 + $0x142] sm:$0xff]
        %v6630 = vld [vmem:[%s6345 + $0x152] sm:$0xff]
        %v6631 = vld [vmem:[%s6345 + $0x15a] sm:$0xff]
        %v6632 = vld [vmem:[%s6345 + $0x16a] sm:$0xff]
        %v6633 = vld [vmem:[%s6345 + $0x172] sm:$0xff]
        %6634 = vst.msk [vmem:[#allocation6 + $0x20] sm:$0xff] %vm5487, %v6602
        %6635 = vst.msk [vmem:[#allocation6 + $0x48] sm:$0xff] %vm5487, %v6603
        %6636 = vst.msk [vmem:[#allocation6 + $0x70] sm:$0xff] %vm5487, %v6604
        %6637 = vst.msk [vmem:[#allocation6 + $0x98] sm:$0xff] %vm5487, %v6605
        %6638 = vst.msk [vmem:[#allocation6 + $0xc0] sm:$0xff] %vm5487, %v6606
        %6639 = vst.msk [vmem:[#allocation6 + $0xe8] sm:$0xff] %vm5487, %v6607
        %6640 = vst.msk [vmem:[#allocation6 + $0x110] sm:$0xff] %vm5487, %v6608
        %6641 = vst.msk [vmem:[#allocation6 + $0x138] sm:$0xff] %vm5487, %v6609
        %6642 = vst.msk [vmem:[#allocation6 + $0x160] sm:$0xff] %vm5487, %v6610
        %6643 = vst.msk [vmem:[#allocation6 + $0x188] sm:$0xff] %vm5487, %v6611
        %6644 = vst.msk [vmem:[#allocation6 + $0x1b0] sm:$0xff] %vm5487, %v6612
        %6645 = vst.msk [vmem:[#allocation6 + $0x1d8] sm:$0xff] %vm5487, %v6613
        %6646 = vst.msk [vmem:[#allocation6 + $0x200] sm:$0xff] %vm5487, %v6614
        %6647 = vst.msk [vmem:[#allocation6 + $0x228] sm:$0xff] %vm5487, %v6615
        %6648 = vst.msk [vmem:[#allocation6 + $0x250] sm:$0xff] %vm5487, %v6616
        %6649 = vst.msk [vmem:[#allocation6 + $0x278] sm:$0xff] %vm5487, %v6617
        %6650 = vst.msk [vmem:[#allocation6 + $0x2a0] sm:$0xff] %vm5487, %v6618
        %6651 = vst.msk [vmem:[#allocation6 + $0x2c8] sm:$0xff] %vm5487, %v6619
        %6652 = vst.msk [vmem:[#allocation6 + $0x2f0] sm:$0xff] %vm5487, %v6620
        %6653 = vst.msk [vmem:[#allocation6 + $0x318] sm:$0xff] %vm5487, %v6621
        %6654 = vst.msk [vmem:[#allocation6 + $0x340] sm:$0xff] %vm5487, %v6622
        %6655 = vst.msk [vmem:[#allocation6 + $0x368] sm:$0xff] %vm5487, %v6623
        %6656 = vst.msk [vmem:[#allocation6 + $0x390] sm:$0xff] %vm5487, %v6624
        %6657 = vst.msk [vmem:[#allocation6 + $0x3b8] sm:$0xff] %vm5487, %v6625
        %6658 = vst.msk [vmem:[#allocation6 + $0x3e0] sm:$0xff] %vm5487, %v6626
        %6659 = vst.msk [vmem:[#allocation6 + $0x408] sm:$0xff] %vm5487, %v6627
        %6660 = vst.msk [vmem:[#allocation6 + $0x430] sm:$0xff] %vm5487, %v6628
        %6661 = vst.msk [vmem:[#allocation6 + $0x458] sm:$0xff] %vm5487, %v6629
        %6662 = vst.msk [vmem:[#allocation6 + $0x480] sm:$0xff] %vm5487, %v6630
        %6663 = vst.msk [vmem:[#allocation6 + $0x4a8] sm:$0xff] %vm5487, %v6631
        %6664 = vst.msk [vmem:[#allocation6 + $0x4d0] sm:$0xff] %vm5487, %v6632
        %6665 = vst.msk [vmem:[#allocation6 + $0x4f8] sm:$0xff] %vm5487, %v6633
        %v6666 = vld [vmem:[#allocation6] sm:$0xff]
        %v6667 = vld [vmem:[#allocation6 + $0x8] sm:$0xff]
        %v6668 = vld [vmem:[#allocation6 + $0x10] sm:$0xff]
        %v6669 = vld [vmem:[#allocation6 + $0x18] sm:$0xff]
        %v6670 = vld [vmem:[#allocation6 + $0x20] sm:$0xff]
        %v6671 = vld [vmem:[#allocation6 + $0x28] sm:$0xff]
        %v6672 = vld [vmem:[#allocation6 + $0x30] sm:$0xff]
        %v6673 = vld [vmem:[#allocation6 + $0x38] sm:$0xff]
        %v6674 = vld [vmem:[#allocation6 + $0x40] sm:$0xff]
        %v6675 = vld [vmem:[#allocation6 + $0x48] sm:$0xff]
        %v6676 = vld [vmem:[#allocation6 + $0x50] sm:$0xff]
        %v6677 = vld [vmem:[#allocation6 + $0x58] sm:$0xff]
        %v6678 = vld [vmem:[#allocation6 + $0x60] sm:$0xff]
        %v6679 = vld [vmem:[#allocation6 + $0x68] sm:$0xff]
        %v6680 = vld [vmem:[#allocation6 + $0x70] sm:$0xff]
        %v6681 = vld [vmem:[#allocation6 + $0x78] sm:$0xff]
        %v6682 = vld [vmem:[#allocation6 + $0x80] sm:$0xff]
        %v6683 = vld [vmem:[#allocation6 + $0x88] sm:$0xff]
        %v6684 = vld [vmem:[#allocation6 + $0x90] sm:$0xff]
        %v6685 = vld [vmem:[#allocation6 + $0x98] sm:$0xff]
        %v6686 = vld [vmem:[#allocation6 + $0xa0] sm:$0xff]
        %v6687 = vld [vmem:[#allocation6 + $0xa8] sm:$0xff]
        %v6688 = vld [vmem:[#allocation6 + $0xb0] sm:$0xff]
        %v6689 = vld [vmem:[#allocation6 + $0xb8] sm:$0xff]
        %v6690 = vld [vmem:[#allocation6 + $0xc0] sm:$0xff]
        %v6691 = vld [vmem:[#allocation6 + $0xc8] sm:$0xff]
        %v6692 = vld [vmem:[#allocation6 + $0xd0] sm:$0xff]
        %v6693 = vld [vmem:[#allocation6 + $0xd8] sm:$0xff]
        %v6694 = vld [vmem:[#allocation6 + $0xe0] sm:$0xff]
        %v6695 = vld [vmem:[#allocation6 + $0xe8] sm:$0xff]
        %v6696 = vld [vmem:[#allocation6 + $0xf0] sm:$0xff]
        %v6697 = vld [vmem:[#allocation6 + $0xf8] sm:$0xff]
        %v6698 = vld [vmem:[#allocation6 + $0x100] sm:$0xff]
        %v6699 = vld [vmem:[#allocation6 + $0x108] sm:$0xff]
        %v6700 = vld [vmem:[#allocation6 + $0x110] sm:$0xff]
        %v6701 = vld [vmem:[#allocation6 + $0x118] sm:$0xff]
        %v6702 = vld [vmem:[#allocation6 + $0x120] sm:$0xff]
        %v6703 = vld [vmem:[#allocation6 + $0x128] sm:$0xff]
        %v6704 = vld [vmem:[#allocation6 + $0x130] sm:$0xff]
        %v6705 = vld [vmem:[#allocation6 + $0x138] sm:$0xff]
        %v6706 = vld [vmem:[#allocation6 + $0x140] sm:$0xff]
        %v6707 = vld [vmem:[#allocation6 + $0x148] sm:$0xff]
        %v6708 = vld [vmem:[#allocation6 + $0x150] sm:$0xff]
        %v6709 = vld [vmem:[#allocation6 + $0x158] sm:$0xff]
        %v6710 = vld [vmem:[#allocation6 + $0x160] sm:$0xff]
        %v6711 = vld [vmem:[#allocation6 + $0x168] sm:$0xff]
        %v6712 = vld [vmem:[#allocation6 + $0x170] sm:$0xff]
        %v6713 = vld [vmem:[#allocation6 + $0x178] sm:$0xff]
        %v6714 = vld [vmem:[#allocation6 + $0x180] sm:$0xff]
        %v6715 = vld [vmem:[#allocation6 + $0x188] sm:$0xff]
        %v6716 = vld [vmem:[#allocation6 + $0x190] sm:$0xff]
        %v6717 = vld [vmem:[#allocation6 + $0x198] sm:$0xff]
        %v6718 = vld [vmem:[#allocation6 + $0x1a0] sm:$0xff]
        %v6719 = vld [vmem:[#allocation6 + $0x1a8] sm:$0xff]
        %v6720 = vld [vmem:[#allocation6 + $0x1b0] sm:$0xff]
        %v6721 = vld [vmem:[#allocation6 + $0x1b8] sm:$0xff]
        %v6722 = vld [vmem:[#allocation6 + $0x1c0] sm:$0xff]
        %v6723 = vld [vmem:[#allocation6 + $0x1c8] sm:$0xff]
        %v6724 = vld [vmem:[#allocation6 + $0x1d0] sm:$0xff]
        %v6725 = vld [vmem:[#allocation6 + $0x1d8] sm:$0xff]
        %v6726 = vld [vmem:[#allocation6 + $0x1e0] sm:$0xff]
        %v6727 = vld [vmem:[#allocation6 + $0x1e8] sm:$0xff]
        %v6728 = vld [vmem:[#allocation6 + $0x1f0] sm:$0xff]
        %v6729 = vld [vmem:[#allocation6 + $0x1f8] sm:$0xff]
        %v6730 = vld [vmem:[#allocation6 + $0x200] sm:$0xff]
        %v6731 = vld [vmem:[#allocation6 + $0x208] sm:$0xff]
        %v6732 = vld [vmem:[#allocation6 + $0x210] sm:$0xff]
        %v6733 = vld [vmem:[#allocation6 + $0x218] sm:$0xff]
        %v6734 = vld [vmem:[#allocation6 + $0x220] sm:$0xff]
        %v6735 = vld [vmem:[#allocation6 + $0x228] sm:$0xff]
        %v6736 = vld [vmem:[#allocation6 + $0x230] sm:$0xff]
        %v6737 = vld [vmem:[#allocation6 + $0x238] sm:$0xff]
        %v6738 = vld [vmem:[#allocation6 + $0x240] sm:$0xff]
        %v6739 = vld [vmem:[#allocation6 + $0x248] sm:$0xff]
        %v6740 = vld [vmem:[#allocation6 + $0x250] sm:$0xff]
        %v6741 = vld [vmem:[#allocation6 + $0x258] sm:$0xff]
        %v6742 = vld [vmem:[#allocation6 + $0x260] sm:$0xff]
        %v6743 = vld [vmem:[#allocation6 + $0x268] sm:$0xff]
        %v6744 = vld [vmem:[#allocation6 + $0x270] sm:$0xff]
        %v6745 = vld [vmem:[#allocation6 + $0x278] sm:$0xff]
        %v6746 = vld [vmem:[#allocation6 + $0x280] sm:$0xff]
        %v6747 = vld [vmem:[#allocation6 + $0x288] sm:$0xff]
        %v6748 = vld [vmem:[#allocation6 + $0x290] sm:$0xff]
        %v6749 = vld [vmem:[#allocation6 + $0x298] sm:$0xff]
        %v6750 = vld [vmem:[#allocation6 + $0x2a0] sm:$0xff]
        %v6751 = vld [vmem:[#allocation6 + $0x2a8] sm:$0xff]
        %v6752 = vld [vmem:[#allocation6 + $0x2b0] sm:$0xff]
        %v6753 = vld [vmem:[#allocation6 + $0x2b8] sm:$0xff]
        %v6754 = vld [vmem:[#allocation6 + $0x2c0] sm:$0xff]
        %v6755 = vld [vmem:[#allocation6 + $0x2c8] sm:$0xff]
        %v6756 = vld [vmem:[#allocation6 + $0x2d0] sm:$0xff]
        %v6757 = vld [vmem:[#allocation6 + $0x2d8] sm:$0xff]
        %v6758 = vld [vmem:[#allocation6 + $0x2e0] sm:$0xff]
        %v6759 = vld [vmem:[#allocation6 + $0x2e8] sm:$0xff]
        %v6760 = vld [vmem:[#allocation6 + $0x2f0] sm:$0xff]
        %v6761 = vld [vmem:[#allocation6 + $0x2f8] sm:$0xff]
        %v6762 = vld [vmem:[#allocation6 + $0x300] sm:$0xff]
        %v6763 = vld [vmem:[#allocation6 + $0x308] sm:$0xff]
        %v6764 = vld [vmem:[#allocation6 + $0x310] sm:$0xff]
        %v6765 = vld [vmem:[#allocation6 + $0x318] sm:$0xff]
        %v6766 = vld [vmem:[#allocation6 + $0x320] sm:$0xff]
        %v6767 = vld [vmem:[#allocation6 + $0x328] sm:$0xff]
        %v6768 = vld [vmem:[#allocation6 + $0x330] sm:$0xff]
        %v6769 = vld [vmem:[#allocation6 + $0x338] sm:$0xff]
        %v6770 = vld [vmem:[#allocation6 + $0x340] sm:$0xff]
        %v6771 = vld [vmem:[#allocation6 + $0x348] sm:$0xff]
        %v6772 = vld [vmem:[#allocation6 + $0x350] sm:$0xff]
        %v6773 = vld [vmem:[#allocation6 + $0x358] sm:$0xff]
        %v6774 = vld [vmem:[#allocation6 + $0x360] sm:$0xff]
        %v6775 = vld [vmem:[#allocation6 + $0x368] sm:$0xff]
        %v6776 = vld [vmem:[#allocation6 + $0x370] sm:$0xff]
        %v6777 = vld [vmem:[#allocation6 + $0x378] sm:$0xff]
        %v6778 = vld [vmem:[#allocation6 + $0x380] sm:$0xff]
        %v6779 = vld [vmem:[#allocation6 + $0x388] sm:$0xff]
        %v6780 = vld [vmem:[#allocation6 + $0x390] sm:$0xff]
        %v6781 = vld [vmem:[#allocation6 + $0x398] sm:$0xff]
        %v6782 = vld [vmem:[#allocation6 + $0x3a0] sm:$0xff]
        %v6783 = vld [vmem:[#allocation6 + $0x3a8] sm:$0xff]
        %v6784 = vld [vmem:[#allocation6 + $0x3b0] sm:$0xff]
        %v6785 = vld [vmem:[#allocation6 + $0x3b8] sm:$0xff]
        %v6786 = vld [vmem:[#allocation6 + $0x3c0] sm:$0xff]
        %v6787 = vld [vmem:[#allocation6 + $0x3c8] sm:$0xff]
        %v6788 = vld [vmem:[#allocation6 + $0x3d0] sm:$0xff]
        %v6789 = vld [vmem:[#allocation6 + $0x3d8] sm:$0xff]
        %v6790 = vld [vmem:[#allocation6 + $0x3e0] sm:$0xff]
        %v6791 = vld [vmem:[#allocation6 + $0x3e8] sm:$0xff]
        %v6792 = vld [vmem:[#allocation6 + $0x3f0] sm:$0xff]
        %v6793 = vld [vmem:[#allocation6 + $0x3f8] sm:$0xff]
        %v6794 = vld [vmem:[#allocation6 + $0x400] sm:$0xff]
        %v6795 = vld [vmem:[#allocation6 + $0x408] sm:$0xff]
        %v6796 = vld [vmem:[#allocation6 + $0x410] sm:$0xff]
        %v6797 = vld [vmem:[#allocation6 + $0x418] sm:$0xff]
        %v6798 = vld [vmem:[#allocation6 + $0x420] sm:$0xff]
        %v6799 = vld [vmem:[#allocation6 + $0x428] sm:$0xff]
        %v6800 = vld [vmem:[#allocation6 + $0x430] sm:$0xff]
        %v6801 = vld [vmem:[#allocation6 + $0x438] sm:$0xff]
        %v6802 = vld [vmem:[#allocation6 + $0x440] sm:$0xff]
        %v6803 = vld [vmem:[#allocation6 + $0x448] sm:$0xff]
        %v6804 = vld [vmem:[#allocation6 + $0x450] sm:$0xff]
        %v6805 = vld [vmem:[#allocation6 + $0x458] sm:$0xff]
        %v6806 = vld [vmem:[#allocation6 + $0x460] sm:$0xff]
        %v6807 = vld [vmem:[#allocation6 + $0x468] sm:$0xff]
        %v6808 = vld [vmem:[#allocation6 + $0x470] sm:$0xff]
        %v6809 = vld [vmem:[#allocation6 + $0x478] sm:$0xff]
        %v6810 = vld [vmem:[#allocation6 + $0x480] sm:$0xff]
        %v6811 = vld [vmem:[#allocation6 + $0x488] sm:$0xff]
        %v6812 = vld [vmem:[#allocation6 + $0x490] sm:$0xff]
        %v6813 = vld [vmem:[#allocation6 + $0x498] sm:$0xff]
        %v6814 = vld [vmem:[#allocation6 + $0x4a0] sm:$0xff]
        %v6815 = vld [vmem:[#allocation6 + $0x4a8] sm:$0xff]
        %v6816 = vld [vmem:[#allocation6 + $0x4b0] sm:$0xff]
        %v6817 = vld [vmem:[#allocation6 + $0x4b8] sm:$0xff]
        %v6818 = vld [vmem:[#allocation6 + $0x4c0] sm:$0xff]
        %v6819 = vld [vmem:[#allocation6 + $0x4c8] sm:$0xff]
        %v6820 = vld [vmem:[#allocation6 + $0x4d0] sm:$0xff]
        %v6821 = vld [vmem:[#allocation6 + $0x4d8] sm:$0xff]
        %v6822 = vld [vmem:[#allocation6 + $0x4e0] sm:$0xff]
        %v6823 = vld [vmem:[#allocation6 + $0x4e8] sm:$0xff]
        %v6824 = vld [vmem:[#allocation6 + $0x4f0] sm:$0xff]
        %v6825 = vld [vmem:[#allocation6 + $0x4f8] sm:$0xff]
        %v6826 = vpack.c.bf16 %v6671, %v6666
        %v6827 = vpack.c.bf16 %v6672, %v6667
        %v6828 = vpack.c.bf16 %v6673, %v6668
        %v6829 = vpack.c.bf16 %v6674, %v6669
        %v6830 = vpack.c.bf16 %v6675, %v6670
        %v6831 = vpack.c.bf16 %v6681, %v6676
        %v6832 = vpack.c.bf16 %v6682, %v6677
        %v6833 = vpack.c.bf16 %v6683, %v6678
        %v6834 = vpack.c.bf16 %v6684, %v6679
        %v6835 = vpack.c.bf16 %v6685, %v6680
        %v6836 = vpack.c.bf16 %v6691, %v6686
        %v6837 = vpack.c.bf16 %v6692, %v6687
        %v6838 = vpack.c.bf16 %v6693, %v6688
        %v6839 = vpack.c.bf16 %v6694, %v6689
        %v6840 = vpack.c.bf16 %v6695, %v6690
        %v6841 = vpack.c.bf16 %v6701, %v6696
        %v6842 = vpack.c.bf16 %v6702, %v6697
        %v6843 = vpack.c.bf16 %v6703, %v6698
        %v6844 = vpack.c.bf16 %v6704, %v6699
        %v6845 = vpack.c.bf16 %v6705, %v6700
        %v6846 = vpack.c.bf16 %v6711, %v6706
        %v6847 = vpack.c.bf16 %v6712, %v6707
        %v6848 = vpack.c.bf16 %v6713, %v6708
        %v6849 = vpack.c.bf16 %v6714, %v6709
        %v6850 = vpack.c.bf16 %v6715, %v6710
        %v6851 = vpack.c.bf16 %v6721, %v6716
        %v6852 = vpack.c.bf16 %v6722, %v6717
        %v6853 = vpack.c.bf16 %v6723, %v6718
        %v6854 = vpack.c.bf16 %v6724, %v6719
        %v6855 = vpack.c.bf16 %v6725, %v6720
        %v6856 = vpack.c.bf16 %v6731, %v6726
        %v6857 = vpack.c.bf16 %v6732, %v6727
        %v6858 = vpack.c.bf16 %v6733, %v6728
        %v6859 = vpack.c.bf16 %v6734, %v6729
        %v6860 = vpack.c.bf16 %v6735, %v6730
        %v6861 = vpack.c.bf16 %v6741, %v6736
        %v6862 = vpack.c.bf16 %v6742, %v6737
        %v6863 = vpack.c.bf16 %v6743, %v6738
        %v6864 = vpack.c.bf16 %v6744, %v6739
        %v6865 = vpack.c.bf16 %v6745, %v6740
        %v6866 = vpack.c.bf16 %v6751, %v6746
        %v6867 = vpack.c.bf16 %v6752, %v6747
        %v6868 = vpack.c.bf16 %v6753, %v6748
        %v6869 = vpack.c.bf16 %v6754, %v6749
        %v6870 = vpack.c.bf16 %v6755, %v6750
        %v6871 = vpack.c.bf16 %v6761, %v6756
        %v6872 = vpack.c.bf16 %v6762, %v6757
        %v6873 = vpack.c.bf16 %v6763, %v6758
        %v6874 = vpack.c.bf16 %v6764, %v6759
        %v6875 = vpack.c.bf16 %v6765, %v6760
        %v6876 = vpack.c.bf16 %v6771, %v6766
        %v6877 = vpack.c.bf16 %v6772, %v6767
        %v6878 = vpack.c.bf16 %v6773, %v6768
        %v6879 = vpack.c.bf16 %v6774, %v6769
        %v6880 = vpack.c.bf16 %v6775, %v6770
        %v6881 = vpack.c.bf16 %v6781, %v6776
        %v6882 = vpack.c.bf16 %v6782, %v6777
        %v6883 = vpack.c.bf16 %v6783, %v6778
        %v6884 = vpack.c.bf16 %v6784, %v6779
        %v6885 = vpack.c.bf16 %v6785, %v6780
        %v6886 = vpack.c.bf16 %v6791, %v6786
        %v6887 = vpack.c.bf16 %v6792, %v6787
        %v6888 = vpack.c.bf16 %v6793, %v6788
        %v6889 = vpack.c.bf16 %v6794, %v6789
        %v6890 = vpack.c.bf16 %v6795, %v6790
        %v6891 = vpack.c.bf16 %v6801, %v6796
        %v6892 = vpack.c.bf16 %v6802, %v6797
        %v6893 = vpack.c.bf16 %v6803, %v6798
        %v6894 = vpack.c.bf16 %v6804, %v6799
        %v6895 = vpack.c.bf16 %v6805, %v6800
        %v6896 = vpack.c.bf16 %v6811, %v6806
        %v6897 = vpack.c.bf16 %v6812, %v6807
        %v6898 = vpack.c.bf16 %v6813, %v6808
        %v6899 = vpack.c.bf16 %v6814, %v6809
        %v6900 = vpack.c.bf16 %v6815, %v6810
        %v6901 = vpack.c.bf16 %v6821, %v6816
        %v6902 = vpack.c.bf16 %v6822, %v6817
        %v6903 = vpack.c.bf16 %v6823, %v6818
        %v6904 = vpack.c.bf16 %v6824, %v6819
        %v6905 = vpack.c.bf16 %v6825, %v6820
        %v6906 = vld [vmem:[%s3] sm:$0xf]
        %v6907 = vld [vmem:[%s3 + $0x4] sm:$0xf]
        %v6908 = vld [vmem:[%s3 + $0x8] sm:$0xf]
        %v6909 = vld [vmem:[%s3 + $0xc] sm:$0xf]
        %v6910 = vld [vmem:[%s3 + $0x10] sm:$0xf]
        %v6911 = vld [vmem:[%s3 + $0x14] sm:$0xf]
        %v6912 = vld [vmem:[%s3 + $0x18] sm:$0xf]
        %v6913 = vld [vmem:[%s3 + $0x1c] sm:$0xf]
        %v6914 = vld [vmem:[%s3 + $0x20] sm:$0xf]
        %v6915 = vld [vmem:[%s3 + $0x24] sm:$0xf]
        %v6916 = vld [vmem:[%s3 + $0x28] sm:$0xf]
        %v6917 = vld [vmem:[%s3 + $0x2c] sm:$0xf]
        %v6918 = vld [vmem:[%s3 + $0x30] sm:$0xf]
        %v6919 = vld [vmem:[%s3 + $0x34] sm:$0xf]
        %v6920 = vld [vmem:[%s3 + $0x38] sm:$0xf]
        %v6921 = vld [vmem:[%s3 + $0x3c] sm:$0xf]
        %v6922 = vld [vmem:[%s3 + $0x40] sm:$0xf]
        %v6923 = vld [vmem:[%s3 + $0x44] sm:$0xf]
        %v6924 = vld [vmem:[%s3 + $0x48] sm:$0xf]
        %v6925 = vld [vmem:[%s3 + $0x4c] sm:$0xf]
        %v6926 = vld [vmem:[%s3 + $0x50] sm:$0xf]
        %v6927 = vld [vmem:[%s3 + $0x54] sm:$0xf]
        %v6928 = vld [vmem:[%s3 + $0x58] sm:$0xf]
        %v6929 = vld [vmem:[%s3 + $0x5c] sm:$0xf]
        %v6930 = vld [vmem:[%s3 + $0x60] sm:$0xf]
        %v6931 = vld [vmem:[%s3 + $0x64] sm:$0xf]
        %v6932 = vld [vmem:[%s3 + $0x68] sm:$0xf]
        %v6933 = vld [vmem:[%s3 + $0x6c] sm:$0xf]
        %v6934 = vld [vmem:[%s3 + $0x70] sm:$0xf]
        %v6935 = vld [vmem:[%s3 + $0x74] sm:$0xf]
        %v6936 = vld [vmem:[%s3 + $0x78] sm:$0xf]
        %v6937 = vld [vmem:[%s3 + $0x7c] sm:$0xf]
        %v6938 = vld [vmem:[%s3 + $0x80] sm:$0xf]
        %v6939 = vld [vmem:[%s3 + $0x84] sm:$0xf]
        %v6940 = vld [vmem:[%s3 + $0x88] sm:$0xf]
        %v6941 = vld [vmem:[%s3 + $0x8c] sm:$0xf]
        %v6942 = vld [vmem:[%s3 + $0x90] sm:$0xf]
        %v6943 = vld [vmem:[%s3 + $0x94] sm:$0xf]
        %v6944 = vld [vmem:[%s3 + $0x98] sm:$0xf]
        %v6945 = vld [vmem:[%s3 + $0x9c] sm:$0xf]
        %v6946 = vld [vmem:[%s3 + $0xa0] sm:$0xf]
        %v6947 = vld [vmem:[%s3 + $0xa4] sm:$0xf]
        %v6948 = vld [vmem:[%s3 + $0xa8] sm:$0xf]
        %v6949 = vld [vmem:[%s3 + $0xac] sm:$0xf]
        %v6950 = vld [vmem:[%s3 + $0xb0] sm:$0xf]
        %v6951 = vld [vmem:[%s3 + $0xb4] sm:$0xf]
        %v6952 = vld [vmem:[%s3 + $0xb8] sm:$0xf]
        %v6953 = vld [vmem:[%s3 + $0xbc] sm:$0xf]
        %v6954 = vld [vmem:[%s3 + $0xc0] sm:$0xf]
        %v6955 = vld [vmem:[%s3 + $0xc4] sm:$0xf]
        %v6956 = vld [vmem:[%s3 + $0xc8] sm:$0xf]
        %v6957 = vld [vmem:[%s3 + $0xcc] sm:$0xf]
        %v6958 = vld [vmem:[%s3 + $0xd0] sm:$0xf]
        %v6959 = vld [vmem:[%s3 + $0xd4] sm:$0xf]
        %v6960 = vld [vmem:[%s3 + $0xd8] sm:$0xf]
        %v6961 = vld [vmem:[%s3 + $0xdc] sm:$0xf]
        %v6962 = vld [vmem:[%s3 + $0xe0] sm:$0xf]
        %v6963 = vld [vmem:[%s3 + $0xe4] sm:$0xf]
        %v6964 = vld [vmem:[%s3 + $0xe8] sm:$0xf]
        %v6965 = vld [vmem:[%s3 + $0xec] sm:$0xf]
        %v6966 = vld [vmem:[%s3 + $0xf0] sm:$0xf]
        %v6967 = vld [vmem:[%s3 + $0xf4] sm:$0xf]
        %v6968 = vld [vmem:[%s3 + $0xf8] sm:$0xf]
        %v6969 = vld [vmem:[%s3 + $0xfc] sm:$0xf]
        %v6970 = vld [vmem:[%s3 + $0x100] sm:$0xf]
        %v6971 = vld [vmem:[%s3 + $0x104] sm:$0xf]
        %v6972 = vld [vmem:[%s3 + $0x108] sm:$0xf]
        %v6973 = vld [vmem:[%s3 + $0x10c] sm:$0xf]
        %v6974 = vld [vmem:[%s3 + $0x110] sm:$0xf]
        %v6975 = vld [vmem:[%s3 + $0x114] sm:$0xf]
        %v6976 = vld [vmem:[%s3 + $0x118] sm:$0xf]
        %v6977 = vld [vmem:[%s3 + $0x11c] sm:$0xf]
        %v6978 = vld [vmem:[#allocation10] sm:$0x1]
        %v6980 = vlaneseq
        %v6981 = vshrl.u32 %v6980, 7
        %v6982 = vsub.s32 0, %v6981
        %v6983 = vrot.slane %v6978, %v6982
        %v7057 = vunpack.c.l.b16 %v6906
        %v7058 = vunpack.c.l.b16 %v6907
        %v7059 = vunpack.c.l.b16 %v6908
        %v7060 = vunpack.c.l.b16 %v6909
        %v7061 = vunpack.c.l.b16 %v6910
        %v7062 = vunpack.c.l.b16 %v6911
        %v7063 = vunpack.c.l.b16 %v6912
        %v7064 = vunpack.c.l.b16 %v6913
        %v7065 = vunpack.c.l.b16 %v6914
        %v7066 = vunpack.c.l.b16 %v6915
        %v7067 = vunpack.c.l.b16 %v6916
        %v7068 = vunpack.c.l.b16 %v6917
        %v7069 = vunpack.c.l.b16 %v6918
        %v7070 = vunpack.c.l.b16 %v6919
        %v7071 = vunpack.c.l.b16 %v6920
        %v7072 = vunpack.c.l.b16 %v6921
        %v7073 = vunpack.c.l.b16 %v6922
        %v7074 = vunpack.c.l.b16 %v6923
        %v7075 = vunpack.c.l.b16 %v6924
        %v7076 = vunpack.c.l.b16 %v6925
        %v7077 = vunpack.c.l.b16 %v6926
        %v7078 = vunpack.c.l.b16 %v6927
        %v7079 = vunpack.c.l.b16 %v6928
        %v7080 = vunpack.c.l.b16 %v6929
        %v7081 = vunpack.c.l.b16 %v6930
        %v7082 = vunpack.c.l.b16 %v6931
        %v7083 = vunpack.c.l.b16 %v6932
        %v7084 = vunpack.c.l.b16 %v6933
        %v7085 = vunpack.c.l.b16 %v6934
        %v7086 = vunpack.c.l.b16 %v6935
        %v7087 = vunpack.c.l.b16 %v6936
        %v7088 = vunpack.c.l.b16 %v6937
        %v7089 = vunpack.c.l.b16 %v6938
        %v7090 = vunpack.c.l.b16 %v6939
        %v7091 = vunpack.c.l.b16 %v6940
        %v7092 = vunpack.c.l.b16 %v6941
        %v7093 = vunpack.c.l.b16 %v6942
        %v7094 = vunpack.c.l.b16 %v6943
        %v7095 = vunpack.c.l.b16 %v6944
        %v7096 = vunpack.c.l.b16 %v6945
        %v7097 = vunpack.c.l.b16 %v6946
        %v7098 = vunpack.c.l.b16 %v6947
        %v7099 = vunpack.c.l.b16 %v6948
        %v7100 = vunpack.c.l.b16 %v6949
        %v7101 = vunpack.c.l.b16 %v6950
        %v7102 = vunpack.c.l.b16 %v6951
        %v7103 = vunpack.c.l.b16 %v6952
        %v7104 = vunpack.c.l.b16 %v6953
        %v7105 = vunpack.c.l.b16 %v6954
        %v7106 = vunpack.c.l.b16 %v6955
        %v7107 = vunpack.c.l.b16 %v6956
        %v7108 = vunpack.c.l.b16 %v6957
        %v7109 = vunpack.c.l.b16 %v6958
        %v7110 = vunpack.c.l.b16 %v6959
        %v7111 = vunpack.c.l.b16 %v6960
        %v7112 = vunpack.c.l.b16 %v6961
        %v7113 = vunpack.c.l.b16 %v6962
        %v7114 = vunpack.c.l.b16 %v6963
        %v7115 = vunpack.c.l.b16 %v6964
        %v7116 = vunpack.c.l.b16 %v6965
        %v7117 = vunpack.c.l.b16 %v6966
        %v7118 = vunpack.c.l.b16 %v6967
        %v7119 = vunpack.c.l.b16 %v6968
        %v7120 = vunpack.c.l.b16 %v6969
        %v7121 = vunpack.c.l.b16 %v6970
        %v7122 = vunpack.c.l.b16 %v6971
        %v7123 = vunpack.c.l.b16 %v6972
        %v7124 = vunpack.c.l.b16 %v6973
        %v7125 = vunpack.c.l.b16 %v6974
        %v7126 = vunpack.c.l.b16 %v6975
        %v7127 = vunpack.c.l.b16 %v6976
        %v7128 = vunpack.c.l.b16 %v6977
        %v7129 = vpack.c.b16 %v7058, %v7057
        %v7130 = vpack.c.b16 %v7060, %v7059
        %v7131 = vpack.c.b16 %v7062, %v7061
        %v7132 = vpack.c.b16 %v7064, %v7063
        %v7133 = vpack.c.b16 %v7066, %v7065
        %v7134 = vpack.c.b16 %v7068, %v7067
        %v7135 = vpack.c.b16 %v7070, %v7069
        %v7136 = vpack.c.b16 %v7072, %v7071
        %v7137 = vpack.c.b16 %v7074, %v7073
        %v7138 = vpack.c.b16 %v7076, %v7075
        %v7139 = vpack.c.b16 %v7078, %v7077
        %v7140 = vpack.c.b16 %v7080, %v7079
        %v7141 = vpack.c.b16 %v7082, %v7081
        %v7142 = vpack.c.b16 %v7084, %v7083
        %v7143 = vpack.c.b16 %v7086, %v7085
        %v7144 = vpack.c.b16 %v7088, %v7087
        %v7145 = vpack.c.b16 %v7090, %v7089
        %v7146 = vpack.c.b16 %v7092, %v7091
        %v7147 = vpack.c.b16 %v7094, %v7093
        %v7148 = vpack.c.b16 %v7096, %v7095
        %v7149 = vpack.c.b16 %v7098, %v7097
        %v7150 = vpack.c.b16 %v7100, %v7099
        %v7151 = vpack.c.b16 %v7102, %v7101
        %v7152 = vpack.c.b16 %v7104, %v7103
        %v7153 = vpack.c.b16 %v7106, %v7105
        %v7154 = vpack.c.b16 %v7108, %v7107
        %v7155 = vpack.c.b16 %v7110, %v7109
        %v7156 = vpack.c.b16 %v7112, %v7111
        %v7157 = vpack.c.b16 %v7114, %v7113
        %v7158 = vpack.c.b16 %v7116, %v7115
        %v7159 = vpack.c.b16 %v7118, %v7117
        %v7160 = vpack.c.b16 %v7120, %v7119
        %v7161 = vpack.c.b16 %v7122, %v7121
        %v7162 = vpack.c.b16 %v7124, %v7123
        %v7163 = vpack.c.b16 %v7126, %v7125
        %v7164 = vpack.c.b16 %v7128, %v7127
        %v7202 = vsel %vm5487, %v6830, 0
        %v7205 = vsel %vm5487, %v6835, 0
        %v7208 = vsel %vm5487, %v6840, 0
        %v7211 = vsel %vm5487, %v6845, 0
        %v7214 = vsel %vm5487, %v6850, 0
        %v7217 = vsel %vm5487, %v6855, 0
        %v7220 = vsel %vm5487, %v6860, 0
        %v7223 = vsel %vm5487, %v6865, 0
        %v7226 = vsel %vm5487, %v6870, 0
        %v7229 = vsel %vm5487, %v6875, 0
        %v7232 = vsel %vm5487, %v6880, 0
        %v7235 = vsel %vm5487, %v6885, 0
        %v7238 = vsel %vm5487, %v6890, 0
        %v7241 = vsel %vm5487, %v6895, 0
        %v7244 = vsel %vm5487, %v6900, 0
        %v7247 = vsel %vm5487, %v6905, 0
        %7249 = vmatprep.subr.bf16.mxu0 0
        %7250 = vmatpush1.bf16.msra.mxu0 %v7129
        %7251 = vmatprep.subr.bf16.mxu0 0
        %7252 = vmatpush1.bf16.msra.mxu0 %v7130
        %7253 = vmatprep.subr.bf16.mxu0 0
        %7254 = vmatpush1.bf16.msra.mxu0 %v7131
        %7255 = vmatprep.subr.bf16.mxu0 0
        %7256 = vmatpush1.bf16.msra.mxu0 %v7132
        %7257 = vmatprep.subr.bf16.mxu0 0
        %7258 = vmatpush1.bf16.msra.mxu0 %v7133
        %7259 = vmatprep.subr.bf16.mxu0 0
        %7260 = vmatpush1.bf16.msra.mxu0 %v7134
        %7261 = vmatprep.subr.bf16.mxu0 0
        %7262 = vmatpush1.bf16.msra.mxu0 %v7135
        %7263 = vmatprep.subr.bf16.mxu0 0
        %7264 = vmatpush1.bf16.msra.mxu0 %v7136
        %7265 = vmatprep.subr.bf16.mxu0 0
        %7266 = vmatpush1.bf16.msra.mxu0 %v7137
        %7267 = vmatprep.subr.bf16.mxu0 0
        %7268 = vmatpush1.bf16.msra.mxu0 %v7138
        %7269 = vmatprep.subr.bf16.mxu0 0
        %7270 = vmatpush1.bf16.msra.mxu0 %v7139
        %7271 = vmatprep.subr.bf16.mxu0 0
        %7272 = vmatpush1.bf16.msra.mxu0 %v7140
        %7273 = vmatprep.subr.bf16.mxu0 0
        %7274 = vmatpush1.bf16.msra.mxu0 %v7141
        %7275 = vmatprep.subr.bf16.mxu0 0
        %7276 = vmatpush1.bf16.msra.mxu0 %v7142
        %7277 = vmatprep.subr.bf16.mxu0 0
        %7278 = vmatpush1.bf16.msra.mxu0 %v7143
        %7279 = vmatprep.subr.bf16.mxu0 0
        %7280 = vmatpush1.bf16.msra.mxu0 %v7144
        %7281 = vmatprep.mubr.bf16.mxu0 %v6827
        %7282 = vmatmul.mubr.bf16.gmra.mrb[0].mxu0 %v6826
        %v7283 = vpop.f32.mrb[0].mxu0
        %v7284 = vadd.f32 %v6983, %v7283
        %v7285 = vpop.f32.mrb[0].mxu0
        %v7286 = vpop.f32.mrb[0].mxu0
        %v7287 = vadd.f32 %v6983, %v7286
        %v7288 = vpop.f32.mrb[0].mxu0
        %7289 = vmatprep.mubr.bf16.mxu0 %v6832
        %7290 = vmatmul.mubr.bf16.gmra.mrb[0].mxu0 %v6831
        %v7291 = vpop.f32.mrb[0].mxu0
        %v7292 = vadd.f32 %v6983, %v7291
        %v7293 = vpop.f32.mrb[0].mxu0
        %v7294 = vpop.f32.mrb[0].mxu0
        %v7295 = vadd.f32 %v6983, %v7294
        %v7296 = vpop.f32.mrb[0].mxu0
        %7297 = vmatprep.mubr.bf16.mxu0 %v6837
        %7298 = vmatmul.mubr.bf16.gmra.mrb[0].mxu0 %v6836
        %v7299 = vpop.f32.mrb[0].mxu0
        %v7300 = vadd.f32 %v6983, %v7299
        %v7301 = vpop.f32.mrb[0].mxu0
        %v7302 = vpop.f32.mrb[0].mxu0
        %v7303 = vadd.f32 %v6983, %v7302
        %v7304 = vpop.f32.mrb[0].mxu0
        %7305 = vmatprep.mubr.bf16.mxu0 %v6842
        %7306 = vmatmul.mubr.bf16.gmra.mrb[0].mxu0 %v6841
        %v7307 = vpop.f32.mrb[0].mxu0
        %v7308 = vadd.f32 %v6983, %v7307
        %v7309 = vpop.f32.mrb[0].mxu0
        %v7310 = vpop.f32.mrb[0].mxu0
        %v7311 = vadd.f32 %v6983, %v7310
        %v7312 = vpop.f32.mrb[0].mxu0
        %7313 = vmatprep.mubr.bf16.mxu0 %v6847
        %7314 = vmatmul.mubr.bf16.gmra.mrb[0].mxu0 %v6846
        %v7315 = vpop.f32.mrb[0].mxu0
        %v7316 = vadd.f32 %v6983, %v7315
        %v7317 = vpop.f32.mrb[0].mxu0
        %v7318 = vpop.f32.mrb[0].mxu0
        %v7319 = vadd.f32 %v6983, %v7318
        %v7320 = vpop.f32.mrb[0].mxu0
        %7321 = vmatprep.mubr.bf16.mxu0 %v6852
        %7322 = vmatmul.mubr.bf16.gmra.mrb[0].mxu0 %v6851
        %v7323 = vpop.f32.mrb[0].mxu0
        %v7324 = vadd.f32 %v6983, %v7323
        %v7325 = vpop.f32.mrb[0].mxu0
        %v7326 = vpop.f32.mrb[0].mxu0
        %v7327 = vadd.f32 %v6983, %v7326
        %v7328 = vpop.f32.mrb[0].mxu0
        %7329 = vmatprep.mubr.bf16.mxu0 %v6857
        %7330 = vmatmul.mubr.bf16.gmra.mrb[0].mxu0 %v6856
        %v7331 = vpop.f32.mrb[0].mxu0
        %v7332 = vadd.f32 %v6983, %v7331
        %v7333 = vpop.f32.mrb[0].mxu0
        %v7334 = vpop.f32.mrb[0].mxu0
        %v7335 = vadd.f32 %v6983, %v7334
        %v7336 = vpop.f32.mrb[0].mxu0
        %7337 = vmatprep.mubr.bf16.mxu0 %v6862
        %7338 = vmatmul.mubr.bf16.gmra.mrb[0].mxu0 %v6861
        %v7339 = vpop.f32.mrb[0].mxu0
        %v7340 = vadd.f32 %v6983, %v7339
        %v7341 = vpop.f32.mrb[0].mxu0
        %v7342 = vpop.f32.mrb[0].mxu0
        %v7343 = vadd.f32 %v6983, %v7342
        %v7344 = vpop.f32.mrb[0].mxu0
        %7345 = vmatprep.mubr.bf16.mxu0 %v6867
        %7346 = vmatmul.mubr.bf16.gmra.mrb[0].mxu0 %v6866
        %v7347 = vpop.f32.mrb[0].mxu0
        %v7348 = vadd.f32 %v6983, %v7347
        %v7349 = vpop.f32.mrb[0].mxu0
        %v7350 = vpop.f32.mrb[0].mxu0
        %v7351 = vadd.f32 %v6983, %v7350
        %v7352 = vpop.f32.mrb[0].mxu0
        %7353 = vmatprep.mubr.bf16.mxu0 %v6872
        %7354 = vmatmul.mubr.bf16.gmra.mrb[0].mxu0 %v6871
        %v7355 = vpop.f32.mrb[0].mxu0
        %v7356 = vadd.f32 %v6983, %v7355
        %v7357 = vpop.f32.mrb[0].mxu0
        %v7358 = vpop.f32.mrb[0].mxu0
        %v7359 = vadd.f32 %v6983, %v7358
        %v7360 = vpop.f32.mrb[0].mxu0
        %7361 = vmatprep.mubr.bf16.mxu0 %v6877
        %7362 = vmatmul.mubr.bf16.gmra.mrb[0].mxu0 %v6876
        %v7363 = vpop.f32.mrb[0].mxu0
        %v7364 = vadd.f32 %v6983, %v7363
        %v7365 = vpop.f32.mrb[0].mxu0
        %v7366 = vpop.f32.mrb[0].mxu0
        %v7367 = vadd.f32 %v6983, %v7366
        %v7368 = vpop.f32.mrb[0].mxu0
        %7369 = vmatprep.mubr.bf16.mxu0 %v6882
        %7370 = vmatmul.mubr.bf16.gmra.mrb[0].mxu0 %v6881
        %v7371 = vpop.f32.mrb[0].mxu0
        %v7372 = vadd.f32 %v6983, %v7371
        %v7373 = vpop.f32.mrb[0].mxu0
        %v7374 = vpop.f32.mrb[0].mxu0
        %v7375 = vadd.f32 %v6983, %v7374
        %v7376 = vpop.f32.mrb[0].mxu0
        %7377 = vmatprep.mubr.bf16.mxu0 %v6887
        %7378 = vmatmul.mubr.bf16.gmra.mrb[0].mxu0 %v6886
        %v7379 = vpop.f32.mrb[0].mxu0
        %v7380 = vadd.f32 %v6983, %v7379
        %v7381 = vpop.f32.mrb[0].mxu0
        %v7382 = vpop.f32.mrb[0].mxu0
        %v7383 = vadd.f32 %v6983, %v7382
        %v7384 = vpop.f32.mrb[0].mxu0
        %7385 = vmatprep.mubr.bf16.mxu0 %v6892
        %7386 = vmatmul.mubr.bf16.gmra.mrb[0].mxu0 %v6891
        %v7387 = vpop.f32.mrb[0].mxu0
        %v7388 = vadd.f32 %v6983, %v7387
        %v7389 = vpop.f32.mrb[0].mxu0
        %v7390 = vpop.f32.mrb[0].mxu0
        %v7391 = vadd.f32 %v6983, %v7390
        %v7392 = vpop.f32.mrb[0].mxu0
        %7393 = vmatprep.mubr.bf16.mxu0 %v6897
        %7394 = vmatmul.mubr.bf16.gmra.mrb[0].mxu0 %v6896
        %v7395 = vpop.f32.mrb[0].mxu0
        %v7396 = vadd.f32 %v6983, %v7395
        %v7397 = vpop.f32.mrb[0].mxu0
        %v7398 = vpop.f32.mrb[0].mxu0
        %v7399 = vadd.f32 %v6983, %v7398
        %v7400 = vpop.f32.mrb[0].mxu0
        %7401 = vmatprep.mubr.bf16.mxu0 %v6902
        %7402 = vmatmul.mubr.bf16.gmra.mrb[0].mxu0 %v6901
        %v7403 = vpop.f32.mrb[0].mxu0
        %v7404 = vadd.f32 %v6983, %v7403
        %v7405 = vpop.f32.mrb[0].mxu0
        %v7406 = vpop.f32.mrb[0].mxu0
        %v7407 = vadd.f32 %v6983, %v7406
        %v7408 = vpop.f32.mrb[0].mxu0
        %7409 = vdwg.mxu0
        %7410 = vmatprep.subr.bf16.mxu0 0
        %7411 = vmatpush1.bf16.msra.mxu0 %v7145
        %7412 = vmatprep.subr.bf16.mxu0 0
        %7413 = vmatpush1.bf16.msra.mxu0 %v7146
        %7414 = vmatprep.subr.bf16.mxu0 0
        %7415 = vmatpush1.bf16.msra.mxu0 %v7147
        %7416 = vmatprep.subr.bf16.mxu0 0
        %7417 = vmatpush1.bf16.msra.mxu0 %v7148
        %7418 = vmatprep.subr.bf16.mxu0 0
        %7419 = vmatpush1.bf16.msra.mxu0 %v7149
        %7420 = vmatprep.subr.bf16.mxu0 0
        %7421 = vmatpush1.bf16.msra.mxu0 %v7150
        %7422 = vmatprep.subr.bf16.mxu0 0
        %7423 = vmatpush1.bf16.msra.mxu0 %v7151
        %7424 = vmatprep.subr.bf16.mxu0 0
        %7425 = vmatpush1.bf16.msra.mxu0 %v7152
        %7426 = vmatprep.subr.bf16.mxu0 0
        %7427 = vmatpush1.bf16.msra.mxu0 %v7153
        %7428 = vmatprep.subr.bf16.mxu0 0
        %7429 = vmatpush1.bf16.msra.mxu0 %v7154
        %7430 = vmatprep.subr.bf16.mxu0 0
        %7431 = vmatpush1.bf16.msra.mxu0 %v7155
        %7432 = vmatprep.subr.bf16.mxu0 0
        %7433 = vmatpush1.bf16.msra.mxu0 %v7156
        %7434 = vmatprep.subr.bf16.mxu0 0
        %7435 = vmatpush1.bf16.msra.mxu0 %v7157
        %7436 = vmatprep.subr.bf16.mxu0 0
        %7437 = vmatpush1.bf16.msra.mxu0 %v7158
        %7438 = vmatprep.subr.bf16.mxu0 0
        %7439 = vmatpush1.bf16.msra.mxu0 %v7159
        %7440 = vmatprep.subr.bf16.mxu0 0
        %7441 = vmatpush1.bf16.msra.mxu0 %v7160
        %7442 = vmatprep.mubr.bf16.mxu0 %v6829
        %7443 = vmatmul.mubr.bf16.gmra.mrb[0].mxu0 %v6828
        %v7444 = vpop.f32.mrb[0].mxu0
        %v7445 = vadd.f32 %v7284, %v7444
        %v7446 = vpop.f32.mrb[0].mxu0
        %v7447 = vpop.f32.mrb[0].mxu0
        %v7448 = vadd.f32 %v7287, %v7447
        %v7449 = vpop.f32.mrb[0].mxu0
        %7450 = vmatprep.mubr.bf16.mxu0 %v6834
        %7451 = vmatmul.mubr.bf16.gmra.mrb[0].mxu0 %v6833
        %v7452 = vpop.f32.mrb[0].mxu0
        %v7453 = vadd.f32 %v7292, %v7452
        %v7454 = vpop.f32.mrb[0].mxu0
        %v7455 = vpop.f32.mrb[0].mxu0
        %v7456 = vadd.f32 %v7295, %v7455
        %v7457 = vpop.f32.mrb[0].mxu0
        %7458 = vmatprep.mubr.bf16.mxu0 %v6839
        %7459 = vmatmul.mubr.bf16.gmra.mrb[0].mxu0 %v6838
        %v7460 = vpop.f32.mrb[0].mxu0
        %v7461 = vadd.f32 %v7300, %v7460
        %v7462 = vpop.f32.mrb[0].mxu0
        %v7463 = vpop.f32.mrb[0].mxu0
        %v7464 = vadd.f32 %v7303, %v7463
        %v7465 = vpop.f32.mrb[0].mxu0
        %7466 = vmatprep.mubr.bf16.mxu0 %v6844
        %7467 = vmatmul.mubr.bf16.gmra.mrb[0].mxu0 %v6843
        %v7468 = vpop.f32.mrb[0].mxu0
        %v7469 = vadd.f32 %v7308, %v7468
        %v7470 = vpop.f32.mrb[0].mxu0
        %v7471 = vpop.f32.mrb[0].mxu0
        %v7472 = vadd.f32 %v7311, %v7471
        %v7473 = vpop.f32.mrb[0].mxu0
        %7474 = vmatprep.mubr.bf16.mxu0 %v6849
        %7475 = vmatmul.mubr.bf16.gmra.mrb[0].mxu0 %v6848
        %v7476 = vpop.f32.mrb[0].mxu0
        %v7477 = vadd.f32 %v7316, %v7476
        %v7478 = vpop.f32.mrb[0].mxu0
        %v7479 = vpop.f32.mrb[0].mxu0
        %v7480 = vadd.f32 %v7319, %v7479
        %v7481 = vpop.f32.mrb[0].mxu0
        %7482 = vmatprep.mubr.bf16.mxu0 %v6854
        %7483 = vmatmul.mubr.bf16.gmra.mrb[0].mxu0 %v6853
        %v7484 = vpop.f32.mrb[0].mxu0
        %v7485 = vadd.f32 %v7324, %v7484
        %v7486 = vpop.f32.mrb[0].mxu0
        %v7487 = vpop.f32.mrb[0].mxu0
        %v7488 = vadd.f32 %v7327, %v7487
        %v7489 = vpop.f32.mrb[0].mxu0
        %7490 = vmatprep.mubr.bf16.mxu0 %v6859
        %7491 = vmatmul.mubr.bf16.gmra.mrb[0].mxu0 %v6858
        %v7492 = vpop.f32.mrb[0].mxu0
        %v7493 = vadd.f32 %v7332, %v7492
        %v7494 = vpop.f32.mrb[0].mxu0
        %v7495 = vpop.f32.mrb[0].mxu0
        %v7496 = vadd.f32 %v7335, %v7495
        %v7497 = vpop.f32.mrb[0].mxu0
        %7498 = vmatprep.mubr.bf16.mxu0 %v6864
        %7499 = vmatmul.mubr.bf16.gmra.mrb[0].mxu0 %v6863
        %v7500 = vpop.f32.mrb[0].mxu0
        %v7501 = vadd.f32 %v7340, %v7500
        %v7502 = vpop.f32.mrb[0].mxu0
        %v7503 = vpop.f32.mrb[0].mxu0
        %v7504 = vadd.f32 %v7343, %v7503
        %v7505 = vpop.f32.mrb[0].mxu0
        %7506 = vmatprep.mubr.bf16.mxu0 %v6869
        %7507 = vmatmul.mubr.bf16.gmra.mrb[0].mxu0 %v6868
        %v7508 = vpop.f32.mrb[0].mxu0
        %v7509 = vadd.f32 %v7348, %v7508
        %v7510 = vpop.f32.mrb[0].mxu0
        %v7511 = vpop.f32.mrb[0].mxu0
        %v7512 = vadd.f32 %v7351, %v7511
        %v7513 = vpop.f32.mrb[0].mxu0
        %7514 = vmatprep.mubr.bf16.mxu0 %v6874
        %7515 = vmatmul.mubr.bf16.gmra.mrb[0].mxu0 %v6873
        %v7516 = vpop.f32.mrb[0].mxu0
        %v7517 = vadd.f32 %v7356, %v7516
        %v7518 = vpop.f32.mrb[0].mxu0
        %v7519 = vpop.f32.mrb[0].mxu0
        %v7520 = vadd.f32 %v7359, %v7519
        %v7521 = vpop.f32.mrb[0].mxu0
        %7522 = vmatprep.mubr.bf16.mxu0 %v6879
        %7523 = vmatmul.mubr.bf16.gmra.mrb[0].mxu0 %v6878
        %v7524 = vpop.f32.mrb[0].mxu0
        %v7525 = vadd.f32 %v7364, %v7524
        %v7526 = vpop.f32.mrb[0].mxu0
        %v7527 = vpop.f32.mrb[0].mxu0
        %v7528 = vadd.f32 %v7367, %v7527
        %v7529 = vpop.f32.mrb[0].mxu0
        %7530 = vmatprep.mubr.bf16.mxu0 %v6884
        %7531 = vmatmul.mubr.bf16.gmra.mrb[0].mxu0 %v6883
        %v7532 = vpop.f32.mrb[0].mxu0
        %v7533 = vadd.f32 %v7372, %v7532
        %v7534 = vpop.f32.mrb[0].mxu0
        %v7535 = vpop.f32.mrb[0].mxu0
        %v7536 = vadd.f32 %v7375, %v7535
        %v7537 = vpop.f32.mrb[0].mxu0
        %7538 = vmatprep.mubr.bf16.mxu0 %v6889
        %7539 = vmatmul.mubr.bf16.gmra.mrb[0].mxu0 %v6888
        %v7540 = vpop.f32.mrb[0].mxu0
        %v7541 = vadd.f32 %v7380, %v7540
        %v7542 = vpop.f32.mrb[0].mxu0
        %v7543 = vpop.f32.mrb[0].mxu0
        %v7544 = vadd.f32 %v7383, %v7543
        %v7545 = vpop.f32.mrb[0].mxu0
        %7546 = vmatprep.mubr.bf16.mxu0 %v6894
        %7547 = vmatmul.mubr.bf16.gmra.mrb[0].mxu0 %v6893
        %v7548 = vpop.f32.mrb[0].mxu0
        %v7549 = vadd.f32 %v7388, %v7548
        %v7550 = vpop.f32.mrb[0].mxu0
        %v7551 = vpop.f32.mrb[0].mxu0
        %v7552 = vadd.f32 %v7391, %v7551
        %v7553 = vpop.f32.mrb[0].mxu0
        %7554 = vmatprep.mubr.bf16.mxu0 %v6899
        %7555 = vmatmul.mubr.bf16.gmra.mrb[0].mxu0 %v6898
        %v7556 = vpop.f32.mrb[0].mxu0
        %v7557 = vadd.f32 %v7396, %v7556
        %v7558 = vpop.f32.mrb[0].mxu0
        %v7559 = vpop.f32.mrb[0].mxu0
        %v7560 = vadd.f32 %v7399, %v7559
        %v7561 = vpop.f32.mrb[0].mxu0
        %7562 = vmatprep.mubr.bf16.mxu0 %v6904
        %7563 = vmatmul.mubr.bf16.gmra.mrb[0].mxu0 %v6903
        %v7564 = vpop.f32.mrb[0].mxu0
        %v7565 = vadd.f32 %v7404, %v7564
        %v7566 = vpop.f32.mrb[0].mxu0
        %v7567 = vpop.f32.mrb[0].mxu0
        %v7568 = vadd.f32 %v7407, %v7567
        %v7569 = vpop.f32.mrb[0].mxu0
        %7570 = vdwg.mxu0
        %7571 = vmatprep.subr.bf16.mxu0 0
        %7572 = vmatpush1.bf16.msra.mxu0 %v7161
        %7573 = vmatprep.subr.bf16.mxu0 0
        %7574 = vmatpush1.bf16.msra.mxu0 %v7162
        %7575 = vmatprep.subr.bf16.mxu0 0
        %7576 = vmatpush1.bf16.msra.mxu0 %v7163
        %7577 = vmatprep.subr.bf16.mxu0 0
        %7578 = vmatpush1.bf16.msra.mxu0 %v7164
        %7579 = vmatprep.subr.bf16.mxu0 0
        %7580 = vmatpush1.bf16.msra.mxu0 0
        %7581 = vmatprep.subr.bf16.mxu0 0
        %7582 = vmatpush1.bf16.msra.mxu0 0
        %7583 = vmatprep.subr.bf16.mxu0 0
        %7584 = vmatpush1.bf16.msra.mxu0 0
        %7585 = vmatprep.subr.bf16.mxu0 0
        %7586 = vmatpush1.bf16.msra.mxu0 0
        %7587 = vmatprep.subr.bf16.mxu0 0
        %7588 = vmatpush1.bf16.msra.mxu0 0
        %7589 = vmatprep.subr.bf16.mxu0 0
        %7590 = vmatpush1.bf16.msra.mxu0 0
        %7591 = vmatprep.subr.bf16.mxu0 0
        %7592 = vmatpush1.bf16.msra.mxu0 0
        %7593 = vmatprep.subr.bf16.mxu0 0
        %7594 = vmatpush1.bf16.msra.mxu0 0
        %7595 = vmatprep.subr.bf16.mxu0 0
        %7596 = vmatpush1.bf16.msra.mxu0 0
        %7597 = vmatprep.subr.bf16.mxu0 0
        %7598 = vmatpush1.bf16.msra.mxu0 0
        %7599 = vmatprep.subr.bf16.mxu0 0
        %7600 = vmatpush1.bf16.msra.mxu0 0
        %7601 = vmatprep.subr.bf16.mxu0 0
        %7602 = vmatpush1.bf16.msra.mxu0 0
        %7603 = vmatprep.mubr.bf16.mxu0 0
        %7604 = vmatmul.mubr.bf16.gmra.mrb[0].mxu0 %v7202
        %v7605 = vpop.f32.mrb[0].mxu0
        %v7606 = vadd.f32 %v7445, %v7605
        %v7607 = vpop.f32.mrb[0].mxu0
        %v7608 = vpop.f32.mrb[0].mxu0
        %v7609 = vadd.f32 %v7448, %v7608
        %v7610 = vpop.f32.mrb[0].mxu0
        %7611 = vmatprep.mubr.bf16.mxu0 0
        %7612 = vmatmul.mubr.bf16.gmra.mrb[0].mxu0 %v7205
        %v7613 = vpop.f32.mrb[0].mxu0
        %v7614 = vadd.f32 %v7453, %v7613
        %v7615 = vpop.f32.mrb[0].mxu0
        %v7616 = vpop.f32.mrb[0].mxu0
        %v7617 = vadd.f32 %v7456, %v7616
        %v7618 = vpop.f32.mrb[0].mxu0
        %7619 = vmatprep.mubr.bf16.mxu0 0
        %7620 = vmatmul.mubr.bf16.gmra.mrb[0].mxu0 %v7208
        %v7621 = vpop.f32.mrb[0].mxu0
        %v7622 = vadd.f32 %v7461, %v7621
        %v7623 = vpop.f32.mrb[0].mxu0
        %v7624 = vpop.f32.mrb[0].mxu0
        %v7625 = vadd.f32 %v7464, %v7624
        %v7626 = vpop.f32.mrb[0].mxu0
        %7627 = vmatprep.mubr.bf16.mxu0 0
        %7628 = vmatmul.mubr.bf16.gmra.mrb[0].mxu0 %v7211
        %v7629 = vpop.f32.mrb[0].mxu0
        %v7630 = vadd.f32 %v7469, %v7629
        %v7631 = vpop.f32.mrb[0].mxu0
        %v7632 = vpop.f32.mrb[0].mxu0
        %v7633 = vadd.f32 %v7472, %v7632
        %v7634 = vpop.f32.mrb[0].mxu0
        %7635 = vmatprep.mubr.bf16.mxu0 0
        %7636 = vmatmul.mubr.bf16.gmra.mrb[0].mxu0 %v7214
        %v7637 = vpop.f32.mrb[0].mxu0
        %v7638 = vadd.f32 %v7477, %v7637
        %v7639 = vpop.f32.mrb[0].mxu0
        %v7640 = vpop.f32.mrb[0].mxu0
        %v7641 = vadd.f32 %v7480, %v7640
        %v7642 = vpop.f32.mrb[0].mxu0
        %7643 = vmatprep.mubr.bf16.mxu0 0
        %7644 = vmatmul.mubr.bf16.gmra.mrb[0].mxu0 %v7217
        %v7645 = vpop.f32.mrb[0].mxu0
        %v7646 = vadd.f32 %v7485, %v7645
        %v7647 = vpop.f32.mrb[0].mxu0
        %v7648 = vpop.f32.mrb[0].mxu0
        %v7649 = vadd.f32 %v7488, %v7648
        %v7650 = vpop.f32.mrb[0].mxu0
        %7651 = vmatprep.mubr.bf16.mxu0 0
        %7652 = vmatmul.mubr.bf16.gmra.mrb[0].mxu0 %v7220
        %v7653 = vpop.f32.mrb[0].mxu0
        %v7654 = vadd.f32 %v7493, %v7653
        %v7655 = vpop.f32.mrb[0].mxu0
        %v7656 = vpop.f32.mrb[0].mxu0
        %v7657 = vadd.f32 %v7496, %v7656
        %v7658 = vpop.f32.mrb[0].mxu0
        %7659 = vmatprep.mubr.bf16.mxu0 0
        %7660 = vmatmul.mubr.bf16.gmra.mrb[0].mxu0 %v7223
        %v7661 = vpop.f32.mrb[0].mxu0
        %v7662 = vadd.f32 %v7501, %v7661
        %v7663 = vpop.f32.mrb[0].mxu0
        %v7664 = vpop.f32.mrb[0].mxu0
        %v7665 = vadd.f32 %v7504, %v7664
        %v7666 = vpop.f32.mrb[0].mxu0
        %7667 = vmatprep.mubr.bf16.mxu0 0
        %7668 = vmatmul.mubr.bf16.gmra.mrb[0].mxu0 %v7226
        %v7669 = vpop.f32.mrb[0].mxu0
        %v7670 = vadd.f32 %v7509, %v7669
        %v7671 = vpop.f32.mrb[0].mxu0
        %v7672 = vpop.f32.mrb[0].mxu0
        %v7673 = vadd.f32 %v7512, %v7672
        %v7674 = vpop.f32.mrb[0].mxu0
        %7675 = vmatprep.mubr.bf16.mxu0 0
        %7676 = vmatmul.mubr.bf16.gmra.mrb[0].mxu0 %v7229
        %v7677 = vpop.f32.mrb[0].mxu0
        %v7678 = vadd.f32 %v7517, %v7677
        %v7679 = vpop.f32.mrb[0].mxu0
        %v7680 = vpop.f32.mrb[0].mxu0
        %v7681 = vadd.f32 %v7520, %v7680
        %v7682 = vpop.f32.mrb[0].mxu0
        %7683 = vmatprep.mubr.bf16.mxu0 0
        %7684 = vmatmul.mubr.bf16.gmra.mrb[0].mxu0 %v7232
        %v7685 = vpop.f32.mrb[0].mxu0
        %v7686 = vadd.f32 %v7525, %v7685
        %v7687 = vpop.f32.mrb[0].mxu0
        %v7688 = vpop.f32.mrb[0].mxu0
        %v7689 = vadd.f32 %v7528, %v7688
        %v7690 = vpop.f32.mrb[0].mxu0
        %7691 = vmatprep.mubr.bf16.mxu0 0
        %7692 = vmatmul.mubr.bf16.gmra.mrb[0].mxu0 %v7235
        %v7693 = vpop.f32.mrb[0].mxu0
        %v7694 = vadd.f32 %v7533, %v7693
        %v7695 = vpop.f32.mrb[0].mxu0
        %v7696 = vpop.f32.mrb[0].mxu0
        %v7697 = vadd.f32 %v7536, %v7696
        %v7698 = vpop.f32.mrb[0].mxu0
        %7699 = vmatprep.mubr.bf16.mxu0 0
        %7700 = vmatmul.mubr.bf16.gmra.mrb[0].mxu0 %v7238
        %v7701 = vpop.f32.mrb[0].mxu0
        %v7702 = vadd.f32 %v7541, %v7701
        %v7703 = vpop.f32.mrb[0].mxu0
        %v7704 = vpop.f32.mrb[0].mxu0
        %v7705 = vadd.f32 %v7544, %v7704
        %v7706 = vpop.f32.mrb[0].mxu0
        %7707 = vmatprep.mubr.bf16.mxu0 0
        %7708 = vmatmul.mubr.bf16.gmra.mrb[0].mxu0 %v7241
        %v7709 = vpop.f32.mrb[0].mxu0
        %v7710 = vadd.f32 %v7549, %v7709
        %v7711 = vpop.f32.mrb[0].mxu0
        %v7712 = vpop.f32.mrb[0].mxu0
        %v7713 = vadd.f32 %v7552, %v7712
        %v7714 = vpop.f32.mrb[0].mxu0
        %7715 = vmatprep.mubr.bf16.mxu0 0
        %7716 = vmatmul.mubr.bf16.gmra.mrb[0].mxu0 %v7244
        %v7717 = vpop.f32.mrb[0].mxu0
        %v7718 = vadd.f32 %v7557, %v7717
        %v7719 = vpop.f32.mrb[0].mxu0
        %v7720 = vpop.f32.mrb[0].mxu0
        %v7721 = vadd.f32 %v7560, %v7720
        %v7722 = vpop.f32.mrb[0].mxu0
        %7723 = vmatprep.mubr.bf16.mxu0 0
        %7724 = vmatmul.mubr.bf16.gmra.mrb[0].mxu0 %v7247
        %v7725 = vpop.f32.mrb[0].mxu0
        %v7726 = vadd.f32 %v7565, %v7725
        %v7727 = vpop.f32.mrb[0].mxu0
        %v7728 = vpop.f32.mrb[0].mxu0
        %v7729 = vadd.f32 %v7568, %v7728
        %v7730 = vpop.f32.mrb[0].mxu0
        %7731 = vdwg.mxu0
        %v7732 = vtanh.pop %v7606
        %v7733 = vtanh.pop %v7609
        %v7734 = vtanh.pop %v7614
        %v7735 = vtanh.pop %v7617
        %v7736 = vtanh.pop %v7622
        %v7737 = vtanh.pop %v7625
        %v7738 = vtanh.pop %v7630
        %v7739 = vtanh.pop %v7633
        %v7740 = vtanh.pop %v7638
        %v7741 = vtanh.pop %v7641
        %v7742 = vtanh.pop %v7646
        %v7743 = vtanh.pop %v7649
        %v7744 = vtanh.pop %v7654
        %v7745 = vtanh.pop %v7657
        %v7746 = vtanh.pop %v7662
        %v7747 = vtanh.pop %v7665
        %v7748 = vtanh.pop %v7670
        %v7749 = vtanh.pop %v7673
        %v7750 = vtanh.pop %v7678
        %v7751 = vtanh.pop %v7681
        %v7752 = vtanh.pop %v7686
        %v7753 = vtanh.pop %v7689
        %v7754 = vtanh.pop %v7694
        %v7755 = vtanh.pop %v7697
        %v7756 = vtanh.pop %v7702
        %v7757 = vtanh.pop %v7705
        %v7758 = vtanh.pop %v7710
        %v7759 = vtanh.pop %v7713
        %v7760 = vtanh.pop %v7718
        %v7761 = vtanh.pop %v7721
        %v7762 = vtanh.pop %v7726
        %v7763 = vtanh.pop %v7729
        %vm7764 = vcmask 261120
        %7765 = vst.msk [vmem:[#allocation4] sm:$0xff] %vm7764, 0.0
        %7766 = vst.msk [vmem:[#allocation4 + $0x8] sm:$0xff] %vm7764, 0.0
        %vm7767 = vcmask 254976
        %7768 = vst.msk [vmem:[#allocation4 + $0x10] sm:$0x3] %vm7767, 0.0
        %7769 = vst.msk [vmem:[#allocation4 + $0x18] sm:$0xff] %vm7764, 0.0
        %7770 = vst.msk [vmem:[#allocation4 + $0x20] sm:$0xff] %vm7764, 0.0
        %7771 = vst.msk [vmem:[#allocation4 + $0x28] sm:$0x3] %vm7767, 0.0
        %7772 = vst.msk [vmem:[#allocation4 + $0x30] sm:$0xff] %vm7764, 0.0
        %7773 = vst.msk [vmem:[#allocation4 + $0x38] sm:$0xff] %vm7764, 0.0
        %7774 = vst.msk [vmem:[#allocation4 + $0x40] sm:$0x3] %vm7767, 0.0
        %7775 = vst.msk [vmem:[#allocation4 + $0x48] sm:$0xff] %vm7764, 0.0
        %7776 = vst.msk [vmem:[#allocation4 + $0x50] sm:$0xff] %vm7764, 0.0
        %7777 = vst.msk [vmem:[#allocation4 + $0x58] sm:$0x3] %vm7767, 0.0
        %7778 = vst.msk [vmem:[#allocation4 + $0x60] sm:$0xff] %vm7764, 0.0
        %7779 = vst.msk [vmem:[#allocation4 + $0x68] sm:$0xff] %vm7764, 0.0
        %7780 = vst.msk [vmem:[#allocation4 + $0x70] sm:$0x3] %vm7767, 0.0
        %7781 = vst.msk [vmem:[#allocation4 + $0x78] sm:$0xff] %vm7764, 0.0
        %7782 = vst.msk [vmem:[#allocation4 + $0x80] sm:$0xff] %vm7764, 0.0
        %7783 = vst.msk [vmem:[#allocation4 + $0x88] sm:$0x3] %vm7767, 0.0
        %7784 = vst.msk [vmem:[#allocation4 + $0x90] sm:$0xff] %vm7764, 0.0
        %7785 = vst.msk [vmem:[#allocation4 + $0x98] sm:$0xff] %vm7764, 0.0
        %7786 = vst.msk [vmem:[#allocation4 + $0xa0] sm:$0x3] %vm7767, 0.0
        %7787 = vst.msk [vmem:[#allocation4 + $0xa8] sm:$0xff] %vm7764, 0.0
        %7788 = vst.msk [vmem:[#allocation4 + $0xb0] sm:$0xff] %vm7764, 0.0
        %7789 = vst.msk [vmem:[#allocation4 + $0xb8] sm:$0x3] %vm7767, 0.0
        %7790 = vst.msk [vmem:[#allocation4 + $0xc0] sm:$0xff] %vm7764, 0.0
        %7791 = vst.msk [vmem:[#allocation4 + $0xc8] sm:$0xff] %vm7764, 0.0
        %7792 = vst.msk [vmem:[#allocation4 + $0xd0] sm:$0x3] %vm7767, 0.0
        %7793 = vst.msk [vmem:[#allocation4 + $0xd8] sm:$0xff] %vm7764, 0.0
        %7794 = vst.msk [vmem:[#allocation4 + $0xe0] sm:$0xff] %vm7764, 0.0
        %7795 = vst.msk [vmem:[#allocation4 + $0xe8] sm:$0x3] %vm7767, 0.0
        %7796 = vst.msk [vmem:[#allocation4 + $0xf0] sm:$0xff] %vm7764, 0.0
        %7797 = vst.msk [vmem:[#allocation4 + $0xf8] sm:$0xff] %vm7764, 0.0
        %7798 = vst.msk [vmem:[#allocation4 + $0x100] sm:$0x3] %vm7767, 0.0
        %7799 = vst.msk [vmem:[#allocation4 + $0x108] sm:$0xff] %vm7764, 0.0
        %7800 = vst.msk [vmem:[#allocation4 + $0x110] sm:$0xff] %vm7764, 0.0
        %7801 = vst.msk [vmem:[#allocation4 + $0x118] sm:$0x3] %vm7767, 0.0
        %7802 = vst.msk [vmem:[#allocation4 + $0x120] sm:$0xff] %vm7764, 0.0
        %7803 = vst.msk [vmem:[#allocation4 + $0x128] sm:$0xff] %vm7764, 0.0
        %7804 = vst.msk [vmem:[#allocation4 + $0x130] sm:$0x3] %vm7767, 0.0
        %7805 = vst.msk [vmem:[#allocation4 + $0x138] sm:$0xff] %vm7764, 0.0
        %7806 = vst.msk [vmem:[#allocation4 + $0x140] sm:$0xff] %vm7764, 0.0
        %7807 = vst.msk [vmem:[#allocation4 + $0x148] sm:$0x3] %vm7767, 0.0
        %7808 = vst.msk [vmem:[#allocation4 + $0x150] sm:$0xff] %vm7764, 0.0
        %7809 = vst.msk [vmem:[#allocation4 + $0x158] sm:$0xff] %vm7764, 0.0
        %7810 = vst.msk [vmem:[#allocation4 + $0x160] sm:$0x3] %vm7767, 0.0
        %7811 = vst.msk [vmem:[#allocation4 + $0x168] sm:$0xff] %vm7764, 0.0
        %7812 = vst.msk [vmem:[#allocation4 + $0x170] sm:$0xff] %vm7764, 0.0
        %7813 = vst.msk [vmem:[#allocation4 + $0x178] sm:$0x3] %vm7767, 0.0
        %7814 = vst.msk [vmem:[#allocation4 + $0x180] sm:$0xff] %vm7764, 0.0
        %7815 = vst.msk [vmem:[#allocation4 + $0x188] sm:$0xff] %vm7764, 0.0
        %7816 = vst.msk [vmem:[#allocation4 + $0x190] sm:$0x3] %vm7767, 0.0
        %7817 = vst.msk [vmem:[#allocation4 + $0x198] sm:$0xff] %vm7764, 0.0
        %7818 = vst.msk [vmem:[#allocation4 + $0x1a0] sm:$0xff] %vm7764, 0.0
        %7819 = vst.msk [vmem:[#allocation4 + $0x1a8] sm:$0x3] %vm7767, 0.0
        %s7820 = scalar_lea.vmem [#allocation4], 24
        %7821 = vst.msk [vmem:[%s7820 + $0x1] sm:$0xff] %vm7764, %v7732
        %7822 = vst.msk [vmem:[%s7820 + $0x9] sm:$0xff] %vm7764, %v7733
        %7823 = vst.msk [vmem:[%s7820 + $0x19] sm:$0xff] %vm7764, %v7734
        %7824 = vst.msk [vmem:[%s7820 + $0x21] sm:$0xff] %vm7764, %v7735
        %7825 = vst.msk [vmem:[%s7820 + $0x31] sm:$0xff] %vm7764, %v7736
        %7826 = vst.msk [vmem:[%s7820 + $0x39] sm:$0xff] %vm7764, %v7737
        %7827 = vst.msk [vmem:[%s7820 + $0x49] sm:$0xff] %vm7764, %v7738
        %7828 = vst.msk [vmem:[%s7820 + $0x51] sm:$0xff] %vm7764, %v7739
        %7829 = vst.msk [vmem:[%s7820 + $0x61] sm:$0xff] %vm7764, %v7740
        %7830 = vst.msk [vmem:[%s7820 + $0x69] sm:$0xff] %vm7764, %v7741
        %7831 = vst.msk [vmem:[%s7820 + $0x79] sm:$0xff] %vm7764, %v7742
        %7832 = vst.msk [vmem:[%s7820 + $0x81] sm:$0xff] %vm7764, %v7743
        %7833 = vst.msk [vmem:[%s7820 + $0x91] sm:$0xff] %vm7764, %v7744
        %7834 = vst.msk [vmem:[%s7820 + $0x99] sm:$0xff] %vm7764, %v7745
        %7835 = vst.msk [vmem:[%s7820 + $0xa9] sm:$0xff] %vm7764, %v7746
        %7836 = vst.msk [vmem:[%s7820 + $0xb1] sm:$0xff] %vm7764, %v7747
        %7837 = vst.msk [vmem:[%s7820 + $0xc1] sm:$0xff] %vm7764, %v7748
        %7838 = vst.msk [vmem:[%s7820 + $0xc9] sm:$0xff] %vm7764, %v7749
        %7839 = vst.msk [vmem:[%s7820 + $0xd9] sm:$0xff] %vm7764, %v7750
        %7840 = vst.msk [vmem:[%s7820 + $0xe1] sm:$0xff] %vm7764, %v7751
        %7841 = vst.msk [vmem:[%s7820 + $0xf1] sm:$0xff] %vm7764, %v7752
        %7842 = vst.msk [vmem:[%s7820 + $0xf9] sm:$0xff] %vm7764, %v7753
        %7843 = vst.msk [vmem:[%s7820 + $0x109] sm:$0xff] %vm7764, %v7754
        %7844 = vst.msk [vmem:[%s7820 + $0x111] sm:$0xff] %vm7764, %v7755
        %7845 = vst.msk [vmem:[%s7820 + $0x121] sm:$0xff] %vm7764, %v7756
        %7846 = vst.msk [vmem:[%s7820 + $0x129] sm:$0xff] %vm7764, %v7757
        %7847 = vst.msk [vmem:[%s7820 + $0x139] sm:$0xff] %vm7764, %v7758
        %7848 = vst.msk [vmem:[%s7820 + $0x141] sm:$0xff] %vm7764, %v7759
        %7849 = vst.msk [vmem:[%s7820 + $0x151] sm:$0xff] %vm7764, %v7760
        %7850 = vst.msk [vmem:[%s7820 + $0x159] sm:$0xff] %vm7764, %v7761
        %7851 = vst.msk [vmem:[%s7820 + $0x169] sm:$0xff] %vm7764, %v7762
        %7852 = vst.msk [vmem:[%s7820 + $0x171] sm:$0xff] %vm7764, %v7763
        %v7853 = vld [vmem:[#allocation4] sm:$0xff]
        %v7854 = vld [vmem:[#allocation4 + $0x8] sm:$0xff]
        %v7855 = vld [vmem:[#allocation4 + $0x18] sm:$0xff]
        %v7856 = vld [vmem:[#allocation4 + $0x20] sm:$0xff]
        %v7857 = vld [vmem:[#allocation4 + $0x30] sm:$0xff]
        %v7858 = vld [vmem:[#allocation4 + $0x38] sm:$0xff]
        %v7859 = vld [vmem:[#allocation4 + $0x48] sm:$0xff]
        %v7860 = vld [vmem:[#allocation4 + $0x50] sm:$0xff]
        %v7861 = vld [vmem:[#allocation4 + $0x60] sm:$0xff]
        %v7862 = vld [vmem:[#allocation4 + $0x68] sm:$0xff]
        %v7863 = vld [vmem:[#allocation4 + $0x78] sm:$0xff]
        %v7864 = vld [vmem:[#allocation4 + $0x80] sm:$0xff]
        %v7865 = vld [vmem:[#allocation4 + $0x90] sm:$0xff]
        %v7866 = vld [vmem:[#allocation4 + $0x98] sm:$0xff]
        %v7867 = vld [vmem:[#allocation4 + $0xa8] sm:$0xff]
        %v7868 = vld [vmem:[#allocation4 + $0xb0] sm:$0xff]
        %v7869 = vld [vmem:[#allocation4 + $0xc0] sm:$0xff]
        %v7870 = vld [vmem:[#allocation4 + $0xc8] sm:$0xff]
        %v7871 = vld [vmem:[#allocation4 + $0xd8] sm:$0xff]
        %v7872 = vld [vmem:[#allocation4 + $0xe0] sm:$0xff]
        %v7873 = vld [vmem:[#allocation4 + $0xf0] sm:$0xff]
        %v7874 = vld [vmem:[#allocation4 + $0xf8] sm:$0xff]
        %v7875 = vld [vmem:[#allocation4 + $0x108] sm:$0xff]
        %v7876 = vld [vmem:[#allocation4 + $0x110] sm:$0xff]
        %v7877 = vld [vmem:[#allocation4 + $0x120] sm:$0xff]
        %v7878 = vld [vmem:[#allocation4 + $0x128] sm:$0xff]
        %v7879 = vld [vmem:[#allocation4 + $0x138] sm:$0xff]
        %v7880 = vld [vmem:[#allocation4 + $0x140] sm:$0xff]
        %v7881 = vld [vmem:[#allocation4 + $0x150] sm:$0xff]
        %v7882 = vld [vmem:[#allocation4 + $0x158] sm:$0xff]
        %v7883 = vld [vmem:[#allocation4 + $0x168] sm:$0xff]
        %v7884 = vld [vmem:[#allocation4 + $0x170] sm:$0xff]
        %7885 = vst.msk [vmem:[#allocation7] sm:$0xff] %vm7764, %v7853
        %7886 = vst.msk [vmem:[#allocation7 + $0x18] sm:$0xff] %vm7764, %v7854
        %7887 = vst.msk [vmem:[#allocation7 + $0x30] sm:$0xff] %vm7764, %v7855
        %7888 = vst.msk [vmem:[#allocation7 + $0x48] sm:$0xff] %vm7764, %v7856
        %7889 = vst.msk [vmem:[#allocation7 + $0x60] sm:$0xff] %vm7764, %v7857
        %7890 = vst.msk [vmem:[#allocation7 + $0x78] sm:$0xff] %vm7764, %v7858
        %7891 = vst.msk [vmem:[#allocation7 + $0x90] sm:$0xff] %vm7764, %v7859
        %7892 = vst.msk [vmem:[#allocation7 + $0xa8] sm:$0xff] %vm7764, %v7860
        %7893 = vst.msk [vmem:[#allocation7 + $0xc0] sm:$0xff] %vm7764, %v7861
        %7894 = vst.msk [vmem:[#allocation7 + $0xd8] sm:$0xff] %vm7764, %v7862
        %7895 = vst.msk [vmem:[#allocation7 + $0xf0] sm:$0xff] %vm7764, %v7863
        %7896 = vst.msk [vmem:[#allocation7 + $0x108] sm:$0xff] %vm7764, %v7864
        %7897 = vst.msk [vmem:[#allocation7 + $0x120] sm:$0xff] %vm7764, %v7865
        %7898 = vst.msk [vmem:[#allocation7 + $0x138] sm:$0xff] %vm7764, %v7866
        %7899 = vst.msk [vmem:[#allocation7 + $0x150] sm:$0xff] %vm7764, %v7867
        %7900 = vst.msk [vmem:[#allocation7 + $0x168] sm:$0xff] %vm7764, %v7868
        %7901 = vst.msk [vmem:[#allocation7 + $0x180] sm:$0xff] %vm7764, %v7869
        %7902 = vst.msk [vmem:[#allocation7 + $0x198] sm:$0xff] %vm7764, %v7870
        %7903 = vst.msk [vmem:[#allocation7 + $0x1b0] sm:$0xff] %vm7764, %v7871
        %7904 = vst.msk [vmem:[#allocation7 + $0x1c8] sm:$0xff] %vm7764, %v7872
        %7905 = vst.msk [vmem:[#allocation7 + $0x1e0] sm:$0xff] %vm7764, %v7873
        %7906 = vst.msk [vmem:[#allocation7 + $0x1f8] sm:$0xff] %vm7764, %v7874
        %7907 = vst.msk [vmem:[#allocation7 + $0x210] sm:$0xff] %vm7764, %v7875
        %7908 = vst.msk [vmem:[#allocation7 + $0x228] sm:$0xff] %vm7764, %v7876
        %7909 = vst.msk [vmem:[#allocation7 + $0x240] sm:$0xff] %vm7764, %v7877
        %7910 = vst.msk [vmem:[#allocation7 + $0x258] sm:$0xff] %vm7764, %v7878
        %7911 = vst.msk [vmem:[#allocation7 + $0x270] sm:$0xff] %vm7764, %v7879
        %7912 = vst.msk [vmem:[#allocation7 + $0x288] sm:$0xff] %vm7764, %v7880
        %7913 = vst.msk [vmem:[#allocation7 + $0x2a0] sm:$0xff] %vm7764, %v7881
        %7914 = vst.msk [vmem:[#allocation7 + $0x2b8] sm:$0xff] %vm7764, %v7882
        %7915 = vst.msk [vmem:[#allocation7 + $0x2d0] sm:$0xff] %vm7764, %v7883
        %7916 = vst.msk [vmem:[#allocation7 + $0x2e8] sm:$0xff] %vm7764, %v7884
        %v7917 = vld [vmem:[#allocation4 + $0x1] sm:$0xff]
        %v7918 = vld [vmem:[#allocation4 + $0x9] sm:$0xff]
        %v7919 = vld [vmem:[#allocation4 + $0x19] sm:$0xff]
        %v7920 = vld [vmem:[#allocation4 + $0x21] sm:$0xff]
        %v7921 = vld [vmem:[#allocation4 + $0x31] sm:$0xff]
        %v7922 = vld [vmem:[#allocation4 + $0x39] sm:$0xff]
        %v7923 = vld [vmem:[#allocation4 + $0x49] sm:$0xff]
        %v7924 = vld [vmem:[#allocation4 + $0x51] sm:$0xff]
        %v7925 = vld [vmem:[#allocation4 + $0x61] sm:$0xff]
        %v7926 = vld [vmem:[#allocation4 + $0x69] sm:$0xff]
        %v7927 = vld [vmem:[#allocation4 + $0x79] sm:$0xff]
        %v7928 = vld [vmem:[#allocation4 + $0x81] sm:$0xff]
        %v7929 = vld [vmem:[#allocation4 + $0x91] sm:$0xff]
        %v7930 = vld [vmem:[#allocation4 + $0x99] sm:$0xff]
        %v7931 = vld [vmem:[#allocation4 + $0xa9] sm:$0xff]
        %v7932 = vld [vmem:[#allocation4 + $0xb1] sm:$0xff]
        %v7933 = vld [vmem:[#allocation4 + $0xc1] sm:$0xff]
        %v7934 = vld [vmem:[#allocation4 + $0xc9] sm:$0xff]
        %v7935 = vld [vmem:[#allocation4 + $0xd9] sm:$0xff]
        %v7936 = vld [vmem:[#allocation4 + $0xe1] sm:$0xff]
        %v7937 = vld [vmem:[#allocation4 + $0xf1] sm:$0xff]
        %v7938 = vld [vmem:[#allocation4 + $0xf9] sm:$0xff]
        %v7939 = vld [vmem:[#allocation4 + $0x109] sm:$0xff]
        %v7940 = vld [vmem:[#allocation4 + $0x111] sm:$0xff]
        %v7941 = vld [vmem:[#allocation4 + $0x121] sm:$0xff]
        %v7942 = vld [vmem:[#allocation4 + $0x129] sm:$0xff]
        %v7943 = vld [vmem:[#allocation4 + $0x139] sm:$0xff]
        %v7944 = vld [vmem:[#allocation4 + $0x141] sm:$0xff]
        %v7945 = vld [vmem:[#allocation4 + $0x151] sm:$0xff]
        %v7946 = vld [vmem:[#allocation4 + $0x159] sm:$0xff]
        %v7947 = vld [vmem:[#allocation4 + $0x169] sm:$0xff]
        %v7948 = vld [vmem:[#allocation4 + $0x171] sm:$0xff]
        %7981 = vrot.lane.b32.xlu0 %v7917, 32
        %v7982 = vpop.permute.xlu0 %7981
        %7983 = vrot.lane.b32.xlu0 %v7918, 32
        %v7984 = vpop.permute.xlu0 %7983
        %7985 = vrot.lane.b32.xlu0 %v7919, 32
        %v7986 = vpop.permute.xlu0 %7985
        %7987 = vrot.lane.b32.xlu0 %v7920, 32
        %v7988 = vpop.permute.xlu0 %7987
        %7989 = vrot.lane.b32.xlu0 %v7921, 32
        %v7990 = vpop.permute.xlu0 %7989
        %7991 = vrot.lane.b32.xlu0 %v7922, 32
        %v7992 = vpop.permute.xlu0 %7991
        %7993 = vrot.lane.b32.xlu0 %v7923, 32
        %v7994 = vpop.permute.xlu0 %7993
        %7995 = vrot.lane.b32.xlu0 %v7924, 32
        %v7996 = vpop.permute.xlu0 %7995
        %7997 = vrot.lane.b32.xlu0 %v7925, 32
        %v7998 = vpop.permute.xlu0 %7997
        %7999 = vrot.lane.b32.xlu0 %v7926, 32
        %v8000 = vpop.permute.xlu0 %7999
        %8001 = vrot.lane.b32.xlu0 %v7927, 32
        %v8002 = vpop.permute.xlu0 %8001
        %8003 = vrot.lane.b32.xlu0 %v7928, 32
        %v8004 = vpop.permute.xlu0 %8003
        %8005 = vrot.lane.b32.xlu0 %v7929, 32
        %v8006 = vpop.permute.xlu0 %8005
        %8007 = vrot.lane.b32.xlu0 %v7930, 32
        %v8008 = vpop.permute.xlu0 %8007
        %8009 = vrot.lane.b32.xlu0 %v7931, 32
        %v8010 = vpop.permute.xlu0 %8009
        %8011 = vrot.lane.b32.xlu0 %v7932, 32
        %v8012 = vpop.permute.xlu0 %8011
        %8013 = vrot.lane.b32.xlu0 %v7933, 32
        %v8014 = vpop.permute.xlu0 %8013
        %8015 = vrot.lane.b32.xlu0 %v7934, 32
        %v8016 = vpop.permute.xlu0 %8015
        %8017 = vrot.lane.b32.xlu0 %v7935, 32
        %v8018 = vpop.permute.xlu0 %8017
        %8019 = vrot.lane.b32.xlu0 %v7936, 32
        %v8020 = vpop.permute.xlu0 %8019
        %8021 = vrot.lane.b32.xlu0 %v7937, 32
        %v8022 = vpop.permute.xlu0 %8021
        %8023 = vrot.lane.b32.xlu0 %v7938, 32
        %v8024 = vpop.permute.xlu0 %8023
        %8025 = vrot.lane.b32.xlu0 %v7939, 32
        %v8026 = vpop.permute.xlu0 %8025
        %8027 = vrot.lane.b32.xlu0 %v7940, 32
        %v8028 = vpop.permute.xlu0 %8027
        %8029 = vrot.lane.b32.xlu0 %v7941, 32
        %v8030 = vpop.permute.xlu0 %8029
        %8031 = vrot.lane.b32.xlu0 %v7942, 32
        %v8032 = vpop.permute.xlu0 %8031
        %8033 = vrot.lane.b32.xlu0 %v7943, 32
        %v8034 = vpop.permute.xlu0 %8033
        %8035 = vrot.lane.b32.xlu0 %v7944, 32
        %v8036 = vpop.permute.xlu0 %8035
        %8037 = vrot.lane.b32.xlu0 %v7945, 32
        %v8038 = vpop.permute.xlu0 %8037
        %8039 = vrot.lane.b32.xlu0 %v7946, 32
        %v8040 = vpop.permute.xlu0 %8039
        %8041 = vrot.lane.b32.xlu0 %v7947, 32
        %v8042 = vpop.permute.xlu0 %8041
        %8043 = vrot.lane.b32.xlu0 %v7948, 32
        %v8044 = vpop.permute.xlu0 %8043
        %vm8077 = vcmask 523520
        %8078 = vst.msk [vmem:[#allocation7] sm:$0xff] %vm8077, %v7982
        %8079 = vst.msk [vmem:[#allocation7 + $0x18] sm:$0xff] %vm8077, %v7984
        %8080 = vst.msk [vmem:[#allocation7 + $0x30] sm:$0xff] %vm8077, %v7986
        %8081 = vst.msk [vmem:[#allocation7 + $0x48] sm:$0xff] %vm8077, %v7988
        %8082 = vst.msk [vmem:[#allocation7 + $0x60] sm:$0xff] %vm8077, %v7990
        %8083 = vst.msk [vmem:[#allocation7 + $0x78] sm:$0xff] %vm8077, %v7992
        %8084 = vst.msk [vmem:[#allocation7 + $0x90] sm:$0xff] %vm8077, %v7994
        %8085 = vst.msk [vmem:[#allocation7 + $0xa8] sm:$0xff] %vm8077, %v7996
        %8086 = vst.msk [vmem:[#allocation7 + $0xc0] sm:$0xff] %vm8077, %v7998
        %8087 = vst.msk [vmem:[#allocation7 + $0xd8] sm:$0xff] %vm8077, %v8000
        %8088 = vst.msk [vmem:[#allocation7 + $0xf0] sm:$0xff] %vm8077, %v8002
        %8089 = vst.msk [vmem:[#allocation7 + $0x108] sm:$0xff] %vm8077, %v8004
        %8090 = vst.msk [vmem:[#allocation7 + $0x120] sm:$0xff] %vm8077, %v8006
        %8091 = vst.msk [vmem:[#allocation7 + $0x138] sm:$0xff] %vm8077, %v8008
        %8092 = vst.msk [vmem:[#allocation7 + $0x150] sm:$0xff] %vm8077, %v8010
        %8093 = vst.msk [vmem:[#allocation7 + $0x168] sm:$0xff] %vm8077, %v8012
        %8094 = vst.msk [vmem:[#allocation7 + $0x180] sm:$0xff] %vm8077, %v8014
        %8095 = vst.msk [vmem:[#allocation7 + $0x198] sm:$0xff] %vm8077, %v8016
        %8096 = vst.msk [vmem:[#allocation7 + $0x1b0] sm:$0xff] %vm8077, %v8018
        %8097 = vst.msk [vmem:[#allocation7 + $0x1c8] sm:$0xff] %vm8077, %v8020
        %8098 = vst.msk [vmem:[#allocation7 + $0x1e0] sm:$0xff] %vm8077, %v8022
        %8099 = vst.msk [vmem:[#allocation7 + $0x1f8] sm:$0xff] %vm8077, %v8024
        %8100 = vst.msk [vmem:[#allocation7 + $0x210] sm:$0xff] %vm8077, %v8026
        %8101 = vst.msk [vmem:[#allocation7 + $0x228] sm:$0xff] %vm8077, %v8028
        %8102 = vst.msk [vmem:[#allocation7 + $0x240] sm:$0xff] %vm8077, %v8030
        %8103 = vst.msk [vmem:[#allocation7 + $0x258] sm:$0xff] %vm8077, %v8032
        %8104 = vst.msk [vmem:[#allocation7 + $0x270] sm:$0xff] %vm8077, %v8034
        %8105 = vst.msk [vmem:[#allocation7 + $0x288] sm:$0xff] %vm8077, %v8036
        %8106 = vst.msk [vmem:[#allocation7 + $0x2a0] sm:$0xff] %vm8077, %v8038
        %8107 = vst.msk [vmem:[#allocation7 + $0x2b8] sm:$0xff] %vm8077, %v8040
        %8108 = vst.msk [vmem:[#allocation7 + $0x2d0] sm:$0xff] %vm8077, %v8042
        %8109 = vst.msk [vmem:[#allocation7 + $0x2e8] sm:$0xff] %vm8077, %v8044
        %v8110 = vld [vmem:[#allocation4 + $0x2] sm:$0xff]
        %v8111 = vld [vmem:[#allocation4 + $0xa] sm:$0xff]
        %v8112 = vld [vmem:[#allocation4 + $0x1a] sm:$0xff]
        %v8113 = vld [vmem:[#allocation4 + $0x22] sm:$0xff]
        %v8114 = vld [vmem:[#allocation4 + $0x32] sm:$0xff]
        %v8115 = vld [vmem:[#allocation4 + $0x3a] sm:$0xff]
        %v8116 = vld [vmem:[#allocation4 + $0x4a] sm:$0xff]
        %v8117 = vld [vmem:[#allocation4 + $0x52] sm:$0xff]
        %v8118 = vld [vmem:[#allocation4 + $0x62] sm:$0xff]
        %v8119 = vld [vmem:[#allocation4 + $0x6a] sm:$0xff]
        %v8120 = vld [vmem:[#allocation4 + $0x7a] sm:$0xff]
        %v8121 = vld [vmem:[#allocation4 + $0x82] sm:$0xff]
        %v8122 = vld [vmem:[#allocation4 + $0x92] sm:$0xff]
        %v8123 = vld [vmem:[#allocation4 + $0x9a] sm:$0xff]
        %v8124 = vld [vmem:[#allocation4 + $0xaa] sm:$0xff]
        %v8125 = vld [vmem:[#allocation4 + $0xb2] sm:$0xff]
        %v8126 = vld [vmem:[#allocation4 + $0xc2] sm:$0xff]
        %v8127 = vld [vmem:[#allocation4 + $0xca] sm:$0xff]
        %v8128 = vld [vmem:[#allocation4 + $0xda] sm:$0xff]
        %v8129 = vld [vmem:[#allocation4 + $0xe2] sm:$0xff]
        %v8130 = vld [vmem:[#allocation4 + $0xf2] sm:$0xff]
        %v8131 = vld [vmem:[#allocation4 + $0xfa] sm:$0xff]
        %v8132 = vld [vmem:[#allocation4 + $0x10a] sm:$0xff]
        %v8133 = vld [vmem:[#allocation4 + $0x112] sm:$0xff]
        %v8134 = vld [vmem:[#allocation4 + $0x122] sm:$0xff]
        %v8135 = vld [vmem:[#allocation4 + $0x12a] sm:$0xff]
        %v8136 = vld [vmem:[#allocation4 + $0x13a] sm:$0xff]
        %v8137 = vld [vmem:[#allocation4 + $0x142] sm:$0xff]
        %v8138 = vld [vmem:[#allocation4 + $0x152] sm:$0xff]
        %v8139 = vld [vmem:[#allocation4 + $0x15a] sm:$0xff]
        %v8140 = vld [vmem:[#allocation4 + $0x16a] sm:$0xff]
        %v8141 = vld [vmem:[#allocation4 + $0x172] sm:$0xff]
        %8174 = vrot.lane.b32.xlu0 %v8110, 64
        %v8175 = vpop.permute.xlu0 %8174
        %8176 = vrot.lane.b32.xlu0 %v8111, 64
        %v8177 = vpop.permute.xlu0 %8176
        %8178 = vrot.lane.b32.xlu0 %v8112, 64
        %v8179 = vpop.permute.xlu0 %8178
        %8180 = vrot.lane.b32.xlu0 %v8113, 64
        %v8181 = vpop.permute.xlu0 %8180
        %8182 = vrot.lane.b32.xlu0 %v8114, 64
        %v8183 = vpop.permute.xlu0 %8182
        %8184 = vrot.lane.b32.xlu0 %v8115, 64
        %v8185 = vpop.permute.xlu0 %8184
        %8186 = vrot.lane.b32.xlu0 %v8116, 64
        %v8187 = vpop.permute.xlu0 %8186
        %8188 = vrot.lane.b32.xlu0 %v8117, 64
        %v8189 = vpop.permute.xlu0 %8188
        %8190 = vrot.lane.b32.xlu0 %v8118, 64
        %v8191 = vpop.permute.xlu0 %8190
        %8192 = vrot.lane.b32.xlu0 %v8119, 64
        %v8193 = vpop.permute.xlu0 %8192
        %8194 = vrot.lane.b32.xlu0 %v8120, 64
        %v8195 = vpop.permute.xlu0 %8194
        %8196 = vrot.lane.b32.xlu0 %v8121, 64
        %v8197 = vpop.permute.xlu0 %8196
        %8198 = vrot.lane.b32.xlu0 %v8122, 64
        %v8199 = vpop.permute.xlu0 %8198
        %8200 = vrot.lane.b32.xlu0 %v8123, 64
        %v8201 = vpop.permute.xlu0 %8200
        %8202 = vrot.lane.b32.xlu0 %v8124, 64
        %v8203 = vpop.permute.xlu0 %8202
        %8204 = vrot.lane.b32.xlu0 %v8125, 64
        %v8205 = vpop.permute.xlu0 %8204
        %8206 = vrot.lane.b32.xlu0 %v8126, 64
        %v8207 = vpop.permute.xlu0 %8206
        %8208 = vrot.lane.b32.xlu0 %v8127, 64
        %v8209 = vpop.permute.xlu0 %8208
        %8210 = vrot.lane.b32.xlu0 %v8128, 64
        %v8211 = vpop.permute.xlu0 %8210
        %8212 = vrot.lane.b32.xlu0 %v8129, 64
        %v8213 = vpop.permute.xlu0 %8212
        %8214 = vrot.lane.b32.xlu0 %v8130, 64
        %v8215 = vpop.permute.xlu0 %8214
        %8216 = vrot.lane.b32.xlu0 %v8131, 64
        %v8217 = vpop.permute.xlu0 %8216
        %8218 = vrot.lane.b32.xlu0 %v8132, 64
        %v8219 = vpop.permute.xlu0 %8218
        %8220 = vrot.lane.b32.xlu0 %v8133, 64
        %v8221 = vpop.permute.xlu0 %8220
        %8222 = vrot.lane.b32.xlu0 %v8134, 64
        %v8223 = vpop.permute.xlu0 %8222
        %8224 = vrot.lane.b32.xlu0 %v8135, 64
        %v8225 = vpop.permute.xlu0 %8224
        %8226 = vrot.lane.b32.xlu0 %v8136, 64
        %v8227 = vpop.permute.xlu0 %8226
        %8228 = vrot.lane.b32.xlu0 %v8137, 64
        %v8229 = vpop.permute.xlu0 %8228
        %8230 = vrot.lane.b32.xlu0 %v8138, 64
        %v8231 = vpop.permute.xlu0 %8230
        %8232 = vrot.lane.b32.xlu0 %v8139, 64
        %v8233 = vpop.permute.xlu0 %8232
        %8234 = vrot.lane.b32.xlu0 %v8140, 64
        %v8235 = vpop.permute.xlu0 %8234
        %8236 = vrot.lane.b32.xlu0 %v8141, 64
        %v8237 = vpop.permute.xlu0 %8236
        %vm8270 = vcmask 785920
        %8271 = vst.msk [vmem:[#allocation7] sm:$0xff] %vm8270, %v8175
        %8272 = vst.msk [vmem:[#allocation7 + $0x18] sm:$0xff] %vm8270, %v8177
        %8273 = vst.msk [vmem:[#allocation7 + $0x30] sm:$0xff] %vm8270, %v8179
        %8274 = vst.msk [vmem:[#allocation7 + $0x48] sm:$0xff] %vm8270, %v8181
        %8275 = vst.msk [vmem:[#allocation7 + $0x60] sm:$0xff] %vm8270, %v8183
        %8276 = vst.msk [vmem:[#allocation7 + $0x78] sm:$0xff] %vm8270, %v8185
        %8277 = vst.msk [vmem:[#allocation7 + $0x90] sm:$0xff] %vm8270, %v8187
        %8278 = vst.msk [vmem:[#allocation7 + $0xa8] sm:$0xff] %vm8270, %v8189
        %8279 = vst.msk [vmem:[#allocation7 + $0xc0] sm:$0xff] %vm8270, %v8191
        %8280 = vst.msk [vmem:[#allocation7 + $0xd8] sm:$0xff] %vm8270, %v8193
        %8281 = vst.msk [vmem:[#allocation7 + $0xf0] sm:$0xff] %vm8270, %v8195
        %8282 = vst.msk [vmem:[#allocation7 + $0x108] sm:$0xff] %vm8270, %v8197
        %8283 = vst.msk [vmem:[#allocation7 + $0x120] sm:$0xff] %vm8270, %v8199
        %8284 = vst.msk [vmem:[#allocation7 + $0x138] sm:$0xff] %vm8270, %v8201
        %8285 = vst.msk [vmem:[#allocation7 + $0x150] sm:$0xff] %vm8270, %v8203
        %8286 = vst.msk [vmem:[#allocation7 + $0x168] sm:$0xff] %vm8270, %v8205
        %8287 = vst.msk [vmem:[#allocation7 + $0x180] sm:$0xff] %vm8270, %v8207
        %8288 = vst.msk [vmem:[#allocation7 + $0x198] sm:$0xff] %vm8270, %v8209
        %8289 = vst.msk [vmem:[#allocation7 + $0x1b0] sm:$0xff] %vm8270, %v8211
        %8290 = vst.msk [vmem:[#allocation7 + $0x1c8] sm:$0xff] %vm8270, %v8213
        %8291 = vst.msk [vmem:[#allocation7 + $0x1e0] sm:$0xff] %vm8270, %v8215
        %8292 = vst.msk [vmem:[#allocation7 + $0x1f8] sm:$0xff] %vm8270, %v8217
        %8293 = vst.msk [vmem:[#allocation7 + $0x210] sm:$0xff] %vm8270, %v8219
        %8294 = vst.msk [vmem:[#allocation7 + $0x228] sm:$0xff] %vm8270, %v8221
        %8295 = vst.msk [vmem:[#allocation7 + $0x240] sm:$0xff] %vm8270, %v8223
        %8296 = vst.msk [vmem:[#allocation7 + $0x258] sm:$0xff] %vm8270, %v8225
        %8297 = vst.msk [vmem:[#allocation7 + $0x270] sm:$0xff] %vm8270, %v8227
        %8298 = vst.msk [vmem:[#allocation7 + $0x288] sm:$0xff] %vm8270, %v8229
        %8299 = vst.msk [vmem:[#allocation7 + $0x2a0] sm:$0xff] %vm8270, %v8231
        %8300 = vst.msk [vmem:[#allocation7 + $0x2b8] sm:$0xff] %vm8270, %v8233
        %8301 = vst.msk [vmem:[#allocation7 + $0x2d0] sm:$0xff] %vm8270, %v8235
        %8302 = vst.msk [vmem:[#allocation7 + $0x2e8] sm:$0xff] %vm8270, %v8237
        %v8303 = vld [vmem:[%s7820] sm:$0xff]
        %v8304 = vld [vmem:[%s7820 + $0x8] sm:$0xff]
        %v8305 = vld [vmem:[%s7820 + $0x18] sm:$0xff]
        %v8306 = vld [vmem:[%s7820 + $0x20] sm:$0xff]
        %v8307 = vld [vmem:[%s7820 + $0x30] sm:$0xff]
        %v8308 = vld [vmem:[%s7820 + $0x38] sm:$0xff]
        %v8309 = vld [vmem:[%s7820 + $0x48] sm:$0xff]
        %v8310 = vld [vmem:[%s7820 + $0x50] sm:$0xff]
        %v8311 = vld [vmem:[%s7820 + $0x60] sm:$0xff]
        %v8312 = vld [vmem:[%s7820 + $0x68] sm:$0xff]
        %v8313 = vld [vmem:[%s7820 + $0x78] sm:$0xff]
        %v8314 = vld [vmem:[%s7820 + $0x80] sm:$0xff]
        %v8315 = vld [vmem:[%s7820 + $0x90] sm:$0xff]
        %v8316 = vld [vmem:[%s7820 + $0x98] sm:$0xff]
        %v8317 = vld [vmem:[%s7820 + $0xa8] sm:$0xff]
        %v8318 = vld [vmem:[%s7820 + $0xb0] sm:$0xff]
        %v8319 = vld [vmem:[%s7820 + $0xc0] sm:$0xff]
        %v8320 = vld [vmem:[%s7820 + $0xc8] sm:$0xff]
        %v8321 = vld [vmem:[%s7820 + $0xd8] sm:$0xff]
        %v8322 = vld [vmem:[%s7820 + $0xe0] sm:$0xff]
        %v8323 = vld [vmem:[%s7820 + $0xf0] sm:$0xff]
        %v8324 = vld [vmem:[%s7820 + $0xf8] sm:$0xff]
        %v8325 = vld [vmem:[%s7820 + $0x108] sm:$0xff]
        %v8326 = vld [vmem:[%s7820 + $0x110] sm:$0xff]
        %v8327 = vld [vmem:[%s7820 + $0x120] sm:$0xff]
        %v8328 = vld [vmem:[%s7820 + $0x128] sm:$0xff]
        %v8329 = vld [vmem:[%s7820 + $0x138] sm:$0xff]
        %v8330 = vld [vmem:[%s7820 + $0x140] sm:$0xff]
        %v8331 = vld [vmem:[%s7820 + $0x150] sm:$0xff]
        %v8332 = vld [vmem:[%s7820 + $0x158] sm:$0xff]
        %v8333 = vld [vmem:[%s7820 + $0x168] sm:$0xff]
        %v8334 = vld [vmem:[%s7820 + $0x170] sm:$0xff]
        %8367 = vrot.lane.b32.xlu0 %v8303, 96
        %v8368 = vpop.permute.xlu0 %8367
        %8369 = vrot.lane.b32.xlu0 %v8304, 96
        %v8370 = vpop.permute.xlu0 %8369
        %8371 = vrot.lane.b32.xlu0 %v8305, 96
        %v8372 = vpop.permute.xlu0 %8371
        %8373 = vrot.lane.b32.xlu0 %v8306, 96
        %v8374 = vpop.permute.xlu0 %8373
        %8375 = vrot.lane.b32.xlu0 %v8307, 96
        %v8376 = vpop.permute.xlu0 %8375
        %8377 = vrot.lane.b32.xlu0 %v8308, 96
        %v8378 = vpop.permute.xlu0 %8377
        %8379 = vrot.lane.b32.xlu0 %v8309, 96
        %v8380 = vpop.permute.xlu0 %8379
        %8381 = vrot.lane.b32.xlu0 %v8310, 96
        %v8382 = vpop.permute.xlu0 %8381
        %8383 = vrot.lane.b32.xlu0 %v8311, 96
        %v8384 = vpop.permute.xlu0 %8383
        %8385 = vrot.lane.b32.xlu0 %v8312, 96
        %v8386 = vpop.permute.xlu0 %8385
        %8387 = vrot.lane.b32.xlu0 %v8313, 96
        %v8388 = vpop.permute.xlu0 %8387
        %8389 = vrot.lane.b32.xlu0 %v8314, 96
        %v8390 = vpop.permute.xlu0 %8389
        %8391 = vrot.lane.b32.xlu0 %v8315, 96
        %v8392 = vpop.permute.xlu0 %8391
        %8393 = vrot.lane.b32.xlu0 %v8316, 96
        %v8394 = vpop.permute.xlu0 %8393
        %8395 = vrot.lane.b32.xlu0 %v8317, 96
        %v8396 = vpop.permute.xlu0 %8395
        %8397 = vrot.lane.b32.xlu0 %v8318, 96
        %v8398 = vpop.permute.xlu0 %8397
        %8399 = vrot.lane.b32.xlu0 %v8319, 96
        %v8400 = vpop.permute.xlu0 %8399
        %8401 = vrot.lane.b32.xlu0 %v8320, 96
        %v8402 = vpop.permute.xlu0 %8401
        %8403 = vrot.lane.b32.xlu0 %v8321, 96
        %v8404 = vpop.permute.xlu0 %8403
        %8405 = vrot.lane.b32.xlu0 %v8322, 96
        %v8406 = vpop.permute.xlu0 %8405
        %8407 = vrot.lane.b32.xlu0 %v8323, 96
        %v8408 = vpop.permute.xlu0 %8407
        %8409 = vrot.lane.b32.xlu0 %v8324, 96
        %v8410 = vpop.permute.xlu0 %8409
        %8411 = vrot.lane.b32.xlu0 %v8325, 96
        %v8412 = vpop.permute.xlu0 %8411
        %8413 = vrot.lane.b32.xlu0 %v8326, 96
        %v8414 = vpop.permute.xlu0 %8413
        %8415 = vrot.lane.b32.xlu0 %v8327, 96
        %v8416 = vpop.permute.xlu0 %8415
        %8417 = vrot.lane.b32.xlu0 %v8328, 96
        %v8418 = vpop.permute.xlu0 %8417
        %8419 = vrot.lane.b32.xlu0 %v8329, 96
        %v8420 = vpop.permute.xlu0 %8419
        %8421 = vrot.lane.b32.xlu0 %v8330, 96
        %v8422 = vpop.permute.xlu0 %8421
        %8423 = vrot.lane.b32.xlu0 %v8331, 96
        %v8424 = vpop.permute.xlu0 %8423
        %8425 = vrot.lane.b32.xlu0 %v8332, 96
        %v8426 = vpop.permute.xlu0 %8425
        %8427 = vrot.lane.b32.xlu0 %v8333, 96
        %v8428 = vpop.permute.xlu0 %8427
        %8429 = vrot.lane.b32.xlu0 %v8334, 96
        %v8430 = vpop.permute.xlu0 %8429
        %vm8463 = vcmask 1048320
        %8464 = vst.msk [vmem:[#allocation7] sm:$0xff] %vm8463, %v8368
        %8465 = vst.msk [vmem:[#allocation7 + $0x18] sm:$0xff] %vm8463, %v8370
        %8466 = vst.msk [vmem:[#allocation7 + $0x30] sm:$0xff] %vm8463, %v8372
        %8467 = vst.msk [vmem:[#allocation7 + $0x48] sm:$0xff] %vm8463, %v8374
        %8468 = vst.msk [vmem:[#allocation7 + $0x60] sm:$0xff] %vm8463, %v8376
        %8469 = vst.msk [vmem:[#allocation7 + $0x78] sm:$0xff] %vm8463, %v8378
        %8470 = vst.msk [vmem:[#allocation7 + $0x90] sm:$0xff] %vm8463, %v8380
        %8471 = vst.msk [vmem:[#allocation7 + $0xa8] sm:$0xff] %vm8463, %v8382
        %8472 = vst.msk [vmem:[#allocation7 + $0xc0] sm:$0xff] %vm8463, %v8384
        %8473 = vst.msk [vmem:[#allocation7 + $0xd8] sm:$0xff] %vm8463, %v8386
        %8474 = vst.msk [vmem:[#allocation7 + $0xf0] sm:$0xff] %vm8463, %v8388
        %8475 = vst.msk [vmem:[#allocation7 + $0x108] sm:$0xff] %vm8463, %v8390
        %8476 = vst.msk [vmem:[#allocation7 + $0x120] sm:$0xff] %vm8463, %v8392
        %8477 = vst.msk [vmem:[#allocation7 + $0x138] sm:$0xff] %vm8463, %v8394
        %8478 = vst.msk [vmem:[#allocation7 + $0x150] sm:$0xff] %vm8463, %v8396
        %8479 = vst.msk [vmem:[#allocation7 + $0x168] sm:$0xff] %vm8463, %v8398
        %8480 = vst.msk [vmem:[#allocation7 + $0x180] sm:$0xff] %vm8463, %v8400
        %8481 = vst.msk [vmem:[#allocation7 + $0x198] sm:$0xff] %vm8463, %v8402
        %8482 = vst.msk [vmem:[#allocation7 + $0x1b0] sm:$0xff] %vm8463, %v8404
        %8483 = vst.msk [vmem:[#allocation7 + $0x1c8] sm:$0xff] %vm8463, %v8406
        %8484 = vst.msk [vmem:[#allocation7 + $0x1e0] sm:$0xff] %vm8463, %v8408
        %8485 = vst.msk [vmem:[#allocation7 + $0x1f8] sm:$0xff] %vm8463, %v8410
        %8486 = vst.msk [vmem:[#allocation7 + $0x210] sm:$0xff] %vm8463, %v8412
        %8487 = vst.msk [vmem:[#allocation7 + $0x228] sm:$0xff] %vm8463, %v8414
        %8488 = vst.msk [vmem:[#allocation7 + $0x240] sm:$0xff] %vm8463, %v8416
        %8489 = vst.msk [vmem:[#allocation7 + $0x258] sm:$0xff] %vm8463, %v8418
        %8490 = vst.msk [vmem:[#allocation7 + $0x270] sm:$0xff] %vm8463, %v8420
        %8491 = vst.msk [vmem:[#allocation7 + $0x288] sm:$0xff] %vm8463, %v8422
        %8492 = vst.msk [vmem:[#allocation7 + $0x2a0] sm:$0xff] %vm8463, %v8424
        %8493 = vst.msk [vmem:[#allocation7 + $0x2b8] sm:$0xff] %vm8463, %v8426
        %8494 = vst.msk [vmem:[#allocation7 + $0x2d0] sm:$0xff] %vm8463, %v8428
        %8495 = vst.msk [vmem:[#allocation7 + $0x2e8] sm:$0xff] %vm8463, %v8430
        %v8496 = vld [vmem:[%s7820 + $0x1] sm:$0xff]
        %v8497 = vld [vmem:[%s7820 + $0x9] sm:$0xff]
        %v8498 = vld [vmem:[%s7820 + $0x19] sm:$0xff]
        %v8499 = vld [vmem:[%s7820 + $0x21] sm:$0xff]
        %v8500 = vld [vmem:[%s7820 + $0x31] sm:$0xff]
        %v8501 = vld [vmem:[%s7820 + $0x39] sm:$0xff]
        %v8502 = vld [vmem:[%s7820 + $0x49] sm:$0xff]
        %v8503 = vld [vmem:[%s7820 + $0x51] sm:$0xff]
        %v8504 = vld [vmem:[%s7820 + $0x61] sm:$0xff]
        %v8505 = vld [vmem:[%s7820 + $0x69] sm:$0xff]
        %v8506 = vld [vmem:[%s7820 + $0x79] sm:$0xff]
        %v8507 = vld [vmem:[%s7820 + $0x81] sm:$0xff]
        %v8508 = vld [vmem:[%s7820 + $0x91] sm:$0xff]
        %v8509 = vld [vmem:[%s7820 + $0x99] sm:$0xff]
        %v8510 = vld [vmem:[%s7820 + $0xa9] sm:$0xff]
        %v8511 = vld [vmem:[%s7820 + $0xb1] sm:$0xff]
        %v8512 = vld [vmem:[%s7820 + $0xc1] sm:$0xff]
        %v8513 = vld [vmem:[%s7820 + $0xc9] sm:$0xff]
        %v8514 = vld [vmem:[%s7820 + $0xd9] sm:$0xff]
        %v8515 = vld [vmem:[%s7820 + $0xe1] sm:$0xff]
        %v8516 = vld [vmem:[%s7820 + $0xf1] sm:$0xff]
        %v8517 = vld [vmem:[%s7820 + $0xf9] sm:$0xff]
        %v8518 = vld [vmem:[%s7820 + $0x109] sm:$0xff]
        %v8519 = vld [vmem:[%s7820 + $0x111] sm:$0xff]
        %v8520 = vld [vmem:[%s7820 + $0x121] sm:$0xff]
        %v8521 = vld [vmem:[%s7820 + $0x129] sm:$0xff]
        %v8522 = vld [vmem:[%s7820 + $0x139] sm:$0xff]
        %v8523 = vld [vmem:[%s7820 + $0x141] sm:$0xff]
        %v8524 = vld [vmem:[%s7820 + $0x151] sm:$0xff]
        %v8525 = vld [vmem:[%s7820 + $0x159] sm:$0xff]
        %v8526 = vld [vmem:[%s7820 + $0x169] sm:$0xff]
        %v8527 = vld [vmem:[%s7820 + $0x171] sm:$0xff]
        %8528 = vst.msk [vmem:[#allocation7 + $0x8] sm:$0xff] %vm7764, %v8496
        %8529 = vst.msk [vmem:[#allocation7 + $0x20] sm:$0xff] %vm7764, %v8497
        %8530 = vst.msk [vmem:[#allocation7 + $0x38] sm:$0xff] %vm7764, %v8498
        %8531 = vst.msk [vmem:[#allocation7 + $0x50] sm:$0xff] %vm7764, %v8499
        %8532 = vst.msk [vmem:[#allocation7 + $0x68] sm:$0xff] %vm7764, %v8500
        %8533 = vst.msk [vmem:[#allocation7 + $0x80] sm:$0xff] %vm7764, %v8501
        %8534 = vst.msk [vmem:[#allocation7 + $0x98] sm:$0xff] %vm7764, %v8502
        %8535 = vst.msk [vmem:[#allocation7 + $0xb0] sm:$0xff] %vm7764, %v8503
        %8536 = vst.msk [vmem:[#allocation7 + $0xc8] sm:$0xff] %vm7764, %v8504
        %8537 = vst.msk [vmem:[#allocation7 + $0xe0] sm:$0xff] %vm7764, %v8505
        %8538 = vst.msk [vmem:[#allocation7 + $0xf8] sm:$0xff] %vm7764, %v8506
        %8539 = vst.msk [vmem:[#allocation7 + $0x110] sm:$0xff] %vm7764, %v8507
        %8540 = vst.msk [vmem:[#allocation7 + $0x128] sm:$0xff] %vm7764, %v8508
        %8541 = vst.msk [vmem:[#allocation7 + $0x140] sm:$0xff] %vm7764, %v8509
        %8542 = vst.msk [vmem:[#allocation7 + $0x158] sm:$0xff] %vm7764, %v8510
        %8543 = vst.msk [vmem:[#allocation7 + $0x170] sm:$0xff] %vm7764, %v8511
        %8544 = vst.msk [vmem:[#allocation7 + $0x188] sm:$0xff] %vm7764, %v8512
        %8545 = vst.msk [vmem:[#allocation7 + $0x1a0] sm:$0xff] %vm7764, %v8513
        %8546 = vst.msk [vmem:[#allocation7 + $0x1b8] sm:$0xff] %vm7764, %v8514
        %8547 = vst.msk [vmem:[#allocation7 + $0x1d0] sm:$0xff] %vm7764, %v8515
        %8548 = vst.msk [vmem:[#allocation7 + $0x1e8] sm:$0xff] %vm7764, %v8516
        %8549 = vst.msk [vmem:[#allocation7 + $0x200] sm:$0xff] %vm7764, %v8517
        %8550 = vst.msk [vmem:[#allocation7 + $0x218] sm:$0xff] %vm7764, %v8518
        %8551 = vst.msk [vmem:[#allocation7 + $0x230] sm:$0xff] %vm7764, %v8519
        %8552 = vst.msk [vmem:[#allocation7 + $0x248] sm:$0xff] %vm7764, %v8520
        %8553 = vst.msk [vmem:[#allocation7 + $0x260] sm:$0xff] %vm7764, %v8521
        %8554 = vst.msk [vmem:[#allocation7 + $0x278] sm:$0xff] %vm7764, %v8522
        %8555 = vst.msk [vmem:[#allocation7 + $0x290] sm:$0xff] %vm7764, %v8523
        %8556 = vst.msk [vmem:[#allocation7 + $0x2a8] sm:$0xff] %vm7764, %v8524
        %8557 = vst.msk [vmem:[#allocation7 + $0x2c0] sm:$0xff] %vm7764, %v8525
        %8558 = vst.msk [vmem:[#allocation7 + $0x2d8] sm:$0xff] %vm7764, %v8526
        %8559 = vst.msk [vmem:[#allocation7 + $0x2f0] sm:$0xff] %vm7764, %v8527
        %v8560 = vld [vmem:[%s7820 + $0x2] sm:$0xff]
        %v8561 = vld [vmem:[%s7820 + $0xa] sm:$0xff]
        %v8562 = vld [vmem:[%s7820 + $0x1a] sm:$0xff]
        %v8563 = vld [vmem:[%s7820 + $0x22] sm:$0xff]
        %v8564 = vld [vmem:[%s7820 + $0x32] sm:$0xff]
        %v8565 = vld [vmem:[%s7820 + $0x3a] sm:$0xff]
        %v8566 = vld [vmem:[%s7820 + $0x4a] sm:$0xff]
        %v8567 = vld [vmem:[%s7820 + $0x52] sm:$0xff]
        %v8568 = vld [vmem:[%s7820 + $0x62] sm:$0xff]
        %v8569 = vld [vmem:[%s7820 + $0x6a] sm:$0xff]
        %v8570 = vld [vmem:[%s7820 + $0x7a] sm:$0xff]
        %v8571 = vld [vmem:[%s7820 + $0x82] sm:$0xff]
        %v8572 = vld [vmem:[%s7820 + $0x92] sm:$0xff]
        %v8573 = vld [vmem:[%s7820 + $0x9a] sm:$0xff]
        %v8574 = vld [vmem:[%s7820 + $0xaa] sm:$0xff]
        %v8575 = vld [vmem:[%s7820 + $0xb2] sm:$0xff]
        %v8576 = vld [vmem:[%s7820 + $0xc2] sm:$0xff]
        %v8577 = vld [vmem:[%s7820 + $0xca] sm:$0xff]
        %v8578 = vld [vmem:[%s7820 + $0xda] sm:$0xff]
        %v8579 = vld [vmem:[%s7820 + $0xe2] sm:$0xff]
        %v8580 = vld [vmem:[%s7820 + $0xf2] sm:$0xff]
        %v8581 = vld [vmem:[%s7820 + $0xfa] sm:$0xff]
        %v8582 = vld [vmem:[%s7820 + $0x10a] sm:$0xff]
        %v8583 = vld [vmem:[%s7820 + $0x112] sm:$0xff]
        %v8584 = vld [vmem:[%s7820 + $0x122] sm:$0xff]
        %v8585 = vld [vmem:[%s7820 + $0x12a] sm:$0xff]
        %v8586 = vld [vmem:[%s7820 + $0x13a] sm:$0xff]
        %v8587 = vld [vmem:[%s7820 + $0x142] sm:$0xff]
        %v8588 = vld [vmem:[%s7820 + $0x152] sm:$0xff]
        %v8589 = vld [vmem:[%s7820 + $0x15a] sm:$0xff]
        %v8590 = vld [vmem:[%s7820 + $0x16a] sm:$0xff]
        %v8591 = vld [vmem:[%s7820 + $0x172] sm:$0xff]
        %8624 = vrot.lane.b32.xlu0 %v8560, 32
        %v8625 = vpop.permute.xlu0 %8624
        %8626 = vrot.lane.b32.xlu0 %v8561, 32
        %v8627 = vpop.permute.xlu0 %8626
        %8628 = vrot.lane.b32.xlu0 %v8562, 32
        %v8629 = vpop.permute.xlu0 %8628
        %8630 = vrot.lane.b32.xlu0 %v8563, 32
        %v8631 = vpop.permute.xlu0 %8630
        %8632 = vrot.lane.b32.xlu0 %v8564, 32
        %v8633 = vpop.permute.xlu0 %8632
        %8634 = vrot.lane.b32.xlu0 %v8565, 32
        %v8635 = vpop.permute.xlu0 %8634
        %8636 = vrot.lane.b32.xlu0 %v8566, 32
        %v8637 = vpop.permute.xlu0 %8636
        %8638 = vrot.lane.b32.xlu0 %v8567, 32
        %v8639 = vpop.permute.xlu0 %8638
        %8640 = vrot.lane.b32.xlu0 %v8568, 32
        %v8641 = vpop.permute.xlu0 %8640
        %8642 = vrot.lane.b32.xlu0 %v8569, 32
        %v8643 = vpop.permute.xlu0 %8642
        %8644 = vrot.lane.b32.xlu0 %v8570, 32
        %v8645 = vpop.permute.xlu0 %8644
        %8646 = vrot.lane.b32.xlu0 %v8571, 32
        %v8647 = vpop.permute.xlu0 %8646
        %8648 = vrot.lane.b32.xlu0 %v8572, 32
        %v8649 = vpop.permute.xlu0 %8648
        %8650 = vrot.lane.b32.xlu0 %v8573, 32
        %v8651 = vpop.permute.xlu0 %8650
        %8652 = vrot.lane.b32.xlu0 %v8574, 32
        %v8653 = vpop.permute.xlu0 %8652
        %8654 = vrot.lane.b32.xlu0 %v8575, 32
        %v8655 = vpop.permute.xlu0 %8654
        %8656 = vrot.lane.b32.xlu0 %v8576, 32
        %v8657 = vpop.permute.xlu0 %8656
        %8658 = vrot.lane.b32.xlu0 %v8577, 32
        %v8659 = vpop.permute.xlu0 %8658
        %8660 = vrot.lane.b32.xlu0 %v8578, 32
        %v8661 = vpop.permute.xlu0 %8660
        %8662 = vrot.lane.b32.xlu0 %v8579, 32
        %v8663 = vpop.permute.xlu0 %8662
        %8664 = vrot.lane.b32.xlu0 %v8580, 32
        %v8665 = vpop.permute.xlu0 %8664
        %8666 = vrot.lane.b32.xlu0 %v8581, 32
        %v8667 = vpop.permute.xlu0 %8666
        %8668 = vrot.lane.b32.xlu0 %v8582, 32
        %v8669 = vpop.permute.xlu0 %8668
        %8670 = vrot.lane.b32.xlu0 %v8583, 32
        %v8671 = vpop.permute.xlu0 %8670
        %8672 = vrot.lane.b32.xlu0 %v8584, 32
        %v8673 = vpop.permute.xlu0 %8672
        %8674 = vrot.lane.b32.xlu0 %v8585, 32
        %v8675 = vpop.permute.xlu0 %8674
        %8676 = vrot.lane.b32.xlu0 %v8586, 32
        %v8677 = vpop.permute.xlu0 %8676
        %8678 = vrot.lane.b32.xlu0 %v8587, 32
        %v8679 = vpop.permute.xlu0 %8678
        %8680 = vrot.lane.b32.xlu0 %v8588, 32
        %v8681 = vpop.permute.xlu0 %8680
        %8682 = vrot.lane.b32.xlu0 %v8589, 32
        %v8683 = vpop.permute.xlu0 %8682
        %8684 = vrot.lane.b32.xlu0 %v8590, 32
        %v8685 = vpop.permute.xlu0 %8684
        %8686 = vrot.lane.b32.xlu0 %v8591, 32
        %v8687 = vpop.permute.xlu0 %8686
        %8720 = vst.msk [vmem:[#allocation7 + $0x8] sm:$0xff] %vm8077, %v8625
        %8721 = vst.msk [vmem:[#allocation7 + $0x20] sm:$0xff] %vm8077, %v8627
        %8722 = vst.msk [vmem:[#allocation7 + $0x38] sm:$0xff] %vm8077, %v8629
        %8723 = vst.msk [vmem:[#allocation7 + $0x50] sm:$0xff] %vm8077, %v8631
        %8724 = vst.msk [vmem:[#allocation7 + $0x68] sm:$0xff] %vm8077, %v8633
        %8725 = vst.msk [vmem:[#allocation7 + $0x80] sm:$0xff] %vm8077, %v8635
        %8726 = vst.msk [vmem:[#allocation7 + $0x98] sm:$0xff] %vm8077, %v8637
        %8727 = vst.msk [vmem:[#allocation7 + $0xb0] sm:$0xff] %vm8077, %v8639
        %8728 = vst.msk [vmem:[#allocation7 + $0xc8] sm:$0xff] %vm8077, %v8641
        %8729 = vst.msk [vmem:[#allocation7 + $0xe0] sm:$0xff] %vm8077, %v8643
        %8730 = vst.msk [vmem:[#allocation7 + $0xf8] sm:$0xff] %vm8077, %v8645
        %8731 = vst.msk [vmem:[#allocation7 + $0x110] sm:$0xff] %vm8077, %v8647
        %8732 = vst.msk [vmem:[#allocation7 + $0x128] sm:$0xff] %vm8077, %v8649
        %8733 = vst.msk [vmem:[#allocation7 + $0x140] sm:$0xff] %vm8077, %v8651
        %8734 = vst.msk [vmem:[#allocation7 + $0x158] sm:$0xff] %vm8077, %v8653
        %8735 = vst.msk [vmem:[#allocation7 + $0x170] sm:$0xff] %vm8077, %v8655
        %8736 = vst.msk [vmem:[#allocation7 + $0x188] sm:$0xff] %vm8077, %v8657
        %8737 = vst.msk [vmem:[#allocation7 + $0x1a0] sm:$0xff] %vm8077, %v8659
        %8738 = vst.msk [vmem:[#allocation7 + $0x1b8] sm:$0xff] %vm8077, %v8661
        %8739 = vst.msk [vmem:[#allocation7 + $0x1d0] sm:$0xff] %vm8077, %v8663
        %8740 = vst.msk [vmem:[#allocation7 + $0x1e8] sm:$0xff] %vm8077, %v8665
        %8741 = vst.msk [vmem:[#allocation7 + $0x200] sm:$0xff] %vm8077, %v8667
        %8742 = vst.msk [vmem:[#allocation7 + $0x218] sm:$0xff] %vm8077, %v8669
        %8743 = vst.msk [vmem:[#allocation7 + $0x230] sm:$0xff] %vm8077, %v8671
        %8744 = vst.msk [vmem:[#allocation7 + $0x248] sm:$0xff] %vm8077, %v8673
        %8745 = vst.msk [vmem:[#allocation7 + $0x260] sm:$0xff] %vm8077, %v8675
        %8746 = vst.msk [vmem:[#allocation7 + $0x278] sm:$0xff] %vm8077, %v8677
        %8747 = vst.msk [vmem:[#allocation7 + $0x290] sm:$0xff] %vm8077, %v8679
        %8748 = vst.msk [vmem:[#allocation7 + $0x2a8] sm:$0xff] %vm8077, %v8681
        %8749 = vst.msk [vmem:[#allocation7 + $0x2c0] sm:$0xff] %vm8077, %v8683
        %8750 = vst.msk [vmem:[#allocation7 + $0x2d8] sm:$0xff] %vm8077, %v8685
        %8751 = vst.msk [vmem:[#allocation7 + $0x2f0] sm:$0xff] %vm8077, %v8687
        %s8752 = scalar_lea.vmem [#allocation4], 48
        %v8753 = vld [vmem:[%s8752] sm:$0xff]
        %v8754 = vld [vmem:[%s8752 + $0x8] sm:$0xff]
        %v8755 = vld [vmem:[%s8752 + $0x18] sm:$0xff]
        %v8756 = vld [vmem:[%s8752 + $0x20] sm:$0xff]
        %v8757 = vld [vmem:[%s8752 + $0x30] sm:$0xff]
        %v8758 = vld [vmem:[%s8752 + $0x38] sm:$0xff]
        %v8759 = vld [vmem:[%s8752 + $0x48] sm:$0xff]
        %v8760 = vld [vmem:[%s8752 + $0x50] sm:$0xff]
        %v8761 = vld [vmem:[%s8752 + $0x60] sm:$0xff]
        %v8762 = vld [vmem:[%s8752 + $0x68] sm:$0xff]
        %v8763 = vld [vmem:[%s8752 + $0x78] sm:$0xff]
        %v8764 = vld [vmem:[%s8752 + $0x80] sm:$0xff]
        %v8765 = vld [vmem:[%s8752 + $0x90] sm:$0xff]
        %v8766 = vld [vmem:[%s8752 + $0x98] sm:$0xff]
        %v8767 = vld [vmem:[%s8752 + $0xa8] sm:$0xff]
        %v8768 = vld [vmem:[%s8752 + $0xb0] sm:$0xff]
        %v8769 = vld [vmem:[%s8752 + $0xc0] sm:$0xff]
        %v8770 = vld [vmem:[%s8752 + $0xc8] sm:$0xff]
        %v8771 = vld [vmem:[%s8752 + $0xd8] sm:$0xff]
        %v8772 = vld [vmem:[%s8752 + $0xe0] sm:$0xff]
        %v8773 = vld [vmem:[%s8752 + $0xf0] sm:$0xff]
        %v8774 = vld [vmem:[%s8752 + $0xf8] sm:$0xff]
        %v8775 = vld [vmem:[%s8752 + $0x108] sm:$0xff]
        %v8776 = vld [vmem:[%s8752 + $0x110] sm:$0xff]
        %v8777 = vld [vmem:[%s8752 + $0x120] sm:$0xff]
        %v8778 = vld [vmem:[%s8752 + $0x128] sm:$0xff]
        %v8779 = vld [vmem:[%s8752 + $0x138] sm:$0xff]
        %v8780 = vld [vmem:[%s8752 + $0x140] sm:$0xff]
        %v8781 = vld [vmem:[%s8752 + $0x150] sm:$0xff]
        %v8782 = vld [vmem:[%s8752 + $0x158] sm:$0xff]
        %v8783 = vld [vmem:[%s8752 + $0x168] sm:$0xff]
        %v8784 = vld [vmem:[%s8752 + $0x170] sm:$0xff]
        %8817 = vrot.lane.b32.xlu0 %v8753, 64
        %v8818 = vpop.permute.xlu0 %8817
        %8819 = vrot.lane.b32.xlu0 %v8754, 64
        %v8820 = vpop.permute.xlu0 %8819
        %8821 = vrot.lane.b32.xlu0 %v8755, 64
        %v8822 = vpop.permute.xlu0 %8821
        %8823 = vrot.lane.b32.xlu0 %v8756, 64
        %v8824 = vpop.permute.xlu0 %8823
        %8825 = vrot.lane.b32.xlu0 %v8757, 64
        %v8826 = vpop.permute.xlu0 %8825
        %8827 = vrot.lane.b32.xlu0 %v8758, 64
        %v8828 = vpop.permute.xlu0 %8827
        %8829 = vrot.lane.b32.xlu0 %v8759, 64
        %v8830 = vpop.permute.xlu0 %8829
        %8831 = vrot.lane.b32.xlu0 %v8760, 64
        %v8832 = vpop.permute.xlu0 %8831
        %8833 = vrot.lane.b32.xlu0 %v8761, 64
        %v8834 = vpop.permute.xlu0 %8833
        %8835 = vrot.lane.b32.xlu0 %v8762, 64
        %v8836 = vpop.permute.xlu0 %8835
        %8837 = vrot.lane.b32.xlu0 %v8763, 64
        %v8838 = vpop.permute.xlu0 %8837
        %8839 = vrot.lane.b32.xlu0 %v8764, 64
        %v8840 = vpop.permute.xlu0 %8839
        %8841 = vrot.lane.b32.xlu0 %v8765, 64
        %v8842 = vpop.permute.xlu0 %8841
        %8843 = vrot.lane.b32.xlu0 %v8766, 64
        %v8844 = vpop.permute.xlu0 %8843
        %8845 = vrot.lane.b32.xlu0 %v8767, 64
        %v8846 = vpop.permute.xlu0 %8845
        %8847 = vrot.lane.b32.xlu0 %v8768, 64
        %v8848 = vpop.permute.xlu0 %8847
        %8849 = vrot.lane.b32.xlu0 %v8769, 64
        %v8850 = vpop.permute.xlu0 %8849
        %8851 = vrot.lane.b32.xlu0 %v8770, 64
        %v8852 = vpop.permute.xlu0 %8851
        %8853 = vrot.lane.b32.xlu0 %v8771, 64
        %v8854 = vpop.permute.xlu0 %8853
        %8855 = vrot.lane.b32.xlu0 %v8772, 64
        %v8856 = vpop.permute.xlu0 %8855
        %8857 = vrot.lane.b32.xlu0 %v8773, 64
        %v8858 = vpop.permute.xlu0 %8857
        %8859 = vrot.lane.b32.xlu0 %v8774, 64
        %v8860 = vpop.permute.xlu0 %8859
        %8861 = vrot.lane.b32.xlu0 %v8775, 64
        %v8862 = vpop.permute.xlu0 %8861
        %8863 = vrot.lane.b32.xlu0 %v8776, 64
        %v8864 = vpop.permute.xlu0 %8863
        %8865 = vrot.lane.b32.xlu0 %v8777, 64
        %v8866 = vpop.permute.xlu0 %8865
        %8867 = vrot.lane.b32.xlu0 %v8778, 64
        %v8868 = vpop.permute.xlu0 %8867
        %8869 = vrot.lane.b32.xlu0 %v8779, 64
        %v8870 = vpop.permute.xlu0 %8869
        %8871 = vrot.lane.b32.xlu0 %v8780, 64
        %v8872 = vpop.permute.xlu0 %8871
        %8873 = vrot.lane.b32.xlu0 %v8781, 64
        %v8874 = vpop.permute.xlu0 %8873
        %8875 = vrot.lane.b32.xlu0 %v8782, 64
        %v8876 = vpop.permute.xlu0 %8875
        %8877 = vrot.lane.b32.xlu0 %v8783, 64
        %v8878 = vpop.permute.xlu0 %8877
        %8879 = vrot.lane.b32.xlu0 %v8784, 64
        %v8880 = vpop.permute.xlu0 %8879
        %8913 = vst.msk [vmem:[#allocation7 + $0x8] sm:$0xff] %vm8270, %v8818
        %8914 = vst.msk [vmem:[#allocation7 + $0x20] sm:$0xff] %vm8270, %v8820
        %8915 = vst.msk [vmem:[#allocation7 + $0x38] sm:$0xff] %vm8270, %v8822
        %8916 = vst.msk [vmem:[#allocation7 + $0x50] sm:$0xff] %vm8270, %v8824
        %8917 = vst.msk [vmem:[#allocation7 + $0x68] sm:$0xff] %vm8270, %v8826
        %8918 = vst.msk [vmem:[#allocation7 + $0x80] sm:$0xff] %vm8270, %v8828
        %8919 = vst.msk [vmem:[#allocation7 + $0x98] sm:$0xff] %vm8270, %v8830
        %8920 = vst.msk [vmem:[#allocation7 + $0xb0] sm:$0xff] %vm8270, %v8832
        %8921 = vst.msk [vmem:[#allocation7 + $0xc8] sm:$0xff] %vm8270, %v8834
        %8922 = vst.msk [vmem:[#allocation7 + $0xe0] sm:$0xff] %vm8270, %v8836
        %8923 = vst.msk [vmem:[#allocation7 + $0xf8] sm:$0xff] %vm8270, %v8838
        %8924 = vst.msk [vmem:[#allocation7 + $0x110] sm:$0xff] %vm8270, %v8840
        %8925 = vst.msk [vmem:[#allocation7 + $0x128] sm:$0xff] %vm8270, %v8842
        %8926 = vst.msk [vmem:[#allocation7 + $0x140] sm:$0xff] %vm8270, %v8844
        %8927 = vst.msk [vmem:[#allocation7 + $0x158] sm:$0xff] %vm8270, %v8846
        %8928 = vst.msk [vmem:[#allocation7 + $0x170] sm:$0xff] %vm8270, %v8848
        %8929 = vst.msk [vmem:[#allocation7 + $0x188] sm:$0xff] %vm8270, %v8850
        %8930 = vst.msk [vmem:[#allocation7 + $0x1a0] sm:$0xff] %vm8270, %v8852
        %8931 = vst.msk [vmem:[#allocation7 + $0x1b8] sm:$0xff] %vm8270, %v8854
        %8932 = vst.msk [vmem:[#allocation7 + $0x1d0] sm:$0xff] %vm8270, %v8856
        %8933 = vst.msk [vmem:[#allocation7 + $0x1e8] sm:$0xff] %vm8270, %v8858
        %8934 = vst.msk [vmem:[#allocation7 + $0x200] sm:$0xff] %vm8270, %v8860
        %8935 = vst.msk [vmem:[#allocation7 + $0x218] sm:$0xff] %vm8270, %v8862
        %8936 = vst.msk [vmem:[#allocation7 + $0x230] sm:$0xff] %vm8270, %v8864
        %8937 = vst.msk [vmem:[#allocation7 + $0x248] sm:$0xff] %vm8270, %v8866
        %8938 = vst.msk [vmem:[#allocation7 + $0x260] sm:$0xff] %vm8270, %v8868
        %8939 = vst.msk [vmem:[#allocation7 + $0x278] sm:$0xff] %vm8270, %v8870
        %8940 = vst.msk [vmem:[#allocation7 + $0x290] sm:$0xff] %vm8270, %v8872
        %8941 = vst.msk [vmem:[#allocation7 + $0x2a8] sm:$0xff] %vm8270, %v8874
        %8942 = vst.msk [vmem:[#allocation7 + $0x2c0] sm:$0xff] %vm8270, %v8876
        %8943 = vst.msk [vmem:[#allocation7 + $0x2d8] sm:$0xff] %vm8270, %v8878
        %8944 = vst.msk [vmem:[#allocation7 + $0x2f0] sm:$0xff] %vm8270, %v8880
        %v8945 = vld [vmem:[%s8752 + $0x1] sm:$0xff]
        %v8946 = vld [vmem:[%s8752 + $0x9] sm:$0xff]
        %v8947 = vld [vmem:[%s8752 + $0x19] sm:$0xff]
        %v8948 = vld [vmem:[%s8752 + $0x21] sm:$0xff]
        %v8949 = vld [vmem:[%s8752 + $0x31] sm:$0xff]
        %v8950 = vld [vmem:[%s8752 + $0x39] sm:$0xff]
        %v8951 = vld [vmem:[%s8752 + $0x49] sm:$0xff]
        %v8952 = vld [vmem:[%s8752 + $0x51] sm:$0xff]
        %v8953 = vld [vmem:[%s8752 + $0x61] sm:$0xff]
        %v8954 = vld [vmem:[%s8752 + $0x69] sm:$0xff]
        %v8955 = vld [vmem:[%s8752 + $0x79] sm:$0xff]
        %v8956 = vld [vmem:[%s8752 + $0x81] sm:$0xff]
        %v8957 = vld [vmem:[%s8752 + $0x91] sm:$0xff]
        %v8958 = vld [vmem:[%s8752 + $0x99] sm:$0xff]
        %v8959 = vld [vmem:[%s8752 + $0xa9] sm:$0xff]
        %v8960 = vld [vmem:[%s8752 + $0xb1] sm:$0xff]
        %v8961 = vld [vmem:[%s8752 + $0xc1] sm:$0xff]
        %v8962 = vld [vmem:[%s8752 + $0xc9] sm:$0xff]
        %v8963 = vld [vmem:[%s8752 + $0xd9] sm:$0xff]
        %v8964 = vld [vmem:[%s8752 + $0xe1] sm:$0xff]
        %v8965 = vld [vmem:[%s8752 + $0xf1] sm:$0xff]
        %v8966 = vld [vmem:[%s8752 + $0xf9] sm:$0xff]
        %v8967 = vld [vmem:[%s8752 + $0x109] sm:$0xff]
        %v8968 = vld [vmem:[%s8752 + $0x111] sm:$0xff]
        %v8969 = vld [vmem:[%s8752 + $0x121] sm:$0xff]
        %v8970 = vld [vmem:[%s8752 + $0x129] sm:$0xff]
        %v8971 = vld [vmem:[%s8752 + $0x139] sm:$0xff]
        %v8972 = vld [vmem:[%s8752 + $0x141] sm:$0xff]
        %v8973 = vld [vmem:[%s8752 + $0x151] sm:$0xff]
        %v8974 = vld [vmem:[%s8752 + $0x159] sm:$0xff]
        %v8975 = vld [vmem:[%s8752 + $0x169] sm:$0xff]
        %v8976 = vld [vmem:[%s8752 + $0x171] sm:$0xff]
        %9009 = vrot.lane.b32.xlu0 %v8945, 96
        %v9010 = vpop.permute.xlu0 %9009
        %9011 = vrot.lane.b32.xlu0 %v8946, 96
        %v9012 = vpop.permute.xlu0 %9011
        %9013 = vrot.lane.b32.xlu0 %v8947, 96
        %v9014 = vpop.permute.xlu0 %9013
        %9015 = vrot.lane.b32.xlu0 %v8948, 96
        %v9016 = vpop.permute.xlu0 %9015
        %9017 = vrot.lane.b32.xlu0 %v8949, 96
        %v9018 = vpop.permute.xlu0 %9017
        %9019 = vrot.lane.b32.xlu0 %v8950, 96
        %v9020 = vpop.permute.xlu0 %9019
        %9021 = vrot.lane.b32.xlu0 %v8951, 96
        %v9022 = vpop.permute.xlu0 %9021
        %9023 = vrot.lane.b32.xlu0 %v8952, 96
        %v9024 = vpop.permute.xlu0 %9023
        %9025 = vrot.lane.b32.xlu0 %v8953, 96
        %v9026 = vpop.permute.xlu0 %9025
        %9027 = vrot.lane.b32.xlu0 %v8954, 96
        %v9028 = vpop.permute.xlu0 %9027
        %9029 = vrot.lane.b32.xlu0 %v8955, 96
        %v9030 = vpop.permute.xlu0 %9029
        %9031 = vrot.lane.b32.xlu0 %v8956, 96
        %v9032 = vpop.permute.xlu0 %9031
        %9033 = vrot.lane.b32.xlu0 %v8957, 96
        %v9034 = vpop.permute.xlu0 %9033
        %9035 = vrot.lane.b32.xlu0 %v8958, 96
        %v9036 = vpop.permute.xlu0 %9035
        %9037 = vrot.lane.b32.xlu0 %v8959, 96
        %v9038 = vpop.permute.xlu0 %9037
        %9039 = vrot.lane.b32.xlu0 %v8960, 96
        %v9040 = vpop.permute.xlu0 %9039
        %9041 = vrot.lane.b32.xlu0 %v8961, 96
        %v9042 = vpop.permute.xlu0 %9041
        %9043 = vrot.lane.b32.xlu0 %v8962, 96
        %v9044 = vpop.permute.xlu0 %9043
        %9045 = vrot.lane.b32.xlu0 %v8963, 96
        %v9046 = vpop.permute.xlu0 %9045
        %9047 = vrot.lane.b32.xlu0 %v8964, 96
        %v9048 = vpop.permute.xlu0 %9047
        %9049 = vrot.lane.b32.xlu0 %v8965, 96
        %v9050 = vpop.permute.xlu0 %9049
        %9051 = vrot.lane.b32.xlu0 %v8966, 96
        %v9052 = vpop.permute.xlu0 %9051
        %9053 = vrot.lane.b32.xlu0 %v8967, 96
        %v9054 = vpop.permute.xlu0 %9053
        %9055 = vrot.lane.b32.xlu0 %v8968, 96
        %v9056 = vpop.permute.xlu0 %9055
        %9057 = vrot.lane.b32.xlu0 %v8969, 96
        %v9058 = vpop.permute.xlu0 %9057
        %9059 = vrot.lane.b32.xlu0 %v8970, 96
        %v9060 = vpop.permute.xlu0 %9059
        %9061 = vrot.lane.b32.xlu0 %v8971, 96
        %v9062 = vpop.permute.xlu0 %9061
        %9063 = vrot.lane.b32.xlu0 %v8972, 96
        %v9064 = vpop.permute.xlu0 %9063
        %9065 = vrot.lane.b32.xlu0 %v8973, 96
        %v9066 = vpop.permute.xlu0 %9065
        %9067 = vrot.lane.b32.xlu0 %v8974, 96
        %v9068 = vpop.permute.xlu0 %9067
        %9069 = vrot.lane.b32.xlu0 %v8975, 96
        %v9070 = vpop.permute.xlu0 %9069
        %9071 = vrot.lane.b32.xlu0 %v8976, 96
        %v9072 = vpop.permute.xlu0 %9071
        %9105 = vst.msk [vmem:[#allocation7 + $0x8] sm:$0xff] %vm8463, %v9010
        %9106 = vst.msk [vmem:[#allocation7 + $0x20] sm:$0xff] %vm8463, %v9012
        %9107 = vst.msk [vmem:[#allocation7 + $0x38] sm:$0xff] %vm8463, %v9014
        %9108 = vst.msk [vmem:[#allocation7 + $0x50] sm:$0xff] %vm8463, %v9016
        %9109 = vst.msk [vmem:[#allocation7 + $0x68] sm:$0xff] %vm8463, %v9018
        %9110 = vst.msk [vmem:[#allocation7 + $0x80] sm:$0xff] %vm8463, %v9020
        %9111 = vst.msk [vmem:[#allocation7 + $0x98] sm:$0xff] %vm8463, %v9022
        %9112 = vst.msk [vmem:[#allocation7 + $0xb0] sm:$0xff] %vm8463, %v9024
        %9113 = vst.msk [vmem:[#allocation7 + $0xc8] sm:$0xff] %vm8463, %v9026
        %9114 = vst.msk [vmem:[#allocation7 + $0xe0] sm:$0xff] %vm8463, %v9028
        %9115 = vst.msk [vmem:[#allocation7 + $0xf8] sm:$0xff] %vm8463, %v9030
        %9116 = vst.msk [vmem:[#allocation7 + $0x110] sm:$0xff] %vm8463, %v9032
        %9117 = vst.msk [vmem:[#allocation7 + $0x128] sm:$0xff] %vm8463, %v9034
        %9118 = vst.msk [vmem:[#allocation7 + $0x140] sm:$0xff] %vm8463, %v9036
        %9119 = vst.msk [vmem:[#allocation7 + $0x158] sm:$0xff] %vm8463, %v9038
        %9120 = vst.msk [vmem:[#allocation7 + $0x170] sm:$0xff] %vm8463, %v9040
        %9121 = vst.msk [vmem:[#allocation7 + $0x188] sm:$0xff] %vm8463, %v9042
        %9122 = vst.msk [vmem:[#allocation7 + $0x1a0] sm:$0xff] %vm8463, %v9044
        %9123 = vst.msk [vmem:[#allocation7 + $0x1b8] sm:$0xff] %vm8463, %v9046
        %9124 = vst.msk [vmem:[#allocation7 + $0x1d0] sm:$0xff] %vm8463, %v9048
        %9125 = vst.msk [vmem:[#allocation7 + $0x1e8] sm:$0xff] %vm8463, %v9050
        %9126 = vst.msk [vmem:[#allocation7 + $0x200] sm:$0xff] %vm8463, %v9052
        %9127 = vst.msk [vmem:[#allocation7 + $0x218] sm:$0xff] %vm8463, %v9054
        %9128 = vst.msk [vmem:[#allocation7 + $0x230] sm:$0xff] %vm8463, %v9056
        %9129 = vst.msk [vmem:[#allocation7 + $0x248] sm:$0xff] %vm8463, %v9058
        %9130 = vst.msk [vmem:[#allocation7 + $0x260] sm:$0xff] %vm8463, %v9060
        %9131 = vst.msk [vmem:[#allocation7 + $0x278] sm:$0xff] %vm8463, %v9062
        %9132 = vst.msk [vmem:[#allocation7 + $0x290] sm:$0xff] %vm8463, %v9064
        %9133 = vst.msk [vmem:[#allocation7 + $0x2a8] sm:$0xff] %vm8463, %v9066
        %9134 = vst.msk [vmem:[#allocation7 + $0x2c0] sm:$0xff] %vm8463, %v9068
        %9135 = vst.msk [vmem:[#allocation7 + $0x2d8] sm:$0xff] %vm8463, %v9070
        %9136 = vst.msk [vmem:[#allocation7 + $0x2f0] sm:$0xff] %vm8463, %v9072
        %v9137 = vld [vmem:[%s8752 + $0x2] sm:$0xff]
        %v9138 = vld [vmem:[%s8752 + $0xa] sm:$0xff]
        %v9139 = vld [vmem:[%s8752 + $0x1a] sm:$0xff]
        %v9140 = vld [vmem:[%s8752 + $0x22] sm:$0xff]
        %v9141 = vld [vmem:[%s8752 + $0x32] sm:$0xff]
        %v9142 = vld [vmem:[%s8752 + $0x3a] sm:$0xff]
        %v9143 = vld [vmem:[%s8752 + $0x4a] sm:$0xff]
        %v9144 = vld [vmem:[%s8752 + $0x52] sm:$0xff]
        %v9145 = vld [vmem:[%s8752 + $0x62] sm:$0xff]
        %v9146 = vld [vmem:[%s8752 + $0x6a] sm:$0xff]
        %v9147 = vld [vmem:[%s8752 + $0x7a] sm:$0xff]
        %v9148 = vld [vmem:[%s8752 + $0x82] sm:$0xff]
        %v9149 = vld [vmem:[%s8752 + $0x92] sm:$0xff]
        %v9150 = vld [vmem:[%s8752 + $0x9a] sm:$0xff]
        %v9151 = vld [vmem:[%s8752 + $0xaa] sm:$0xff]
        %v9152 = vld [vmem:[%s8752 + $0xb2] sm:$0xff]
        %v9153 = vld [vmem:[%s8752 + $0xc2] sm:$0xff]
        %v9154 = vld [vmem:[%s8752 + $0xca] sm:$0xff]
        %v9155 = vld [vmem:[%s8752 + $0xda] sm:$0xff]
        %v9156 = vld [vmem:[%s8752 + $0xe2] sm:$0xff]
        %v9157 = vld [vmem:[%s8752 + $0xf2] sm:$0xff]
        %v9158 = vld [vmem:[%s8752 + $0xfa] sm:$0xff]
        %v9159 = vld [vmem:[%s8752 + $0x10a] sm:$0xff]
        %v9160 = vld [vmem:[%s8752 + $0x112] sm:$0xff]
        %v9161 = vld [vmem:[%s8752 + $0x122] sm:$0xff]
        %v9162 = vld [vmem:[%s8752 + $0x12a] sm:$0xff]
        %v9163 = vld [vmem:[%s8752 + $0x13a] sm:$0xff]
        %v9164 = vld [vmem:[%s8752 + $0x142] sm:$0xff]
        %v9165 = vld [vmem:[%s8752 + $0x152] sm:$0xff]
        %v9166 = vld [vmem:[%s8752 + $0x15a] sm:$0xff]
        %v9167 = vld [vmem:[%s8752 + $0x16a] sm:$0xff]
        %v9168 = vld [vmem:[%s8752 + $0x172] sm:$0xff]
        %9169 = vst.msk [vmem:[#allocation7 + $0x10] sm:$0xff] %vm7764, %v9137
        %9170 = vst.msk [vmem:[#allocation7 + $0x28] sm:$0xff] %vm7764, %v9138
        %9171 = vst.msk [vmem:[#allocation7 + $0x40] sm:$0xff] %vm7764, %v9139
        %9172 = vst.msk [vmem:[#allocation7 + $0x58] sm:$0xff] %vm7764, %v9140
        %9173 = vst.msk [vmem:[#allocation7 + $0x70] sm:$0xff] %vm7764, %v9141
        %9174 = vst.msk [vmem:[#allocation7 + $0x88] sm:$0xff] %vm7764, %v9142
        %9175 = vst.msk [vmem:[#allocation7 + $0xa0] sm:$0xff] %vm7764, %v9143
        %9176 = vst.msk [vmem:[#allocation7 + $0xb8] sm:$0xff] %vm7764, %v9144
        %9177 = vst.msk [vmem:[#allocation7 + $0xd0] sm:$0xff] %vm7764, %v9145
        %9178 = vst.msk [vmem:[#allocation7 + $0xe8] sm:$0xff] %vm7764, %v9146
        %9179 = vst.msk [vmem:[#allocation7 + $0x100] sm:$0xff] %vm7764, %v9147
        %9180 = vst.msk [vmem:[#allocation7 + $0x118] sm:$0xff] %vm7764, %v9148
        %9181 = vst.msk [vmem:[#allocation7 + $0x130] sm:$0xff] %vm7764, %v9149
        %9182 = vst.msk [vmem:[#allocation7 + $0x148] sm:$0xff] %vm7764, %v9150
        %9183 = vst.msk [vmem:[#allocation7 + $0x160] sm:$0xff] %vm7764, %v9151
        %9184 = vst.msk [vmem:[#allocation7 + $0x178] sm:$0xff] %vm7764, %v9152
        %9185 = vst.msk [vmem:[#allocation7 + $0x190] sm:$0xff] %vm7764, %v9153
        %9186 = vst.msk [vmem:[#allocation7 + $0x1a8] sm:$0xff] %vm7764, %v9154
        %9187 = vst.msk [vmem:[#allocation7 + $0x1c0] sm:$0xff] %vm7764, %v9155
        %9188 = vst.msk [vmem:[#allocation7 + $0x1d8] sm:$0xff] %vm7764, %v9156
        %9189 = vst.msk [vmem:[#allocation7 + $0x1f0] sm:$0xff] %vm7764, %v9157
        %9190 = vst.msk [vmem:[#allocation7 + $0x208] sm:$0xff] %vm7764, %v9158
        %9191 = vst.msk [vmem:[#allocation7 + $0x220] sm:$0xff] %vm7764, %v9159
        %9192 = vst.msk [vmem:[#allocation7 + $0x238] sm:$0xff] %vm7764, %v9160
        %9193 = vst.msk [vmem:[#allocation7 + $0x250] sm:$0xff] %vm7764, %v9161
        %9194 = vst.msk [vmem:[#allocation7 + $0x268] sm:$0xff] %vm7764, %v9162
        %9195 = vst.msk [vmem:[#allocation7 + $0x280] sm:$0xff] %vm7764, %v9163
        %9196 = vst.msk [vmem:[#allocation7 + $0x298] sm:$0xff] %vm7764, %v9164
        %9197 = vst.msk [vmem:[#allocation7 + $0x2b0] sm:$0xff] %vm7764, %v9165
        %9198 = vst.msk [vmem:[#allocation7 + $0x2c8] sm:$0xff] %vm7764, %v9166
        %9199 = vst.msk [vmem:[#allocation7 + $0x2e0] sm:$0xff] %vm7764, %v9167
        %9200 = vst.msk [vmem:[#allocation7 + $0x2f8] sm:$0xff] %vm7764, %v9168
        %v9201 = vld [vmem:[#allocation7] sm:$0xff]
        %v9202 = vld [vmem:[#allocation7 + $0x8] sm:$0xff]
        %v9203 = vld [vmem:[#allocation7 + $0x10] sm:$0xff]
        %v9204 = vld [vmem:[#allocation7 + $0x18] sm:$0xff]
        %v9205 = vld [vmem:[#allocation7 + $0x20] sm:$0xff]
        %v9206 = vld [vmem:[#allocation7 + $0x28] sm:$0xff]
        %v9207 = vld [vmem:[#allocation7 + $0x30] sm:$0xff]
        %v9208 = vld [vmem:[#allocation7 + $0x38] sm:$0xff]
        %v9209 = vld [vmem:[#allocation7 + $0x40] sm:$0xff]
        %v9210 = vld [vmem:[#allocation7 + $0x48] sm:$0xff]
        %v9211 = vld [vmem:[#allocation7 + $0x50] sm:$0xff]
        %v9212 = vld [vmem:[#allocation7 + $0x58] sm:$0xff]
        %v9213 = vld [vmem:[#allocation7 + $0x60] sm:$0xff]
        %v9214 = vld [vmem:[#allocation7 + $0x68] sm:$0xff]
        %v9215 = vld [vmem:[#allocation7 + $0x70] sm:$0xff]
        %v9216 = vld [vmem:[#allocation7 + $0x78] sm:$0xff]
        %v9217 = vld [vmem:[#allocation7 + $0x80] sm:$0xff]
        %v9218 = vld [vmem:[#allocation7 + $0x88] sm:$0xff]
        %v9219 = vld [vmem:[#allocation7 + $0x90] sm:$0xff]
        %v9220 = vld [vmem:[#allocation7 + $0x98] sm:$0xff]
        %v9221 = vld [vmem:[#allocation7 + $0xa0] sm:$0xff]
        %v9222 = vld [vmem:[#allocation7 + $0xa8] sm:$0xff]
        %v9223 = vld [vmem:[#allocation7 + $0xb0] sm:$0xff]
        %v9224 = vld [vmem:[#allocation7 + $0xb8] sm:$0xff]
        %v9225 = vld [vmem:[#allocation7 + $0xc0] sm:$0xff]
        %v9226 = vld [vmem:[#allocation7 + $0xc8] sm:$0xff]
        %v9227 = vld [vmem:[#allocation7 + $0xd0] sm:$0xff]
        %v9228 = vld [vmem:[#allocation7 + $0xd8] sm:$0xff]
        %v9229 = vld [vmem:[#allocation7 + $0xe0] sm:$0xff]
        %v9230 = vld [vmem:[#allocation7 + $0xe8] sm:$0xff]
        %v9231 = vld [vmem:[#allocation7 + $0xf0] sm:$0xff]
        %v9232 = vld [vmem:[#allocation7 + $0xf8] sm:$0xff]
        %v9233 = vld [vmem:[#allocation7 + $0x100] sm:$0xff]
        %v9234 = vld [vmem:[#allocation7 + $0x108] sm:$0xff]
        %v9235 = vld [vmem:[#allocation7 + $0x110] sm:$0xff]
        %v9236 = vld [vmem:[#allocation7 + $0x118] sm:$0xff]
        %v9237 = vld [vmem:[#allocation7 + $0x120] sm:$0xff]
        %v9238 = vld [vmem:[#allocation7 + $0x128] sm:$0xff]
        %v9239 = vld [vmem:[#allocation7 + $0x130] sm:$0xff]
        %v9240 = vld [vmem:[#allocation7 + $0x138] sm:$0xff]
        %v9241 = vld [vmem:[#allocation7 + $0x140] sm:$0xff]
        %v9242 = vld [vmem:[#allocation7 + $0x148] sm:$0xff]
        %v9243 = vld [vmem:[#allocation7 + $0x150] sm:$0xff]
        %v9244 = vld [vmem:[#allocation7 + $0x158] sm:$0xff]
        %v9245 = vld [vmem:[#allocation7 + $0x160] sm:$0xff]
        %v9246 = vld [vmem:[#allocation7 + $0x168] sm:$0xff]
        %v9247 = vld [vmem:[#allocation7 + $0x170] sm:$0xff]
        %v9248 = vld [vmem:[#allocation7 + $0x178] sm:$0xff]
        %v9249 = vld [vmem:[#allocation7 + $0x180] sm:$0xff]
        %v9250 = vld [vmem:[#allocation7 + $0x188] sm:$0xff]
        %v9251 = vld [vmem:[#allocation7 + $0x190] sm:$0xff]
        %v9252 = vld [vmem:[#allocation7 + $0x198] sm:$0xff]
        %v9253 = vld [vmem:[#allocation7 + $0x1a0] sm:$0xff]
        %v9254 = vld [vmem:[#allocation7 + $0x1a8] sm:$0xff]
        %v9255 = vld [vmem:[#allocation7 + $0x1b0] sm:$0xff]
        %v9256 = vld [vmem:[#allocation7 + $0x1b8] sm:$0xff]
        %v9257 = vld [vmem:[#allocation7 + $0x1c0] sm:$0xff]
        %v9258 = vld [vmem:[#allocation7 + $0x1c8] sm:$0xff]
        %v9259 = vld [vmem:[#allocation7 + $0x1d0] sm:$0xff]
        %v9260 = vld [vmem:[#allocation7 + $0x1d8] sm:$0xff]
        %v9261 = vld [vmem:[#allocation7 + $0x1e0] sm:$0xff]
        %v9262 = vld [vmem:[#allocation7 + $0x1e8] sm:$0xff]
        %v9263 = vld [vmem:[#allocation7 + $0x1f0] sm:$0xff]
        %v9264 = vld [vmem:[#allocation7 + $0x1f8] sm:$0xff]
        %v9265 = vld [vmem:[#allocation7 + $0x200] sm:$0xff]
        %v9266 = vld [vmem:[#allocation7 + $0x208] sm:$0xff]
        %v9267 = vld [vmem:[#allocation7 + $0x210] sm:$0xff]
        %v9268 = vld [vmem:[#allocation7 + $0x218] sm:$0xff]
        %v9269 = vld [vmem:[#allocation7 + $0x220] sm:$0xff]
        %v9270 = vld [vmem:[#allocation7 + $0x228] sm:$0xff]
        %v9271 = vld [vmem:[#allocation7 + $0x230] sm:$0xff]
        %v9272 = vld [vmem:[#allocation7 + $0x238] sm:$0xff]
        %v9273 = vld [vmem:[#allocation7 + $0x240] sm:$0xff]
        %v9274 = vld [vmem:[#allocation7 + $0x248] sm:$0xff]
        %v9275 = vld [vmem:[#allocation7 + $0x250] sm:$0xff]
        %v9276 = vld [vmem:[#allocation7 + $0x258] sm:$0xff]
        %v9277 = vld [vmem:[#allocation7 + $0x260] sm:$0xff]
        %v9278 = vld [vmem:[#allocation7 + $0x268] sm:$0xff]
        %v9279 = vld [vmem:[#allocation7 + $0x270] sm:$0xff]
        %v9280 = vld [vmem:[#allocation7 + $0x278] sm:$0xff]
        %v9281 = vld [vmem:[#allocation7 + $0x280] sm:$0xff]
        %v9282 = vld [vmem:[#allocation7 + $0x288] sm:$0xff]
        %v9283 = vld [vmem:[#allocation7 + $0x290] sm:$0xff]
        %v9284 = vld [vmem:[#allocation7 + $0x298] sm:$0xff]
        %v9285 = vld [vmem:[#allocation7 + $0x2a0] sm:$0xff]
        %v9286 = vld [vmem:[#allocation7 + $0x2a8] sm:$0xff]
        %v9287 = vld [vmem:[#allocation7 + $0x2b0] sm:$0xff]
        %v9288 = vld [vmem:[#allocation7 + $0x2b8] sm:$0xff]
        %v9289 = vld [vmem:[#allocation7 + $0x2c0] sm:$0xff]
        %v9290 = vld [vmem:[#allocation7 + $0x2c8] sm:$0xff]
        %v9291 = vld [vmem:[#allocation7 + $0x2d0] sm:$0xff]
        %v9292 = vld [vmem:[#allocation7 + $0x2d8] sm:$0xff]
        %v9293 = vld [vmem:[#allocation7 + $0x2e0] sm:$0xff]
        %v9294 = vld [vmem:[#allocation7 + $0x2e8] sm:$0xff]
        %v9295 = vld [vmem:[#allocation7 + $0x2f0] sm:$0xff]
        %v9296 = vld [vmem:[#allocation7 + $0x2f8] sm:$0xff]
        %v9297 = vpack.c.bf16 %v9204, %v9201
        %v9298 = vpack.c.bf16 %v9205, %v9202
        %v9299 = vpack.c.bf16 %v9206, %v9203
        %v9300 = vpack.c.bf16 %v9210, %v9207
        %v9301 = vpack.c.bf16 %v9211, %v9208
        %v9302 = vpack.c.bf16 %v9212, %v9209
        %v9303 = vpack.c.bf16 %v9216, %v9213
        %v9304 = vpack.c.bf16 %v9217, %v9214
        %v9305 = vpack.c.bf16 %v9218, %v9215
        %v9306 = vpack.c.bf16 %v9222, %v9219
        %v9307 = vpack.c.bf16 %v9223, %v9220
        %v9308 = vpack.c.bf16 %v9224, %v9221
        %v9309 = vpack.c.bf16 %v9228, %v9225
        %v9310 = vpack.c.bf16 %v9229, %v9226
        %v9311 = vpack.c.bf16 %v9230, %v9227
        %v9312 = vpack.c.bf16 %v9234, %v9231
        %v9313 = vpack.c.bf16 %v9235, %v9232
        %v9314 = vpack.c.bf16 %v9236, %v9233
        %v9315 = vpack.c.bf16 %v9240, %v9237
        %v9316 = vpack.c.bf16 %v9241, %v9238
        %v9317 = vpack.c.bf16 %v9242, %v9239
        %v9318 = vpack.c.bf16 %v9246, %v9243
        %v9319 = vpack.c.bf16 %v9247, %v9244
        %v9320 = vpack.c.bf16 %v9248, %v9245
        %v9321 = vpack.c.bf16 %v9252, %v9249
        %v9322 = vpack.c.bf16 %v9253, %v9250
        %v9323 = vpack.c.bf16 %v9254, %v9251
        %v9324 = vpack.c.bf16 %v9258, %v9255
        %v9325 = vpack.c.bf16 %v9259, %v9256
        %v9326 = vpack.c.bf16 %v9260, %v9257
        %v9327 = vpack.c.bf16 %v9264, %v9261
        %v9328 = vpack.c.bf16 %v9265, %v9262
        %v9329 = vpack.c.bf16 %v9266, %v9263
        %v9330 = vpack.c.bf16 %v9270, %v9267
        %v9331 = vpack.c.bf16 %v9271, %v9268
        %v9332 = vpack.c.bf16 %v9272, %v9269
        %v9333 = vpack.c.bf16 %v9276, %v9273
        %v9334 = vpack.c.bf16 %v9277, %v9274
        %v9335 = vpack.c.bf16 %v9278, %v9275
        %v9336 = vpack.c.bf16 %v9282, %v9279
        %v9337 = vpack.c.bf16 %v9283, %v9280
        %v9338 = vpack.c.bf16 %v9284, %v9281
        %v9339 = vpack.c.bf16 %v9288, %v9285
        %v9340 = vpack.c.bf16 %v9289, %v9286
        %v9341 = vpack.c.bf16 %v9290, %v9287
        %v9342 = vpack.c.bf16 %v9294, %v9291
        %v9343 = vpack.c.bf16 %v9295, %v9292
        %v9344 = vpack.c.bf16 %v9296, %v9293
        %v9345 = vld [vmem:[%s5] sm:$0xf]
        %v9346 = vld [vmem:[%s5 + $0x4] sm:$0xf]
        %v9347 = vld [vmem:[%s5 + $0x8] sm:$0xf]
        %v9348 = vld [vmem:[%s5 + $0xc] sm:$0xf]
        %v9349 = vld [vmem:[%s5 + $0x10] sm:$0xf]
        %v9350 = vld [vmem:[%s5 + $0x14] sm:$0xf]
        %v9351 = vld [vmem:[%s5 + $0x18] sm:$0xf]
        %v9352 = vld [vmem:[%s5 + $0x1c] sm:$0xf]
        %v9353 = vld [vmem:[%s5 + $0x20] sm:$0xf]
        %v9354 = vld [vmem:[%s5 + $0x24] sm:$0xf]
        %v9355 = vld [vmem:[%s5 + $0x28] sm:$0xf]
        %v9356 = vld [vmem:[%s5 + $0x2c] sm:$0xf]
        %v9357 = vld [vmem:[%s5 + $0x30] sm:$0xf]
        %v9358 = vld [vmem:[%s5 + $0x34] sm:$0xf]
        %v9359 = vld [vmem:[%s5 + $0x38] sm:$0xf]
        %v9360 = vld [vmem:[%s5 + $0x3c] sm:$0xf]
        %v9361 = vld [vmem:[%s5 + $0x40] sm:$0xf]
        %v9362 = vld [vmem:[%s5 + $0x44] sm:$0xf]
        %v9363 = vld [vmem:[%s5 + $0x48] sm:$0xf]
        %v9364 = vld [vmem:[%s5 + $0x4c] sm:$0xf]
        %v9365 = vld [vmem:[%s5 + $0x50] sm:$0xf]
        %v9366 = vld [vmem:[%s5 + $0x54] sm:$0xf]
        %v9367 = vld [vmem:[%s5 + $0x58] sm:$0xf]
        %v9368 = vld [vmem:[%s5 + $0x5c] sm:$0xf]
        %v9369 = vld [vmem:[%s5 + $0x60] sm:$0xf]
        %v9370 = vld [vmem:[%s5 + $0x64] sm:$0xf]
        %v9371 = vld [vmem:[%s5 + $0x68] sm:$0xf]
        %v9372 = vld [vmem:[%s5 + $0x6c] sm:$0xf]
        %v9373 = vld [vmem:[%s5 + $0x70] sm:$0xf]
        %v9374 = vld [vmem:[%s5 + $0x74] sm:$0xf]
        %v9375 = vld [vmem:[%s5 + $0x78] sm:$0xf]
        %v9376 = vld [vmem:[%s5 + $0x7c] sm:$0xf]
        %v9377 = vld [vmem:[%s5 + $0x80] sm:$0xf]
        %v9378 = vld [vmem:[%s5 + $0x84] sm:$0xf]
        %v9379 = vld [vmem:[%s5 + $0x88] sm:$0xf]
        %v9380 = vld [vmem:[%s5 + $0x8c] sm:$0xf]
        %v9381 = vld [vmem:[#allocation12] sm:$0x1]
        %v9383 = vlaneseq
        %v9384 = vshrl.u32 %v9383, 7
        %v9385 = vsub.s32 0, %v9384
        %v9386 = vrot.slane %v9381, %v9385
        %v9424 = vunpack.c.l.b16 %v9345
        %v9425 = vunpack.c.l.b16 %v9346
        %v9426 = vunpack.c.l.b16 %v9347
        %v9427 = vunpack.c.l.b16 %v9348
        %v9428 = vunpack.c.l.b16 %v9349
        %v9429 = vunpack.c.l.b16 %v9350
        %v9430 = vunpack.c.l.b16 %v9351
        %v9431 = vunpack.c.l.b16 %v9352
        %v9432 = vunpack.c.l.b16 %v9353
        %v9433 = vunpack.c.l.b16 %v9354
        %v9434 = vunpack.c.l.b16 %v9355
        %v9435 = vunpack.c.l.b16 %v9356
        %v9436 = vunpack.c.l.b16 %v9357
        %v9437 = vunpack.c.l.b16 %v9358
        %v9438 = vunpack.c.l.b16 %v9359
        %v9439 = vunpack.c.l.b16 %v9360
        %v9440 = vunpack.c.l.b16 %v9361
        %v9441 = vunpack.c.l.b16 %v9362
        %v9442 = vunpack.c.l.b16 %v9363
        %v9443 = vunpack.c.l.b16 %v9364
        %v9444 = vunpack.c.l.b16 %v9365
        %v9445 = vunpack.c.l.b16 %v9366
        %v9446 = vunpack.c.l.b16 %v9367
        %v9447 = vunpack.c.l.b16 %v9368
        %v9448 = vunpack.c.l.b16 %v9369
        %v9449 = vunpack.c.l.b16 %v9370
        %v9450 = vunpack.c.l.b16 %v9371
        %v9451 = vunpack.c.l.b16 %v9372
        %v9452 = vunpack.c.l.b16 %v9373
        %v9453 = vunpack.c.l.b16 %v9374
        %v9454 = vunpack.c.l.b16 %v9375
        %v9455 = vunpack.c.l.b16 %v9376
        %v9456 = vunpack.c.l.b16 %v9377
        %v9457 = vunpack.c.l.b16 %v9378
        %v9458 = vunpack.c.l.b16 %v9379
        %v9459 = vunpack.c.l.b16 %v9380
        %v9460 = vpack.c.b16 %v9425, %v9424
        %v9461 = vpack.c.b16 %v9427, %v9426
        %v9462 = vpack.c.b16 %v9429, %v9428
        %v9463 = vpack.c.b16 %v9431, %v9430
        %v9464 = vpack.c.b16 %v9433, %v9432
        %v9465 = vpack.c.b16 %v9435, %v9434
        %v9466 = vpack.c.b16 %v9437, %v9436
        %v9467 = vpack.c.b16 %v9439, %v9438
        %v9468 = vpack.c.b16 %v9441, %v9440
        %v9469 = vpack.c.b16 %v9443, %v9442
        %v9470 = vpack.c.b16 %v9445, %v9444
        %v9471 = vpack.c.b16 %v9447, %v9446
        %v9472 = vpack.c.b16 %v9449, %v9448
        %v9473 = vpack.c.b16 %v9451, %v9450
        %v9474 = vpack.c.b16 %v9453, %v9452
        %v9475 = vpack.c.b16 %v9455, %v9454
        %v9476 = vpack.c.b16 %v9457, %v9456
        %v9477 = vpack.c.b16 %v9459, %v9458
        %v9497 = vsel %vm7764, %v9299, 0
        %v9500 = vsel %vm7764, %v9302, 0
        %v9503 = vsel %vm7764, %v9305, 0
        %v9506 = vsel %vm7764, %v9308, 0
        %v9509 = vsel %vm7764, %v9311, 0
        %v9512 = vsel %vm7764, %v9314, 0
        %v9515 = vsel %vm7764, %v9317, 0
        %v9518 = vsel %vm7764, %v9320, 0
        %v9521 = vsel %vm7764, %v9323, 0
        %v9524 = vsel %vm7764, %v9326, 0
        %v9527 = vsel %vm7764, %v9329, 0
        %v9530 = vsel %vm7764, %v9332, 0
        %v9533 = vsel %vm7764, %v9335, 0
        %v9536 = vsel %vm7764, %v9338, 0
        %v9539 = vsel %vm7764, %v9341, 0
        %v9542 = vsel %vm7764, %v9344, 0
        %9544 = vmatprep.subr.bf16.mxu0 0
        %9545 = vmatpush1.bf16.msra.mxu0 %v9460
        %9546 = vmatprep.subr.bf16.mxu0 0
        %9547 = vmatpush1.bf16.msra.mxu0 %v9461
        %9548 = vmatprep.subr.bf16.mxu0 0
        %9549 = vmatpush1.bf16.msra.mxu0 %v9462
        %9550 = vmatprep.subr.bf16.mxu0 0
        %9551 = vmatpush1.bf16.msra.mxu0 %v9463
        %9552 = vmatprep.subr.bf16.mxu0 0
        %9553 = vmatpush1.bf16.msra.mxu0 %v9464
        %9554 = vmatprep.subr.bf16.mxu0 0
        %9555 = vmatpush1.bf16.msra.mxu0 %v9465
        %9556 = vmatprep.subr.bf16.mxu0 0
        %9557 = vmatpush1.bf16.msra.mxu0 %v9466
        %9558 = vmatprep.subr.bf16.mxu0 0
        %9559 = vmatpush1.bf16.msra.mxu0 %v9467
        %9560 = vmatprep.subr.bf16.mxu0 0
        %9561 = vmatpush1.bf16.msra.mxu0 %v9468
        %9562 = vmatprep.subr.bf16.mxu0 0
        %9563 = vmatpush1.bf16.msra.mxu0 %v9469
        %9564 = vmatprep.subr.bf16.mxu0 0
        %9565 = vmatpush1.bf16.msra.mxu0 %v9470
        %9566 = vmatprep.subr.bf16.mxu0 0
        %9567 = vmatpush1.bf16.msra.mxu0 %v9471
        %9568 = vmatprep.subr.bf16.mxu0 0
        %9569 = vmatpush1.bf16.msra.mxu0 %v9472
        %9570 = vmatprep.subr.bf16.mxu0 0
        %9571 = vmatpush1.bf16.msra.mxu0 %v9473
        %9572 = vmatprep.subr.bf16.mxu0 0
        %9573 = vmatpush1.bf16.msra.mxu0 %v9474
        %9574 = vmatprep.subr.bf16.mxu0 0
        %9575 = vmatpush1.bf16.msra.mxu0 %v9475
        %9576 = vmatprep.mubr.bf16.mxu0 %v9298
        %9577 = vmatmul.mubr.bf16.gmra.mrb[0].mxu0 %v9297
        %v9578 = vpop.f32.mrb[0].mxu0
        %v9579 = vadd.f32 %v9386, %v9578
        %v9580 = vpop.f32.mrb[0].mxu0
        %v9581 = vpop.f32.mrb[0].mxu0
        %v9582 = vadd.f32 %v9386, %v9581
        %v9583 = vpop.f32.mrb[0].mxu0
        %9584 = vmatprep.mubr.bf16.mxu0 %v9301
        %9585 = vmatmul.mubr.bf16.gmra.mrb[0].mxu0 %v9300
        %v9586 = vpop.f32.mrb[0].mxu0
        %v9587 = vadd.f32 %v9386, %v9586
        %v9588 = vpop.f32.mrb[0].mxu0
        %v9589 = vpop.f32.mrb[0].mxu0
        %v9590 = vadd.f32 %v9386, %v9589
        %v9591 = vpop.f32.mrb[0].mxu0
        %9592 = vmatprep.mubr.bf16.mxu0 %v9304
        %9593 = vmatmul.mubr.bf16.gmra.mrb[0].mxu0 %v9303
        %v9594 = vpop.f32.mrb[0].mxu0
        %v9595 = vadd.f32 %v9386, %v9594
        %v9596 = vpop.f32.mrb[0].mxu0
        %v9597 = vpop.f32.mrb[0].mxu0
        %v9598 = vadd.f32 %v9386, %v9597
        %v9599 = vpop.f32.mrb[0].mxu0
        %9600 = vmatprep.mubr.bf16.mxu0 %v9307
        %9601 = vmatmul.mubr.bf16.gmra.mrb[0].mxu0 %v9306
        %v9602 = vpop.f32.mrb[0].mxu0
        %v9603 = vadd.f32 %v9386, %v9602
        %v9604 = vpop.f32.mrb[0].mxu0
        %v9605 = vpop.f32.mrb[0].mxu0
        %v9606 = vadd.f32 %v9386, %v9605
        %v9607 = vpop.f32.mrb[0].mxu0
        %9608 = vmatprep.mubr.bf16.mxu0 %v9310
        %9609 = vmatmul.mubr.bf16.gmra.mrb[0].mxu0 %v9309
        %v9610 = vpop.f32.mrb[0].mxu0
        %v9611 = vadd.f32 %v9386, %v9610
        %v9612 = vpop.f32.mrb[0].mxu0
        %v9613 = vpop.f32.mrb[0].mxu0
        %v9614 = vadd.f32 %v9386, %v9613
        %v9615 = vpop.f32.mrb[0].mxu0
        %9616 = vmatprep.mubr.bf16.mxu0 %v9313
        %9617 = vmatmul.mubr.bf16.gmra.mrb[0].mxu0 %v9312
        %v9618 = vpop.f32.mrb[0].mxu0
        %v9619 = vadd.f32 %v9386, %v9618
        %v9620 = vpop.f32.mrb[0].mxu0
        %v9621 = vpop.f32.mrb[0].mxu0
        %v9622 = vadd.f32 %v9386, %v9621
        %v9623 = vpop.f32.mrb[0].mxu0
        %9624 = vmatprep.mubr.bf16.mxu0 %v9316
        %9625 = vmatmul.mubr.bf16.gmra.mrb[0].mxu0 %v9315
        %v9626 = vpop.f32.mrb[0].mxu0
        %v9627 = vadd.f32 %v9386, %v9626
        %v9628 = vpop.f32.mrb[0].mxu0
        %v9629 = vpop.f32.mrb[0].mxu0
        %v9630 = vadd.f32 %v9386, %v9629
        %v9631 = vpop.f32.mrb[0].mxu0
        %9632 = vmatprep.mubr.bf16.mxu0 %v9319
        %9633 = vmatmul.mubr.bf16.gmra.mrb[0].mxu0 %v9318
        %v9634 = vpop.f32.mrb[0].mxu0
        %v9635 = vadd.f32 %v9386, %v9634
        %v9636 = vpop.f32.mrb[0].mxu0
        %v9637 = vpop.f32.mrb[0].mxu0
        %v9638 = vadd.f32 %v9386, %v9637
        %v9639 = vpop.f32.mrb[0].mxu0
        %9640 = vmatprep.mubr.bf16.mxu0 %v9322
        %9641 = vmatmul.mubr.bf16.gmra.mrb[0].mxu0 %v9321
        %v9642 = vpop.f32.mrb[0].mxu0
        %v9643 = vadd.f32 %v9386, %v9642
        %v9644 = vpop.f32.mrb[0].mxu0
        %v9645 = vpop.f32.mrb[0].mxu0
        %v9646 = vadd.f32 %v9386, %v9645
        %v9647 = vpop.f32.mrb[0].mxu0
        %9648 = vmatprep.mubr.bf16.mxu0 %v9325
        %9649 = vmatmul.mubr.bf16.gmra.mrb[0].mxu0 %v9324
        %v9650 = vpop.f32.mrb[0].mxu0
        %v9651 = vadd.f32 %v9386, %v9650
        %v9652 = vpop.f32.mrb[0].mxu0
        %v9653 = vpop.f32.mrb[0].mxu0
        %v9654 = vadd.f32 %v9386, %v9653
        %v9655 = vpop.f32.mrb[0].mxu0
        %9656 = vmatprep.mubr.bf16.mxu0 %v9328
        %9657 = vmatmul.mubr.bf16.gmra.mrb[0].mxu0 %v9327
        %v9658 = vpop.f32.mrb[0].mxu0
        %v9659 = vadd.f32 %v9386, %v9658
        %v9660 = vpop.f32.mrb[0].mxu0
        %v9661 = vpop.f32.mrb[0].mxu0
        %v9662 = vadd.f32 %v9386, %v9661
        %v9663 = vpop.f32.mrb[0].mxu0
        %9664 = vmatprep.mubr.bf16.mxu0 %v9331
        %9665 = vmatmul.mubr.bf16.gmra.mrb[0].mxu0 %v9330
        %v9666 = vpop.f32.mrb[0].mxu0
        %v9667 = vadd.f32 %v9386, %v9666
        %v9668 = vpop.f32.mrb[0].mxu0
        %v9669 = vpop.f32.mrb[0].mxu0
        %v9670 = vadd.f32 %v9386, %v9669
        %v9671 = vpop.f32.mrb[0].mxu0
        %9672 = vmatprep.mubr.bf16.mxu0 %v9334
        %9673 = vmatmul.mubr.bf16.gmra.mrb[0].mxu0 %v9333
        %v9674 = vpop.f32.mrb[0].mxu0
        %v9675 = vadd.f32 %v9386, %v9674
        %v9676 = vpop.f32.mrb[0].mxu0
        %v9677 = vpop.f32.mrb[0].mxu0
        %v9678 = vadd.f32 %v9386, %v9677
        %v9679 = vpop.f32.mrb[0].mxu0
        %9680 = vmatprep.mubr.bf16.mxu0 %v9337
        %9681 = vmatmul.mubr.bf16.gmra.mrb[0].mxu0 %v9336
        %v9682 = vpop.f32.mrb[0].mxu0
        %v9683 = vadd.f32 %v9386, %v9682
        %v9684 = vpop.f32.mrb[0].mxu0
        %v9685 = vpop.f32.mrb[0].mxu0
        %v9686 = vadd.f32 %v9386, %v9685
        %v9687 = vpop.f32.mrb[0].mxu0
        %9688 = vmatprep.mubr.bf16.mxu0 %v9340
        %9689 = vmatmul.mubr.bf16.gmra.mrb[0].mxu0 %v9339
        %v9690 = vpop.f32.mrb[0].mxu0
        %v9691 = vadd.f32 %v9386, %v9690
        %v9692 = vpop.f32.mrb[0].mxu0
        %v9693 = vpop.f32.mrb[0].mxu0
        %v9694 = vadd.f32 %v9386, %v9693
        %v9695 = vpop.f32.mrb[0].mxu0
        %9696 = vmatprep.mubr.bf16.mxu0 %v9343
        %9697 = vmatmul.mubr.bf16.gmra.mrb[0].mxu0 %v9342
        %v9698 = vpop.f32.mrb[0].mxu0
        %v9699 = vadd.f32 %v9386, %v9698
        %v9700 = vpop.f32.mrb[0].mxu0
        %v9701 = vpop.f32.mrb[0].mxu0
        %v9702 = vadd.f32 %v9386, %v9701
        %v9703 = vpop.f32.mrb[0].mxu0
        %9704 = vdwg.mxu0
        %9705 = vmatprep.subr.bf16.mxu0 0
        %9706 = vmatpush1.bf16.msra.mxu0 %v9476
        %9707 = vmatprep.subr.bf16.mxu0 0
        %9708 = vmatpush1.bf16.msra.mxu0 %v9477
        %9709 = vmatprep.subr.bf16.mxu0 0
        %9710 = vmatpush1.bf16.msra.mxu0 0
        %9711 = vmatprep.subr.bf16.mxu0 0
        %9712 = vmatpush1.bf16.msra.mxu0 0
        %9713 = vmatprep.subr.bf16.mxu0 0
        %9714 = vmatpush1.bf16.msra.mxu0 0
        %9715 = vmatprep.subr.bf16.mxu0 0
        %9716 = vmatpush1.bf16.msra.mxu0 0
        %9717 = vmatprep.subr.bf16.mxu0 0
        %9718 = vmatpush1.bf16.msra.mxu0 0
        %9719 = vmatprep.subr.bf16.mxu0 0
        %9720 = vmatpush1.bf16.msra.mxu0 0
        %9721 = vmatprep.subr.bf16.mxu0 0
        %9722 = vmatpush1.bf16.msra.mxu0 0
        %9723 = vmatprep.subr.bf16.mxu0 0
        %9724 = vmatpush1.bf16.msra.mxu0 0
        %9725 = vmatprep.subr.bf16.mxu0 0
        %9726 = vmatpush1.bf16.msra.mxu0 0
        %9727 = vmatprep.subr.bf16.mxu0 0
        %9728 = vmatpush1.bf16.msra.mxu0 0
        %9729 = vmatprep.subr.bf16.mxu0 0
        %9730 = vmatpush1.bf16.msra.mxu0 0
        %9731 = vmatprep.subr.bf16.mxu0 0
        %9732 = vmatpush1.bf16.msra.mxu0 0
        %9733 = vmatprep.subr.bf16.mxu0 0
        %9734 = vmatpush1.bf16.msra.mxu0 0
        %9735 = vmatprep.subr.bf16.mxu0 0
        %9736 = vmatpush1.bf16.msra.mxu0 0
        %9737 = vmatprep.mubr.bf16.mxu0 0
        %9738 = vmatmul.mubr.bf16.gmra.mrb[0].mxu0 %v9497
        %v9739 = vpop.f32.mrb[0].mxu0
        %v9740 = vadd.f32 %v9579, %v9739
        %v9741 = vpop.f32.mrb[0].mxu0
        %v9742 = vpop.f32.mrb[0].mxu0
        %v9743 = vadd.f32 %v9582, %v9742
        %v9744 = vpop.f32.mrb[0].mxu0
        %9745 = vmatprep.mubr.bf16.mxu0 0
        %9746 = vmatmul.mubr.bf16.gmra.mrb[0].mxu0 %v9500
        %v9747 = vpop.f32.mrb[0].mxu0
        %v9748 = vadd.f32 %v9587, %v9747
        %v9749 = vpop.f32.mrb[0].mxu0
        %v9750 = vpop.f32.mrb[0].mxu0
        %v9751 = vadd.f32 %v9590, %v9750
        %v9752 = vpop.f32.mrb[0].mxu0
        %9753 = vmatprep.mubr.bf16.mxu0 0
        %9754 = vmatmul.mubr.bf16.gmra.mrb[0].mxu0 %v9503
        %v9755 = vpop.f32.mrb[0].mxu0
        %v9756 = vadd.f32 %v9595, %v9755
        %v9757 = vpop.f32.mrb[0].mxu0
        %v9758 = vpop.f32.mrb[0].mxu0
        %v9759 = vadd.f32 %v9598, %v9758
        %v9760 = vpop.f32.mrb[0].mxu0
        %9761 = vmatprep.mubr.bf16.mxu0 0
        %9762 = vmatmul.mubr.bf16.gmra.mrb[0].mxu0 %v9506
        %v9763 = vpop.f32.mrb[0].mxu0
        %v9764 = vadd.f32 %v9603, %v9763
        %v9765 = vpop.f32.mrb[0].mxu0
        %v9766 = vpop.f32.mrb[0].mxu0
        %v9767 = vadd.f32 %v9606, %v9766
        %v9768 = vpop.f32.mrb[0].mxu0
        %9769 = vmatprep.mubr.bf16.mxu0 0
        %9770 = vmatmul.mubr.bf16.gmra.mrb[0].mxu0 %v9509
        %v9771 = vpop.f32.mrb[0].mxu0
        %v9772 = vadd.f32 %v9611, %v9771
        %v9773 = vpop.f32.mrb[0].mxu0
        %v9774 = vpop.f32.mrb[0].mxu0
        %v9775 = vadd.f32 %v9614, %v9774
        %v9776 = vpop.f32.mrb[0].mxu0
        %9777 = vmatprep.mubr.bf16.mxu0 0
        %9778 = vmatmul.mubr.bf16.gmra.mrb[0].mxu0 %v9512
        %v9779 = vpop.f32.mrb[0].mxu0
        %v9780 = vadd.f32 %v9619, %v9779
        %v9781 = vpop.f32.mrb[0].mxu0
        %v9782 = vpop.f32.mrb[0].mxu0
        %v9783 = vadd.f32 %v9622, %v9782
        %v9784 = vpop.f32.mrb[0].mxu0
        %9785 = vmatprep.mubr.bf16.mxu0 0
        %9786 = vmatmul.mubr.bf16.gmra.mrb[0].mxu0 %v9515
        %v9787 = vpop.f32.mrb[0].mxu0
        %v9788 = vadd.f32 %v9627, %v9787
        %v9789 = vpop.f32.mrb[0].mxu0
        %v9790 = vpop.f32.mrb[0].mxu0
        %v9791 = vadd.f32 %v9630, %v9790
        %v9792 = vpop.f32.mrb[0].mxu0
        %9793 = vmatprep.mubr.bf16.mxu0 0
        %9794 = vmatmul.mubr.bf16.gmra.mrb[0].mxu0 %v9518
        %v9795 = vpop.f32.mrb[0].mxu0
        %v9796 = vadd.f32 %v9635, %v9795
        %v9797 = vpop.f32.mrb[0].mxu0
        %v9798 = vpop.f32.mrb[0].mxu0
        %v9799 = vadd.f32 %v9638, %v9798
        %v9800 = vpop.f32.mrb[0].mxu0
        %9801 = vmatprep.mubr.bf16.mxu0 0
        %9802 = vmatmul.mubr.bf16.gmra.mrb[0].mxu0 %v9521
        %v9803 = vpop.f32.mrb[0].mxu0
        %v9804 = vadd.f32 %v9643, %v9803
        %v9805 = vpop.f32.mrb[0].mxu0
        %v9806 = vpop.f32.mrb[0].mxu0
        %v9807 = vadd.f32 %v9646, %v9806
        %v9808 = vpop.f32.mrb[0].mxu0
        %9809 = vmatprep.mubr.bf16.mxu0 0
        %9810 = vmatmul.mubr.bf16.gmra.mrb[0].mxu0 %v9524
        %v9811 = vpop.f32.mrb[0].mxu0
        %v9812 = vadd.f32 %v9651, %v9811
        %v9813 = vpop.f32.mrb[0].mxu0
        %v9814 = vpop.f32.mrb[0].mxu0
        %v9815 = vadd.f32 %v9654, %v9814
        %v9816 = vpop.f32.mrb[0].mxu0
        %9817 = vmatprep.mubr.bf16.mxu0 0
        %9818 = vmatmul.mubr.bf16.gmra.mrb[0].mxu0 %v9527
        %v9819 = vpop.f32.mrb[0].mxu0
        %v9820 = vadd.f32 %v9659, %v9819
        %v9821 = vpop.f32.mrb[0].mxu0
        %v9822 = vpop.f32.mrb[0].mxu0
        %v9823 = vadd.f32 %v9662, %v9822
        %v9824 = vpop.f32.mrb[0].mxu0
        %9825 = vmatprep.mubr.bf16.mxu0 0
        %9826 = vmatmul.mubr.bf16.gmra.mrb[0].mxu0 %v9530
        %v9827 = vpop.f32.mrb[0].mxu0
        %v9828 = vadd.f32 %v9667, %v9827
        %v9829 = vpop.f32.mrb[0].mxu0
        %v9830 = vpop.f32.mrb[0].mxu0
        %v9831 = vadd.f32 %v9670, %v9830
        %v9832 = vpop.f32.mrb[0].mxu0
        %9833 = vmatprep.mubr.bf16.mxu0 0
        %9834 = vmatmul.mubr.bf16.gmra.mrb[0].mxu0 %v9533
        %v9835 = vpop.f32.mrb[0].mxu0
        %v9836 = vadd.f32 %v9675, %v9835
        %v9837 = vpop.f32.mrb[0].mxu0
        %v9838 = vpop.f32.mrb[0].mxu0
        %v9839 = vadd.f32 %v9678, %v9838
        %v9840 = vpop.f32.mrb[0].mxu0
        %9841 = vmatprep.mubr.bf16.mxu0 0
        %9842 = vmatmul.mubr.bf16.gmra.mrb[0].mxu0 %v9536
        %v9843 = vpop.f32.mrb[0].mxu0
        %v9844 = vadd.f32 %v9683, %v9843
        %v9845 = vpop.f32.mrb[0].mxu0
        %v9846 = vpop.f32.mrb[0].mxu0
        %v9847 = vadd.f32 %v9686, %v9846
        %v9848 = vpop.f32.mrb[0].mxu0
        %9849 = vmatprep.mubr.bf16.mxu0 0
        %9850 = vmatmul.mubr.bf16.gmra.mrb[0].mxu0 %v9539
        %v9851 = vpop.f32.mrb[0].mxu0
        %v9852 = vadd.f32 %v9691, %v9851
        %v9853 = vpop.f32.mrb[0].mxu0
        %v9854 = vpop.f32.mrb[0].mxu0
        %v9855 = vadd.f32 %v9694, %v9854
        %v9856 = vpop.f32.mrb[0].mxu0
        %9857 = vmatprep.mubr.bf16.mxu0 0
        %9858 = vmatmul.mubr.bf16.gmra.mrb[0].mxu0 %v9542
        %v9859 = vpop.f32.mrb[0].mxu0
        %v9860 = vadd.f32 %v9699, %v9859
        %v9861 = vpop.f32.mrb[0].mxu0
        %v9862 = vpop.f32.mrb[0].mxu0
        %v9863 = vadd.f32 %v9702, %v9862
        %v9864 = vpop.f32.mrb[0].mxu0
        %9865 = vdwg.mxu0
        %v9866 = vtanh.pop %v9740
        %v9867 = vtanh.pop %v9743
        %v9868 = vtanh.pop %v9748
        %v9869 = vtanh.pop %v9751
        %v9870 = vtanh.pop %v9756
        %v9871 = vtanh.pop %v9759
        %v9872 = vtanh.pop %v9764
        %v9873 = vtanh.pop %v9767
        %v9874 = vtanh.pop %v9772
        %v9875 = vtanh.pop %v9775
        %v9876 = vtanh.pop %v9780
        %v9877 = vtanh.pop %v9783
        %v9878 = vtanh.pop %v9788
        %v9879 = vtanh.pop %v9791
        %v9880 = vtanh.pop %v9796
        %v9881 = vtanh.pop %v9799
        %v9882 = vtanh.pop %v9804
        %v9883 = vtanh.pop %v9807
        %v9884 = vtanh.pop %v9812
        %v9885 = vtanh.pop %v9815
        %v9886 = vtanh.pop %v9820
        %v9887 = vtanh.pop %v9823
        %v9888 = vtanh.pop %v9828
        %v9889 = vtanh.pop %v9831
        %v9890 = vtanh.pop %v9836
        %v9891 = vtanh.pop %v9839
        %v9892 = vtanh.pop %v9844
        %v9893 = vtanh.pop %v9847
        %v9894 = vtanh.pop %v9852
        %v9895 = vtanh.pop %v9855
        %v9896 = vtanh.pop %v9860
        %v9897 = vtanh.pop %v9863
        %vm9898 = vcmask 97280
        %9899 = vst.msk [vmem:[%s316] sm:$0xff] %vm9898, %v9866
        %9900 = vst.msk [vmem:[%s316 + $0x8] sm:$0xff] %vm9898, %v9867
        %9901 = vst.msk [vmem:[%s316 + $0x10] sm:$0xff] %vm9898, %v9868
        %9902 = vst.msk [vmem:[%s316 + $0x18] sm:$0xff] %vm9898, %v9869
        %9903 = vst.msk [vmem:[%s316 + $0x20] sm:$0xff] %vm9898, %v9870
        %9904 = vst.msk [vmem:[%s316 + $0x28] sm:$0xff] %vm9898, %v9871
        %9905 = vst.msk [vmem:[%s316 + $0x30] sm:$0xff] %vm9898, %v9872
        %9906 = vst.msk [vmem:[%s316 + $0x38] sm:$0xff] %vm9898, %v9873
        %9907 = vst.msk [vmem:[%s316 + $0x40] sm:$0xff] %vm9898, %v9874
        %9908 = vst.msk [vmem:[%s316 + $0x48] sm:$0xff] %vm9898, %v9875
        %9909 = vst.msk [vmem:[%s316 + $0x50] sm:$0xff] %vm9898, %v9876
        %9910 = vst.msk [vmem:[%s316 + $0x58] sm:$0xff] %vm9898, %v9877
        %9911 = vst.msk [vmem:[%s316 + $0x60] sm:$0xff] %vm9898, %v9878
        %9912 = vst.msk [vmem:[%s316 + $0x68] sm:$0xff] %vm9898, %v9879
        %9913 = vst.msk [vmem:[%s316 + $0x70] sm:$0xff] %vm9898, %v9880
        %9914 = vst.msk [vmem:[%s316 + $0x78] sm:$0xff] %vm9898, %v9881
        %9915 = vst.msk [vmem:[%s316 + $0x80] sm:$0xff] %vm9898, %v9882
        %9916 = vst.msk [vmem:[%s316 + $0x88] sm:$0xff] %vm9898, %v9883
        %9917 = vst.msk [vmem:[%s316 + $0x90] sm:$0xff] %vm9898, %v9884
        %9918 = vst.msk [vmem:[%s316 + $0x98] sm:$0xff] %vm9898, %v9885
        %9919 = vst.msk [vmem:[%s316 + $0xa0] sm:$0xff] %vm9898, %v9886
        %9920 = vst.msk [vmem:[%s316 + $0xa8] sm:$0xff] %vm9898, %v9887
        %9921 = vst.msk [vmem:[%s316 + $0xb0] sm:$0xff] %vm9898, %v9888
        %9922 = vst.msk [vmem:[%s316 + $0xb8] sm:$0xff] %vm9898, %v9889
        %9923 = vst.msk [vmem:[%s316 + $0xc0] sm:$0xff] %vm9898, %v9890
        %9924 = vst.msk [vmem:[%s316 + $0xc8] sm:$0xff] %vm9898, %v9891
        %9925 = vst.msk [vmem:[%s316 + $0xd0] sm:$0xff] %vm9898, %v9892
        %9926 = vst.msk [vmem:[%s316 + $0xd8] sm:$0xff] %vm9898, %v9893
        %9927 = vst.msk [vmem:[%s316 + $0xe0] sm:$0xff] %vm9898, %v9894
        %9928 = vst.msk [vmem:[%s316 + $0xe8] sm:$0xff] %vm9898, %v9895
        %9929 = vst.msk [vmem:[%s316 + $0xf0] sm:$0xff] %vm9898, %v9896
        %9930 = vst.msk [vmem:[%s316 + $0xf8] sm:$0xff] %vm9898, %v9897
        %p9931 = scmp.lt.s32.totalorder %s20, 1
        %s9932 = scalar_select %p9931, %s20, 1
        %s9933 = smul.addr %s9932, 32
        %s9934 = smul.addr %s9933, 8
        %s9935 = scalar_lea.vmem %s7, %s9934
        // Predicated region
        $region61: #{espcn_forward.1} parent=47 // pred_check
          %p9936 = pneg %p190
        $region62: #{espcn_forward.1} parent=47 // pred_check_branch
          %9938 = sbr.rel (%p9936) target = $region64
        $region63: #{espcn_forward.1} parent=47 // pred_region
          _
        $region64: #{espcn_forward.1} parent=47 // pred_fallthru
          _
      $region48: #{espcn_forward.1} parent=5 // pred_fallthru
        _
      %p9939 = scmp.le.s32.totalorder 2, %s15
      // Predicated region
      $region65: #{espcn_forward.1} parent=5 // pred_check
        %p9940 = pneg %p9939
      $region66: #{espcn_forward.1} parent=5 // pred_check_branch
        %9942 = sbr.rel (%p9940) target = $region68
      $region67: #{espcn_forward.1} parent=5 // pred_region
        %s9943 = ssub.s32 %s15, 2
        // Predicated region
        $region69: #{espcn_forward.1} parent=67 // pred_check
          %p9944 = pneg %p196
        $region70: #{espcn_forward.1} parent=67 // pred_check_branch
          %9946 = sbr.rel (%p9944) target = $region72
        $region71: #{espcn_forward.1} parent=67 // pred_region
          %p9947 = scmp.lt.s32.totalorder %s21, 1
          %s9948 = scalar_select %p9947, %s21, 1
          %s9949 = smul.addr %s9948, 32
          %s9950 = smul.addr %s9949, 8
          %s9951 = scalar_lea.vmem %s7, %s9950
        $region72: #{espcn_forward.1} parent=67 // pred_fallthru
          _
      $region68: #{espcn_forward.1} parent=5 // pred_fallthru
        _
    $region6: #{espcn_forward.1} parent=1 // loop_footer
      %s19 = sadd.s32 1, %s15
    $region7: #{espcn_forward.1} parent=1 // loop_footer_branch
      %14 = sbr.rel target = $region3
    $region8: #{espcn_forward.1} parent=1 // loop_exit
      _
    %9952 = vsyncpa [#allocation9], 1
    %s9953 = scalar_lea.sflag [#allocation9], 1
    %9954 = vsyncpa %s9953, 1
    %9955 = vsyncpa [#allocation11], 1

</llo_original>
